<compile_context>
chip_gen: v5e
topology: v5e:2x2
jax: 0.10.0
libtpu: 0.0.40
codegen_flags: <defaults>
</compile_context>

<pallas_src>
import jax
import jax.numpy as jnp
from jax.experimental import pallas as pl
from jax.experimental.pallas import tpu as pltpu

TM_MAX = 512                    # rows (M) per tile
TK_MAX = 1024                   # contraction tile; K <= TK_MAX stays one block
VMEM_LIMIT = 32 * 1024 * 1024   # safe scoped-VMEM budget on v5e/v6e/v7x


def _round_up(x, m):
    return (x + m - 1) // m * m


def _tile(dim, tmax):
    """Full-extent block when it fits, else tmax-sized blocks over a padded dim."""
    if dim <= tmax:
        return dim, dim
    return tmax, _round_up(dim, tmax)


# ----------------------------- Pallas kernels ------------------------------

def gemm_stats_kernel(p_ref, w_ref, y_ref, s1_ref, s2_ref, acc_ref):
    """bf16 patches @ bf16 weights, f32-accumulated over the K grid axis.

    At the last K step the tile result is stored (bf16) and the per-tile
    channel sum / sum-of-squares for BatchNorm are emitted (f32).
    """
    k = pl.program_id(1)

    @pl.when(k == 0)
    def _():
        acc_ref[...] = jnp.zeros_like(acc_ref)

    acc_ref[...] += jnp.dot(p_ref[...], w_ref[...],
                            preferred_element_type=jnp.float32)

    @pl.when(k == pl.num_programs(1) - 1)
    def _():
        y = acc_ref[...]
        y_ref[...] = y.astype(y_ref.dtype)
        s1_ref[...] = jnp.sum(y, axis=0, keepdims=True).reshape(s1_ref.shape)
        s2_ref[...] = jnp.sum(y * y, axis=0, keepdims=True).reshape(s2_ref.shape)


def gemm_bias_tanh_kernel(p_ref, w_ref, b_ref, o_ref, acc_ref):
    """Final layer: GEMM with fused bias add + tanh epilogue."""
    k = pl.program_id(1)

    @pl.when(k == 0)
    def _():
        acc_ref[...] = jnp.zeros_like(acc_ref)

    acc_ref[...] += jnp.dot(p_ref[...], w_ref[...],
                            preferred_element_type=jnp.float32)

    @pl.when(k == pl.num_programs(1) - 1)
    def _():
        o_ref[...] = jnp.tanh(acc_ref[...] + b_ref[...]).astype(o_ref.dtype)


def bn_relu_kernel(y_ref, scale_ref, shift_ref, o_ref):
    """Fused BatchNorm (precomputed scale/shift, f32 math) + ReLU, bf16 out."""
    y = y_ref[...].astype(jnp.float32)
    o_ref[...] = jnp.maximum(y * scale_ref[...] + shift_ref[...],
                             0.0).astype(o_ref.dtype)


# ----------------------------- Pallas wrappers -----------------------------

def pallas_gemm_bn_stats(patches, wmat):
    """y = patches @ wmat (bf16 in, f32 acc) + per-M-tile channel stats."""
    M, K = patches.shape
    _, C = wmat.shape
    tm, Mp = _tile(M, TM_MAX)
    tk, Kp = _tile(K, TK_MAX)
    patches = jnp.pad(patches, ((0, Mp - M), (0, Kp - K)))   # no-op at test shapes
    wmat = jnp.pad(wmat, ((0, Kp - K), (0, 0)))
    nm, nk = Mp // tm, Kp // tk

    y, s1, s2 = pl.pallas_call(
        gemm_stats_kernel,
        out_shape=(jax.ShapeDtypeStruct((Mp, C), jnp.bfloat16),
                   jax.ShapeDtypeStruct((nm, 1, C), jnp.float32),
                   jax.ShapeDtypeStruct((nm, 1, C), jnp.float32)),
        grid_spec=pltpu.PrefetchScalarGridSpec(
            num_scalar_prefetch=0,
            grid=(nm, nk),
            in_specs=[pl.BlockSpec((tm, tk), lambda i, k: (i, k)),
                      pl.BlockSpec((tk, C), lambda i, k: (k, 0))],
            out_specs=[pl.BlockSpec((tm, C), lambda i, k: (i, 0)),
                       pl.BlockSpec((1, 1, C), lambda i, k: (i, 0, 0)),
                       pl.BlockSpec((1, 1, C), lambda i, k: (i, 0, 0))],
            scratch_shapes=[pltpu.VMEM((tm, C), jnp.float32)]),
        compiler_params=pltpu.CompilerParams(
            dimension_semantics=("parallel", "arbitrary"),
            vmem_limit_bytes=VMEM_LIMIT),
    )(patches, wmat)
    return y, s1, s2


def pallas_bn_relu(y, scale, shift):
    Mp, C = y.shape
    tm, _ = _tile(Mp, TM_MAX)
    return pl.pallas_call(
        bn_relu_kernel,
        out_shape=jax.ShapeDtypeStruct((Mp, C), jnp.bfloat16),
        grid_spec=pltpu.PrefetchScalarGridSpec(
            num_scalar_prefetch=0,
            grid=(Mp // tm,),
            in_specs=[pl.BlockSpec((tm, C), lambda i: (i, 0)),
                      pl.BlockSpec((1, C), lambda i: (0, 0)),
                      pl.BlockSpec((1, C), lambda i: (0, 0))],
            out_specs=pl.BlockSpec((tm, C), lambda i: (i, 0))),
        compiler_params=pltpu.CompilerParams(
            dimension_semantics=("parallel",),
            vmem_limit_bytes=VMEM_LIMIT),
    )(y, scale.reshape(1, C), shift.reshape(1, C))


def pallas_gemm_bias_tanh(patches, wmat, bias):
    M, K = patches.shape
    _, C = wmat.shape
    tm, Mp = _tile(M, TM_MAX)
    tk, Kp = _tile(K, TK_MAX)
    patches = jnp.pad(patches, ((0, Mp - M), (0, Kp - K)))
    wmat = jnp.pad(wmat, ((0, Kp - K), (0, 0)))
    nm, nk = Mp // tm, Kp // tk

    return pl.pallas_call(
        gemm_bias_tanh_kernel,
        out_shape=jax.ShapeDtypeStruct((Mp, C), jnp.float32),
        grid_spec=pltpu.PrefetchScalarGridSpec(
            num_scalar_prefetch=0,
            grid=(nm, nk),
            in_specs=[pl.BlockSpec((tm, tk), lambda i, k: (i, k)),
                      pl.BlockSpec((tk, C), lambda i, k: (k, 0)),
                      pl.BlockSpec((1, C), lambda i, k: (0, 0))],
            out_specs=pl.BlockSpec((tm, C), lambda i, k: (i, 0)),
            scratch_shapes=[pltpu.VMEM((tm, C), jnp.float32)]),
        compiler_params=pltpu.CompilerParams(
            dimension_semantics=("parallel", "arbitrary"),
            vmem_limit_bytes=VMEM_LIMIT),
    )(patches, wmat, bias.reshape(1, C))


# ------------------------------- JAX glue -----------------------------------

def im2col(x_nhwc, kw, pad):
    """Dense stride-1 im2col with window kw and symmetric zero pad."""
    N, H, W, C = x_nhwc.shape
    if kw == 1 and pad == 0:
        return x_nhwc.reshape(N * H * W, C)
    xp = jnp.pad(x_nhwc, ((0, 0), (pad, pad), (pad, pad), (0, 0)))
    cols = [xp[:, a:a + H, b:b + W, :] for a in range(kw) for b in range(kw)]
    patches = jnp.stack(cols, axis=3)              # (N, H, W, kw*kw, C)
    return patches.reshape(N * H * W, kw * kw * C)


def depth_to_space(y2d, N, H, W, r, Cout):
    """(N*H*W, r*r*Cout) with channel index (ph*r+pw)*Cout+cout -> (N, H*r, W*r, Cout)."""
    y = y2d.reshape(N, H, W, r, r, Cout)
    y = jnp.transpose(y, (0, 1, 3, 2, 4, 5))
    return y.reshape(N, H * r, W * r, Cout)


def convt_first_to_gemm(w):
    """ConvTranspose2d(k=4, s=1, p=0) on a 1x1 map: out[:,ph,pw,:] = x @ w[:,:,ph,pw]."""
    Cin, Cout, kh, kw = w.shape
    return jnp.transpose(w, (0, 2, 3, 1)).reshape(Cin, kh * kw * Cout)


# phase -> ((window_index, conv_tap_di), ...) for the k=4, s=2, p=1 decomposition.
_S2_TAPS = {0: ((0, 0), (1, 2)), 1: ((1, 1), (2, 3))}


def convt_s2_to_gemm(w):
    """ConvTranspose2d(k=4, s=2, p=1) as 4 sub-pixel phases, each a 3x3 stride-1
    conv over the input, folded into one GEMM matrix (9*Cin, 4*Cout)."""
    Cin, Cout = w.shape[0], w.shape[1]
    w_conv = jnp.transpose(w[:, :, ::-1, ::-1], (2, 3, 0, 1))  # (di, dj, Cin, Cout)
    wfull = jnp.zeros((3, 3, Cin, 2, 2, Cout), w.dtype)
    for ph in (0, 1):
        for pw_ in (0, 1):
            for ai, di in _S2_TAPS[ph]:
                for bi, dj in _S2_TAPS[pw_]:
                    wfull = wfull.at[ai, bi, :, ph, pw_, :].set(w_conv[di, dj])
    return wfull.reshape(9 * Cin, 4 * Cout)


def deconv_bn_relu_layer(x_nhwc, w, gamma, beta, first, eps=1e-5):
    N, H, W, _ = x_nhwc.shape
    Cout = w.shape[1]
    if first:
        assert H == 1 and W == 1           # DCGAN first block: 1x1 -> 4x4
        kw, pad, r = 1, 0, 4
        wmat = convt_first_to_gemm(w)
    else:
        kw, pad, r = 3, 1, 2
        wmat = convt_s2_to_gemm(w)
    P = r * r
    M = N * H * W

    patches = im2col(x_nhwc, kw, pad).astype(jnp.bfloat16)
    y, s1, s2 = pallas_gemm_bn_stats(patches, wmat.astype(jnp.bfloat16))

    # Training-mode BatchNorm2d: biased batch stats over N*Hout*Wout = M*P
    # elements per channel.  Fold the per-M-tile partials and the r*r phases.
    cnt = float(M * P)
    s1c = s1.reshape(-1, P, Cout).sum(axis=(0, 1))
    s2c = s2.reshape(-1, P, Cout).sum(axis=(0, 1))
    mean = s1c / cnt
    var = jnp.maximum(s2c / cnt - mean * mean, 0.0)     # guard tiny negative var
    scale = gamma / jnp.sqrt(var + eps)
    shift = beta - mean * scale

    # TODO(synk): the BN-normalized activation still bounces once through HBM
    # (bf16); a single-pass fusion needs a 2-pass/VMEM-resident scheme because
    # scale/shift depend on stats over all M tiles.
    out = pallas_bn_relu(y, jnp.tile(scale, P), jnp.tile(shift, P))
    return depth_to_space(out[:M], N, H, W, r, Cout)


def deconv_bias_tanh_layer(x_nhwc, w, b):
    N, H, W, _ = x_nhwc.shape
    Cout = w.shape[1]
    M = N * H * W
    patches = im2col(x_nhwc, 3, 1).astype(jnp.bfloat16)
    wmat = convt_s2_to_gemm(w).astype(jnp.bfloat16)
    out = pallas_gemm_bias_tanh(patches, wmat,
                                jnp.tile(b.astype(jnp.float32), 4))
    return depth_to_space(out[:M], N, H, W, 2, Cout)


def generator_forward(x_nchw, params):
    x = jnp.transpose(x_nchw, (0, 2, 3, 1))                # NCHW -> NHWC
    for idx, (w, gamma, beta) in enumerate(params["blocks"]):
        x = deconv_bn_relu_layer(x, w, gamma, beta, first=(idx == 0))
    x = deconv_bias_tanh_layer(x, params["final_w"], params["final_b"])
    return jnp.transpose(x, (0, 3, 1, 2)).astype(jnp.float32)   # NHWC -> NCHW


def init_generator_params(key, z_dim, chan_img, feat_g):
    # Channel plan of the reference Generator; all kernels are 4x4.
    # Block 0: stride 1, pad 0 (1x1 -> 4x4); remaining blocks: stride 2, pad 1.
    chans = [z_dim, feat_g * 16, feat_g * 8, feat_g * 4, feat_g * 2]
    keys = jax.random.split(key, 3 * (len(chans) - 1) + 2)
    blocks, ki = [], 0
    for cin, cout in zip(chans[:-1], chans[1:]):
        w = 0.02 * jax.random.normal(keys[ki], (cin, cout, 4, 4), jnp.float32); ki += 1
        gamma = 1.0 + 0.1 * jax.random.normal(keys[ki], (cout,), jnp.float32); ki += 1
        beta = 0.1 * jax.random.normal(keys[ki], (cout,), jnp.float32); ki += 1
        blocks.append((w, gamma, beta))
    wf = 0.02 * jax.random.normal(keys[ki], (feat_g * 2, chan_img, 4, 4), jnp.float32); ki += 1
    bf = 0.02 * jax.random.normal(keys[ki], (chan_img,), jnp.float32)
    return {"blocks": blocks, "final_w": wf, "final_b": bf}


if __name__ == "__main__":
    key = jax.random.PRNGKey(0)
    z_dim, chan_img, feat_g, batch = 16, 3, 4, 2
    kp, kx = jax.random.split(key)
    params = init_generator_params(kp, z_dim, chan_img, feat_g)
    x = jax.random.normal(kx, (batch, z_dim, 1, 1), jnp.float32)   # (N, z_dim, 1, 1)

    out = jax.jit(generator_forward)(x, params)
    out = jax.block_until_ready(out)

    assert out.shape == (batch, chan_img, 64, 64), out.shape
    assert bool(jnp.all(jnp.isfinite(out)))
    assert bool(jnp.all(jnp.abs(out) <= 1.0))   # tanh output range
    print("KERNEL_OK")
</pallas_src>

<mosaic_0001>
module attributes {stable_mosaic.version = 11 : i64} {
  func.func @gemm_stats_kernel(%arg0: i32, %arg1: i32, %arg2: memref<2x16xbf16, #tpu.memory_space<vmem>>, %arg3: memref<16x1024xbf16, #tpu.memory_space<vmem>>, %arg4: memref<2x1024xbf16, #tpu.memory_space<vmem>>, %arg5: memref<1x1x1024xf32, #tpu.memory_space<vmem>>, %arg6: memref<1x1x1024xf32, #tpu.memory_space<vmem>>, %arg7: memref<2x1024xf32, #tpu.memory_space<vmem>>) attributes {dimension_semantics = [#tpu.dimension_semantics<parallel>, #tpu.dimension_semantics<arbitrary>], iteration_bounds = array<i64: 1, 1>, scalar_prefetch = 0 : i64, scratch_operands = 1 : i64, tpu.core_type = #tpu.core_type<tc>, window_params = [{transform_indices = @transform_0, window_bounds = array<i64: 2, 16>}, {transform_indices = @transform_1, window_bounds = array<i64: 16, 1024>}, {transform_indices = @transform_2, window_bounds = array<i64: 2, 1024>}, {transform_indices = @transform_3, window_bounds = array<i64: 1, 1, 1024>}, {transform_indices = @transform_4, window_bounds = array<i64: 1, 1, 1024>}]} {
    %c0_i32 = arith.constant 0 : i32
    %0 = arith.cmpi eq, %arg1, %c0_i32 : i32
    %1 = arith.extui %0 : i1 to i32
    %c0_i32_0 = arith.constant 0 : i32
    %2 = arith.cmpi ne, %1, %c0_i32_0 : i32
    scf.if %2 {
      %cst_10 = arith.constant 0.000000e+00 : f32
      %12 = vector.broadcast %cst_10 : f32 to vector<2x1024xf32>
      %c0_11 = arith.constant 0 : index
      %c0_12 = arith.constant 0 : index
      %13 = vector.load %arg7[%c0_11, %c0_12] : memref<2x1024xf32, #tpu.memory_space<vmem>>, vector<2x1024xf32>
      tpu.vector_store %arg7[%c0_11, %c0_12], %12 {strides = array<i32>} : memref<2x1024xf32, #tpu.memory_space<vmem>>, vector<2x1024xf32>,
    } else {
    }
    %c0 = arith.constant 0 : index
    %c0_1 = arith.constant 0 : index
    %3 = vector.load %arg7[%c0, %c0_1] : memref<2x1024xf32, #tpu.memory_space<vmem>>, vector<2x1024xf32>
    %c0_2 = arith.constant 0 : index
    %c0_3 = arith.constant 0 : index
    %4 = vector.load %arg2[%c0_2, %c0_3] : memref<2x16xbf16, #tpu.memory_space<vmem>>, vector<2x16xbf16>
    %c0_4 = arith.constant 0 : index
    %c0_5 = arith.constant 0 : index
    %5 = vector.load %arg3[%c0_4, %c0_5] : memref<16x1024xbf16, #tpu.memory_space<vmem>>, vector<16x1024xbf16>
    %cst = arith.constant dense<0.000000e+00> : vector<2x1024xf32>
    %6 = tpu.matmul %4, %5, %cst {dimension_numbers = #tpu.dot_dimension_numbers<[1], [0], [0], [1], [0, 0, 1, 1], [], []>} : vector<2x16xbf16>, vector<16x1024xbf16>, vector<2x1024xf32> -> vector<2x1024xf32>
    %7 = arith.addf %3, %6 : vector<2x1024xf32>
    %c0_6 = arith.constant 0 : index
    %c0_7 = arith.constant 0 : index
    %8 = vector.load %arg7[%c0_6, %c0_7] : memref<2x1024xf32, #tpu.memory_space<vmem>>, vector<2x1024xf32>
    tpu.vector_store %arg7[%c0_6, %c0_7], %7 {strides = array<i32>} : memref<2x1024xf32, #tpu.memory_space<vmem>>, vector<2x1024xf32>,
    %c0_i32_8 = arith.constant 0 : i32
    %9 = arith.cmpi eq, %arg1, %c0_i32_8 : i32
    %10 = arith.extui %9 : i1 to i32
    %c0_i32_9 = arith.constant 0 : i32
    %11 = arith.cmpi ne, %10, %c0_i32_9 : i32
    scf.if %11 {
      %c0_10 = arith.constant 0 : index
      %c0_11 = arith.constant 0 : index
      %12 = vector.load %arg7[%c0_10, %c0_11] : memref<2x1024xf32, #tpu.memory_space<vmem>>, vector<2x1024xf32>
      %13 = arith.truncf %12 : vector<2x1024xf32> to vector<2x1024xbf16>
      %c0_12 = arith.constant 0 : index
      %c0_13 = arith.constant 0 : index
      %14 = vector.load %arg4[%c0_12, %c0_13] : memref<2x1024xbf16, #tpu.memory_space<vmem>>, vector<2x1024xbf16>
      tpu.vector_store %arg4[%c0_12, %c0_13], %13 {strides = array<i32>} : memref<2x1024xbf16, #tpu.memory_space<vmem>>, vector<2x1024xbf16>,
      %cst_14 = arith.constant dense<0.000000e+00> : vector<1024xf32>
      %15 = vector.multi_reduction <add>, %12, %cst_14 [0] : vector<2x1024xf32> to vector<1024xf32>
      %16 = vector.shape_cast %15 : vector<1024xf32> to vector<1x1024xf32>
      %17 = vector.shape_cast %16 : vector<1x1024xf32> to vector<1x1x1024xf32>
      %c0_15 = arith.constant 0 : index
      %c0_16 = arith.constant 0 : index
      %c0_17 = arith.constant 0 : index
      %18 = vector.load %arg5[%c0_15, %c0_16, %c0_17] : memref<1x1x1024xf32, #tpu.memory_space<vmem>>, vector<1x1x1024xf32>
      tpu.vector_store %arg5[%c0_15, %c0_16, %c0_17], %17 {strides = array<i32>} : memref<1x1x1024xf32, #tpu.memory_space<vmem>>, vector<1x1x1024xf32>,
      %19 = arith.mulf %12, %12 : vector<2x1024xf32>
      %cst_18 = arith.constant dense<0.000000e+00> : vector<1024xf32>
      %20 = vector.multi_reduction <add>, %19, %cst_18 [0] : vector<2x1024xf32> to vector<1024xf32>
      %21 = vector.shape_cast %20 : vector<1024xf32> to vector<1x1024xf32>
      %22 = vector.shape_cast %21 : vector<1x1024xf32> to vector<1x1x1024xf32>
      %c0_19 = arith.constant 0 : index
      %c0_20 = arith.constant 0 : index
      %c0_21 = arith.constant 0 : index
      %23 = vector.load %arg6[%c0_19, %c0_20, %c0_21] : memref<1x1x1024xf32, #tpu.memory_space<vmem>>, vector<1x1x1024xf32>
      tpu.vector_store %arg6[%c0_19, %c0_20, %c0_21], %22 {strides = array<i32>} : memref<1x1x1024xf32, #tpu.memory_space<vmem>>, vector<1x1x1024xf32>,
    } else {
    }
    return
  }
  func.func @transform_0(%arg0: i32, %arg1: i32) -> (i32, i32) {
    %c0_i32 = arith.constant 0 : i32
    return %arg0, %arg1 : i32, i32
  }
  func.func @transform_1(%arg0: i32, %arg1: i32) -> (i32, i32) {
    %c0_i32 = arith.constant 0 : i32
    %c0_i32_0 = arith.constant 0 : i32
    return %arg1, %c0_i32 : i32, i32
  }
  func.func @transform_2(%arg0: i32, %arg1: i32) -> (i32, i32) {
    %c0_i32 = arith.constant 0 : i32
    %c0_i32_0 = arith.constant 0 : i32
    return %arg0, %c0_i32 : i32, i32
  }
  func.func @transform_3(%arg0: i32, %arg1: i32) -> (i32, i32, i32) {
    %c0_i32 = arith.constant 0 : i32
    %c0_i32_0 = arith.constant 0 : i32
    %c0_i32_1 = arith.constant 0 : i32
    return %arg0, %c0_i32, %c0_i32_0 : i32, i32, i32
  }
  func.func @transform_4(%arg0: i32, %arg1: i32) -> (i32, i32, i32) {
    %c0_i32 = arith.constant 0 : i32
    %c0_i32_0 = arith.constant 0 : i32
    %c0_i32_1 = arith.constant 0 : i32
    return %arg0, %c0_i32, %c0_i32_0 : i32, i32, i32
  }
}

module attributes {stable_mosaic.version = 11 : i64} {
  func.func @bn_relu_kernel(%arg0: i32, %arg1: memref<2x1024xbf16, #tpu.memory_space<vmem>>, %arg2: memref<1x1024xf32, #tpu.memory_space<vmem>>, %arg3: memref<1x1024xf32, #tpu.memory_space<vmem>>, %arg4: memref<2x1024xbf16, #tpu.memory_space<vmem>>) attributes {dimension_semantics = [#tpu.dimension_semantics<parallel>], iteration_bounds = array<i64: 1>, scalar_prefetch = 0 : i64, scratch_operands = 0 : i64, tpu.core_type = #tpu.core_type<tc>, window_params = [{transform_indices = @transform_0, window_bounds = array<i64: 2, 1024>}, {pipeline_mode = #tpu.pipeline_mode<synchronous>, transform_indices = @transform_1, window_bounds = array<i64: 1, 1024>}, {pipeline_mode = #tpu.pipeline_mode<synchronous>, transform_indices = @transform_2, window_bounds = array<i64: 1, 1024>}, {transform_indices = @transform_3, window_bounds = array<i64: 2, 1024>}]} {
    %c0 = arith.constant 0 : index
    %c0_0 = arith.constant 0 : index
    %0 = vector.load %arg1[%c0, %c0_0] : memref<2x1024xbf16, #tpu.memory_space<vmem>>, vector<2x1024xbf16>
    %1 = arith.extf %0 : vector<2x1024xbf16> to vector<2x1024xf32>
    %c0_1 = arith.constant 0 : index
    %c0_2 = arith.constant 0 : index
    %2 = vector.load %arg2[%c0_1, %c0_2] : memref<1x1024xf32, #tpu.memory_space<vmem>>, vector<1x1024xf32>
    %3 = vector.broadcast %2 : vector<1x1024xf32> to vector<2x1024xf32>
    %4 = arith.mulf %1, %3 : vector<2x1024xf32>
    %c0_3 = arith.constant 0 : index
    %c0_4 = arith.constant 0 : index
    %5 = vector.load %arg3[%c0_3, %c0_4] : memref<1x1024xf32, #tpu.memory_space<vmem>>, vector<1x1024xf32>
    %6 = vector.broadcast %5 : vector<1x1024xf32> to vector<2x1024xf32>
    %7 = arith.addf %4, %6 : vector<2x1024xf32>
    %cst = arith.constant 0.000000e+00 : f32
    %8 = vector.broadcast %cst : f32 to vector<2x1024xf32>
    %9 = arith.maximumf %7, %8 : vector<2x1024xf32>
    %10 = arith.truncf %9 : vector<2x1024xf32> to vector<2x1024xbf16>
    %c0_5 = arith.constant 0 : index
    %c0_6 = arith.constant 0 : index
    %11 = vector.load %arg4[%c0_5, %c0_6] : memref<2x1024xbf16, #tpu.memory_space<vmem>>, vector<2x1024xbf16>
    tpu.vector_store %arg4[%c0_5, %c0_6], %10 {strides = array<i32>} : memref<2x1024xbf16, #tpu.memory_space<vmem>>, vector<2x1024xbf16>,
    return
  }
  func.func @transform_0(%arg0: i32) -> (i32, i32) {
    %c0_i32 = arith.constant 0 : i32
    %c0_i32_0 = arith.constant 0 : i32
    return %arg0, %c0_i32 : i32, i32
  }
  func.func @transform_1(%arg0: i32) -> (i32, i32) {
    %c0_i32 = arith.constant 0 : i32
    %c0_i32_0 = arith.constant 0 : i32
    %c0_i32_1 = arith.constant 0 : i32
    return %c0_i32, %c0_i32_0 : i32, i32
  }
  func.func @transform_2(%arg0: i32) -> (i32, i32) {
    %c0_i32 = arith.constant 0 : i32
    %c0_i32_0 = arith.constant 0 : i32
    %c0_i32_1 = arith.constant 0 : i32
    return %c0_i32, %c0_i32_0 : i32, i32
  }
  func.func @transform_3(%arg0: i32) -> (i32, i32) {
    %c0_i32 = arith.constant 0 : i32
    %c0_i32_0 = arith.constant 0 : i32
    return %arg0, %c0_i32 : i32, i32
  }
}

module attributes {stable_mosaic.version = 11 : i64} {
  func.func @gemm_stats_kernel(%arg0: i32, %arg1: i32, %arg2: memref<32x576xbf16, #tpu.memory_space<vmem>>, %arg3: memref<576x128xbf16, #tpu.memory_space<vmem>>, %arg4: memref<32x128xbf16, #tpu.memory_space<vmem>>, %arg5: memref<1x1x128xf32, #tpu.memory_space<vmem>>, %arg6: memref<1x1x128xf32, #tpu.memory_space<vmem>>, %arg7: memref<32x128xf32, #tpu.memory_space<vmem>>) attributes {dimension_semantics = [#tpu.dimension_semantics<parallel>, #tpu.dimension_semantics<arbitrary>], iteration_bounds = array<i64: 1, 1>, scalar_prefetch = 0 : i64, scratch_operands = 1 : i64, tpu.core_type = #tpu.core_type<tc>, window_params = [{transform_indices = @transform_0, window_bounds = array<i64: 32, 576>}, {transform_indices = @transform_1, window_bounds = array<i64: 576, 128>}, {transform_indices = @transform_2, window_bounds = array<i64: 32, 128>}, {transform_indices = @transform_3, window_bounds = array<i64: 1, 1, 128>}, {transform_indices = @transform_4, window_bounds = array<i64: 1, 1, 128>}]} {
    %c0_i32 = arith.constant 0 : i32
    %0 = arith.cmpi eq, %arg1, %c0_i32 : i32
    %1 = arith.extui %0 : i1 to i32
    %c0_i32_0 = arith.constant 0 : i32
    %2 = arith.cmpi ne, %1, %c0_i32_0 : i32
    scf.if %2 {
      %cst_10 = arith.constant 0.000000e+00 : f32
      %12 = vector.broadcast %cst_10 : f32 to vector<32x128xf32>
      %c0_11 = arith.constant 0 : index
      %c0_12 = arith.constant 0 : index
      %13 = vector.load %arg7[%c0_11, %c0_12] : memref<32x128xf32, #tpu.memory_space<vmem>>, vector<32x128xf32>
      tpu.vector_store %arg7[%c0_11, %c0_12], %12 {strides = array<i32>} : memref<32x128xf32, #tpu.memory_space<vmem>>, vector<32x128xf32>,
    } else {
    }
    %c0 = arith.constant 0 : index
    %c0_1 = arith.constant 0 : index
    %3 = vector.load %arg7[%c0, %c0_1] : memref<32x128xf32, #tpu.memory_space<vmem>>, vector<32x128xf32>
    %c0_2 = arith.constant 0 : index
    %c0_3 = arith.constant 0 : index
    %4 = vector.load %arg2[%c0_2, %c0_3] : memref<32x576xbf16, #tpu.memory_space<vmem>>, vector<32x576xbf16>
    %c0_4 = arith.constant 0 : index
    %c0_5 = arith.constant 0 : index
    %5 = vector.load %arg3[%c0_4, %c0_5] : memref<576x128xbf16, #tpu.memory_space<vmem>>, vector<576x128xbf16>
    %cst = arith.constant dense<0.000000e+00> : vector<32x128xf32>
    %6 = tpu.matmul %4, %5, %cst {dimension_numbers = #tpu.dot_dimension_numbers<[1], [0], [0], [1], [0, 0, 1, 1], [], []>} : vector<32x576xbf16>, vector<576x128xbf16>, vector<32x128xf32> -> vector<32x128xf32>
    %7 = arith.addf %3, %6 : vector<32x128xf32>
    %c0_6 = arith.constant 0 : index
    %c0_7 = arith.constant 0 : index
    %8 = vector.load %arg7[%c0_6, %c0_7] : memref<32x128xf32, #tpu.memory_space<vmem>>, vector<32x128xf32>
    tpu.vector_store %arg7[%c0_6, %c0_7], %7 {strides = array<i32>} : memref<32x128xf32, #tpu.memory_space<vmem>>, vector<32x128xf32>,
    %c0_i32_8 = arith.constant 0 : i32
    %9 = arith.cmpi eq, %arg1, %c0_i32_8 : i32
    %10 = arith.extui %9 : i1 to i32
    %c0_i32_9 = arith.constant 0 : i32
    %11 = arith.cmpi ne, %10, %c0_i32_9 : i32
    scf.if %11 {
      %c0_10 = arith.constant 0 : index
      %c0_11 = arith.constant 0 : index
      %12 = vector.load %arg7[%c0_10, %c0_11] : memref<32x128xf32, #tpu.memory_space<vmem>>, vector<32x128xf32>
      %13 = arith.truncf %12 : vector<32x128xf32> to vector<32x128xbf16>
      %c0_12 = arith.constant 0 : index
      %c0_13 = arith.constant 0 : index
      %14 = vector.load %arg4[%c0_12, %c0_13] : memref<32x128xbf16, #tpu.memory_space<vmem>>, vector<32x128xbf16>
      tpu.vector_store %arg4[%c0_12, %c0_13], %13 {strides = array<i32>} : memref<32x128xbf16, #tpu.memory_space<vmem>>, vector<32x128xbf16>,
      %cst_14 = arith.constant dense<0.000000e+00> : vector<128xf32>
      %15 = vector.multi_reduction <add>, %12, %cst_14 [0] : vector<32x128xf32> to vector<128xf32>
      %16 = vector.shape_cast %15 : vector<128xf32> to vector<1x128xf32>
      %17 = vector.shape_cast %16 : vector<1x128xf32> to vector<1x1x128xf32>
      %c0_15 = arith.constant 0 : index
      %c0_16 = arith.constant 0 : index
      %c0_17 = arith.constant 0 : index
      %18 = vector.load %arg5[%c0_15, %c0_16, %c0_17] : memref<1x1x128xf32, #tpu.memory_space<vmem>>, vector<1x1x128xf32>
      tpu.vector_store %arg5[%c0_15, %c0_16, %c0_17], %17 {strides = array<i32>} : memref<1x1x128xf32, #tpu.memory_space<vmem>>, vector<1x1x128xf32>,
      %19 = arith.mulf %12, %12 : vector<32x128xf32>
      %cst_18 = arith.constant dense<0.000000e+00> : vector<128xf32>
      %20 = vector.multi_reduction <add>, %19, %cst_18 [0] : vector<32x128xf32> to vector<128xf32>
      %21 = vector.shape_cast %20 : vector<128xf32> to vector<1x128xf32>
      %22 = vector.shape_cast %21 : vector<1x128xf32> to vector<1x1x128xf32>
      %c0_19 = arith.constant 0 : index
      %c0_20 = arith.constant 0 : index
      %c0_21 = arith.constant 0 : index
      %23 = vector.load %arg6[%c0_19, %c0_20, %c0_21] : memref<1x1x128xf32, #tpu.memory_space<vmem>>, vector<1x1x128xf32>
      tpu.vector_store %arg6[%c0_19, %c0_20, %c0_21], %22 {strides = array<i32>} : memref<1x1x128xf32, #tpu.memory_space<vmem>>, vector<1x1x128xf32>,
    } else {
    }
    return
  }
  func.func @transform_0(%arg0: i32, %arg1: i32) -> (i32, i32) {
    %c0_i32 = arith.constant 0 : i32
    return %arg0, %arg1 : i32, i32
  }
  func.func @transform_1(%arg0: i32, %arg1: i32) -> (i32, i32) {
    %c0_i32 = arith.constant 0 : i32
    %c0_i32_0 = arith.constant 0 : i32
    return %arg1, %c0_i32 : i32, i32
  }
  func.func @transform_2(%arg0: i32, %arg1: i32) -> (i32, i32) {
    %c0_i32 = arith.constant 0 : i32
    %c0_i32_0 = arith.constant 0 : i32
    return %arg0, %c0_i32 : i32, i32
  }
  func.func @transform_3(%arg0: i32, %arg1: i32) -> (i32, i32, i32) {
    %c0_i32 = arith.constant 0 : i32
    %c0_i32_0 = arith.constant 0 : i32
    %c0_i32_1 = arith.constant 0 : i32
    return %arg0, %c0_i32, %c0_i32_0 : i32, i32, i32
  }
  func.func @transform_4(%arg0: i32, %arg1: i32) -> (i32, i32, i32) {
    %c0_i32 = arith.constant 0 : i32
    %c0_i32_0 = arith.constant 0 : i32
    %c0_i32_1 = arith.constant 0 : i32
    return %arg0, %c0_i32, %c0_i32_0 : i32, i32, i32
  }
}

module attributes {stable_mosaic.version = 11 : i64} {
  func.func @bn_relu_kernel(%arg0: i32, %arg1: memref<32x128xbf16, #tpu.memory_space<vmem>>, %arg2: memref<1x128xf32, #tpu.memory_space<vmem>>, %arg3: memref<1x128xf32, #tpu.memory_space<vmem>>, %arg4: memref<32x128xbf16, #tpu.memory_space<vmem>>) attributes {dimension_semantics = [#tpu.dimension_semantics<parallel>], iteration_bounds = array<i64: 1>, scalar_prefetch = 0 : i64, scratch_operands = 0 : i64, tpu.core_type = #tpu.core_type<tc>, window_params = [{transform_indices = @transform_0, window_bounds = array<i64: 32, 128>}, {pipeline_mode = #tpu.pipeline_mode<synchronous>, transform_indices = @transform_1, window_bounds = array<i64: 1, 128>}, {pipeline_mode = #tpu.pipeline_mode<synchronous>, transform_indices = @transform_2, window_bounds = array<i64: 1, 128>}, {transform_indices = @transform_3, window_bounds = array<i64: 32, 128>}]} {
    %c0 = arith.constant 0 : index
    %c0_0 = arith.constant 0 : index
    %0 = vector.load %arg1[%c0, %c0_0] : memref<32x128xbf16, #tpu.memory_space<vmem>>, vector<32x128xbf16>
    %1 = arith.extf %0 : vector<32x128xbf16> to vector<32x128xf32>
    %c0_1 = arith.constant 0 : index
    %c0_2 = arith.constant 0 : index
    %2 = vector.load %arg2[%c0_1, %c0_2] : memref<1x128xf32, #tpu.memory_space<vmem>>, vector<1x128xf32>
    %3 = vector.broadcast %2 : vector<1x128xf32> to vector<32x128xf32>
    %4 = arith.mulf %1, %3 : vector<32x128xf32>
    %c0_3 = arith.constant 0 : index
    %c0_4 = arith.constant 0 : index
    %5 = vector.load %arg3[%c0_3, %c0_4] : memref<1x128xf32, #tpu.memory_space<vmem>>, vector<1x128xf32>
    %6 = vector.broadcast %5 : vector<1x128xf32> to vector<32x128xf32>
    %7 = arith.addf %4, %6 : vector<32x128xf32>
    %cst = arith.constant 0.000000e+00 : f32
    %8 = vector.broadcast %cst : f32 to vector<32x128xf32>
    %9 = arith.maximumf %7, %8 : vector<32x128xf32>
    %10 = arith.truncf %9 : vector<32x128xf32> to vector<32x128xbf16>
    %c0_5 = arith.constant 0 : index
    %c0_6 = arith.constant 0 : index
    %11 = vector.load %arg4[%c0_5, %c0_6] : memref<32x128xbf16, #tpu.memory_space<vmem>>, vector<32x128xbf16>
    tpu.vector_store %arg4[%c0_5, %c0_6], %10 {strides = array<i32>} : memref<32x128xbf16, #tpu.memory_space<vmem>>, vector<32x128xbf16>,
    return
  }
  func.func @transform_0(%arg0: i32) -> (i32, i32) {
    %c0_i32 = arith.constant 0 : i32
    %c0_i32_0 = arith.constant 0 : i32
    return %arg0, %c0_i32 : i32, i32
  }
  func.func @transform_1(%arg0: i32) -> (i32, i32) {
    %c0_i32 = arith.constant 0 : i32
    %c0_i32_0 = arith.constant 0 : i32
    %c0_i32_1 = arith.constant 0 : i32
    return %c0_i32, %c0_i32_0 : i32, i32
  }
  func.func @transform_2(%arg0: i32) -> (i32, i32) {
    %c0_i32 = arith.constant 0 : i32
    %c0_i32_0 = arith.constant 0 : i32
    %c0_i32_1 = arith.constant 0 : i32
    return %c0_i32, %c0_i32_0 : i32, i32
  }
  func.func @transform_3(%arg0: i32) -> (i32, i32) {
    %c0_i32 = arith.constant 0 : i32
    %c0_i32_0 = arith.constant 0 : i32
    return %arg0, %c0_i32 : i32, i32
  }
}

module attributes {stable_mosaic.version = 11 : i64} {
  func.func @gemm_stats_kernel(%arg0: i32, %arg1: i32, %arg2: memref<128x288xbf16, #tpu.memory_space<vmem>>, %arg3: memref<288x64xbf16, #tpu.memory_space<vmem>>, %arg4: memref<128x64xbf16, #tpu.memory_space<vmem>>, %arg5: memref<1x1x64xf32, #tpu.memory_space<vmem>>, %arg6: memref<1x1x64xf32, #tpu.memory_space<vmem>>, %arg7: memref<128x64xf32, #tpu.memory_space<vmem>>) attributes {dimension_semantics = [#tpu.dimension_semantics<parallel>, #tpu.dimension_semantics<arbitrary>], iteration_bounds = array<i64: 1, 1>, scalar_prefetch = 0 : i64, scratch_operands = 1 : i64, tpu.core_type = #tpu.core_type<tc>, window_params = [{transform_indices = @transform_0, window_bounds = array<i64: 128, 288>}, {transform_indices = @transform_1, window_bounds = array<i64: 288, 64>}, {transform_indices = @transform_2, window_bounds = array<i64: 128, 64>}, {transform_indices = @transform_3, window_bounds = array<i64: 1, 1, 64>}, {transform_indices = @transform_4, window_bounds = array<i64: 1, 1, 64>}]} {
    %c0_i32 = arith.constant 0 : i32
    %0 = arith.cmpi eq, %arg1, %c0_i32 : i32
    %1 = arith.extui %0 : i1 to i32
    %c0_i32_0 = arith.constant 0 : i32
    %2 = arith.cmpi ne, %1, %c0_i32_0 : i32
    scf.if %2 {
      %cst_10 = arith.constant 0.000000e+00 : f32
      %12 = vector.broadcast %cst_10 : f32 to vector<128x64xf32>
      %c0_11 = arith.constant 0 : index
      %c0_12 = arith.constant 0 : index
      %13 = vector.load %arg7[%c0_11, %c0_12] : memref<128x64xf32, #tpu.memory_space<vmem>>, vector<128x64xf32>
      tpu.vector_store %arg7[%c0_11, %c0_12], %12 {strides = array<i32>} : memref<128x64xf32, #tpu.memory_space<vmem>>, vector<128x64xf32>,
    } else {
    }
    %c0 = arith.constant 0 : index
    %c0_1 = arith.constant 0 : index
    %3 = vector.load %arg7[%c0, %c0_1] : memref<128x64xf32, #tpu.memory_space<vmem>>, vector<128x64xf32>
    %c0_2 = arith.constant 0 : index
    %c0_3 = arith.constant 0 : index
    %4 = vector.load %arg2[%c0_2, %c0_3] : memref<128x288xbf16, #tpu.memory_space<vmem>>, vector<128x288xbf16>
    %c0_4 = arith.constant 0 : index
    %c0_5 = arith.constant 0 : index
    %5 = vector.load %arg3[%c0_4, %c0_5] : memref<288x64xbf16, #tpu.memory_space<vmem>>, vector<288x64xbf16>
    %cst = arith.constant dense<0.000000e+00> : vector<128x64xf32>
    %6 = tpu.matmul %4, %5, %cst {dimension_numbers = #tpu.dot_dimension_numbers<[1], [0], [0], [1], [0, 0, 1, 1], [], []>} : vector<128x288xbf16>, vector<288x64xbf16>, vector<128x64xf32> -> vector<128x64xf32>
    %7 = arith.addf %3, %6 : vector<128x64xf32>
    %c0_6 = arith.constant 0 : index
    %c0_7 = arith.constant 0 : index
    %8 = vector.load %arg7[%c0_6, %c0_7] : memref<128x64xf32, #tpu.memory_space<vmem>>, vector<128x64xf32>
    tpu.vector_store %arg7[%c0_6, %c0_7], %7 {strides = array<i32>} : memref<128x64xf32, #tpu.memory_space<vmem>>, vector<128x64xf32>,
    %c0_i32_8 = arith.constant 0 : i32
    %9 = arith.cmpi eq, %arg1, %c0_i32_8 : i32
    %10 = arith.extui %9 : i1 to i32
    %c0_i32_9 = arith.constant 0 : i32
    %11 = arith.cmpi ne, %10, %c0_i32_9 : i32
    scf.if %11 {
      %c0_10 = arith.constant 0 : index
      %c0_11 = arith.constant 0 : index
      %12 = vector.load %arg7[%c0_10, %c0_11] : memref<128x64xf32, #tpu.memory_space<vmem>>, vector<128x64xf32>
      %13 = arith.truncf %12 : vector<128x64xf32> to vector<128x64xbf16>
      %c0_12 = arith.constant 0 : index
      %c0_13 = arith.constant 0 : index
      %14 = vector.load %arg4[%c0_12, %c0_13] : memref<128x64xbf16, #tpu.memory_space<vmem>>, vector<128x64xbf16>
      tpu.vector_store %arg4[%c0_12, %c0_13], %13 {strides = array<i32>} : memref<128x64xbf16, #tpu.memory_space<vmem>>, vector<128x64xbf16>,
      %cst_14 = arith.constant dense<0.000000e+00> : vector<64xf32>
      %15 = vector.multi_reduction <add>, %12, %cst_14 [0] : vector<128x64xf32> to vector<64xf32>
      %16 = vector.shape_cast %15 : vector<64xf32> to vector<1x64xf32>
      %17 = vector.shape_cast %16 : vector<1x64xf32> to vector<1x1x64xf32>
      %c0_15 = arith.constant 0 : index
      %c0_16 = arith.constant 0 : index
      %c0_17 = arith.constant 0 : index
      %18 = vector.load %arg5[%c0_15, %c0_16, %c0_17] : memref<1x1x64xf32, #tpu.memory_space<vmem>>, vector<1x1x64xf32>
      tpu.vector_store %arg5[%c0_15, %c0_16, %c0_17], %17 {strides = array<i32>} : memref<1x1x64xf32, #tpu.memory_space<vmem>>, vector<1x1x64xf32>,
      %19 = arith.mulf %12, %12 : vector<128x64xf32>
      %cst_18 = arith.constant dense<0.000000e+00> : vector<64xf32>
      %20 = vector.multi_reduction <add>, %19, %cst_18 [0] : vector<128x64xf32> to vector<64xf32>
      %21 = vector.shape_cast %20 : vector<64xf32> to vector<1x64xf32>
      %22 = vector.shape_cast %21 : vector<1x64xf32> to vector<1x1x64xf32>
      %c0_19 = arith.constant 0 : index
      %c0_20 = arith.constant 0 : index
      %c0_21 = arith.constant 0 : index
      %23 = vector.load %arg6[%c0_19, %c0_20, %c0_21] : memref<1x1x64xf32, #tpu.memory_space<vmem>>, vector<1x1x64xf32>
      tpu.vector_store %arg6[%c0_19, %c0_20, %c0_21], %22 {strides = array<i32>} : memref<1x1x64xf32, #tpu.memory_space<vmem>>, vector<1x1x64xf32>,
    } else {
    }
    return
  }
  func.func @transform_0(%arg0: i32, %arg1: i32) -> (i32, i32) {
    %c0_i32 = arith.constant 0 : i32
    return %arg0, %arg1 : i32, i32
  }
  func.func @transform_1(%arg0: i32, %arg1: i32) -> (i32, i32) {
    %c0_i32 = arith.constant 0 : i32
    %c0_i32_0 = arith.constant 0 : i32
    return %arg1, %c0_i32 : i32, i32
  }
  func.func @transform_2(%arg0: i32, %arg1: i32) -> (i32, i32) {
    %c0_i32 = arith.constant 0 : i32
    %c0_i32_0 = arith.constant 0 : i32
    return %arg0, %c0_i32 : i32, i32
  }
  func.func @transform_3(%arg0: i32, %arg1: i32) -> (i32, i32, i32) {
    %c0_i32 = arith.constant 0 : i32
    %c0_i32_0 = arith.constant 0 : i32
    %c0_i32_1 = arith.constant 0 : i32
    return %arg0, %c0_i32, %c0_i32_0 : i32, i32, i32
  }
  func.func @transform_4(%arg0: i32, %arg1: i32) -> (i32, i32, i32) {
    %c0_i32 = arith.constant 0 : i32
    %c0_i32_0 = arith.constant 0 : i32
    %c0_i32_1 = arith.constant 0 : i32
    return %arg0, %c0_i32, %c0_i32_0 : i32, i32, i32
  }
}

module attributes {stable_mosaic.version = 11 : i64} {
  func.func @bn_relu_kernel(%arg0: i32, %arg1: memref<128x64xbf16, #tpu.memory_space<vmem>>, %arg2: memref<1x64xf32, #tpu.memory_space<vmem>>, %arg3: memref<1x64xf32, #tpu.memory_space<vmem>>, %arg4: memref<128x64xbf16, #tpu.memory_space<vmem>>) attributes {dimension_semantics = [#tpu.dimension_semantics<parallel>], iteration_bounds = array<i64: 1>, scalar_prefetch = 0 : i64, scratch_operands = 0 : i64, tpu.core_type = #tpu.core_type<tc>, window_params = [{transform_indices = @transform_0, window_bounds = array<i64: 128, 64>}, {pipeline_mode = #tpu.pipeline_mode<synchronous>, transform_indices = @transform_1, window_bounds = array<i64: 1, 64>}, {pipeline_mode = #tpu.pipeline_mode<synchronous>, transform_indices = @transform_2, window_bounds = array<i64: 1, 64>}, {transform_indices = @transform_3, window_bounds = array<i64: 128, 64>}]} {
    %c0 = arith.constant 0 : index
    %c0_0 = arith.constant 0 : index
    %0 = vector.load %arg1[%c0, %c0_0] : memref<128x64xbf16, #tpu.memory_space<vmem>>, vector<128x64xbf16>
    %1 = arith.extf %0 : vector<128x64xbf16> to vector<128x64xf32>
    %c0_1 = arith.constant 0 : index
    %c0_2 = arith.constant 0 : index
    %2 = vector.load %arg2[%c0_1, %c0_2] : memref<1x64xf32, #tpu.memory_space<vmem>>, vector<1x64xf32>
    %3 = vector.broadcast %2 : vector<1x64xf32> to vector<128x64xf32>
    %4 = arith.mulf %1, %3 : vector<128x64xf32>
    %c0_3 = arith.constant 0 : index
    %c0_4 = arith.constant 0 : index
    %5 = vector.load %arg3[%c0_3, %c0_4] : memref<1x64xf32, #tpu.memory_space<vmem>>, vector<1x64xf32>
    %6 = vector.broadcast %5 : vector<1x64xf32> to vector<128x64xf32>
    %7 = arith.addf %4, %6 : vector<128x64xf32>
    %cst = arith.constant 0.000000e+00 : f32
    %8 = vector.broadcast %cst : f32 to vector<128x64xf32>
    %9 = arith.maximumf %7, %8 : vector<128x64xf32>
    %10 = arith.truncf %9 : vector<128x64xf32> to vector<128x64xbf16>
    %c0_5 = arith.constant 0 : index
    %c0_6 = arith.constant 0 : index
    %11 = vector.load %arg4[%c0_5, %c0_6] : memref<128x64xbf16, #tpu.memory_space<vmem>>, vector<128x64xbf16>
    tpu.vector_store %arg4[%c0_5, %c0_6], %10 {strides = array<i32>} : memref<128x64xbf16, #tpu.memory_space<vmem>>, vector<128x64xbf16>,
    return
  }
  func.func @transform_0(%arg0: i32) -> (i32, i32) {
    %c0_i32 = arith.constant 0 : i32
    %c0_i32_0 = arith.constant 0 : i32
    return %arg0, %c0_i32 : i32, i32
  }
  func.func @transform_1(%arg0: i32) -> (i32, i32) {
    %c0_i32 = arith.constant 0 : i32
    %c0_i32_0 = arith.constant 0 : i32
    %c0_i32_1 = arith.constant 0 : i32
    return %c0_i32, %c0_i32_0 : i32, i32
  }
  func.func @transform_2(%arg0: i32) -> (i32, i32) {
    %c0_i32 = arith.constant 0 : i32
    %c0_i32_0 = arith.constant 0 : i32
    %c0_i32_1 = arith.constant 0 : i32
    return %c0_i32, %c0_i32_0 : i32, i32
  }
  func.func @transform_3(%arg0: i32) -> (i32, i32) {
    %c0_i32 = arith.constant 0 : i32
    %c0_i32_0 = arith.constant 0 : i32
    return %arg0, %c0_i32 : i32, i32
  }
}

module attributes {stable_mosaic.version = 11 : i64} {
  func.func @bn_relu_kernel(%arg0: i32, %arg1: memref<512x32xbf16, #tpu.memory_space<vmem>>, %arg2: memref<1x32xf32, #tpu.memory_space<vmem>>, %arg3: memref<1x32xf32, #tpu.memory_space<vmem>>, %arg4: memref<512x32xbf16, #tpu.memory_space<vmem>>) attributes {dimension_semantics = [#tpu.dimension_semantics<parallel>], iteration_bounds = array<i64: 1>, scalar_prefetch = 0 : i64, scratch_operands = 0 : i64, tpu.core_type = #tpu.core_type<tc>, window_params = [{transform_indices = @transform_0, window_bounds = array<i64: 512, 32>}, {pipeline_mode = #tpu.pipeline_mode<synchronous>, transform_indices = @transform_1, window_bounds = array<i64: 1, 32>}, {pipeline_mode = #tpu.pipeline_mode<synchronous>, transform_indices = @transform_2, window_bounds = array<i64: 1, 32>}, {transform_indices = @transform_3, window_bounds = array<i64: 512, 32>}]} {
    %c0 = arith.constant 0 : index
    %c0_0 = arith.constant 0 : index
    %0 = vector.load %arg1[%c0, %c0_0] : memref<512x32xbf16, #tpu.memory_space<vmem>>, vector<512x32xbf16>
    %1 = arith.extf %0 : vector<512x32xbf16> to vector<512x32xf32>
    %c0_1 = arith.constant 0 : index
    %c0_2 = arith.constant 0 : index
    %2 = vector.load %arg2[%c0_1, %c0_2] : memref<1x32xf32, #tpu.memory_space<vmem>>, vector<1x32xf32>
    %3 = vector.broadcast %2 : vector<1x32xf32> to vector<512x32xf32>
    %4 = arith.mulf %1, %3 : vector<512x32xf32>
    %c0_3 = arith.constant 0 : index
    %c0_4 = arith.constant 0 : index
    %5 = vector.load %arg3[%c0_3, %c0_4] : memref<1x32xf32, #tpu.memory_space<vmem>>, vector<1x32xf32>
    %6 = vector.broadcast %5 : vector<1x32xf32> to vector<512x32xf32>
    %7 = arith.addf %4, %6 : vector<512x32xf32>
    %cst = arith.constant 0.000000e+00 : f32
    %8 = vector.broadcast %cst : f32 to vector<512x32xf32>
    %9 = arith.maximumf %7, %8 : vector<512x32xf32>
    %10 = arith.truncf %9 : vector<512x32xf32> to vector<512x32xbf16>
    %c0_5 = arith.constant 0 : index
    %c0_6 = arith.constant 0 : index
    %11 = vector.load %arg4[%c0_5, %c0_6] : memref<512x32xbf16, #tpu.memory_space<vmem>>, vector<512x32xbf16>
    tpu.vector_store %arg4[%c0_5, %c0_6], %10 {strides = array<i32>} : memref<512x32xbf16, #tpu.memory_space<vmem>>, vector<512x32xbf16>,
    return
  }
  func.func @transform_0(%arg0: i32) -> (i32, i32) {
    %c0_i32 = arith.constant 0 : i32
    %c0_i32_0 = arith.constant 0 : i32
    return %arg0, %c0_i32 : i32, i32
  }
  func.func @transform_1(%arg0: i32) -> (i32, i32) {
    %c0_i32 = arith.constant 0 : i32
    %c0_i32_0 = arith.constant 0 : i32
    %c0_i32_1 = arith.constant 0 : i32
    return %c0_i32, %c0_i32_0 : i32, i32
  }
  func.func @transform_2(%arg0: i32) -> (i32, i32) {
    %c0_i32 = arith.constant 0 : i32
    %c0_i32_0 = arith.constant 0 : i32
    %c0_i32_1 = arith.constant 0 : i32
    return %c0_i32, %c0_i32_0 : i32, i32
  }
  func.func @transform_3(%arg0: i32) -> (i32, i32) {
    %c0_i32 = arith.constant 0 : i32
    %c0_i32_0 = arith.constant 0 : i32
    return %arg0, %c0_i32 : i32, i32
  }
}

module attributes {stable_mosaic.version = 11 : i64} {
  func.func @gemm_stats_kernel(%arg0: i32, %arg1: i32, %arg2: memref<512x144xbf16, #tpu.memory_space<vmem>>, %arg3: memref<144x32xbf16, #tpu.memory_space<vmem>>, %arg4: memref<512x32xbf16, #tpu.memory_space<vmem>>, %arg5: memref<1x1x32xf32, #tpu.memory_space<vmem>>, %arg6: memref<1x1x32xf32, #tpu.memory_space<vmem>>, %arg7: memref<512x32xf32, #tpu.memory_space<vmem>>) attributes {dimension_semantics = [#tpu.dimension_semantics<parallel>, #tpu.dimension_semantics<arbitrary>], iteration_bounds = array<i64: 1, 1>, scalar_prefetch = 0 : i64, scratch_operands = 1 : i64, tpu.core_type = #tpu.core_type<tc>, window_params = [{transform_indices = @transform_0, window_bounds = array<i64: 512, 144>}, {transform_indices = @transform_1, window_bounds = array<i64: 144, 32>}, {transform_indices = @transform_2, window_bounds = array<i64: 512, 32>}, {transform_indices = @transform_3, window_bounds = array<i64: 1, 1, 32>}, {transform_indices = @transform_4, window_bounds = array<i64: 1, 1, 32>}]} {
    %c0_i32 = arith.constant 0 : i32
    %0 = arith.cmpi eq, %arg1, %c0_i32 : i32
    %1 = arith.extui %0 : i1 to i32
    %c0_i32_0 = arith.constant 0 : i32
    %2 = arith.cmpi ne, %1, %c0_i32_0 : i32
    scf.if %2 {
      %cst_10 = arith.constant 0.000000e+00 : f32
      %12 = vector.broadcast %cst_10 : f32 to vector<512x32xf32>
      %c0_11 = arith.constant 0 : index
      %c0_12 = arith.constant 0 : index
      %13 = vector.load %arg7[%c0_11, %c0_12] : memref<512x32xf32, #tpu.memory_space<vmem>>, vector<512x32xf32>
      tpu.vector_store %arg7[%c0_11, %c0_12], %12 {strides = array<i32>} : memref<512x32xf32, #tpu.memory_space<vmem>>, vector<512x32xf32>,
    } else {
    }
    %c0 = arith.constant 0 : index
    %c0_1 = arith.constant 0 : index
    %3 = vector.load %arg7[%c0, %c0_1] : memref<512x32xf32, #tpu.memory_space<vmem>>, vector<512x32xf32>
    %c0_2 = arith.constant 0 : index
    %c0_3 = arith.constant 0 : index
    %4 = vector.load %arg2[%c0_2, %c0_3] : memref<512x144xbf16, #tpu.memory_space<vmem>>, vector<512x144xbf16>
    %c0_4 = arith.constant 0 : index
    %c0_5 = arith.constant 0 : index
    %5 = vector.load %arg3[%c0_4, %c0_5] : memref<144x32xbf16, #tpu.memory_space<vmem>>, vector<144x32xbf16>
    %cst = arith.constant dense<0.000000e+00> : vector<512x32xf32>
    %6 = tpu.matmul %4, %5, %cst {dimension_numbers = #tpu.dot_dimension_numbers<[1], [0], [0], [1], [0, 0, 1, 1], [], []>} : vector<512x144xbf16>, vector<144x32xbf16>, vector<512x32xf32> -> vector<512x32xf32>
    %7 = arith.addf %3, %6 : vector<512x32xf32>
    %c0_6 = arith.constant 0 : index
    %c0_7 = arith.constant 0 : index
    %8 = vector.load %arg7[%c0_6, %c0_7] : memref<512x32xf32, #tpu.memory_space<vmem>>, vector<512x32xf32>
    tpu.vector_store %arg7[%c0_6, %c0_7], %7 {strides = array<i32>} : memref<512x32xf32, #tpu.memory_space<vmem>>, vector<512x32xf32>,
    %c0_i32_8 = arith.constant 0 : i32
    %9 = arith.cmpi eq, %arg1, %c0_i32_8 : i32
    %10 = arith.extui %9 : i1 to i32
    %c0_i32_9 = arith.constant 0 : i32
    %11 = arith.cmpi ne, %10, %c0_i32_9 : i32
    scf.if %11 {
      %c0_10 = arith.constant 0 : index
      %c0_11 = arith.constant 0 : index
      %12 = vector.load %arg7[%c0_10, %c0_11] : memref<512x32xf32, #tpu.memory_space<vmem>>, vector<512x32xf32>
      %13 = arith.truncf %12 : vector<512x32xf32> to vector<512x32xbf16>
      %c0_12 = arith.constant 0 : index
      %c0_13 = arith.constant 0 : index
      %14 = vector.load %arg4[%c0_12, %c0_13] : memref<512x32xbf16, #tpu.memory_space<vmem>>, vector<512x32xbf16>
      tpu.vector_store %arg4[%c0_12, %c0_13], %13 {strides = array<i32>} : memref<512x32xbf16, #tpu.memory_space<vmem>>, vector<512x32xbf16>,
      %cst_14 = arith.constant dense<0.000000e+00> : vector<32xf32>
      %15 = vector.multi_reduction <add>, %12, %cst_14 [0] : vector<512x32xf32> to vector<32xf32>
      %16 = vector.shape_cast %15 : vector<32xf32> to vector<1x32xf32>
      %17 = vector.shape_cast %16 : vector<1x32xf32> to vector<1x1x32xf32>
      %c0_15 = arith.constant 0 : index
      %c0_16 = arith.constant 0 : index
      %c0_17 = arith.constant 0 : index
      %18 = vector.load %arg5[%c0_15, %c0_16, %c0_17] : memref<1x1x32xf32, #tpu.memory_space<vmem>>, vector<1x1x32xf32>
      tpu.vector_store %arg5[%c0_15, %c0_16, %c0_17], %17 {strides = array<i32>} : memref<1x1x32xf32, #tpu.memory_space<vmem>>, vector<1x1x32xf32>,
      %19 = arith.mulf %12, %12 : vector<512x32xf32>
      %cst_18 = arith.constant dense<0.000000e+00> : vector<32xf32>
      %20 = vector.multi_reduction <add>, %19, %cst_18 [0] : vector<512x32xf32> to vector<32xf32>
      %21 = vector.shape_cast %20 : vector<32xf32> to vector<1x32xf32>
      %22 = vector.shape_cast %21 : vector<1x32xf32> to vector<1x1x32xf32>
      %c0_19 = arith.constant 0 : index
      %c0_20 = arith.constant 0 : index
      %c0_21 = arith.constant 0 : index
      %23 = vector.load %arg6[%c0_19, %c0_20, %c0_21] : memref<1x1x32xf32, #tpu.memory_space<vmem>>, vector<1x1x32xf32>
      tpu.vector_store %arg6[%c0_19, %c0_20, %c0_21], %22 {strides = array<i32>} : memref<1x1x32xf32, #tpu.memory_space<vmem>>, vector<1x1x32xf32>,
    } else {
    }
    return
  }
  func.func @transform_0(%arg0: i32, %arg1: i32) -> (i32, i32) {
    %c0_i32 = arith.constant 0 : i32
    return %arg0, %arg1 : i32, i32
  }
  func.func @transform_1(%arg0: i32, %arg1: i32) -> (i32, i32) {
    %c0_i32 = arith.constant 0 : i32
    %c0_i32_0 = arith.constant 0 : i32
    return %arg1, %c0_i32 : i32, i32
  }
  func.func @transform_2(%arg0: i32, %arg1: i32) -> (i32, i32) {
    %c0_i32 = arith.constant 0 : i32
    %c0_i32_0 = arith.constant 0 : i32
    return %arg0, %c0_i32 : i32, i32
  }
  func.func @transform_3(%arg0: i32, %arg1: i32) -> (i32, i32, i32) {
    %c0_i32 = arith.constant 0 : i32
    %c0_i32_0 = arith.constant 0 : i32
    %c0_i32_1 = arith.constant 0 : i32
    return %arg0, %c0_i32, %c0_i32_0 : i32, i32, i32
  }
  func.func @transform_4(%arg0: i32, %arg1: i32) -> (i32, i32, i32) {
    %c0_i32 = arith.constant 0 : i32
    %c0_i32_0 = arith.constant 0 : i32
    %c0_i32_1 = arith.constant 0 : i32
    return %arg0, %c0_i32, %c0_i32_0 : i32, i32, i32
  }
}

module attributes {stable_mosaic.version = 11 : i64} {
  func.func @gemm_bias_tanh_kernel(%arg0: i32, %arg1: i32, %arg2: memref<512x72xbf16, #tpu.memory_space<vmem>>, %arg3: memref<72x12xbf16, #tpu.memory_space<vmem>>, %arg4: memref<1x12xf32, #tpu.memory_space<vmem>>, %arg5: memref<512x12xf32, #tpu.memory_space<vmem>>, %arg6: memref<512x12xf32, #tpu.memory_space<vmem>>) attributes {dimension_semantics = [#tpu.dimension_semantics<parallel>, #tpu.dimension_semantics<arbitrary>], iteration_bounds = array<i64: 4, 1>, scalar_prefetch = 0 : i64, scratch_operands = 1 : i64, tpu.core_type = #tpu.core_type<tc>, window_params = [{transform_indices = @transform_0, window_bounds = array<i64: 512, 72>}, {transform_indices = @transform_1, window_bounds = array<i64: 72, 12>}, {pipeline_mode = #tpu.pipeline_mode<synchronous>, transform_indices = @transform_2, window_bounds = array<i64: 1, 12>}, {transform_indices = @transform_3, window_bounds = array<i64: 512, 12>}]} {
    %c0_i32 = arith.constant 0 : i32
    %0 = arith.cmpi eq, %arg1, %c0_i32 : i32
    %1 = arith.extui %0 : i1 to i32
    %c0_i32_0 = arith.constant 0 : i32
    %2 = arith.cmpi ne, %1, %c0_i32_0 : i32
    scf.if %2 {
      %cst_10 = arith.constant 0.000000e+00 : f32
      %12 = vector.broadcast %cst_10 : f32 to vector<512x12xf32>
      %c0_11 = arith.constant 0 : index
      %c0_12 = arith.constant 0 : index
      %13 = vector.load %arg6[%c0_11, %c0_12] : memref<512x12xf32, #tpu.memory_space<vmem>>, vector<512x12xf32>
      tpu.vector_store %arg6[%c0_11, %c0_12], %12 {strides = array<i32>} : memref<512x12xf32, #tpu.memory_space<vmem>>, vector<512x12xf32>,
    } else {
    }
    %c0 = arith.constant 0 : index
    %c0_1 = arith.constant 0 : index
    %3 = vector.load %arg6[%c0, %c0_1] : memref<512x12xf32, #tpu.memory_space<vmem>>, vector<512x12xf32>
    %c0_2 = arith.constant 0 : index
    %c0_3 = arith.constant 0 : index
    %4 = vector.load %arg2[%c0_2, %c0_3] : memref<512x72xbf16, #tpu.memory_space<vmem>>, vector<512x72xbf16>
    %c0_4 = arith.constant 0 : index
    %c0_5 = arith.constant 0 : index
    %5 = vector.load %arg3[%c0_4, %c0_5] : memref<72x12xbf16, #tpu.memory_space<vmem>>, vector<72x12xbf16>
    %cst = arith.constant dense<0.000000e+00> : vector<512x12xf32>
    %6 = tpu.matmul %4, %5, %cst {dimension_numbers = #tpu.dot_dimension_numbers<[1], [0], [0], [1], [0, 0, 1, 1], [], []>} : vector<512x72xbf16>, vector<72x12xbf16>, vector<512x12xf32> -> vector<512x12xf32>
    %7 = arith.addf %3, %6 : vector<512x12xf32>
    %c0_6 = arith.constant 0 : index
    %c0_7 = arith.constant 0 : index
    %8 = vector.load %arg6[%c0_6, %c0_7] : memref<512x12xf32, #tpu.memory_space<vmem>>, vector<512x12xf32>
    tpu.vector_store %arg6[%c0_6, %c0_7], %7 {strides = array<i32>} : memref<512x12xf32, #tpu.memory_space<vmem>>, vector<512x12xf32>,
    %c0_i32_8 = arith.constant 0 : i32
    %9 = arith.cmpi eq, %arg1, %c0_i32_8 : i32
    %10 = arith.extui %9 : i1 to i32
    %c0_i32_9 = arith.constant 0 : i32
    %11 = arith.cmpi ne, %10, %c0_i32_9 : i32
    scf.if %11 {
      %c0_10 = arith.constant 0 : index
      %c0_11 = arith.constant 0 : index
      %12 = vector.load %arg6[%c0_10, %c0_11] : memref<512x12xf32, #tpu.memory_space<vmem>>, vector<512x12xf32>
      %c0_12 = arith.constant 0 : index
      %c0_13 = arith.constant 0 : index
      %13 = vector.load %arg4[%c0_12, %c0_13] : memref<1x12xf32, #tpu.memory_space<vmem>>, vector<1x12xf32>
      %14 = vector.broadcast %13 : vector<1x12xf32> to vector<512x12xf32>
      %15 = arith.addf %12, %14 : vector<512x12xf32>
      %16 = math.tanh %15 : vector<512x12xf32>
      %c0_14 = arith.constant 0 : index
      %c0_15 = arith.constant 0 : index
      %17 = vector.load %arg5[%c0_14, %c0_15] : memref<512x12xf32, #tpu.memory_space<vmem>>, vector<512x12xf32>
      tpu.vector_store %arg5[%c0_14, %c0_15], %16 {strides = array<i32>} : memref<512x12xf32, #tpu.memory_space<vmem>>, vector<512x12xf32>,
    } else {
    }
    return
  }
  func.func @transform_0(%arg0: i32, %arg1: i32) -> (i32, i32) {
    %c0_i32 = arith.constant 0 : i32
    return %arg0, %arg1 : i32, i32
  }
  func.func @transform_1(%arg0: i32, %arg1: i32) -> (i32, i32) {
    %c0_i32 = arith.constant 0 : i32
    %c0_i32_0 = arith.constant 0 : i32
    return %arg1, %c0_i32 : i32, i32
  }
  func.func @transform_2(%arg0: i32, %arg1: i32) -> (i32, i32) {
    %c0_i32 = arith.constant 0 : i32
    %c0_i32_0 = arith.constant 0 : i32
    %c0_i32_1 = arith.constant 0 : i32
    return %c0_i32, %c0_i32_0 : i32, i32
  }
  func.func @transform_3(%arg0: i32, %arg1: i32) -> (i32, i32) {
    %c0_i32 = arith.constant 0 : i32
    %c0_i32_0 = arith.constant 0 : i32
    return %arg0, %c0_i32 : i32, i32
  }
}

</mosaic_0001>

<llo_original>
// kernel: tile.48
$region0: #{tile.48}
  #allocation0 [shape = 's32[1]{0}', space=sflag, size = 0x4, scoped, tag = 'scoped memory for tile.48']
  %s0 = inlined_call_operand.vmem [shape: f32[64], index: 0, kind: input, shape index: {}]
  %s1 = inlined_call_operand.vmem [shape: f32[16,64], index: 1, kind: output, shape index: {}]
  // Predicated region
  $region2: #{tile.48} parent=0 // pred_check
    _
  $region3: #{tile.48} parent=0 // pred_check_branch
    %3 = sbr.rel (0) target = $region5
  $region4: #{tile.48} parent=0 // pred_region
    _
  $region5: #{tile.48} parent=0 // pred_fallthru
    _
  %v4 = vld [vmem:[%s0] ss:$0 sm:$0xff]
  %5 = vst [vmem:[%s1] sm:$0xff] %v4
  %s6 = scalar_lea.vmem %s1, 8
  %7 = vst [vmem:[%s6] sm:$0xff] %v4

// kernel: tile.53
$region0: #{tile.53}
  %s0 = inlined_call_operand.vmem [shape: f32[16,64], index: 0, kind: input, shape index: {}]
  %s1 = inlined_call_operand.vmem [shape: f32[1,1024], index: 1, kind: output, shape index: {}]
  $region1: #{tile.53} parent=0
    #allocation0 [shape = 'u8[32768]{0}', space=vmem, size = 0x8000, scoped, tag = 'scoped mem for output reshape']
    %v2 = vld [vmem:[%s0] ss:$2 sm:$0xff]
    %vm3 = vcmask 523264
    %4 = vst.msk [vmem:[#allocation0] ss:$8 sm:$0xf] %vm3, %v2
    %5 = vst.msk [vmem:[#allocation0] ss:$8 sm:$0xf0] %vm3, %v2
    %s6 = scalar_lea.vmem %s0, 1
    %v7 = vld [vmem:[%s6] ss:$2 sm:$0xff]
    %8 = vrot.lane.b32.xlu0 %v7, 64
    %v9 = vpop.permute.xlu0 %8
    %vm10 = vcmask 1048064
    %11 = vst.msk [vmem:[#allocation0] ss:$8 sm:$0xf] %vm10, %v9
    %12 = vst.msk [vmem:[#allocation0] ss:$8 sm:$0xf0] %vm10, %v9
    %s14 = ssub.s32 2, 1
    %v15 = vld [vmem:[#allocation0] sm:%s14]
    %s17 = ssub.s32 2, 1
    %18 = vst [vmem:[%s1] sm:%s17] %v15
    %s19 = scalar_lea.vmem [#allocation0], 8
    %v20 = vld [vmem:[%s19] sm:%s14]
    %s22 = ssub.s32 2, 1
    %s23 = scalar_lea.vmem %s1, 1
    %24 = vst [vmem:[%s23] sm:%s22] %v20
    %s25 = scalar_lea.vmem [#allocation0], 16
    %v26 = vld [vmem:[%s25] sm:%s14]
    %s28 = ssub.s32 2, 1
    %s29 = scalar_lea.vmem %s1, 2
    %30 = vst [vmem:[%s29] sm:%s28] %v26
    %s31 = scalar_lea.vmem [#allocation0], 24
    %v32 = vld [vmem:[%s31] sm:%s14]
    %s34 = ssub.s32 2, 1
    %s35 = scalar_lea.vmem %s1, 3
    %36 = vst [vmem:[%s35] sm:%s34] %v32
    %s37 = scalar_lea.vmem [#allocation0], 32
    %v38 = vld [vmem:[%s37] sm:%s14]
    %s40 = ssub.s32 2, 1
    %s41 = scalar_lea.vmem %s1, 4
    %42 = vst [vmem:[%s41] sm:%s40] %v38
    %s43 = scalar_lea.vmem [#allocation0], 40
    %v44 = vld [vmem:[%s43] sm:%s14]
    %s46 = ssub.s32 2, 1
    %s47 = scalar_lea.vmem %s1, 5
    %48 = vst [vmem:[%s47] sm:%s46] %v44
    %s49 = scalar_lea.vmem [#allocation0], 48
    %v50 = vld [vmem:[%s49] sm:%s14]
    %s52 = ssub.s32 2, 1
    %s53 = scalar_lea.vmem %s1, 6
    %54 = vst [vmem:[%s53] sm:%s52] %v50
    %s55 = scalar_lea.vmem [#allocation0], 56
    %v56 = vld [vmem:[%s55] sm:%s14]
    %s58 = ssub.s32 2, 1
    %s59 = scalar_lea.vmem %s1, 7
    %60 = vst [vmem:[%s59] sm:%s58] %v56

// kernel: generator_forward.10
$region0: #{generator_forward.10}
  #allocation0 [shape = 'u32[]', space=smem, size = 0x4, offset = 0x4, fixed_abs, tag = 'smem constant byte address 0x4 - core index']
  #allocation1 [shape = 'u32[72,128]{1,0:T(1,128)}', space=vmem, size = 0x9000, scoped, tag = 'internal scratch']
  %s0 = inlined_call_operand.vmem [shape: bf16[2,1024], index: 0, kind: input, shape index: {}]
  %s1 = inlined_call_operand.vmem [shape: f32[1,1024], index: 1, kind: input, shape index: {}]
  %s2 = inlined_call_operand.vmem [shape: f32[1,1024], index: 2, kind: input, shape index: {}]
  %s3 = inlined_call_operand.vmem [shape: bf16[2,1024], index: 3, kind: output, shape index: {}]
  %s4 = sld [smem:[#allocation0]]
  $region22: #{generator_forward.10} parent=0
    _
  %s6 = ssub.s32 1, %s4
  %s7 = scalar_select 0, %s6, %s4
  // Predicated region
  $region2: #{generator_forward.10} parent=0 // pred_check
    _
  $region3: #{generator_forward.10} parent=0 // pred_check_branch
    %9 = sbr.rel (0) target = $region5
  $region4: #{generator_forward.10} parent=0 // pred_region
    _
  $region5: #{generator_forward.10} parent=0 // pred_fallthru
    _
  // Predicated region
  $region6: #{generator_forward.10} parent=0 // pred_check
    _
  $region7: #{generator_forward.10} parent=0 // pred_check_branch
    %11 = sbr.rel (0) target = $region9
  $region8: #{generator_forward.10} parent=0 // pred_region
    _
  $region9: #{generator_forward.10} parent=0 // pred_fallthru
    _
  // Predicated region
  $region10: #{generator_forward.10} parent=0 // pred_check
    _
  $region11: #{generator_forward.10} parent=0 // pred_check_branch
    %13 = sbr.rel (0) target = $region13
  $region12: #{generator_forward.10} parent=0 // pred_region
    _
  $region13: #{generator_forward.10} parent=0 // pred_fallthru
    _
  %v14 = vld [vmem:[%s0] sm:$0xff]
  %v15 = vunpack.c.l.bf16 %v14
  %v16 = vunpack.c.h.bf16 %v14
  %v17 = vld [vmem:[%s1] sm:$0xff]
  %v19 = vperm.slane %v17, 0
  %v20 = vperm.slane %v17, 1
  %v21 = vperm.slane %v17, 2
  %v22 = vperm.slane %v17, 3
  %v23 = vperm.slane %v17, 4
  %v24 = vperm.slane %v17, 5
  %v25 = vperm.slane %v17, 6
  %v26 = vperm.slane %v17, 7
  %v27 = vrot.slane %v20, 6
  %v28 = vrot.slane %v21, 4
  %v29 = vrot.slane %v22, 2
  %v30 = vrot.slane %v24, 6
  %v31 = vrot.slane %v25, 4
  %v32 = vrot.slane %v26, 2
  %vm33 = vcmask 1041408
  %v34 = vsel %vm33, %v19, %v27
  %vm35 = vcmask 1045508
  %v36 = vsel %vm35, %v28, %v29
  %vm37 = vcmask 1043456
  %v38 = vsel %vm37, %v34, %v36
  %v39 = vsel %vm33, %v23, %v30
  %v40 = vsel %vm35, %v31, %v32
  %v41 = vsel %vm37, %v39, %v40
  %v44 = vmul.f32 %v15, %v38
  %v45 = vmul.f32 %v16, %v41
  %v46 = vld [vmem:[%s2] sm:$0xff]
  %v48 = vperm.slane %v46, 0
  %v49 = vperm.slane %v46, 1
  %v50 = vperm.slane %v46, 2
  %v51 = vperm.slane %v46, 3
  %v52 = vperm.slane %v46, 4
  %v53 = vperm.slane %v46, 5
  %v54 = vperm.slane %v46, 6
  %v55 = vperm.slane %v46, 7
  %v56 = vrot.slane %v49, 6
  %v57 = vrot.slane %v50, 4
  %v58 = vrot.slane %v51, 2
  %v59 = vrot.slane %v53, 6
  %v60 = vrot.slane %v54, 4
  %v61 = vrot.slane %v55, 2
  %v62 = vsel %vm33, %v48, %v56
  %v63 = vsel %vm35, %v57, %v58
  %v64 = vsel %vm37, %v62, %v63
  %v65 = vsel %vm33, %v52, %v59
  %v66 = vsel %vm35, %v60, %v61
  %v67 = vsel %vm37, %v65, %v66
  %v70 = vadd.f32 %v44, %v64
  %v71 = vadd.f32 %v45, %v67
  %v72 = vmax.f32 %v70, 0.0
  %v73 = vmax.f32 %v71, 0.0
  %76 = vst [vmem:[#allocation1] ss:$4 sm:$0xff] %v72
  %s77 = scalar_lea.vmem [#allocation1], 32
  %78 = vst [vmem:[%s77] ss:$4 sm:$0xff] %v73
  %v79 = vld.sshfl [vmem:[#allocation1] sm:$0xff pattern:$0x73625140]
  %v80 = vld.sshfl [vmem:[#allocation1 + $0x8] sm:$0xff pattern:$0x73625140]
  %v81 = vld.sshfl [vmem:[#allocation1 + $0x10] sm:$0xff pattern:$0x73625140]
  %v82 = vld.sshfl [vmem:[#allocation1 + $0x18] sm:$0xff pattern:$0x73625140]
  %v83 = vld.sshfl [vmem:[#allocation1 + $0x20] sm:$0xff pattern:$0x73625140]
  %v84 = vld.sshfl [vmem:[#allocation1 + $0x28] sm:$0xff pattern:$0x73625140]
  %v85 = vld.sshfl [vmem:[#allocation1 + $0x30] sm:$0xff pattern:$0x73625140]
  %v86 = vld.sshfl [vmem:[#allocation1 + $0x38] sm:$0xff pattern:$0x73625140]
  %v95 = vpack.c.bf16 %v80, %v79
  %v96 = vpack.c.bf16 %v82, %v81
  %v97 = vpack.c.bf16 %v84, %v83
  %v98 = vpack.c.bf16 %v86, %v85
  %v103 = vrot.slane %v95, 3
  %v104 = vrot.slane %v96, 6
  %v105 = vrot.slane %v96, 1
  %v106 = vrot.slane %v97, 4
  %v107 = vrot.slane %v97, 7
  %v108 = vrot.slane %v98, 2
  %v109 = vrot.slane %v98, 5
  %vm110 = vcmask 1040384
  %v113 = vsel %vm110, %v95, %v103
  %vm114 = vcmask 1042434
  %v117 = vsel %vm114, %v104, %v105
  %v118 = vsel %vm33, %v113, %v117
  %vm119 = vcmask 1044484
  %v122 = vsel %vm119, %v106, %v107
  %vm123 = vcmask 1046534
  %v126 = vsel %vm123, %v108, %v109
  %v127 = vsel %vm35, %v122, %v126
  %v128 = vsel %vm37, %v118, %v127
  %130 = vst [vmem:[%s3] sm:$0xff] %v128
  // Predicated region
  $region14: #{generator_forward.10} parent=0 // pred_check
    _
  $region15: #{generator_forward.10} parent=0 // pred_check_branch
    %132 = sbr.rel (0) target = $region17
  $region16: #{generator_forward.10} parent=0 // pred_region
    _
  $region17: #{generator_forward.10} parent=0 // pred_fallthru
    _
  // Predicated region
  $region18: #{generator_forward.10} parent=0 // pred_check
    _
  $region19: #{generator_forward.10} parent=0 // pred_check_branch
    %134 = sbr.rel (0) target = $region21
  $region20: #{generator_forward.10} parent=0 // pred_region
    _
  $region21: #{generator_forward.10} parent=0 // pred_fallthru
    _

// kernel: generator_forward.9
$region0: #{generator_forward.9}
  #allocation0 [shape = 'u32[]', space=smem, size = 0x4, offset = 0x4, fixed_abs, tag = 'smem constant byte address 0x4 - core index']
  #allocation1 [shape = 'u32[72,128]{1,0:T(1,128)}', space=vmem, size = 0x9000, scoped, tag = 'internal scratch']
  #allocation2 [shape = 'f32[2,1024]{1,0:T(2,128)}', space=vmem, size = 0x2000, scoped, tag = 'scratch operand']
  %s0 = inlined_call_operand.vmem [shape: bf16[2,16], index: 0, kind: input, shape index: {}]
  %s1 = inlined_call_operand.vmem [shape: bf16[16,1024], index: 1, kind: input, shape index: {}]
  %s2 = inlined_call_operand.vmem [shape: bf16[2,1024], index: 2, kind: output, shape index: {0}]
  %s3 = inlined_call_operand.vmem [shape: f32[1,1,1024], index: 3, kind: output, shape index: {1}]
  %s4 = inlined_call_operand.vmem [shape: f32[1,1,1024], index: 4, kind: output, shape index: {2}]
  %5 = xla_tuple %s2, %s3, %s4
  %s6 = sld [smem:[#allocation0]]
  $region42: #{generator_forward.9} parent=0
    _
  %s8 = ssub.s32 1, %s6
  %s9 = scalar_select 0, %s8, %s6
  // Predicated region
  $region2: #{generator_forward.9} parent=0 // pred_check
    _
  $region3: #{generator_forward.9} parent=0 // pred_check_branch
    %11 = sbr.rel (0) target = $region5
  $region4: #{generator_forward.9} parent=0 // pred_region
    _
  $region5: #{generator_forward.9} parent=0 // pred_fallthru
    _
  // Predicated region
  $region6: #{generator_forward.9} parent=0 // pred_check
    _
  $region7: #{generator_forward.9} parent=0 // pred_check_branch
    %13 = sbr.rel (0) target = $region9
  $region8: #{generator_forward.9} parent=0 // pred_region
    _
  $region9: #{generator_forward.9} parent=0 // pred_fallthru
    _
  %p15 = scmp.eq.s32.totalorder 0, 0
  // Predicated region
  $region10: #{generator_forward.9} parent=0 // pred_check
    %p16 = pneg %p15
  $region11: #{generator_forward.9} parent=0 // pred_check_branch
    %18 = sbr.rel (%p16) target = $region13
  $region12: #{generator_forward.9} parent=0 // pred_region
    %19 = vst [vmem:[#allocation2] sm:$0xff] 0.0
    %20 = vst [vmem:[#allocation2 + $0x8] sm:$0xff] 0.0
  $region13: #{generator_forward.9} parent=0 // pred_fallthru
    _
  %v21 = vld [vmem:[#allocation2] sm:$0xff]
  %v22 = vld [vmem:[#allocation2 + $0x8] sm:$0xff]
  %v23 = vld [vmem:[%s0] sm:$0x1]
  %v24 = vld [vmem:[%s1] sm:$0xff]
  %v25 = vld [vmem:[%s1 + $0x8] sm:$0xff]
  %v26 = vld [vmem:[%s1 + $0x10] sm:$0xff]
  %v27 = vld [vmem:[%s1 + $0x18] sm:$0xff]
  %v28 = vld [vmem:[%s1 + $0x20] sm:$0xff]
  %v29 = vld [vmem:[%s1 + $0x28] sm:$0xff]
  %v30 = vld [vmem:[%s1 + $0x30] sm:$0xff]
  %v31 = vld [vmem:[%s1 + $0x38] sm:$0xff]
  %v40 = vunpack.c.l.b16 %v24
  %v41 = vunpack.c.h.b16 %v24
  %v42 = vunpack.c.l.b16 %v25
  %v43 = vunpack.c.h.b16 %v25
  %v44 = vunpack.c.l.b16 %v26
  %v45 = vunpack.c.h.b16 %v26
  %v46 = vunpack.c.l.b16 %v27
  %v47 = vunpack.c.h.b16 %v27
  %v48 = vunpack.c.l.b16 %v28
  %v49 = vunpack.c.h.b16 %v28
  %v50 = vunpack.c.l.b16 %v29
  %v51 = vunpack.c.h.b16 %v29
  %v52 = vunpack.c.l.b16 %v30
  %v53 = vunpack.c.h.b16 %v30
  %v54 = vunpack.c.l.b16 %v31
  %v55 = vunpack.c.h.b16 %v31
  %v56 = vpack.c.b16 %v48, %v40
  %v57 = vpack.c.b16 %v49, %v41
  %v58 = vpack.c.b16 %v50, %v42
  %v59 = vpack.c.b16 %v51, %v43
  %v60 = vpack.c.b16 %v52, %v44
  %v61 = vpack.c.b16 %v53, %v45
  %v62 = vpack.c.b16 %v54, %v46
  %v63 = vpack.c.b16 %v55, %v47
  %vm72 = vcmask 130048
  %v74 = vsel %vm72, %v23, 0
  %76 = vmatpush.bf16.msra.mxu0 0
  %77 = vmatpush.bf16.msra.mxu0 0
  %78 = vmatpush.bf16.msra.mxu0 0
  %79 = vmatpush.bf16.msra.mxu0 0
  %80 = vmatpush.bf16.msra.mxu0 0
  %81 = vmatpush.bf16.msra.mxu0 0
  %82 = vmatpush.bf16.msra.mxu0 0
  %83 = vmatpush.bf16.msra.mxu0 %v56
  %84 = vmatmul.bf16.gmra.mxu0 %v74
  %v85 = vpop.f32.mrf.mxu0
  %v86 = vadd.f32 0.0, %v85
  %v87 = vpop.f32.mrf.mxu0
  %88 = vdwg.mxu0
  %89 = vmatpush.bf16.msra.mxu0 0
  %90 = vmatpush.bf16.msra.mxu0 0
  %91 = vmatpush.bf16.msra.mxu0 0
  %92 = vmatpush.bf16.msra.mxu0 0
  %93 = vmatpush.bf16.msra.mxu0 0
  %94 = vmatpush.bf16.msra.mxu0 0
  %95 = vmatpush.bf16.msra.mxu0 0
  %96 = vmatpush.bf16.msra.mxu0 %v57
  %97 = vmatmul.bf16.gmra.mxu0 %v74
  %v98 = vpop.f32.mrf.mxu0
  %v99 = vadd.f32 0.0, %v98
  %v100 = vpop.f32.mrf.mxu0
  %101 = vdwg.mxu0
  %102 = vmatpush.bf16.msra.mxu0 0
  %103 = vmatpush.bf16.msra.mxu0 0
  %104 = vmatpush.bf16.msra.mxu0 0
  %105 = vmatpush.bf16.msra.mxu0 0
  %106 = vmatpush.bf16.msra.mxu0 0
  %107 = vmatpush.bf16.msra.mxu0 0
  %108 = vmatpush.bf16.msra.mxu0 0
  %109 = vmatpush.bf16.msra.mxu0 %v58
  %110 = vmatmul.bf16.gmra.mxu0 %v74
  %v111 = vpop.f32.mrf.mxu0
  %v112 = vadd.f32 0.0, %v111
  %v113 = vpop.f32.mrf.mxu0
  %114 = vdwg.mxu0
  %115 = vmatpush.bf16.msra.mxu0 0
  %116 = vmatpush.bf16.msra.mxu0 0
  %117 = vmatpush.bf16.msra.mxu0 0
  %118 = vmatpush.bf16.msra.mxu0 0
  %119 = vmatpush.bf16.msra.mxu0 0
  %120 = vmatpush.bf16.msra.mxu0 0
  %121 = vmatpush.bf16.msra.mxu0 0
  %122 = vmatpush.bf16.msra.mxu0 %v59
  %123 = vmatmul.bf16.gmra.mxu0 %v74
  %v124 = vpop.f32.mrf.mxu0
  %v125 = vadd.f32 0.0, %v124
  %v126 = vpop.f32.mrf.mxu0
  %127 = vdwg.mxu0
  %128 = vmatpush.bf16.msra.mxu0 0
  %129 = vmatpush.bf16.msra.mxu0 0
  %130 = vmatpush.bf16.msra.mxu0 0
  %131 = vmatpush.bf16.msra.mxu0 0
  %132 = vmatpush.bf16.msra.mxu0 0
  %133 = vmatpush.bf16.msra.mxu0 0
  %134 = vmatpush.bf16.msra.mxu0 0
  %135 = vmatpush.bf16.msra.mxu0 %v60
  %136 = vmatmul.bf16.gmra.mxu0 %v74
  %v137 = vpop.f32.mrf.mxu0
  %v138 = vadd.f32 0.0, %v137
  %v139 = vpop.f32.mrf.mxu0
  %140 = vdwg.mxu0
  %141 = vmatpush.bf16.msra.mxu0 0
  %142 = vmatpush.bf16.msra.mxu0 0
  %143 = vmatpush.bf16.msra.mxu0 0
  %144 = vmatpush.bf16.msra.mxu0 0
  %145 = vmatpush.bf16.msra.mxu0 0
  %146 = vmatpush.bf16.msra.mxu0 0
  %147 = vmatpush.bf16.msra.mxu0 0
  %148 = vmatpush.bf16.msra.mxu0 %v61
  %149 = vmatmul.bf16.gmra.mxu0 %v74
  %v150 = vpop.f32.mrf.mxu0
  %v151 = vadd.f32 0.0, %v150
  %v152 = vpop.f32.mrf.mxu0
  %153 = vdwg.mxu0
  %154 = vmatpush.bf16.msra.mxu0 0
  %155 = vmatpush.bf16.msra.mxu0 0
  %156 = vmatpush.bf16.msra.mxu0 0
  %157 = vmatpush.bf16.msra.mxu0 0
  %158 = vmatpush.bf16.msra.mxu0 0
  %159 = vmatpush.bf16.msra.mxu0 0
  %160 = vmatpush.bf16.msra.mxu0 0
  %161 = vmatpush.bf16.msra.mxu0 %v62
  %162 = vmatmul.bf16.gmra.mxu0 %v74
  %v163 = vpop.f32.mrf.mxu0
  %v164 = vadd.f32 0.0, %v163
  %v165 = vpop.f32.mrf.mxu0
  %166 = vdwg.mxu0
  %167 = vmatpush.bf16.msra.mxu0 0
  %168 = vmatpush.bf16.msra.mxu0 0
  %169 = vmatpush.bf16.msra.mxu0 0
  %170 = vmatpush.bf16.msra.mxu0 0
  %171 = vmatpush.bf16.msra.mxu0 0
  %172 = vmatpush.bf16.msra.mxu0 0
  %173 = vmatpush.bf16.msra.mxu0 0
  %174 = vmatpush.bf16.msra.mxu0 %v63
  %175 = vmatmul.bf16.gmra.mxu0 %v74
  %v176 = vpop.f32.mrf.mxu0
  %v177 = vadd.f32 0.0, %v176
  %v178 = vpop.f32.mrf.mxu0
  %179 = vdwg.mxu0
  %v188 = vrot.slane %v99, 6
  %v189 = vrot.slane %v112, 4
  %v190 = vrot.slane %v125, 2
  %v191 = vrot.slane %v151, 6
  %v192 = vrot.slane %v164, 4
  %v193 = vrot.slane %v177, 2
  %vm194 = vcmask 1041408
  %v195 = vsel %vm194, %v86, %v188
  %vm196 = vcmask 1045508
  %v197 = vsel %vm196, %v189, %v190
  %vm198 = vcmask 1043456
  %v199 = vsel %vm198, %v195, %v197
  %v200 = vsel %vm194, %v138, %v191
  %v201 = vsel %vm196, %v192, %v193
  %v202 = vsel %vm198, %v200, %v201
  %v205 = vadd.f32 %v21, %v199
  %v206 = vadd.f32 %v22, %v202
  %207 = vst [vmem:[#allocation2] sm:$0xff] %v205
  %208 = vst [vmem:[#allocation2 + $0x8] sm:$0xff] %v206
  // Predicated region
  $region14: #{generator_forward.9} parent=0 // pred_check
    %p209 = pneg %p15
  $region15: #{generator_forward.9} parent=0 // pred_check_branch
    %211 = sbr.rel (%p209) target = $region17
  $region16: #{generator_forward.9} parent=0 // pred_region
    %v212 = vld [vmem:[#allocation2] sm:$0xff]
    %v213 = vld [vmem:[#allocation2 + $0x8] sm:$0xff]
    %216 = vst [vmem:[#allocation1] ss:$4 sm:$0xff] %v212
    %s217 = scalar_lea.vmem [#allocation1], 32
    %218 = vst [vmem:[%s217] ss:$4 sm:$0xff] %v213
    %v219 = vld.sshfl [vmem:[#allocation1] sm:$0xff pattern:$0x73625140]
    %v220 = vld.sshfl [vmem:[#allocation1 + $0x8] sm:$0xff pattern:$0x73625140]
    %v221 = vld.sshfl [vmem:[#allocation1 + $0x10] sm:$0xff pattern:$0x73625140]
    %v222 = vld.sshfl [vmem:[#allocation1 + $0x18] sm:$0xff pattern:$0x73625140]
    %v223 = vld.sshfl [vmem:[#allocation1 + $0x20] sm:$0xff pattern:$0x73625140]
    %v224 = vld.sshfl [vmem:[#allocation1 + $0x28] sm:$0xff pattern:$0x73625140]
    %v225 = vld.sshfl [vmem:[#allocation1 + $0x30] sm:$0xff pattern:$0x73625140]
    %v226 = vld.sshfl [vmem:[#allocation1 + $0x38] sm:$0xff pattern:$0x73625140]
    %v235 = vpack.c.bf16 %v220, %v219
    %v236 = vpack.c.bf16 %v222, %v221
    %v237 = vpack.c.bf16 %v224, %v223
    %v238 = vpack.c.bf16 %v226, %v225
    %v243 = vrot.slane %v235, 3
    %v244 = vrot.slane %v236, 6
    %v245 = vrot.slane %v236, 1
    %v246 = vrot.slane %v237, 4
    %v247 = vrot.slane %v237, 7
    %v248 = vrot.slane %v238, 2
    %v249 = vrot.slane %v238, 5
    %vm250 = vcmask 1040384
    %v253 = vsel %vm250, %v235, %v243
    %vm254 = vcmask 1042434
    %v257 = vsel %vm254, %v244, %v245
    %v258 = vsel %vm194, %v253, %v257
    %vm259 = vcmask 1044484
    %v262 = vsel %vm259, %v246, %v247
    %vm263 = vcmask 1046534
    %v266 = vsel %vm263, %v248, %v249
    %v267 = vsel %vm196, %v262, %v266
    %v268 = vsel %vm198, %v258, %v267
    %270 = vst [vmem:[%s2] sm:$0xff] %v268
    %271 = vst [vmem:[#allocation1] ss:$4 sm:$0xff] %v212
    %s272 = scalar_lea.vmem [#allocation1], 32
    %273 = vst [vmem:[%s272] ss:$4 sm:$0xff] %v213
    %v274 = vld.sshfl [vmem:[#allocation1] sm:$0xff pattern:$0x73625140]
    %v275 = vld.sshfl [vmem:[#allocation1 + $0x8] sm:$0xff pattern:$0x73625140]
    %v276 = vld.sshfl [vmem:[#allocation1 + $0x10] sm:$0xff pattern:$0x73625140]
    %v277 = vld.sshfl [vmem:[#allocation1 + $0x18] sm:$0xff pattern:$0x73625140]
    %v278 = vld.sshfl [vmem:[#allocation1 + $0x20] sm:$0xff pattern:$0x73625140]
    %v279 = vld.sshfl [vmem:[#allocation1 + $0x28] sm:$0xff pattern:$0x73625140]
    %v280 = vld.sshfl [vmem:[#allocation1 + $0x30] sm:$0xff pattern:$0x73625140]
    %v281 = vld.sshfl [vmem:[#allocation1 + $0x38] sm:$0xff pattern:$0x73625140]
    %v290 = vsel %vm194, %v274, 0.0
    %v291 = vrot.slane %v290, 4
    %v292 = vadd.f32 %v290, %v291
    %v293 = vrot.slane %v292, 2
    %v294 = vadd.f32 %v292, %v293
    %v295 = vrot.slane %v294, 1
    %v296 = vadd.f32 %v294, %v295
    %v297 = vsel %vm194, %v275, 0.0
    %v298 = vrot.slane %v297, 4
    %v299 = vadd.f32 %v297, %v298
    %v300 = vrot.slane %v299, 2
    %v301 = vadd.f32 %v299, %v300
    %v302 = vrot.slane %v301, 1
    %v303 = vadd.f32 %v301, %v302
    %v304 = vsel %vm194, %v276, 0.0
    %v305 = vrot.slane %v304, 4
    %v306 = vadd.f32 %v304, %v305
    %v307 = vrot.slane %v306, 2
    %v308 = vadd.f32 %v306, %v307
    %v309 = vrot.slane %v308, 1
    %v310 = vadd.f32 %v308, %v309
    %v311 = vsel %vm194, %v277, 0.0
    %v312 = vrot.slane %v311, 4
    %v313 = vadd.f32 %v311, %v312
    %v314 = vrot.slane %v313, 2
    %v315 = vadd.f32 %v313, %v314
    %v316 = vrot.slane %v315, 1
    %v317 = vadd.f32 %v315, %v316
    %v318 = vsel %vm194, %v278, 0.0
    %v319 = vrot.slane %v318, 4
    %v320 = vadd.f32 %v318, %v319
    %v321 = vrot.slane %v320, 2
    %v322 = vadd.f32 %v320, %v321
    %v323 = vrot.slane %v322, 1
    %v324 = vadd.f32 %v322, %v323
    %v325 = vsel %vm194, %v279, 0.0
    %v326 = vrot.slane %v325, 4
    %v327 = vadd.f32 %v325, %v326
    %v328 = vrot.slane %v327, 2
    %v329 = vadd.f32 %v327, %v328
    %v330 = vrot.slane %v329, 1
    %v331 = vadd.f32 %v329, %v330
    %v332 = vsel %vm194, %v280, 0.0
    %v333 = vrot.slane %v332, 4
    %v334 = vadd.f32 %v332, %v333
    %v335 = vrot.slane %v334, 2
    %v336 = vadd.f32 %v334, %v335
    %v337 = vrot.slane %v336, 1
    %v338 = vadd.f32 %v336, %v337
    %v339 = vsel %vm194, %v281, 0.0
    %v340 = vrot.slane %v339, 4
    %v341 = vadd.f32 %v339, %v340
    %v342 = vrot.slane %v341, 2
    %v343 = vadd.f32 %v341, %v342
    %v344 = vrot.slane %v343, 1
    %v345 = vadd.f32 %v343, %v344
    %v354 = vrot.slane %v303, 7
    %v355 = vrot.slane %v310, 6
    %v356 = vrot.slane %v317, 5
    %v357 = vrot.slane %v324, 4
    %v358 = vrot.slane %v331, 3
    %v359 = vrot.slane %v338, 2
    %v360 = vrot.slane %v345, 1
    %v361 = vsel %vm250, %v296, %v354
    %v362 = vsel %vm254, %v355, %v356
    %v363 = vsel %vm194, %v361, %v362
    %v364 = vsel %vm259, %v357, %v358
    %v365 = vsel %vm263, %v359, %v360
    %v366 = vsel %vm196, %v364, %v365
    %v367 = vsel %vm198, %v363, %v366
    %369 = vst [vmem:[%s3] sm:$0xff] %v367
    %v370 = vmul.f32 %v212, %v212
    %v371 = vmul.f32 %v213, %v213
    %374 = vst [vmem:[#allocation1] ss:$4 sm:$0xff] %v370
    %s375 = scalar_lea.vmem [#allocation1], 32
    %376 = vst [vmem:[%s375] ss:$4 sm:$0xff] %v371
    %v377 = vld.sshfl [vmem:[#allocation1] sm:$0xff pattern:$0x73625140]
    %v378 = vld.sshfl [vmem:[#allocation1 + $0x8] sm:$0xff pattern:$0x73625140]
    %v379 = vld.sshfl [vmem:[#allocation1 + $0x10] sm:$0xff pattern:$0x73625140]
    %v380 = vld.sshfl [vmem:[#allocation1 + $0x18] sm:$0xff pattern:$0x73625140]
    %v381 = vld.sshfl [vmem:[#allocation1 + $0x20] sm:$0xff pattern:$0x73625140]
    %v382 = vld.sshfl [vmem:[#allocation1 + $0x28] sm:$0xff pattern:$0x73625140]
    %v383 = vld.sshfl [vmem:[#allocation1 + $0x30] sm:$0xff pattern:$0x73625140]
    %v384 = vld.sshfl [vmem:[#allocation1 + $0x38] sm:$0xff pattern:$0x73625140]
    %v393 = vsel %vm194, %v377, 0.0
    %v394 = vrot.slane %v393, 4
    %v395 = vadd.f32 %v393, %v394
    %v396 = vrot.slane %v395, 2
    %v397 = vadd.f32 %v395, %v396
    %v398 = vrot.slane %v397, 1
    %v399 = vadd.f32 %v397, %v398
    %v400 = vsel %vm194, %v378, 0.0
    %v401 = vrot.slane %v400, 4
    %v402 = vadd.f32 %v400, %v401
    %v403 = vrot.slane %v402, 2
    %v404 = vadd.f32 %v402, %v403
    %v405 = vrot.slane %v404, 1
    %v406 = vadd.f32 %v404, %v405
    %v407 = vsel %vm194, %v379, 0.0
    %v408 = vrot.slane %v407, 4
    %v409 = vadd.f32 %v407, %v408
    %v410 = vrot.slane %v409, 2
    %v411 = vadd.f32 %v409, %v410
    %v412 = vrot.slane %v411, 1
    %v413 = vadd.f32 %v411, %v412
    %v414 = vsel %vm194, %v380, 0.0
    %v415 = vrot.slane %v414, 4
    %v416 = vadd.f32 %v414, %v415
    %v417 = vrot.slane %v416, 2
    %v418 = vadd.f32 %v416, %v417
    %v419 = vrot.slane %v418, 1
    %v420 = vadd.f32 %v418, %v419
    %v421 = vsel %vm194, %v381, 0.0
    %v422 = vrot.slane %v421, 4
    %v423 = vadd.f32 %v421, %v422
    %v424 = vrot.slane %v423, 2
    %v425 = vadd.f32 %v423, %v424
    %v426 = vrot.slane %v425, 1
    %v427 = vadd.f32 %v425, %v426
    %v428 = vsel %vm194, %v382, 0.0
    %v429 = vrot.slane %v428, 4
    %v430 = vadd.f32 %v428, %v429
    %v431 = vrot.slane %v430, 2
    %v432 = vadd.f32 %v430, %v431
    %v433 = vrot.slane %v432, 1
    %v434 = vadd.f32 %v432, %v433
    %v435 = vsel %vm194, %v383, 0.0
    %v436 = vrot.slane %v435, 4
    %v437 = vadd.f32 %v435, %v436
    %v438 = vrot.slane %v437, 2
    %v439 = vadd.f32 %v437, %v438
    %v440 = vrot.slane %v439, 1
    %v441 = vadd.f32 %v439, %v440
    %v442 = vsel %vm194, %v384, 0.0
    %v443 = vrot.slane %v442, 4
    %v444 = vadd.f32 %v442, %v443
    %v445 = vrot.slane %v444, 2
    %v446 = vadd.f32 %v444, %v445
    %v447 = vrot.slane %v446, 1
    %v448 = vadd.f32 %v446, %v447
    %v457 = vrot.slane %v406, 7
    %v458 = vrot.slane %v413, 6
    %v459 = vrot.slane %v420, 5
    %v460 = vrot.slane %v427, 4
    %v461 = vrot.slane %v434, 3
    %v462 = vrot.slane %v441, 2
    %v463 = vrot.slane %v448, 1
    %v464 = vsel %vm250, %v399, %v457
    %v465 = vsel %vm254, %v458, %v459
    %v466 = vsel %vm194, %v464, %v465
    %v467 = vsel %vm259, %v460, %v461
    %v468 = vsel %vm263, %v462, %v463
    %v469 = vsel %vm196, %v467, %v468
    %v470 = vsel %vm198, %v466, %v469
    %472 = vst [vmem:[%s4] sm:$0xff] %v470
  $region17: #{generator_forward.9} parent=0 // pred_fallthru
    _
  // Predicated region
  $region18: #{generator_forward.9} parent=0 // pred_check
    _
  $region19: #{generator_forward.9} parent=0 // pred_check_branch
    %474 = sbr.rel (0) target = $region21
  $region20: #{generator_forward.9} parent=0 // pred_region
    _
  $region21: #{generator_forward.9} parent=0 // pred_fallthru
    _
  // Predicated region
  $region22: #{generator_forward.9} parent=0 // pred_check
    _
  $region23: #{generator_forward.9} parent=0 // pred_check_branch
    %476 = sbr.rel (0) target = $region25
  $region24: #{generator_forward.9} parent=0 // pred_region
    _
  $region25: #{generator_forward.9} parent=0 // pred_fallthru
    _
  // Predicated region
  $region26: #{generator_forward.9} parent=0 // pred_check
    _
  $region27: #{generator_forward.9} parent=0 // pred_check_branch
    %478 = sbr.rel (0) target = $region29
  $region28: #{generator_forward.9} parent=0 // pred_region
    _
  $region29: #{generator_forward.9} parent=0 // pred_fallthru
    _
  // Predicated region
  $region30: #{generator_forward.9} parent=0 // pred_check
    _
  $region31: #{generator_forward.9} parent=0 // pred_check_branch
    %480 = sbr.rel (0) target = $region33
  $region32: #{generator_forward.9} parent=0 // pred_region
    _
  $region33: #{generator_forward.9} parent=0 // pred_fallthru
    _
  // Predicated region
  $region34: #{generator_forward.9} parent=0 // pred_check
    _
  $region35: #{generator_forward.9} parent=0 // pred_check_branch
    %482 = sbr.rel (0) target = $region37
  $region36: #{generator_forward.9} parent=0 // pred_region
    _
  $region37: #{generator_forward.9} parent=0 // pred_fallthru
    _
  // Predicated region
  $region38: #{generator_forward.9} parent=0 // pred_check
    _
  $region39: #{generator_forward.9} parent=0 // pred_check_branch
    %484 = sbr.rel (0) target = $region41
  $region40: #{generator_forward.9} parent=0 // pred_region
    _
  $region41: #{generator_forward.9} parent=0 // pred_fallthru
    _

// kernel: tile.58
$region0: #{tile.58}
  #allocation0 [shape = 's32[1]{0}', space=sflag, size = 0x4, scoped, tag = 'scoped memory for tile.58']
  %s0 = inlined_call_operand.vmem [shape: f32[32], index: 0, kind: input, shape index: {}]
  %s1 = inlined_call_operand.vmem [shape: f32[4,32], index: 1, kind: output, shape index: {}]
  // Predicated region
  $region2: #{tile.58} parent=0 // pred_check
    _
  $region3: #{tile.58} parent=0 // pred_check_branch
    %3 = sbr.rel (0) target = $region5
  $region4: #{tile.58} parent=0 // pred_region
    _
  $region5: #{tile.58} parent=0 // pred_fallthru
    _
  %v4 = vld [vmem:[%s0] ss:$0 sm:$0xff]
  %5 = vst [vmem:[%s1] sm:$0xf] %v4

// kernel: tile.63
$region0: #{tile.63}
  %s0 = inlined_call_operand.vmem [shape: f32[4,32], index: 0, kind: input, shape index: {}]
  %s1 = inlined_call_operand.vmem [shape: f32[1,128], index: 1, kind: output, shape index: {}]
  $region1: #{tile.63} parent=0
    #allocation0 [shape = 'u8[4096]{0}', space=vmem, size = 0x1000, scoped, tag = 'scoped mem for output reshape']
    #allocation1 [shape = 'u8[4096]{0}', space=vmem, size = 0x1000, scoped, tag = 'scoped mem for input reshape']
    %s3 = ssub.s32 16, 1
    %v4 = vld [vmem:[%s0] sm:%s3]
    %5 = vst [vmem:[#allocation1] sm:%s3] %v4
    %v6 = vld [vmem:[#allocation1] sm:$0x1]
    %vm7 = vcmask 261120
    %8 = vst.msk [vmem:[#allocation0] sm:$0x1] %vm7, %v6
    %s9 = scalar_lea.vmem [#allocation1], 3
    %v10 = vld [vmem:[%s9] sm:$0x1]
    %11 = vrot.lane.b32.xlu0 %v10, 96
    %v12 = vpop.permute.xlu0 %11
    %vm13 = vcmask 1048320
    %14 = vst.msk [vmem:[#allocation0] sm:$0x1] %vm13, %v12
    %s15 = scalar_lea.vmem [#allocation1], 2
    %v16 = vld [vmem:[%s15] sm:$0x1]
    %17 = vrot.lane.b32.xlu0 %v16, 64
    %v18 = vpop.permute.xlu0 %17
    %vm19 = vcmask 785920
    %20 = vst.msk [vmem:[#allocation0] sm:$0x1] %vm19, %v18
    %s21 = scalar_lea.vmem [#allocation1], 1
    %v22 = vld [vmem:[%s21] sm:$0x1]
    %23 = vrot.lane.b32.xlu0 %v22, 32
    %v24 = vpop.permute.xlu0 %23
    %vm25 = vcmask 523520
    %26 = vst.msk [vmem:[#allocation0] sm:$0x1] %vm25, %v24
    %s28 = ssub.s32 2, 1
    %v29 = vld [vmem:[#allocation0] sm:%s28]
    %s31 = ssub.s32 2, 1
    %32 = vst [vmem:[%s1] sm:%s31] %v29

// kernel: generator_forward.12
$region0: #{generator_forward.12}
  #allocation0 [shape = 'u32[]', space=smem, size = 0x4, offset = 0x4, fixed_abs, tag = 'smem constant byte address 0x4 - core index']
  #allocation1 [shape = 'u32[72,128]{1,0:T(1,128)}', space=vmem, size = 0x9000, scoped, tag = 'internal scratch']
  %s0 = inlined_call_operand.vmem [shape: bf16[32,128], index: 0, kind: input, shape index: {}]
  %s1 = inlined_call_operand.vmem [shape: f32[1,128], index: 1, kind: input, shape index: {}]
  %s2 = inlined_call_operand.vmem [shape: f32[1,128], index: 2, kind: input, shape index: {}]
  %s3 = inlined_call_operand.vmem [shape: bf16[32,128], index: 3, kind: output, shape index: {}]
  %s4 = sld [smem:[#allocation0]]
  $region22: #{generator_forward.12} parent=0
    _
  %s6 = ssub.s32 1, %s4
  %s7 = scalar_select 0, %s6, %s4
  // Predicated region
  $region2: #{generator_forward.12} parent=0 // pred_check
    _
  $region3: #{generator_forward.12} parent=0 // pred_check_branch
    %9 = sbr.rel (0) target = $region5
  $region4: #{generator_forward.12} parent=0 // pred_region
    _
  $region5: #{generator_forward.12} parent=0 // pred_fallthru
    _
  // Predicated region
  $region6: #{generator_forward.12} parent=0 // pred_check
    _
  $region7: #{generator_forward.12} parent=0 // pred_check_branch
    %11 = sbr.rel (0) target = $region9
  $region8: #{generator_forward.12} parent=0 // pred_region
    _
  $region9: #{generator_forward.12} parent=0 // pred_fallthru
    _
  // Predicated region
  $region10: #{generator_forward.12} parent=0 // pred_check
    _
  $region11: #{generator_forward.12} parent=0 // pred_check_branch
    %13 = sbr.rel (0) target = $region13
  $region12: #{generator_forward.12} parent=0 // pred_region
    _
  $region13: #{generator_forward.12} parent=0 // pred_fallthru
    _
  %v14 = vld [vmem:[%s0] sm:$0xf]
  %v15 = vld [vmem:[%s0 + $0x4] sm:$0xf]
  %v16 = vld [vmem:[%s0 + $0x8] sm:$0xf]
  %v17 = vld [vmem:[%s0 + $0xc] sm:$0xf]
  %v18 = vunpack.c.l.bf16 %v14
  %v19 = vunpack.c.l.bf16 %v15
  %v20 = vunpack.c.l.bf16 %v16
  %v21 = vunpack.c.l.bf16 %v17
  %v22 = vld [vmem:[%s1] sm:$0x1]
  %v24 = vperm.slane %v22, 0
  %v26 = vmul.f32 %v18, %v24
  %v27 = vmul.f32 %v19, %v24
  %v28 = vmul.f32 %v20, %v24
  %v29 = vmul.f32 %v21, %v24
  %v30 = vld [vmem:[%s2] sm:$0x1]
  %v32 = vperm.slane %v30, 0
  %v34 = vadd.f32 %v26, %v32
  %v35 = vadd.f32 %v27, %v32
  %v36 = vadd.f32 %v28, %v32
  %v37 = vadd.f32 %v29, %v32
  %v38 = vmax.f32 %v34, 0.0
  %v39 = vmax.f32 %v35, 0.0
  %v40 = vmax.f32 %v36, 0.0
  %v41 = vmax.f32 %v37, 0.0
  %v42 = vpack.c.bf16 %v38, %v38
  %v43 = vpack.c.bf16 %v39, %v39
  %v44 = vpack.c.bf16 %v40, %v40
  %v45 = vpack.c.bf16 %v41, %v41
  %46 = vst [vmem:[%s3] sm:$0xf] %v42
  %47 = vst [vmem:[%s3 + $0x4] sm:$0xf] %v43
  %48 = vst [vmem:[%s3 + $0x8] sm:$0xf] %v44
  %49 = vst [vmem:[%s3 + $0xc] sm:$0xf] %v45
  // Predicated region
  $region14: #{generator_forward.12} parent=0 // pred_check
    _
  $region15: #{generator_forward.12} parent=0 // pred_check_branch
    %51 = sbr.rel (0) target = $region17
  $region16: #{generator_forward.12} parent=0 // pred_region
    _
  $region17: #{generator_forward.12} parent=0 // pred_fallthru
    _
  // Predicated region
  $region18: #{generator_forward.12} parent=0 // pred_check
    _
  $region19: #{generator_forward.12} parent=0 // pred_check_branch
    %53 = sbr.rel (0) target = $region21
  $region20: #{generator_forward.12} parent=0 // pred_region
    _
  $region21: #{generator_forward.12} parent=0 // pred_fallthru
    _

// kernel: generator_forward.11
$region0: #{generator_forward.11}
  #allocation0 [shape = 'u32[]', space=smem, size = 0x4, offset = 0x4, fixed_abs, tag = 'smem constant byte address 0x4 - core index']
  #allocation1 [shape = 'u32[72,128]{1,0:T(1,128)}', space=vmem, size = 0x9000, scoped, tag = 'internal scratch']
  #allocation2 [shape = 'f32[32,128]{1,0:T(8,128)}', space=vmem, size = 0x4000, scoped, tag = 'scratch operand']
  %s0 = inlined_call_operand.vmem [shape: bf16[32,576], index: 0, kind: input, shape index: {}]
  %s1 = inlined_call_operand.vmem [shape: bf16[576,128], index: 1, kind: input, shape index: {}]
  %s2 = inlined_call_operand.vmem [shape: bf16[32,128], index: 2, kind: output, shape index: {0}]
  %s3 = inlined_call_operand.vmem [shape: f32[1,1,128], index: 3, kind: output, shape index: {1}]
  %s4 = inlined_call_operand.vmem [shape: f32[1,1,128], index: 4, kind: output, shape index: {2}]
  %5 = xla_tuple %s2, %s3, %s4
  %s6 = sld [smem:[#allocation0]]
  $region42: #{generator_forward.11} parent=0
    _
  %s8 = ssub.s32 1, %s6
  %s9 = scalar_select 0, %s8, %s6
  // Predicated region
  $region2: #{generator_forward.11} parent=0 // pred_check
    _
  $region3: #{generator_forward.11} parent=0 // pred_check_branch
    %11 = sbr.rel (0) target = $region5
  $region4: #{generator_forward.11} parent=0 // pred_region
    _
  $region5: #{generator_forward.11} parent=0 // pred_fallthru
    _
  // Predicated region
  $region6: #{generator_forward.11} parent=0 // pred_check
    _
  $region7: #{generator_forward.11} parent=0 // pred_check_branch
    %13 = sbr.rel (0) target = $region9
  $region8: #{generator_forward.11} parent=0 // pred_region
    _
  $region9: #{generator_forward.11} parent=0 // pred_fallthru
    _
  %p15 = scmp.eq.s32.totalorder 0, 0
  // Predicated region
  $region10: #{generator_forward.11} parent=0 // pred_check
    %p16 = pneg %p15
  $region11: #{generator_forward.11} parent=0 // pred_check_branch
    %18 = sbr.rel (%p16) target = $region13
  $region12: #{generator_forward.11} parent=0 // pred_region
    %19 = vst [vmem:[#allocation2] sm:$0xff] 0.0
    %20 = vst [vmem:[#allocation2 + $0x8] sm:$0xff] 0.0
    %21 = vst [vmem:[#allocation2 + $0x10] sm:$0xff] 0.0
    %22 = vst [vmem:[#allocation2 + $0x18] sm:$0xff] 0.0
  $region13: #{generator_forward.11} parent=0 // pred_fallthru
    _
  %v23 = vld [vmem:[#allocation2] sm:$0xff]
  %v24 = vld [vmem:[#allocation2 + $0x8] sm:$0xff]
  %v25 = vld [vmem:[#allocation2 + $0x10] sm:$0xff]
  %v26 = vld [vmem:[#allocation2 + $0x18] sm:$0xff]
  %v27 = vld [vmem:[%s0] sm:$0xff]
  %v28 = vld [vmem:[%s0 + $0x8] sm:$0xff]
  %v29 = vld [vmem:[%s0 + $0x10] sm:$0xf]
  %v30 = vld [vmem:[%s0 + $0x14] sm:$0xff]
  %v31 = vld [vmem:[%s0 + $0x1c] sm:$0xff]
  %v32 = vld [vmem:[%s0 + $0x24] sm:$0xf]
  %v33 = vld [vmem:[%s0 + $0x28] sm:$0xff]
  %v34 = vld [vmem:[%s0 + $0x30] sm:$0xff]
  %v35 = vld [vmem:[%s0 + $0x38] sm:$0xf]
  %v36 = vld [vmem:[%s0 + $0x3c] sm:$0xff]
  %v37 = vld [vmem:[%s0 + $0x44] sm:$0xff]
  %v38 = vld [vmem:[%s0 + $0x4c] sm:$0xf]
  %v39 = vld [vmem:[%s1] sm:$0xf]
  %v40 = vld [vmem:[%s1 + $0x4] sm:$0xf]
  %v41 = vld [vmem:[%s1 + $0x8] sm:$0xf]
  %v42 = vld [vmem:[%s1 + $0xc] sm:$0xf]
  %v43 = vld [vmem:[%s1 + $0x10] sm:$0xf]
  %v44 = vld [vmem:[%s1 + $0x14] sm:$0xf]
  %v45 = vld [vmem:[%s1 + $0x18] sm:$0xf]
  %v46 = vld [vmem:[%s1 + $0x1c] sm:$0xf]
  %v47 = vld [vmem:[%s1 + $0x20] sm:$0xf]
  %v48 = vld [vmem:[%s1 + $0x24] sm:$0xf]
  %v49 = vld [vmem:[%s1 + $0x28] sm:$0xf]
  %v50 = vld [vmem:[%s1 + $0x2c] sm:$0xf]
  %v51 = vld [vmem:[%s1 + $0x30] sm:$0xf]
  %v52 = vld [vmem:[%s1 + $0x34] sm:$0xf]
  %v53 = vld [vmem:[%s1 + $0x38] sm:$0xf]
  %v54 = vld [vmem:[%s1 + $0x3c] sm:$0xf]
  %v55 = vld [vmem:[%s1 + $0x40] sm:$0xf]
  %v56 = vld [vmem:[%s1 + $0x44] sm:$0xf]
  %v57 = vld [vmem:[%s1 + $0x48] sm:$0xf]
  %v58 = vld [vmem:[%s1 + $0x4c] sm:$0xf]
  %v59 = vld [vmem:[%s1 + $0x50] sm:$0xf]
  %v60 = vld [vmem:[%s1 + $0x54] sm:$0xf]
  %v61 = vld [vmem:[%s1 + $0x58] sm:$0xf]
  %v62 = vld [vmem:[%s1 + $0x5c] sm:$0xf]
  %v63 = vld [vmem:[%s1 + $0x60] sm:$0xf]
  %v64 = vld [vmem:[%s1 + $0x64] sm:$0xf]
  %v65 = vld [vmem:[%s1 + $0x68] sm:$0xf]
  %v66 = vld [vmem:[%s1 + $0x6c] sm:$0xf]
  %v67 = vld [vmem:[%s1 + $0x70] sm:$0xf]
  %v68 = vld [vmem:[%s1 + $0x74] sm:$0xf]
  %v69 = vld [vmem:[%s1 + $0x78] sm:$0xf]
  %v70 = vld [vmem:[%s1 + $0x7c] sm:$0xf]
  %v71 = vld [vmem:[%s1 + $0x80] sm:$0xf]
  %v72 = vld [vmem:[%s1 + $0x84] sm:$0xf]
  %v73 = vld [vmem:[%s1 + $0x88] sm:$0xf]
  %v74 = vld [vmem:[%s1 + $0x8c] sm:$0xf]
  %v75 = vld [vmem:[%s1 + $0x90] sm:$0xf]
  %v76 = vld [vmem:[%s1 + $0x94] sm:$0xf]
  %v77 = vld [vmem:[%s1 + $0x98] sm:$0xf]
  %v78 = vld [vmem:[%s1 + $0x9c] sm:$0xf]
  %v79 = vld [vmem:[%s1 + $0xa0] sm:$0xf]
  %v80 = vld [vmem:[%s1 + $0xa4] sm:$0xf]
  %v81 = vld [vmem:[%s1 + $0xa8] sm:$0xf]
  %v82 = vld [vmem:[%s1 + $0xac] sm:$0xf]
  %v83 = vld [vmem:[%s1 + $0xb0] sm:$0xf]
  %v84 = vld [vmem:[%s1 + $0xb4] sm:$0xf]
  %v85 = vld [vmem:[%s1 + $0xb8] sm:$0xf]
  %v86 = vld [vmem:[%s1 + $0xbc] sm:$0xf]
  %v87 = vld [vmem:[%s1 + $0xc0] sm:$0xf]
  %v88 = vld [vmem:[%s1 + $0xc4] sm:$0xf]
  %v89 = vld [vmem:[%s1 + $0xc8] sm:$0xf]
  %v90 = vld [vmem:[%s1 + $0xcc] sm:$0xf]
  %v91 = vld [vmem:[%s1 + $0xd0] sm:$0xf]
  %v92 = vld [vmem:[%s1 + $0xd4] sm:$0xf]
  %v93 = vld [vmem:[%s1 + $0xd8] sm:$0xf]
  %v94 = vld [vmem:[%s1 + $0xdc] sm:$0xf]
  %v95 = vld [vmem:[%s1 + $0xe0] sm:$0xf]
  %v96 = vld [vmem:[%s1 + $0xe4] sm:$0xf]
  %v97 = vld [vmem:[%s1 + $0xe8] sm:$0xf]
  %v98 = vld [vmem:[%s1 + $0xec] sm:$0xf]
  %v99 = vld [vmem:[%s1 + $0xf0] sm:$0xf]
  %v100 = vld [vmem:[%s1 + $0xf4] sm:$0xf]
  %v101 = vld [vmem:[%s1 + $0xf8] sm:$0xf]
  %v102 = vld [vmem:[%s1 + $0xfc] sm:$0xf]
  %v103 = vld [vmem:[%s1 + $0x100] sm:$0xf]
  %v104 = vld [vmem:[%s1 + $0x104] sm:$0xf]
  %v105 = vld [vmem:[%s1 + $0x108] sm:$0xf]
  %v106 = vld [vmem:[%s1 + $0x10c] sm:$0xf]
  %v107 = vld [vmem:[%s1 + $0x110] sm:$0xf]
  %v108 = vld [vmem:[%s1 + $0x114] sm:$0xf]
  %v109 = vld [vmem:[%s1 + $0x118] sm:$0xf]
  %v110 = vld [vmem:[%s1 + $0x11c] sm:$0xf]
  %v123 = vunpack.c.l.b16 %v27
  %v124 = vunpack.c.h.b16 %v27
  %v125 = vunpack.c.l.b16 %v28
  %v126 = vunpack.c.h.b16 %v28
  %v127 = vunpack.c.l.b16 %v29
  %v128 = vunpack.c.l.b16 %v30
  %v129 = vunpack.c.h.b16 %v30
  %v130 = vunpack.c.l.b16 %v31
  %v131 = vunpack.c.h.b16 %v31
  %v132 = vunpack.c.l.b16 %v32
  %v133 = vunpack.c.l.b16 %v33
  %v134 = vunpack.c.h.b16 %v33
  %v135 = vunpack.c.l.b16 %v34
  %v136 = vunpack.c.h.b16 %v34
  %v137 = vunpack.c.l.b16 %v35
  %v138 = vunpack.c.l.b16 %v36
  %v139 = vunpack.c.h.b16 %v36
  %v140 = vunpack.c.l.b16 %v37
  %v141 = vunpack.c.h.b16 %v37
  %v142 = vunpack.c.l.b16 %v38
  %v143 = vpack.c.b16 %v128, %v123
  %v144 = vpack.c.b16 %v129, %v124
  %v145 = vpack.c.b16 %v130, %v125
  %v146 = vpack.c.b16 %v131, %v126
  %v147 = vpack.c.b16 %v132, %v127
  %v148 = vpack.c.b16 %v138, %v133
  %v149 = vpack.c.b16 %v139, %v134
  %v150 = vpack.c.b16 %v140, %v135
  %v151 = vpack.c.b16 %v141, %v136
  %v152 = vpack.c.b16 %v142, %v137
  %v233 = vunpack.c.l.b16 %v39
  %v234 = vunpack.c.l.b16 %v40
  %v235 = vunpack.c.l.b16 %v41
  %v236 = vunpack.c.l.b16 %v42
  %v237 = vunpack.c.l.b16 %v43
  %v238 = vunpack.c.l.b16 %v44
  %v239 = vunpack.c.l.b16 %v45
  %v240 = vunpack.c.l.b16 %v46
  %v241 = vunpack.c.l.b16 %v47
  %v242 = vunpack.c.l.b16 %v48
  %v243 = vunpack.c.l.b16 %v49
  %v244 = vunpack.c.l.b16 %v50
  %v245 = vunpack.c.l.b16 %v51
  %v246 = vunpack.c.l.b16 %v52
  %v247 = vunpack.c.l.b16 %v53
  %v248 = vunpack.c.l.b16 %v54
  %v249 = vunpack.c.l.b16 %v55
  %v250 = vunpack.c.l.b16 %v56
  %v251 = vunpack.c.l.b16 %v57
  %v252 = vunpack.c.l.b16 %v58
  %v253 = vunpack.c.l.b16 %v59
  %v254 = vunpack.c.l.b16 %v60
  %v255 = vunpack.c.l.b16 %v61
  %v256 = vunpack.c.l.b16 %v62
  %v257 = vunpack.c.l.b16 %v63
  %v258 = vunpack.c.l.b16 %v64
  %v259 = vunpack.c.l.b16 %v65
  %v260 = vunpack.c.l.b16 %v66
  %v261 = vunpack.c.l.b16 %v67
  %v262 = vunpack.c.l.b16 %v68
  %v263 = vunpack.c.l.b16 %v69
  %v264 = vunpack.c.l.b16 %v70
  %v265 = vunpack.c.l.b16 %v71
  %v266 = vunpack.c.l.b16 %v72
  %v267 = vunpack.c.l.b16 %v73
  %v268 = vunpack.c.l.b16 %v74
  %v269 = vunpack.c.l.b16 %v75
  %v270 = vunpack.c.l.b16 %v76
  %v271 = vunpack.c.l.b16 %v77
  %v272 = vunpack.c.l.b16 %v78
  %v273 = vunpack.c.l.b16 %v79
  %v274 = vunpack.c.l.b16 %v80
  %v275 = vunpack.c.l.b16 %v81
  %v276 = vunpack.c.l.b16 %v82
  %v277 = vunpack.c.l.b16 %v83
  %v278 = vunpack.c.l.b16 %v84
  %v279 = vunpack.c.l.b16 %v85
  %v280 = vunpack.c.l.b16 %v86
  %v281 = vunpack.c.l.b16 %v87
  %v282 = vunpack.c.l.b16 %v88
  %v283 = vunpack.c.l.b16 %v89
  %v284 = vunpack.c.l.b16 %v90
  %v285 = vunpack.c.l.b16 %v91
  %v286 = vunpack.c.l.b16 %v92
  %v287 = vunpack.c.l.b16 %v93
  %v288 = vunpack.c.l.b16 %v94
  %v289 = vunpack.c.l.b16 %v95
  %v290 = vunpack.c.l.b16 %v96
  %v291 = vunpack.c.l.b16 %v97
  %v292 = vunpack.c.l.b16 %v98
  %v293 = vunpack.c.l.b16 %v99
  %v294 = vunpack.c.l.b16 %v100
  %v295 = vunpack.c.l.b16 %v101
  %v296 = vunpack.c.l.b16 %v102
  %v297 = vunpack.c.l.b16 %v103
  %v298 = vunpack.c.l.b16 %v104
  %v299 = vunpack.c.l.b16 %v105
  %v300 = vunpack.c.l.b16 %v106
  %v301 = vunpack.c.l.b16 %v107
  %v302 = vunpack.c.l.b16 %v108
  %v303 = vunpack.c.l.b16 %v109
  %v304 = vunpack.c.l.b16 %v110
  %v305 = vpack.c.b16 %v234, %v233
  %v306 = vpack.c.b16 %v236, %v235
  %v307 = vpack.c.b16 %v238, %v237
  %v308 = vpack.c.b16 %v240, %v239
  %v309 = vpack.c.b16 %v242, %v241
  %v310 = vpack.c.b16 %v244, %v243
  %v311 = vpack.c.b16 %v246, %v245
  %v312 = vpack.c.b16 %v248, %v247
  %v313 = vpack.c.b16 %v250, %v249
  %v314 = vpack.c.b16 %v252, %v251
  %v315 = vpack.c.b16 %v254, %v253
  %v316 = vpack.c.b16 %v256, %v255
  %v317 = vpack.c.b16 %v258, %v257
  %v318 = vpack.c.b16 %v260, %v259
  %v319 = vpack.c.b16 %v262, %v261
  %v320 = vpack.c.b16 %v264, %v263
  %v321 = vpack.c.b16 %v266, %v265
  %v322 = vpack.c.b16 %v268, %v267
  %v323 = vpack.c.b16 %v270, %v269
  %v324 = vpack.c.b16 %v272, %v271
  %v325 = vpack.c.b16 %v274, %v273
  %v326 = vpack.c.b16 %v276, %v275
  %v327 = vpack.c.b16 %v278, %v277
  %v328 = vpack.c.b16 %v280, %v279
  %v329 = vpack.c.b16 %v282, %v281
  %v330 = vpack.c.b16 %v284, %v283
  %v331 = vpack.c.b16 %v286, %v285
  %v332 = vpack.c.b16 %v288, %v287
  %v333 = vpack.c.b16 %v290, %v289
  %v334 = vpack.c.b16 %v292, %v291
  %v335 = vpack.c.b16 %v294, %v293
  %v336 = vpack.c.b16 %v296, %v295
  %v337 = vpack.c.b16 %v298, %v297
  %v338 = vpack.c.b16 %v300, %v299
  %v339 = vpack.c.b16 %v302, %v301
  %v340 = vpack.c.b16 %v304, %v303
  %vm377 = vcmask 523264
  %v379 = vsel %vm377, %v147, 0
  %v382 = vsel %vm377, %v152, 0
  %384 = vmatpush.bf16.msra.mxu0 %v312
  %385 = vmatpush.bf16.msra.mxu0 %v311
  %386 = vmatpush.bf16.msra.mxu0 %v310
  %387 = vmatpush.bf16.msra.mxu0 %v309
  %388 = vmatpush.bf16.msra.mxu0 %v308
  %389 = vmatpush.bf16.msra.mxu0 %v307
  %390 = vmatpush.bf16.msra.mxu0 %v306
  %391 = vmatpush.bf16.msra.mxu0 %v305
  %392 = vmatmul.bf16.gmra.mxu0 %v143
  %v393 = vpop.f32.mrf.mxu0
  %v394 = vadd.f32 0.0, %v393
  %v395 = vpop.f32.mrf.mxu0
  %v396 = vadd.f32 0.0, %v395
  %397 = vmatmul.bf16.gmra.mxu0 %v148
  %v398 = vpop.f32.mrf.mxu0
  %v399 = vadd.f32 0.0, %v398
  %v400 = vpop.f32.mrf.mxu0
  %v401 = vadd.f32 0.0, %v400
  %402 = vdwg.mxu0
  %403 = vmatpush.bf16.msra.mxu0 %v320
  %404 = vmatpush.bf16.msra.mxu0 %v319
  %405 = vmatpush.bf16.msra.mxu0 %v318
  %406 = vmatpush.bf16.msra.mxu0 %v317
  %407 = vmatpush.bf16.msra.mxu0 %v316
  %408 = vmatpush.bf16.msra.mxu0 %v315
  %409 = vmatpush.bf16.msra.mxu0 %v314
  %410 = vmatpush.bf16.msra.mxu0 %v313
  %411 = vmatmul.bf16.gmra.mxu0 %v144
  %v412 = vpop.f32.mrf.mxu0
  %v413 = vadd.f32 %v394, %v412
  %v414 = vpop.f32.mrf.mxu0
  %v415 = vadd.f32 %v396, %v414
  %416 = vmatmul.bf16.gmra.mxu0 %v149
  %v417 = vpop.f32.mrf.mxu0
  %v418 = vadd.f32 %v399, %v417
  %v419 = vpop.f32.mrf.mxu0
  %v420 = vadd.f32 %v401, %v419
  %421 = vdwg.mxu0
  %422 = vmatpush.bf16.msra.mxu0 %v328
  %423 = vmatpush.bf16.msra.mxu0 %v327
  %424 = vmatpush.bf16.msra.mxu0 %v326
  %425 = vmatpush.bf16.msra.mxu0 %v325
  %426 = vmatpush.bf16.msra.mxu0 %v324
  %427 = vmatpush.bf16.msra.mxu0 %v323
  %428 = vmatpush.bf16.msra.mxu0 %v322
  %429 = vmatpush.bf16.msra.mxu0 %v321
  %430 = vmatmul.bf16.gmra.mxu0 %v145
  %v431 = vpop.f32.mrf.mxu0
  %v432 = vadd.f32 %v413, %v431
  %v433 = vpop.f32.mrf.mxu0
  %v434 = vadd.f32 %v415, %v433
  %435 = vmatmul.bf16.gmra.mxu0 %v150
  %v436 = vpop.f32.mrf.mxu0
  %v437 = vadd.f32 %v418, %v436
  %v438 = vpop.f32.mrf.mxu0
  %v439 = vadd.f32 %v420, %v438
  %440 = vdwg.mxu0
  %441 = vmatpush.bf16.msra.mxu0 %v336
  %442 = vmatpush.bf16.msra.mxu0 %v335
  %443 = vmatpush.bf16.msra.mxu0 %v334
  %444 = vmatpush.bf16.msra.mxu0 %v333
  %445 = vmatpush.bf16.msra.mxu0 %v332
  %446 = vmatpush.bf16.msra.mxu0 %v331
  %447 = vmatpush.bf16.msra.mxu0 %v330
  %448 = vmatpush.bf16.msra.mxu0 %v329
  %449 = vmatmul.bf16.gmra.mxu0 %v146
  %v450 = vpop.f32.mrf.mxu0
  %v451 = vadd.f32 %v432, %v450
  %v452 = vpop.f32.mrf.mxu0
  %v453 = vadd.f32 %v434, %v452
  %454 = vmatmul.bf16.gmra.mxu0 %v151
  %v455 = vpop.f32.mrf.mxu0
  %v456 = vadd.f32 %v437, %v455
  %v457 = vpop.f32.mrf.mxu0
  %v458 = vadd.f32 %v439, %v457
  %459 = vdwg.mxu0
  %460 = vmatpush.bf16.msra.mxu0 0
  %461 = vmatpush.bf16.msra.mxu0 0
  %462 = vmatpush.bf16.msra.mxu0 0
  %463 = vmatpush.bf16.msra.mxu0 0
  %464 = vmatpush.bf16.msra.mxu0 %v340
  %465 = vmatpush.bf16.msra.mxu0 %v339
  %466 = vmatpush.bf16.msra.mxu0 %v338
  %467 = vmatpush.bf16.msra.mxu0 %v337
  %468 = vmatmul.bf16.gmra.mxu0 %v379
  %v469 = vpop.f32.mrf.mxu0
  %v470 = vadd.f32 %v451, %v469
  %v471 = vpop.f32.mrf.mxu0
  %v472 = vadd.f32 %v453, %v471
  %473 = vmatmul.bf16.gmra.mxu0 %v382
  %v474 = vpop.f32.mrf.mxu0
  %v475 = vadd.f32 %v456, %v474
  %v476 = vpop.f32.mrf.mxu0
  %v477 = vadd.f32 %v458, %v476
  %478 = vdwg.mxu0
  %v479 = vadd.f32 %v23, %v470
  %v480 = vadd.f32 %v24, %v472
  %v481 = vadd.f32 %v25, %v475
  %v482 = vadd.f32 %v26, %v477
  %483 = vst [vmem:[#allocation2] sm:$0xff] %v479
  %484 = vst [vmem:[#allocation2 + $0x8] sm:$0xff] %v480
  %485 = vst [vmem:[#allocation2 + $0x10] sm:$0xff] %v481
  %486 = vst [vmem:[#allocation2 + $0x18] sm:$0xff] %v482
  // Predicated region
  $region14: #{generator_forward.11} parent=0 // pred_check
    %p487 = pneg %p15
  $region15: #{generator_forward.11} parent=0 // pred_check_branch
    %489 = sbr.rel (%p487) target = $region17
  $region16: #{generator_forward.11} parent=0 // pred_region
    %v490 = vld [vmem:[#allocation2] sm:$0xff]
    %v491 = vld [vmem:[#allocation2 + $0x8] sm:$0xff]
    %v492 = vld [vmem:[#allocation2 + $0x10] sm:$0xff]
    %v493 = vld [vmem:[#allocation2 + $0x18] sm:$0xff]
    %v494 = vpack.c.bf16 %v490, %v490
    %v495 = vpack.c.bf16 %v491, %v491
    %v496 = vpack.c.bf16 %v492, %v492
    %v497 = vpack.c.bf16 %v493, %v493
    %498 = vst [vmem:[%s2] sm:$0xf] %v494
    %499 = vst [vmem:[%s2 + $0x4] sm:$0xf] %v495
    %500 = vst [vmem:[%s2 + $0x8] sm:$0xf] %v496
    %501 = vst [vmem:[%s2 + $0xc] sm:$0xf] %v497
    %v502 = vadd.f32 %v490, %v491
    %v503 = vadd.f32 %v502, %v492
    %v504 = vadd.f32 %v503, %v493
    %v505 = vrot.slane %v504, 4
    %v506 = vadd.f32 %v504, %v505
    %v507 = vrot.slane %v506, 2
    %v508 = vadd.f32 %v506, %v507
    %v509 = vrot.slane %v508, 1
    %v510 = vadd.f32 %v508, %v509
    %511 = vst [vmem:[%s3] sm:$0x1] %v510
    %v512 = vmul.f32 %v490, %v490
    %v513 = vmul.f32 %v491, %v491
    %v514 = vmul.f32 %v492, %v492
    %v515 = vmul.f32 %v493, %v493
    %v516 = vadd.f32 %v512, %v513
    %v517 = vadd.f32 %v516, %v514
    %v518 = vadd.f32 %v517, %v515
    %v519 = vrot.slane %v518, 4
    %v520 = vadd.f32 %v518, %v519
    %v521 = vrot.slane %v520, 2
    %v522 = vadd.f32 %v520, %v521
    %v523 = vrot.slane %v522, 1
    %v524 = vadd.f32 %v522, %v523
    %525 = vst [vmem:[%s4] sm:$0x1] %v524
  $region17: #{generator_forward.11} parent=0 // pred_fallthru
    _
  // Predicated region
  $region18: #{generator_forward.11} parent=0 // pred_check
    _
  $region19: #{generator_forward.11} parent=0 // pred_check_branch
    %527 = sbr.rel (0) target = $region21
  $region20: #{generator_forward.11} parent=0 // pred_region
    _
  $region21: #{generator_forward.11} parent=0 // pred_fallthru
    _
  // Predicated region
  $region22: #{generator_forward.11} parent=0 // pred_check
    _
  $region23: #{generator_forward.11} parent=0 // pred_check_branch
    %529 = sbr.rel (0) target = $region25
  $region24: #{generator_forward.11} parent=0 // pred_region
    _
  $region25: #{generator_forward.11} parent=0 // pred_fallthru
    _
  // Predicated region
  $region26: #{generator_forward.11} parent=0 // pred_check
    _
  $region27: #{generator_forward.11} parent=0 // pred_check_branch
    %531 = sbr.rel (0) target = $region29
  $region28: #{generator_forward.11} parent=0 // pred_region
    _
  $region29: #{generator_forward.11} parent=0 // pred_fallthru
    _
  // Predicated region
  $region30: #{generator_forward.11} parent=0 // pred_check
    _
  $region31: #{generator_forward.11} parent=0 // pred_check_branch
    %533 = sbr.rel (0) target = $region33
  $region32: #{generator_forward.11} parent=0 // pred_region
    _
  $region33: #{generator_forward.11} parent=0 // pred_fallthru
    _
  // Predicated region
  $region34: #{generator_forward.11} parent=0 // pred_check
    _
  $region35: #{generator_forward.11} parent=0 // pred_check_branch
    %535 = sbr.rel (0) target = $region37
  $region36: #{generator_forward.11} parent=0 // pred_region
    _
  $region37: #{generator_forward.11} parent=0 // pred_fallthru
    _
  // Predicated region
  $region38: #{generator_forward.11} parent=0 // pred_check
    _
  $region39: #{generator_forward.11} parent=0 // pred_check_branch
    %537 = sbr.rel (0) target = $region41
  $region40: #{generator_forward.11} parent=0 // pred_region
    _
  $region41: #{generator_forward.11} parent=0 // pred_fallthru
    _

// kernel: tile.68
$region0: #{tile.68}
  #allocation0 [shape = 's32[1]{0}', space=sflag, size = 0x4, scoped, tag = 'scoped memory for tile.68']
  %s0 = inlined_call_operand.vmem [shape: f32[16], index: 0, kind: input, shape index: {}]
  %s1 = inlined_call_operand.vmem [shape: f32[4,16], index: 1, kind: output, shape index: {}]
  // Predicated region
  $region2: #{tile.68} parent=0 // pred_check
    _
  $region3: #{tile.68} parent=0 // pred_check_branch
    %3 = sbr.rel (0) target = $region5
  $region4: #{tile.68} parent=0 // pred_region
    _
  $region5: #{tile.68} parent=0 // pred_fallthru
    _
  %v4 = vld [vmem:[%s0] ss:$0 sm:$0xff]
  %5 = vst [vmem:[%s1] sm:$0xf] %v4

// kernel: tile.73
$region0: #{tile.73}
  %s0 = inlined_call_operand.vmem [shape: f32[4,16], index: 0, kind: input, shape index: {}]
  %s1 = inlined_call_operand.vmem [shape: f32[1,64], index: 1, kind: output, shape index: {}]
  $region1: #{tile.73} parent=0
    #allocation0 [shape = 'u8[4096]{0}', space=vmem, size = 0x1000, scoped, tag = 'scoped mem for output reshape']
    #allocation1 [shape = 'u8[4096]{0}', space=vmem, size = 0x1000, scoped, tag = 'scoped mem for input reshape']
    %s3 = ssub.s32 16, 1
    %v4 = vld [vmem:[%s0] sm:%s3]
    %5 = vst [vmem:[#allocation1] sm:%s3] %v4
    %v6 = vld [vmem:[#allocation1] sm:$0x1]
    %vm7 = vcmask 130048
    %8 = vst.msk [vmem:[#allocation0] sm:$0x1] %vm7, %v6
    %s9 = scalar_lea.vmem [#allocation1], 3
    %v10 = vld [vmem:[%s9] sm:$0x1]
    %11 = vrot.lane.b32.xlu0 %v10, 48
    %v12 = vpop.permute.xlu0 %11
    %vm13 = vcmask 523648
    %14 = vst.msk [vmem:[#allocation0] sm:$0x1] %vm13, %v12
    %s15 = scalar_lea.vmem [#allocation1], 2
    %v16 = vld [vmem:[%s15] sm:$0x1]
    %17 = vrot.lane.b32.xlu0 %v16, 32
    %v18 = vpop.permute.xlu0 %17
    %vm19 = vcmask 392448
    %20 = vst.msk [vmem:[#allocation0] sm:$0x1] %vm19, %v18
    %s21 = scalar_lea.vmem [#allocation1], 1
    %v22 = vld [vmem:[%s21] sm:$0x1]
    %23 = vrot.lane.b32.xlu0 %v22, 16
    %v24 = vpop.permute.xlu0 %23
    %vm25 = vcmask 261248
    %26 = vst.msk [vmem:[#allocation0] sm:$0x1] %vm25, %v24
    %s28 = ssub.s32 2, 1
    %v29 = vld [vmem:[#allocation0] sm:%s28]
    %s31 = ssub.s32 2, 1
    %32 = vst [vmem:[%s1] sm:%s31] %v29

// kernel: generator_forward.14
$region0: #{generator_forward.14}
  #allocation0 [shape = 'u32[]', space=smem, size = 0x4, offset = 0x4, fixed_abs, tag = 'smem constant byte address 0x4 - core index']
  #allocation1 [shape = 'u32[72,128]{1,0:T(1,128)}', space=vmem, size = 0x9000, scoped, tag = 'internal scratch']
  %s0 = inlined_call_operand.vmem [shape: bf16[128,64], index: 0, kind: input, shape index: {}]
  %s1 = inlined_call_operand.vmem [shape: f32[1,64], index: 1, kind: input, shape index: {}]
  %s2 = inlined_call_operand.vmem [shape: f32[1,64], index: 2, kind: input, shape index: {}]
  %s3 = inlined_call_operand.vmem [shape: bf16[128,64], index: 3, kind: output, shape index: {}]
  %s4 = sld [smem:[#allocation0]]
  $region22: #{generator_forward.14} parent=0
    _
  %s6 = ssub.s32 1, %s4
  %s7 = scalar_select 0, %s6, %s4
  // Predicated region
  $region2: #{generator_forward.14} parent=0 // pred_check
    _
  $region3: #{generator_forward.14} parent=0 // pred_check_branch
    %9 = sbr.rel (0) target = $region5
  $region4: #{generator_forward.14} parent=0 // pred_region
    _
  $region5: #{generator_forward.14} parent=0 // pred_fallthru
    _
  // Predicated region
  $region6: #{generator_forward.14} parent=0 // pred_check
    _
  $region7: #{generator_forward.14} parent=0 // pred_check_branch
    %11 = sbr.rel (0) target = $region9
  $region8: #{generator_forward.14} parent=0 // pred_region
    _
  $region9: #{generator_forward.14} parent=0 // pred_fallthru
    _
  // Predicated region
  $region10: #{generator_forward.14} parent=0 // pred_check
    _
  $region11: #{generator_forward.14} parent=0 // pred_check_branch
    %13 = sbr.rel (0) target = $region13
  $region12: #{generator_forward.14} parent=0 // pred_region
    _
  $region13: #{generator_forward.14} parent=0 // pred_fallthru
    _
  %v14 = vld [vmem:[%s0] sm:$0xf]
  %v15 = vld [vmem:[%s0 + $0x4] sm:$0xf]
  %v16 = vld [vmem:[%s0 + $0x8] sm:$0xf]
  %v17 = vld [vmem:[%s0 + $0xc] sm:$0xf]
  %v18 = vld [vmem:[%s0 + $0x10] sm:$0xf]
  %v19 = vld [vmem:[%s0 + $0x14] sm:$0xf]
  %v20 = vld [vmem:[%s0 + $0x18] sm:$0xf]
  %v21 = vld [vmem:[%s0 + $0x1c] sm:$0xf]
  %v22 = vld [vmem:[%s0 + $0x20] sm:$0xf]
  %v23 = vld [vmem:[%s0 + $0x24] sm:$0xf]
  %v24 = vld [vmem:[%s0 + $0x28] sm:$0xf]
  %v25 = vld [vmem:[%s0 + $0x2c] sm:$0xf]
  %v26 = vld [vmem:[%s0 + $0x30] sm:$0xf]
  %v27 = vld [vmem:[%s0 + $0x34] sm:$0xf]
  %v28 = vld [vmem:[%s0 + $0x38] sm:$0xf]
  %v29 = vld [vmem:[%s0 + $0x3c] sm:$0xf]
  %v30 = vunpack.c.l.bf16 %v14
  %v31 = vunpack.c.l.bf16 %v15
  %v32 = vunpack.c.l.bf16 %v16
  %v33 = vunpack.c.l.bf16 %v17
  %v34 = vunpack.c.l.bf16 %v18
  %v35 = vunpack.c.l.bf16 %v19
  %v36 = vunpack.c.l.bf16 %v20
  %v37 = vunpack.c.l.bf16 %v21
  %v38 = vunpack.c.l.bf16 %v22
  %v39 = vunpack.c.l.bf16 %v23
  %v40 = vunpack.c.l.bf16 %v24
  %v41 = vunpack.c.l.bf16 %v25
  %v42 = vunpack.c.l.bf16 %v26
  %v43 = vunpack.c.l.bf16 %v27
  %v44 = vunpack.c.l.bf16 %v28
  %v45 = vunpack.c.l.bf16 %v29
  %v46 = vld [vmem:[%s1] sm:$0x1]
  %v48 = vperm.slane %v46, 0
  %v50 = vmul.f32 %v30, %v48
  %v51 = vmul.f32 %v31, %v48
  %v52 = vmul.f32 %v32, %v48
  %v53 = vmul.f32 %v33, %v48
  %v54 = vmul.f32 %v34, %v48
  %v55 = vmul.f32 %v35, %v48
  %v56 = vmul.f32 %v36, %v48
  %v57 = vmul.f32 %v37, %v48
  %v58 = vmul.f32 %v38, %v48
  %v59 = vmul.f32 %v39, %v48
  %v60 = vmul.f32 %v40, %v48
  %v61 = vmul.f32 %v41, %v48
  %v62 = vmul.f32 %v42, %v48
  %v63 = vmul.f32 %v43, %v48
  %v64 = vmul.f32 %v44, %v48
  %v65 = vmul.f32 %v45, %v48
  %v66 = vld [vmem:[%s2] sm:$0x1]
  %v68 = vperm.slane %v66, 0
  %v70 = vadd.f32 %v50, %v68
  %v71 = vadd.f32 %v51, %v68
  %v72 = vadd.f32 %v52, %v68
  %v73 = vadd.f32 %v53, %v68
  %v74 = vadd.f32 %v54, %v68
  %v75 = vadd.f32 %v55, %v68
  %v76 = vadd.f32 %v56, %v68
  %v77 = vadd.f32 %v57, %v68
  %v78 = vadd.f32 %v58, %v68
  %v79 = vadd.f32 %v59, %v68
  %v80 = vadd.f32 %v60, %v68
  %v81 = vadd.f32 %v61, %v68
  %v82 = vadd.f32 %v62, %v68
  %v83 = vadd.f32 %v63, %v68
  %v84 = vadd.f32 %v64, %v68
  %v85 = vadd.f32 %v65, %v68
  %v86 = vmax.f32 %v70, 0.0
  %v87 = vmax.f32 %v71, 0.0
  %v88 = vmax.f32 %v72, 0.0
  %v89 = vmax.f32 %v73, 0.0
  %v90 = vmax.f32 %v74, 0.0
  %v91 = vmax.f32 %v75, 0.0
  %v92 = vmax.f32 %v76, 0.0
  %v93 = vmax.f32 %v77, 0.0
  %v94 = vmax.f32 %v78, 0.0
  %v95 = vmax.f32 %v79, 0.0
  %v96 = vmax.f32 %v80, 0.0
  %v97 = vmax.f32 %v81, 0.0
  %v98 = vmax.f32 %v82, 0.0
  %v99 = vmax.f32 %v83, 0.0
  %v100 = vmax.f32 %v84, 0.0
  %v101 = vmax.f32 %v85, 0.0
  %v102 = vpack.c.bf16 %v86, %v86
  %v103 = vpack.c.bf16 %v87, %v87
  %v104 = vpack.c.bf16 %v88, %v88
  %v105 = vpack.c.bf16 %v89, %v89
  %v106 = vpack.c.bf16 %v90, %v90
  %v107 = vpack.c.bf16 %v91, %v91
  %v108 = vpack.c.bf16 %v92, %v92
  %v109 = vpack.c.bf16 %v93, %v93
  %v110 = vpack.c.bf16 %v94, %v94
  %v111 = vpack.c.bf16 %v95, %v95
  %v112 = vpack.c.bf16 %v96, %v96
  %v113 = vpack.c.bf16 %v97, %v97
  %v114 = vpack.c.bf16 %v98, %v98
  %v115 = vpack.c.bf16 %v99, %v99
  %v116 = vpack.c.bf16 %v100, %v100
  %v117 = vpack.c.bf16 %v101, %v101
  %vm118 = vcmask 519168
  %119 = vst.msk [vmem:[%s3] sm:$0xf] %vm118, %v102
  %120 = vst.msk [vmem:[%s3 + $0x4] sm:$0xf] %vm118, %v103
  %121 = vst.msk [vmem:[%s3 + $0x8] sm:$0xf] %vm118, %v104
  %122 = vst.msk [vmem:[%s3 + $0xc] sm:$0xf] %vm118, %v105
  %123 = vst.msk [vmem:[%s3 + $0x10] sm:$0xf] %vm118, %v106
  %124 = vst.msk [vmem:[%s3 + $0x14] sm:$0xf] %vm118, %v107
  %125 = vst.msk [vmem:[%s3 + $0x18] sm:$0xf] %vm118, %v108
  %126 = vst.msk [vmem:[%s3 + $0x1c] sm:$0xf] %vm118, %v109
  %127 = vst.msk [vmem:[%s3 + $0x20] sm:$0xf] %vm118, %v110
  %128 = vst.msk [vmem:[%s3 + $0x24] sm:$0xf] %vm118, %v111
  %129 = vst.msk [vmem:[%s3 + $0x28] sm:$0xf] %vm118, %v112
  %130 = vst.msk [vmem:[%s3 + $0x2c] sm:$0xf] %vm118, %v113
  %131 = vst.msk [vmem:[%s3 + $0x30] sm:$0xf] %vm118, %v114
  %132 = vst.msk [vmem:[%s3 + $0x34] sm:$0xf] %vm118, %v115
  %133 = vst.msk [vmem:[%s3 + $0x38] sm:$0xf] %vm118, %v116
  %134 = vst.msk [vmem:[%s3 + $0x3c] sm:$0xf] %vm118, %v117
  // Predicated region
  $region14: #{generator_forward.14} parent=0 // pred_check
    _
  $region15: #{generator_forward.14} parent=0 // pred_check_branch
    %136 = sbr.rel (0) target = $region17
  $region16: #{generator_forward.14} parent=0 // pred_region
    _
  $region17: #{generator_forward.14} parent=0 // pred_fallthru
    _
  // Predicated region
  $region18: #{generator_forward.14} parent=0 // pred_check
    _
  $region19: #{generator_forward.14} parent=0 // pred_check_branch
    %138 = sbr.rel (0) target = $region21
  $region20: #{generator_forward.14} parent=0 // pred_region
    _
  $region21: #{generator_forward.14} parent=0 // pred_fallthru
    _

// kernel: generator_forward.13
$region0: #{generator_forward.13}
  #allocation0 [shape = 'u32[]', space=smem, size = 0x4, offset = 0x4, fixed_abs, tag = 'smem constant byte address 0x4 - core index']
  #allocation1 [shape = 'u32[72,128]{1,0:T(1,128)}', space=vmem, size = 0x9000, scoped, tag = 'internal scratch']
  #allocation2 [shape = 'f32[128,64]{1,0:T(8,128)}', space=vmem, size = 0x10000, scoped, tag = 'scratch operand']
  %s0 = inlined_call_operand.vmem [shape: bf16[128,288], index: 0, kind: input, shape index: {}]
  %s1 = inlined_call_operand.vmem [shape: bf16[288,64], index: 1, kind: input, shape index: {}]
  %s2 = inlined_call_operand.vmem [shape: bf16[128,64], index: 2, kind: output, shape index: {0}]
  %s3 = inlined_call_operand.vmem [shape: f32[1,1,64], index: 3, kind: output, shape index: {1}]
  %s4 = inlined_call_operand.vmem [shape: f32[1,1,64], index: 4, kind: output, shape index: {2}]
  %5 = xla_tuple %s2, %s3, %s4
  %s6 = sld [smem:[#allocation0]]
  $region42: #{generator_forward.13} parent=0
    _
  %s8 = ssub.s32 1, %s6
  %s9 = scalar_select 0, %s8, %s6
  // Predicated region
  $region2: #{generator_forward.13} parent=0 // pred_check
    _
  $region3: #{generator_forward.13} parent=0 // pred_check_branch
    %11 = sbr.rel (0) target = $region5
  $region4: #{generator_forward.13} parent=0 // pred_region
    _
  $region5: #{generator_forward.13} parent=0 // pred_fallthru
    _
  // Predicated region
  $region6: #{generator_forward.13} parent=0 // pred_check
    _
  $region7: #{generator_forward.13} parent=0 // pred_check_branch
    %13 = sbr.rel (0) target = $region9
  $region8: #{generator_forward.13} parent=0 // pred_region
    _
  $region9: #{generator_forward.13} parent=0 // pred_fallthru
    _
  %p15 = scmp.eq.s32.totalorder 0, 0
  // Predicated region
  $region10: #{generator_forward.13} parent=0 // pred_check
    %p16 = pneg %p15
  $region11: #{generator_forward.13} parent=0 // pred_check_branch
    %18 = sbr.rel (%p16) target = $region13
  $region12: #{generator_forward.13} parent=0 // pred_region
    %vm19 = vcmask 523264
    %20 = vst.msk [vmem:[#allocation2] sm:$0xff] %vm19, 0.0
    %21 = vst.msk [vmem:[#allocation2 + $0x8] sm:$0xff] %vm19, 0.0
    %22 = vst.msk [vmem:[#allocation2 + $0x10] sm:$0xff] %vm19, 0.0
    %23 = vst.msk [vmem:[#allocation2 + $0x18] sm:$0xff] %vm19, 0.0
    %24 = vst.msk [vmem:[#allocation2 + $0x20] sm:$0xff] %vm19, 0.0
    %25 = vst.msk [vmem:[#allocation2 + $0x28] sm:$0xff] %vm19, 0.0
    %26 = vst.msk [vmem:[#allocation2 + $0x30] sm:$0xff] %vm19, 0.0
    %27 = vst.msk [vmem:[#allocation2 + $0x38] sm:$0xff] %vm19, 0.0
    %28 = vst.msk [vmem:[#allocation2 + $0x40] sm:$0xff] %vm19, 0.0
    %29 = vst.msk [vmem:[#allocation2 + $0x48] sm:$0xff] %vm19, 0.0
    %30 = vst.msk [vmem:[#allocation2 + $0x50] sm:$0xff] %vm19, 0.0
    %31 = vst.msk [vmem:[#allocation2 + $0x58] sm:$0xff] %vm19, 0.0
    %32 = vst.msk [vmem:[#allocation2 + $0x60] sm:$0xff] %vm19, 0.0
    %33 = vst.msk [vmem:[#allocation2 + $0x68] sm:$0xff] %vm19, 0.0
    %34 = vst.msk [vmem:[#allocation2 + $0x70] sm:$0xff] %vm19, 0.0
    %35 = vst.msk [vmem:[#allocation2 + $0x78] sm:$0xff] %vm19, 0.0
  $region13: #{generator_forward.13} parent=0 // pred_fallthru
    _
  %v36 = vld [vmem:[#allocation2] sm:$0xff]
  %v37 = vld [vmem:[#allocation2 + $0x8] sm:$0xff]
  %v38 = vld [vmem:[#allocation2 + $0x10] sm:$0xff]
  %v39 = vld [vmem:[#allocation2 + $0x18] sm:$0xff]
  %v40 = vld [vmem:[#allocation2 + $0x20] sm:$0xff]
  %v41 = vld [vmem:[#allocation2 + $0x28] sm:$0xff]
  %v42 = vld [vmem:[#allocation2 + $0x30] sm:$0xff]
  %v43 = vld [vmem:[#allocation2 + $0x38] sm:$0xff]
  %v44 = vld [vmem:[#allocation2 + $0x40] sm:$0xff]
  %v45 = vld [vmem:[#allocation2 + $0x48] sm:$0xff]
  %v46 = vld [vmem:[#allocation2 + $0x50] sm:$0xff]
  %v47 = vld [vmem:[#allocation2 + $0x58] sm:$0xff]
  %v48 = vld [vmem:[#allocation2 + $0x60] sm:$0xff]
  %v49 = vld [vmem:[#allocation2 + $0x68] sm:$0xff]
  %v50 = vld [vmem:[#allocation2 + $0x70] sm:$0xff]
  %v51 = vld [vmem:[#allocation2 + $0x78] sm:$0xff]
  %v52 = vld [vmem:[%s0] sm:$0xff]
  %v53 = vld [vmem:[%s0 + $0x8] sm:$0xf]
  %v54 = vld [vmem:[%s0 + $0xc] sm:$0xff]
  %v55 = vld [vmem:[%s0 + $0x14] sm:$0xf]
  %v56 = vld [vmem:[%s0 + $0x18] sm:$0xff]
  %v57 = vld [vmem:[%s0 + $0x20] sm:$0xf]
  %v58 = vld [vmem:[%s0 + $0x24] sm:$0xff]
  %v59 = vld [vmem:[%s0 + $0x2c] sm:$0xf]
  %v60 = vld [vmem:[%s0 + $0x30] sm:$0xff]
  %v61 = vld [vmem:[%s0 + $0x38] sm:$0xf]
  %v62 = vld [vmem:[%s0 + $0x3c] sm:$0xff]
  %v63 = vld [vmem:[%s0 + $0x44] sm:$0xf]
  %v64 = vld [vmem:[%s0 + $0x48] sm:$0xff]
  %v65 = vld [vmem:[%s0 + $0x50] sm:$0xf]
  %v66 = vld [vmem:[%s0 + $0x54] sm:$0xff]
  %v67 = vld [vmem:[%s0 + $0x5c] sm:$0xf]
  %v68 = vld [vmem:[%s0 + $0x60] sm:$0xff]
  %v69 = vld [vmem:[%s0 + $0x68] sm:$0xf]
  %v70 = vld [vmem:[%s0 + $0x6c] sm:$0xff]
  %v71 = vld [vmem:[%s0 + $0x74] sm:$0xf]
  %v72 = vld [vmem:[%s0 + $0x78] sm:$0xff]
  %v73 = vld [vmem:[%s0 + $0x80] sm:$0xf]
  %v74 = vld [vmem:[%s0 + $0x84] sm:$0xff]
  %v75 = vld [vmem:[%s0 + $0x8c] sm:$0xf]
  %v76 = vld [vmem:[%s0 + $0x90] sm:$0xff]
  %v77 = vld [vmem:[%s0 + $0x98] sm:$0xf]
  %v78 = vld [vmem:[%s0 + $0x9c] sm:$0xff]
  %v79 = vld [vmem:[%s0 + $0xa4] sm:$0xf]
  %v80 = vld [vmem:[%s0 + $0xa8] sm:$0xff]
  %v81 = vld [vmem:[%s0 + $0xb0] sm:$0xf]
  %v82 = vld [vmem:[%s0 + $0xb4] sm:$0xff]
  %v83 = vld [vmem:[%s0 + $0xbc] sm:$0xf]
  %v84 = vld [vmem:[%s1] sm:$0xf]
  %v85 = vld [vmem:[%s1 + $0x4] sm:$0xf]
  %v86 = vld [vmem:[%s1 + $0x8] sm:$0xf]
  %v87 = vld [vmem:[%s1 + $0xc] sm:$0xf]
  %v88 = vld [vmem:[%s1 + $0x10] sm:$0xf]
  %v89 = vld [vmem:[%s1 + $0x14] sm:$0xf]
  %v90 = vld [vmem:[%s1 + $0x18] sm:$0xf]
  %v91 = vld [vmem:[%s1 + $0x1c] sm:$0xf]
  %v92 = vld [vmem:[%s1 + $0x20] sm:$0xf]
  %v93 = vld [vmem:[%s1 + $0x24] sm:$0xf]
  %v94 = vld [vmem:[%s1 + $0x28] sm:$0xf]
  %v95 = vld [vmem:[%s1 + $0x2c] sm:$0xf]
  %v96 = vld [vmem:[%s1 + $0x30] sm:$0xf]
  %v97 = vld [vmem:[%s1 + $0x34] sm:$0xf]
  %v98 = vld [vmem:[%s1 + $0x38] sm:$0xf]
  %v99 = vld [vmem:[%s1 + $0x3c] sm:$0xf]
  %v100 = vld [vmem:[%s1 + $0x40] sm:$0xf]
  %v101 = vld [vmem:[%s1 + $0x44] sm:$0xf]
  %v102 = vld [vmem:[%s1 + $0x48] sm:$0xf]
  %v103 = vld [vmem:[%s1 + $0x4c] sm:$0xf]
  %v104 = vld [vmem:[%s1 + $0x50] sm:$0xf]
  %v105 = vld [vmem:[%s1 + $0x54] sm:$0xf]
  %v106 = vld [vmem:[%s1 + $0x58] sm:$0xf]
  %v107 = vld [vmem:[%s1 + $0x5c] sm:$0xf]
  %v108 = vld [vmem:[%s1 + $0x60] sm:$0xf]
  %v109 = vld [vmem:[%s1 + $0x64] sm:$0xf]
  %v110 = vld [vmem:[%s1 + $0x68] sm:$0xf]
  %v111 = vld [vmem:[%s1 + $0x6c] sm:$0xf]
  %v112 = vld [vmem:[%s1 + $0x70] sm:$0xf]
  %v113 = vld [vmem:[%s1 + $0x74] sm:$0xf]
  %v114 = vld [vmem:[%s1 + $0x78] sm:$0xf]
  %v115 = vld [vmem:[%s1 + $0x7c] sm:$0xf]
  %v116 = vld [vmem:[%s1 + $0x80] sm:$0xf]
  %v117 = vld [vmem:[%s1 + $0x84] sm:$0xf]
  %v118 = vld [vmem:[%s1 + $0x88] sm:$0xf]
  %v119 = vld [vmem:[%s1 + $0x8c] sm:$0xf]
  %v152 = vunpack.c.l.b16 %v52
  %v153 = vunpack.c.h.b16 %v52
  %v154 = vunpack.c.l.b16 %v53
  %v155 = vunpack.c.l.b16 %v54
  %v156 = vunpack.c.h.b16 %v54
  %v157 = vunpack.c.l.b16 %v55
  %v158 = vunpack.c.l.b16 %v56
  %v159 = vunpack.c.h.b16 %v56
  %v160 = vunpack.c.l.b16 %v57
  %v161 = vunpack.c.l.b16 %v58
  %v162 = vunpack.c.h.b16 %v58
  %v163 = vunpack.c.l.b16 %v59
  %v164 = vunpack.c.l.b16 %v60
  %v165 = vunpack.c.h.b16 %v60
  %v166 = vunpack.c.l.b16 %v61
  %v167 = vunpack.c.l.b16 %v62
  %v168 = vunpack.c.h.b16 %v62
  %v169 = vunpack.c.l.b16 %v63
  %v170 = vunpack.c.l.b16 %v64
  %v171 = vunpack.c.h.b16 %v64
  %v172 = vunpack.c.l.b16 %v65
  %v173 = vunpack.c.l.b16 %v66
  %v174 = vunpack.c.h.b16 %v66
  %v175 = vunpack.c.l.b16 %v67
  %v176 = vunpack.c.l.b16 %v68
  %v177 = vunpack.c.h.b16 %v68
  %v178 = vunpack.c.l.b16 %v69
  %v179 = vunpack.c.l.b16 %v70
  %v180 = vunpack.c.h.b16 %v70
  %v181 = vunpack.c.l.b16 %v71
  %v182 = vunpack.c.l.b16 %v72
  %v183 = vunpack.c.h.b16 %v72
  %v184 = vunpack.c.l.b16 %v73
  %v185 = vunpack.c.l.b16 %v74
  %v186 = vunpack.c.h.b16 %v74
  %v187 = vunpack.c.l.b16 %v75
  %v188 = vunpack.c.l.b16 %v76
  %v189 = vunpack.c.h.b16 %v76
  %v190 = vunpack.c.l.b16 %v77
  %v191 = vunpack.c.l.b16 %v78
  %v192 = vunpack.c.h.b16 %v78
  %v193 = vunpack.c.l.b16 %v79
  %v194 = vunpack.c.l.b16 %v80
  %v195 = vunpack.c.h.b16 %v80
  %v196 = vunpack.c.l.b16 %v81
  %v197 = vunpack.c.l.b16 %v82
  %v198 = vunpack.c.h.b16 %v82
  %v199 = vunpack.c.l.b16 %v83
  %v200 = vpack.c.b16 %v155, %v152
  %v201 = vpack.c.b16 %v156, %v153
  %v202 = vpack.c.b16 %v157, %v154
  %v203 = vpack.c.b16 %v161, %v158
  %v204 = vpack.c.b16 %v162, %v159
  %v205 = vpack.c.b16 %v163, %v160
  %v206 = vpack.c.b16 %v167, %v164
  %v207 = vpack.c.b16 %v168, %v165
  %v208 = vpack.c.b16 %v169, %v166
  %v209 = vpack.c.b16 %v173, %v170
  %v210 = vpack.c.b16 %v174, %v171
  %v211 = vpack.c.b16 %v175, %v172
  %v212 = vpack.c.b16 %v179, %v176
  %v213 = vpack.c.b16 %v180, %v177
  %v214 = vpack.c.b16 %v181, %v178
  %v215 = vpack.c.b16 %v185, %v182
  %v216 = vpack.c.b16 %v186, %v183
  %v217 = vpack.c.b16 %v187, %v184
  %v218 = vpack.c.b16 %v191, %v188
  %v219 = vpack.c.b16 %v192, %v189
  %v220 = vpack.c.b16 %v193, %v190
  %v221 = vpack.c.b16 %v197, %v194
  %v222 = vpack.c.b16 %v198, %v195
  %v223 = vpack.c.b16 %v199, %v196
  %v276 = vunpack.c.l.b16 %v84
  %v277 = vunpack.c.l.b16 %v85
  %v278 = vunpack.c.l.b16 %v86
  %v279 = vunpack.c.l.b16 %v87
  %v280 = vunpack.c.l.b16 %v88
  %v281 = vunpack.c.l.b16 %v89
  %v282 = vunpack.c.l.b16 %v90
  %v283 = vunpack.c.l.b16 %v91
  %v284 = vunpack.c.l.b16 %v92
  %v285 = vunpack.c.l.b16 %v93
  %v286 = vunpack.c.l.b16 %v94
  %v287 = vunpack.c.l.b16 %v95
  %v288 = vunpack.c.l.b16 %v96
  %v289 = vunpack.c.l.b16 %v97
  %v290 = vunpack.c.l.b16 %v98
  %v291 = vunpack.c.l.b16 %v99
  %v292 = vunpack.c.l.b16 %v100
  %v293 = vunpack.c.l.b16 %v101
  %v294 = vunpack.c.l.b16 %v102
  %v295 = vunpack.c.l.b16 %v103
  %v296 = vunpack.c.l.b16 %v104
  %v297 = vunpack.c.l.b16 %v105
  %v298 = vunpack.c.l.b16 %v106
  %v299 = vunpack.c.l.b16 %v107
  %v300 = vunpack.c.l.b16 %v108
  %v301 = vunpack.c.l.b16 %v109
  %v302 = vunpack.c.l.b16 %v110
  %v303 = vunpack.c.l.b16 %v111
  %v304 = vunpack.c.l.b16 %v112
  %v305 = vunpack.c.l.b16 %v113
  %v306 = vunpack.c.l.b16 %v114
  %v307 = vunpack.c.l.b16 %v115
  %v308 = vunpack.c.l.b16 %v116
  %v309 = vunpack.c.l.b16 %v117
  %v310 = vunpack.c.l.b16 %v118
  %v311 = vunpack.c.l.b16 %v119
  %v312 = vpack.c.b16 %v277, %v276
  %v313 = vpack.c.b16 %v279, %v278
  %v314 = vpack.c.b16 %v281, %v280
  %v315 = vpack.c.b16 %v283, %v282
  %v316 = vpack.c.b16 %v285, %v284
  %v317 = vpack.c.b16 %v287, %v286
  %v318 = vpack.c.b16 %v289, %v288
  %v319 = vpack.c.b16 %v291, %v290
  %v320 = vpack.c.b16 %v293, %v292
  %v321 = vpack.c.b16 %v295, %v294
  %v322 = vpack.c.b16 %v297, %v296
  %v323 = vpack.c.b16 %v299, %v298
  %v324 = vpack.c.b16 %v301, %v300
  %v325 = vpack.c.b16 %v303, %v302
  %v326 = vpack.c.b16 %v305, %v304
  %v327 = vpack.c.b16 %v307, %v306
  %v328 = vpack.c.b16 %v309, %v308
  %v329 = vpack.c.b16 %v311, %v310
  %vm348 = vcmask 261120
  %v350 = vsel %vm348, %v202, 0
  %v353 = vsel %vm348, %v205, 0
  %v356 = vsel %vm348, %v208, 0
  %v359 = vsel %vm348, %v211, 0
  %v362 = vsel %vm348, %v214, 0
  %v365 = vsel %vm348, %v217, 0
  %v368 = vsel %vm348, %v220, 0
  %v371 = vsel %vm348, %v223, 0
  %373 = vmatpush.bf16.msra.mxu0 %v319
  %374 = vmatpush.bf16.msra.mxu0 %v318
  %375 = vmatpush.bf16.msra.mxu0 %v317
  %376 = vmatpush.bf16.msra.mxu0 %v316
  %377 = vmatpush.bf16.msra.mxu0 %v315
  %378 = vmatpush.bf16.msra.mxu0 %v314
  %379 = vmatpush.bf16.msra.mxu0 %v313
  %380 = vmatpush.bf16.msra.mxu0 %v312
  %381 = vmatmul.bf16.gmra.mxu0 %v200
  %v382 = vpop.f32.mrf.mxu0
  %v383 = vadd.f32 0.0, %v382
  %v384 = vpop.f32.mrf.mxu0
  %v385 = vadd.f32 0.0, %v384
  %386 = vmatmul.bf16.gmra.mxu0 %v203
  %v387 = vpop.f32.mrf.mxu0
  %v388 = vadd.f32 0.0, %v387
  %v389 = vpop.f32.mrf.mxu0
  %v390 = vadd.f32 0.0, %v389
  %391 = vmatmul.bf16.gmra.mxu0 %v206
  %v392 = vpop.f32.mrf.mxu0
  %v393 = vadd.f32 0.0, %v392
  %v394 = vpop.f32.mrf.mxu0
  %v395 = vadd.f32 0.0, %v394
  %396 = vmatmul.bf16.gmra.mxu0 %v209
  %v397 = vpop.f32.mrf.mxu0
  %v398 = vadd.f32 0.0, %v397
  %v399 = vpop.f32.mrf.mxu0
  %v400 = vadd.f32 0.0, %v399
  %401 = vmatmul.bf16.gmra.mxu0 %v212
  %v402 = vpop.f32.mrf.mxu0
  %v403 = vadd.f32 0.0, %v402
  %v404 = vpop.f32.mrf.mxu0
  %v405 = vadd.f32 0.0, %v404
  %406 = vmatmul.bf16.gmra.mxu0 %v215
  %v407 = vpop.f32.mrf.mxu0
  %v408 = vadd.f32 0.0, %v407
  %v409 = vpop.f32.mrf.mxu0
  %v410 = vadd.f32 0.0, %v409
  %411 = vmatmul.bf16.gmra.mxu0 %v218
  %v412 = vpop.f32.mrf.mxu0
  %v413 = vadd.f32 0.0, %v412
  %v414 = vpop.f32.mrf.mxu0
  %v415 = vadd.f32 0.0, %v414
  %416 = vmatmul.bf16.gmra.mxu0 %v221
  %v417 = vpop.f32.mrf.mxu0
  %v418 = vadd.f32 0.0, %v417
  %v419 = vpop.f32.mrf.mxu0
  %v420 = vadd.f32 0.0, %v419
  %421 = vdwg.mxu0
  %422 = vmatpush.bf16.msra.mxu0 %v327
  %423 = vmatpush.bf16.msra.mxu0 %v326
  %424 = vmatpush.bf16.msra.mxu0 %v325
  %425 = vmatpush.bf16.msra.mxu0 %v324
  %426 = vmatpush.bf16.msra.mxu0 %v323
  %427 = vmatpush.bf16.msra.mxu0 %v322
  %428 = vmatpush.bf16.msra.mxu0 %v321
  %429 = vmatpush.bf16.msra.mxu0 %v320
  %430 = vmatmul.bf16.gmra.mxu0 %v201
  %v431 = vpop.f32.mrf.mxu0
  %v432 = vadd.f32 %v383, %v431
  %v433 = vpop.f32.mrf.mxu0
  %v434 = vadd.f32 %v385, %v433
  %435 = vmatmul.bf16.gmra.mxu0 %v204
  %v436 = vpop.f32.mrf.mxu0
  %v437 = vadd.f32 %v388, %v436
  %v438 = vpop.f32.mrf.mxu0
  %v439 = vadd.f32 %v390, %v438
  %440 = vmatmul.bf16.gmra.mxu0 %v207
  %v441 = vpop.f32.mrf.mxu0
  %v442 = vadd.f32 %v393, %v441
  %v443 = vpop.f32.mrf.mxu0
  %v444 = vadd.f32 %v395, %v443
  %445 = vmatmul.bf16.gmra.mxu0 %v210
  %v446 = vpop.f32.mrf.mxu0
  %v447 = vadd.f32 %v398, %v446
  %v448 = vpop.f32.mrf.mxu0
  %v449 = vadd.f32 %v400, %v448
  %450 = vmatmul.bf16.gmra.mxu0 %v213
  %v451 = vpop.f32.mrf.mxu0
  %v452 = vadd.f32 %v403, %v451
  %v453 = vpop.f32.mrf.mxu0
  %v454 = vadd.f32 %v405, %v453
  %455 = vmatmul.bf16.gmra.mxu0 %v216
  %v456 = vpop.f32.mrf.mxu0
  %v457 = vadd.f32 %v408, %v456
  %v458 = vpop.f32.mrf.mxu0
  %v459 = vadd.f32 %v410, %v458
  %460 = vmatmul.bf16.gmra.mxu0 %v219
  %v461 = vpop.f32.mrf.mxu0
  %v462 = vadd.f32 %v413, %v461
  %v463 = vpop.f32.mrf.mxu0
  %v464 = vadd.f32 %v415, %v463
  %465 = vmatmul.bf16.gmra.mxu0 %v222
  %v466 = vpop.f32.mrf.mxu0
  %v467 = vadd.f32 %v418, %v466
  %v468 = vpop.f32.mrf.mxu0
  %v469 = vadd.f32 %v420, %v468
  %470 = vdwg.mxu0
  %471 = vmatpush.bf16.msra.mxu0 0
  %472 = vmatpush.bf16.msra.mxu0 0
  %473 = vmatpush.bf16.msra.mxu0 0
  %474 = vmatpush.bf16.msra.mxu0 0
  %475 = vmatpush.bf16.msra.mxu0 0
  %476 = vmatpush.bf16.msra.mxu0 0
  %477 = vmatpush.bf16.msra.mxu0 %v329
  %478 = vmatpush.bf16.msra.mxu0 %v328
  %479 = vmatmul.bf16.gmra.mxu0 %v350
  %v480 = vpop.f32.mrf.mxu0
  %v481 = vadd.f32 %v432, %v480
  %v482 = vpop.f32.mrf.mxu0
  %v483 = vadd.f32 %v434, %v482
  %484 = vmatmul.bf16.gmra.mxu0 %v353
  %v485 = vpop.f32.mrf.mxu0
  %v486 = vadd.f32 %v437, %v485
  %v487 = vpop.f32.mrf.mxu0
  %v488 = vadd.f32 %v439, %v487
  %489 = vmatmul.bf16.gmra.mxu0 %v356
  %v490 = vpop.f32.mrf.mxu0
  %v491 = vadd.f32 %v442, %v490
  %v492 = vpop.f32.mrf.mxu0
  %v493 = vadd.f32 %v444, %v492
  %494 = vmatmul.bf16.gmra.mxu0 %v359
  %v495 = vpop.f32.mrf.mxu0
  %v496 = vadd.f32 %v447, %v495
  %v497 = vpop.f32.mrf.mxu0
  %v498 = vadd.f32 %v449, %v497
  %499 = vmatmul.bf16.gmra.mxu0 %v362
  %v500 = vpop.f32.mrf.mxu0
  %v501 = vadd.f32 %v452, %v500
  %v502 = vpop.f32.mrf.mxu0
  %v503 = vadd.f32 %v454, %v502
  %504 = vmatmul.bf16.gmra.mxu0 %v365
  %v505 = vpop.f32.mrf.mxu0
  %v506 = vadd.f32 %v457, %v505
  %v507 = vpop.f32.mrf.mxu0
  %v508 = vadd.f32 %v459, %v507
  %509 = vmatmul.bf16.gmra.mxu0 %v368
  %v510 = vpop.f32.mrf.mxu0
  %v511 = vadd.f32 %v462, %v510
  %v512 = vpop.f32.mrf.mxu0
  %v513 = vadd.f32 %v464, %v512
  %514 = vmatmul.bf16.gmra.mxu0 %v371
  %v515 = vpop.f32.mrf.mxu0
  %v516 = vadd.f32 %v467, %v515
  %v517 = vpop.f32.mrf.mxu0
  %v518 = vadd.f32 %v469, %v517
  %519 = vdwg.mxu0
  %v520 = vadd.f32 %v36, %v481
  %v521 = vadd.f32 %v37, %v483
  %v522 = vadd.f32 %v38, %v486
  %v523 = vadd.f32 %v39, %v488
  %v524 = vadd.f32 %v40, %v491
  %v525 = vadd.f32 %v41, %v493
  %v526 = vadd.f32 %v42, %v496
  %v527 = vadd.f32 %v43, %v498
  %v528 = vadd.f32 %v44, %v501
  %v529 = vadd.f32 %v45, %v503
  %v530 = vadd.f32 %v46, %v506
  %v531 = vadd.f32 %v47, %v508
  %v532 = vadd.f32 %v48, %v511
  %v533 = vadd.f32 %v49, %v513
  %v534 = vadd.f32 %v50, %v516
  %v535 = vadd.f32 %v51, %v518
  %vm536 = vcmask 523264
  %537 = vst.msk [vmem:[#allocation2] sm:$0xff] %vm536, %v520
  %538 = vst.msk [vmem:[#allocation2 + $0x8] sm:$0xff] %vm536, %v521
  %539 = vst.msk [vmem:[#allocation2 + $0x10] sm:$0xff] %vm536, %v522
  %540 = vst.msk [vmem:[#allocation2 + $0x18] sm:$0xff] %vm536, %v523
  %541 = vst.msk [vmem:[#allocation2 + $0x20] sm:$0xff] %vm536, %v524
  %542 = vst.msk [vmem:[#allocation2 + $0x28] sm:$0xff] %vm536, %v525
  %543 = vst.msk [vmem:[#allocation2 + $0x30] sm:$0xff] %vm536, %v526
  %544 = vst.msk [vmem:[#allocation2 + $0x38] sm:$0xff] %vm536, %v527
  %545 = vst.msk [vmem:[#allocation2 + $0x40] sm:$0xff] %vm536, %v528
  %546 = vst.msk [vmem:[#allocation2 + $0x48] sm:$0xff] %vm536, %v529
  %547 = vst.msk [vmem:[#allocation2 + $0x50] sm:$0xff] %vm536, %v530
  %548 = vst.msk [vmem:[#allocation2 + $0x58] sm:$0xff] %vm536, %v531
  %549 = vst.msk [vmem:[#allocation2 + $0x60] sm:$0xff] %vm536, %v532
  %550 = vst.msk [vmem:[#allocation2 + $0x68] sm:$0xff] %vm536, %v533
  %551 = vst.msk [vmem:[#allocation2 + $0x70] sm:$0xff] %vm536, %v534
  %552 = vst.msk [vmem:[#allocation2 + $0x78] sm:$0xff] %vm536, %v535
  // Predicated region
  $region14: #{generator_forward.13} parent=0 // pred_check
    %p553 = pneg %p15
  $region15: #{generator_forward.13} parent=0 // pred_check_branch
    %555 = sbr.rel (%p553) target = $region17
  $region16: #{generator_forward.13} parent=0 // pred_region
    %v556 = vld [vmem:[#allocation2] sm:$0xff]
    %v557 = vld [vmem:[#allocation2 + $0x8] sm:$0xff]
    %v558 = vld [vmem:[#allocation2 + $0x10] sm:$0xff]
    %v559 = vld [vmem:[#allocation2 + $0x18] sm:$0xff]
    %v560 = vld [vmem:[#allocation2 + $0x20] sm:$0xff]
    %v561 = vld [vmem:[#allocation2 + $0x28] sm:$0xff]
    %v562 = vld [vmem:[#allocation2 + $0x30] sm:$0xff]
    %v563 = vld [vmem:[#allocation2 + $0x38] sm:$0xff]
    %v564 = vld [vmem:[#allocation2 + $0x40] sm:$0xff]
    %v565 = vld [vmem:[#allocation2 + $0x48] sm:$0xff]
    %v566 = vld [vmem:[#allocation2 + $0x50] sm:$0xff]
    %v567 = vld [vmem:[#allocation2 + $0x58] sm:$0xff]
    %v568 = vld [vmem:[#allocation2 + $0x60] sm:$0xff]
    %v569 = vld [vmem:[#allocation2 + $0x68] sm:$0xff]
    %v570 = vld [vmem:[#allocation2 + $0x70] sm:$0xff]
    %v571 = vld [vmem:[#allocation2 + $0x78] sm:$0xff]
    %v572 = vpack.c.bf16 %v556, %v556
    %v573 = vpack.c.bf16 %v557, %v557
    %v574 = vpack.c.bf16 %v558, %v558
    %v575 = vpack.c.bf16 %v559, %v559
    %v576 = vpack.c.bf16 %v560, %v560
    %v577 = vpack.c.bf16 %v561, %v561
    %v578 = vpack.c.bf16 %v562, %v562
    %v579 = vpack.c.bf16 %v563, %v563
    %v580 = vpack.c.bf16 %v564, %v564
    %v581 = vpack.c.bf16 %v565, %v565
    %v582 = vpack.c.bf16 %v566, %v566
    %v583 = vpack.c.bf16 %v567, %v567
    %v584 = vpack.c.bf16 %v568, %v568
    %v585 = vpack.c.bf16 %v569, %v569
    %v586 = vpack.c.bf16 %v570, %v570
    %v587 = vpack.c.bf16 %v571, %v571
    %vm588 = vcmask 519168
    %589 = vst.msk [vmem:[%s2] sm:$0xf] %vm588, %v572
    %590 = vst.msk [vmem:[%s2 + $0x4] sm:$0xf] %vm588, %v573
    %591 = vst.msk [vmem:[%s2 + $0x8] sm:$0xf] %vm588, %v574
    %592 = vst.msk [vmem:[%s2 + $0xc] sm:$0xf] %vm588, %v575
    %593 = vst.msk [vmem:[%s2 + $0x10] sm:$0xf] %vm588, %v576
    %594 = vst.msk [vmem:[%s2 + $0x14] sm:$0xf] %vm588, %v577
    %595 = vst.msk [vmem:[%s2 + $0x18] sm:$0xf] %vm588, %v578
    %596 = vst.msk [vmem:[%s2 + $0x1c] sm:$0xf] %vm588, %v579
    %597 = vst.msk [vmem:[%s2 + $0x20] sm:$0xf] %vm588, %v580
    %598 = vst.msk [vmem:[%s2 + $0x24] sm:$0xf] %vm588, %v581
    %599 = vst.msk [vmem:[%s2 + $0x28] sm:$0xf] %vm588, %v582
    %600 = vst.msk [vmem:[%s2 + $0x2c] sm:$0xf] %vm588, %v583
    %601 = vst.msk [vmem:[%s2 + $0x30] sm:$0xf] %vm588, %v584
    %602 = vst.msk [vmem:[%s2 + $0x34] sm:$0xf] %vm588, %v585
    %603 = vst.msk [vmem:[%s2 + $0x38] sm:$0xf] %vm588, %v586
    %604 = vst.msk [vmem:[%s2 + $0x3c] sm:$0xf] %vm588, %v587
    %v605 = vsel %vm536, %v556, 0.0
    %v606 = vsel %vm536, %v557, 0.0
    %v607 = vadd.f32 %v605, %v606
    %v608 = vsel %vm536, %v558, 0.0
    %v609 = vadd.f32 %v607, %v608
    %v610 = vsel %vm536, %v559, 0.0
    %v611 = vadd.f32 %v609, %v610
    %v612 = vsel %vm536, %v560, 0.0
    %v613 = vadd.f32 %v611, %v612
    %v614 = vsel %vm536, %v561, 0.0
    %v615 = vadd.f32 %v613, %v614
    %v616 = vsel %vm536, %v562, 0.0
    %v617 = vadd.f32 %v615, %v616
    %v618 = vsel %vm536, %v563, 0.0
    %v619 = vadd.f32 %v617, %v618
    %v620 = vsel %vm536, %v564, 0.0
    %v621 = vadd.f32 %v619, %v620
    %v622 = vsel %vm536, %v565, 0.0
    %v623 = vadd.f32 %v621, %v622
    %v624 = vsel %vm536, %v566, 0.0
    %v625 = vadd.f32 %v623, %v624
    %v626 = vsel %vm536, %v567, 0.0
    %v627 = vadd.f32 %v625, %v626
    %v628 = vsel %vm536, %v568, 0.0
    %v629 = vadd.f32 %v627, %v628
    %v630 = vsel %vm536, %v569, 0.0
    %v631 = vadd.f32 %v629, %v630
    %v632 = vsel %vm536, %v570, 0.0
    %v633 = vadd.f32 %v631, %v632
    %v634 = vsel %vm536, %v571, 0.0
    %v635 = vadd.f32 %v633, %v634
    %v636 = vrot.slane %v635, 4
    %v637 = vadd.f32 %v635, %v636
    %v638 = vrot.slane %v637, 2
    %v639 = vadd.f32 %v637, %v638
    %v640 = vrot.slane %v639, 1
    %v641 = vadd.f32 %v639, %v640
    %vm642 = vcmask 516096
    %643 = vst.msk [vmem:[%s3] sm:$0x1] %vm642, %v641
    %v644 = vmul.f32 %v556, %v556
    %v645 = vmul.f32 %v557, %v557
    %v646 = vmul.f32 %v558, %v558
    %v647 = vmul.f32 %v559, %v559
    %v648 = vmul.f32 %v560, %v560
    %v649 = vmul.f32 %v561, %v561
    %v650 = vmul.f32 %v562, %v562
    %v651 = vmul.f32 %v563, %v563
    %v652 = vmul.f32 %v564, %v564
    %v653 = vmul.f32 %v565, %v565
    %v654 = vmul.f32 %v566, %v566
    %v655 = vmul.f32 %v567, %v567
    %v656 = vmul.f32 %v568, %v568
    %v657 = vmul.f32 %v569, %v569
    %v658 = vmul.f32 %v570, %v570
    %v659 = vmul.f32 %v571, %v571
    %v660 = vsel %vm536, %v644, 0.0
    %v661 = vsel %vm536, %v645, 0.0
    %v662 = vadd.f32 %v660, %v661
    %v663 = vsel %vm536, %v646, 0.0
    %v664 = vadd.f32 %v662, %v663
    %v665 = vsel %vm536, %v647, 0.0
    %v666 = vadd.f32 %v664, %v665
    %v667 = vsel %vm536, %v648, 0.0
    %v668 = vadd.f32 %v666, %v667
    %v669 = vsel %vm536, %v649, 0.0
    %v670 = vadd.f32 %v668, %v669
    %v671 = vsel %vm536, %v650, 0.0
    %v672 = vadd.f32 %v670, %v671
    %v673 = vsel %vm536, %v651, 0.0
    %v674 = vadd.f32 %v672, %v673
    %v675 = vsel %vm536, %v652, 0.0
    %v676 = vadd.f32 %v674, %v675
    %v677 = vsel %vm536, %v653, 0.0
    %v678 = vadd.f32 %v676, %v677
    %v679 = vsel %vm536, %v654, 0.0
    %v680 = vadd.f32 %v678, %v679
    %v681 = vsel %vm536, %v655, 0.0
    %v682 = vadd.f32 %v680, %v681
    %v683 = vsel %vm536, %v656, 0.0
    %v684 = vadd.f32 %v682, %v683
    %v685 = vsel %vm536, %v657, 0.0
    %v686 = vadd.f32 %v684, %v685
    %v687 = vsel %vm536, %v658, 0.0
    %v688 = vadd.f32 %v686, %v687
    %v689 = vsel %vm536, %v659, 0.0
    %v690 = vadd.f32 %v688, %v689
    %v691 = vrot.slane %v690, 4
    %v692 = vadd.f32 %v690, %v691
    %v693 = vrot.slane %v692, 2
    %v694 = vadd.f32 %v692, %v693
    %v695 = vrot.slane %v694, 1
    %v696 = vadd.f32 %v694, %v695
    %697 = vst.msk [vmem:[%s4] sm:$0x1] %vm642, %v696
  $region17: #{generator_forward.13} parent=0 // pred_fallthru
    _
  // Predicated region
  $region18: #{generator_forward.13} parent=0 // pred_check
    _
  $region19: #{generator_forward.13} parent=0 // pred_check_branch
    %699 = sbr.rel (0) target = $region21
  $region20: #{generator_forward.13} parent=0 // pred_region
    _
  $region21: #{generator_forward.13} parent=0 // pred_fallthru
    _
  // Predicated region
  $region22: #{generator_forward.13} parent=0 // pred_check
    _
  $region23: #{generator_forward.13} parent=0 // pred_check_branch
    %701 = sbr.rel (0) target = $region25
  $region24: #{generator_forward.13} parent=0 // pred_region
    _
  $region25: #{generator_forward.13} parent=0 // pred_fallthru
    _
  // Predicated region
  $region26: #{generator_forward.13} parent=0 // pred_check
    _
  $region27: #{generator_forward.13} parent=0 // pred_check_branch
    %703 = sbr.rel (0) target = $region29
  $region28: #{generator_forward.13} parent=0 // pred_region
    _
  $region29: #{generator_forward.13} parent=0 // pred_fallthru
    _
  // Predicated region
  $region30: #{generator_forward.13} parent=0 // pred_check
    _
  $region31: #{generator_forward.13} parent=0 // pred_check_branch
    %705 = sbr.rel (0) target = $region33
  $region32: #{generator_forward.13} parent=0 // pred_region
    _
  $region33: #{generator_forward.13} parent=0 // pred_fallthru
    _
  // Predicated region
  $region34: #{generator_forward.13} parent=0 // pred_check
    _
  $region35: #{generator_forward.13} parent=0 // pred_check_branch
    %707 = sbr.rel (0) target = $region37
  $region36: #{generator_forward.13} parent=0 // pred_region
    _
  $region37: #{generator_forward.13} parent=0 // pred_fallthru
    _
  // Predicated region
  $region38: #{generator_forward.13} parent=0 // pred_check
    _
  $region39: #{generator_forward.13} parent=0 // pred_check_branch
    %709 = sbr.rel (0) target = $region41
  $region40: #{generator_forward.13} parent=0 // pred_region
    _
  $region41: #{generator_forward.13} parent=0 // pred_fallthru
    _

// kernel: tile.78
$region0: #{tile.78}
  #allocation0 [shape = 's32[1]{0}', space=sflag, size = 0x4, scoped, tag = 'scoped memory for tile.78']
  %s0 = inlined_call_operand.vmem [shape: f32[8], index: 0, kind: input, shape index: {}]
  %s1 = inlined_call_operand.vmem [shape: f32[4,8], index: 1, kind: output, shape index: {}]
  // Predicated region
  $region2: #{tile.78} parent=0 // pred_check
    _
  $region3: #{tile.78} parent=0 // pred_check_branch
    %3 = sbr.rel (0) target = $region5
  $region4: #{tile.78} parent=0 // pred_region
    _
  $region5: #{tile.78} parent=0 // pred_fallthru
    _
  %v4 = vld [vmem:[%s0] ss:$0 sm:$0xff]
  %5 = vst [vmem:[%s1] sm:$0xf] %v4

// kernel: tile.83
$region0: #{tile.83}
  %s0 = inlined_call_operand.vmem [shape: f32[4,8], index: 0, kind: input, shape index: {}]
  %s1 = inlined_call_operand.vmem [shape: f32[1,32], index: 1, kind: output, shape index: {}]
  $region1: #{tile.83} parent=0
    #allocation0 [shape = 'u8[4096]{0}', space=vmem, size = 0x1000, scoped, tag = 'scoped mem for output reshape']
    #allocation1 [shape = 'u8[4096]{0}', space=vmem, size = 0x1000, scoped, tag = 'scoped mem for input reshape']
    %s3 = ssub.s32 16, 1
    %v4 = vld [vmem:[%s0] sm:%s3]
    %5 = vst [vmem:[#allocation1] sm:%s3] %v4
    %v6 = vld [vmem:[#allocation1] sm:$0x1]
    %vm7 = vcmask 64512
    %8 = vst.msk [vmem:[#allocation0] sm:$0x1] %vm7, %v6
    %s9 = scalar_lea.vmem [#allocation1], 3
    %v10 = vld [vmem:[%s9] sm:$0x1]
    %11 = vrot.lane.b32.xlu0 %v10, 24
    %v12 = vpop.permute.xlu0 %11
    %vm13 = vcmask 261312
    %14 = vst.msk [vmem:[#allocation0] sm:$0x1] %vm13, %v12
    %s15 = scalar_lea.vmem [#allocation1], 2
    %v16 = vld [vmem:[%s15] sm:$0x1]
    %17 = vrot.lane.b32.xlu0 %v16, 16
    %v18 = vpop.permute.xlu0 %17
    %vm19 = vcmask 195712
    %20 = vst.msk [vmem:[#allocation0] sm:$0x1] %vm19, %v18
    %s21 = scalar_lea.vmem [#allocation1], 1
    %v22 = vld [vmem:[%s21] sm:$0x1]
    %23 = vrot.lane.b32.xlu0 %v22, 8
    %v24 = vpop.permute.xlu0 %23
    %vm25 = vcmask 130112
    %26 = vst.msk [vmem:[#allocation0] sm:$0x1] %vm25, %v24
    %s28 = ssub.s32 2, 1
    %v29 = vld [vmem:[#allocation0] sm:%s28]
    %s31 = ssub.s32 2, 1
    %32 = vst [vmem:[%s1] sm:%s31] %v29

// kernel: generator_forward.16
$region0: #{generator_forward.16}
  #allocation0 [shape = 'u32[]', space=smem, size = 0x4, offset = 0x4, fixed_abs, tag = 'smem constant byte address 0x4 - core index']
  #allocation1 [shape = 'u32[72,128]{1,0:T(1,128)}', space=vmem, size = 0x9000, scoped, tag = 'internal scratch']
  %s0 = inlined_call_operand.vmem [shape: bf16[512,32], index: 0, kind: input, shape index: {}]
  %s1 = inlined_call_operand.vmem [shape: f32[1,32], index: 1, kind: input, shape index: {}]
  %s2 = inlined_call_operand.vmem [shape: f32[1,32], index: 2, kind: input, shape index: {}]
  %s3 = inlined_call_operand.vmem [shape: bf16[512,32], index: 3, kind: output, shape index: {}]
  %s4 = sld [smem:[#allocation0]]
  $region22: #{generator_forward.16} parent=0
    _
  %s6 = ssub.s32 1, %s4
  %s7 = scalar_select 0, %s6, %s4
  // Predicated region
  $region2: #{generator_forward.16} parent=0 // pred_check
    _
  $region3: #{generator_forward.16} parent=0 // pred_check_branch
    %9 = sbr.rel (0) target = $region5
  $region4: #{generator_forward.16} parent=0 // pred_region
    _
  $region5: #{generator_forward.16} parent=0 // pred_fallthru
    _
  // Predicated region
  $region6: #{generator_forward.16} parent=0 // pred_check
    _
  $region7: #{generator_forward.16} parent=0 // pred_check_branch
    %11 = sbr.rel (0) target = $region9
  $region8: #{generator_forward.16} parent=0 // pred_region
    _
  $region9: #{generator_forward.16} parent=0 // pred_fallthru
    _
  // Predicated region
  $region10: #{generator_forward.16} parent=0 // pred_check
    _
  $region11: #{generator_forward.16} parent=0 // pred_check_branch
    %13 = sbr.rel (0) target = $region13
  $region12: #{generator_forward.16} parent=0 // pred_region
    _
  $region13: #{generator_forward.16} parent=0 // pred_fallthru
    _
  %v14 = vld [vmem:[%s0] sm:$0xf]
  %v15 = vld [vmem:[%s0 + $0x4] sm:$0xf]
  %v16 = vld [vmem:[%s0 + $0x8] sm:$0xf]
  %v17 = vld [vmem:[%s0 + $0xc] sm:$0xf]
  %v18 = vld [vmem:[%s0 + $0x10] sm:$0xf]
  %v19 = vld [vmem:[%s0 + $0x14] sm:$0xf]
  %v20 = vld [vmem:[%s0 + $0x18] sm:$0xf]
  %v21 = vld [vmem:[%s0 + $0x1c] sm:$0xf]
  %v22 = vld [vmem:[%s0 + $0x20] sm:$0xf]
  %v23 = vld [vmem:[%s0 + $0x24] sm:$0xf]
  %v24 = vld [vmem:[%s0 + $0x28] sm:$0xf]
  %v25 = vld [vmem:[%s0 + $0x2c] sm:$0xf]
  %v26 = vld [vmem:[%s0 + $0x30] sm:$0xf]
  %v27 = vld [vmem:[%s0 + $0x34] sm:$0xf]
  %v28 = vld [vmem:[%s0 + $0x38] sm:$0xf]
  %v29 = vld [vmem:[%s0 + $0x3c] sm:$0xf]
  %v30 = vld [vmem:[%s0 + $0x40] sm:$0xf]
  %v31 = vld [vmem:[%s0 + $0x44] sm:$0xf]
  %v32 = vld [vmem:[%s0 + $0x48] sm:$0xf]
  %v33 = vld [vmem:[%s0 + $0x4c] sm:$0xf]
  %v34 = vld [vmem:[%s0 + $0x50] sm:$0xf]
  %v35 = vld [vmem:[%s0 + $0x54] sm:$0xf]
  %v36 = vld [vmem:[%s0 + $0x58] sm:$0xf]
  %v37 = vld [vmem:[%s0 + $0x5c] sm:$0xf]
  %v38 = vld [vmem:[%s0 + $0x60] sm:$0xf]
  %v39 = vld [vmem:[%s0 + $0x64] sm:$0xf]
  %v40 = vld [vmem:[%s0 + $0x68] sm:$0xf]
  %v41 = vld [vmem:[%s0 + $0x6c] sm:$0xf]
  %v42 = vld [vmem:[%s0 + $0x70] sm:$0xf]
  %v43 = vld [vmem:[%s0 + $0x74] sm:$0xf]
  %v44 = vld [vmem:[%s0 + $0x78] sm:$0xf]
  %v45 = vld [vmem:[%s0 + $0x7c] sm:$0xf]
  %v46 = vld [vmem:[%s0 + $0x80] sm:$0xf]
  %v47 = vld [vmem:[%s0 + $0x84] sm:$0xf]
  %v48 = vld [vmem:[%s0 + $0x88] sm:$0xf]
  %v49 = vld [vmem:[%s0 + $0x8c] sm:$0xf]
  %v50 = vld [vmem:[%s0 + $0x90] sm:$0xf]
  %v51 = vld [vmem:[%s0 + $0x94] sm:$0xf]
  %v52 = vld [vmem:[%s0 + $0x98] sm:$0xf]
  %v53 = vld [vmem:[%s0 + $0x9c] sm:$0xf]
  %v54 = vld [vmem:[%s0 + $0xa0] sm:$0xf]
  %v55 = vld [vmem:[%s0 + $0xa4] sm:$0xf]
  %v56 = vld [vmem:[%s0 + $0xa8] sm:$0xf]
  %v57 = vld [vmem:[%s0 + $0xac] sm:$0xf]
  %v58 = vld [vmem:[%s0 + $0xb0] sm:$0xf]
  %v59 = vld [vmem:[%s0 + $0xb4] sm:$0xf]
  %v60 = vld [vmem:[%s0 + $0xb8] sm:$0xf]
  %v61 = vld [vmem:[%s0 + $0xbc] sm:$0xf]
  %v62 = vld [vmem:[%s0 + $0xc0] sm:$0xf]
  %v63 = vld [vmem:[%s0 + $0xc4] sm:$0xf]
  %v64 = vld [vmem:[%s0 + $0xc8] sm:$0xf]
  %v65 = vld [vmem:[%s0 + $0xcc] sm:$0xf]
  %v66 = vld [vmem:[%s0 + $0xd0] sm:$0xf]
  %v67 = vld [vmem:[%s0 + $0xd4] sm:$0xf]
  %v68 = vld [vmem:[%s0 + $0xd8] sm:$0xf]
  %v69 = vld [vmem:[%s0 + $0xdc] sm:$0xf]
  %v70 = vld [vmem:[%s0 + $0xe0] sm:$0xf]
  %v71 = vld [vmem:[%s0 + $0xe4] sm:$0xf]
  %v72 = vld [vmem:[%s0 + $0xe8] sm:$0xf]
  %v73 = vld [vmem:[%s0 + $0xec] sm:$0xf]
  %v74 = vld [vmem:[%s0 + $0xf0] sm:$0xf]
  %v75 = vld [vmem:[%s0 + $0xf4] sm:$0xf]
  %v76 = vld [vmem:[%s0 + $0xf8] sm:$0xf]
  %v77 = vld [vmem:[%s0 + $0xfc] sm:$0xf]
  %v78 = vunpack.c.l.bf16 %v14
  %v79 = vunpack.c.l.bf16 %v15
  %v80 = vunpack.c.l.bf16 %v16
  %v81 = vunpack.c.l.bf16 %v17
  %v82 = vunpack.c.l.bf16 %v18
  %v83 = vunpack.c.l.bf16 %v19
  %v84 = vunpack.c.l.bf16 %v20
  %v85 = vunpack.c.l.bf16 %v21
  %v86 = vunpack.c.l.bf16 %v22
  %v87 = vunpack.c.l.bf16 %v23
  %v88 = vunpack.c.l.bf16 %v24
  %v89 = vunpack.c.l.bf16 %v25
  %v90 = vunpack.c.l.bf16 %v26
  %v91 = vunpack.c.l.bf16 %v27
  %v92 = vunpack.c.l.bf16 %v28
  %v93 = vunpack.c.l.bf16 %v29
  %v94 = vunpack.c.l.bf16 %v30
  %v95 = vunpack.c.l.bf16 %v31
  %v96 = vunpack.c.l.bf16 %v32
  %v97 = vunpack.c.l.bf16 %v33
  %v98 = vunpack.c.l.bf16 %v34
  %v99 = vunpack.c.l.bf16 %v35
  %v100 = vunpack.c.l.bf16 %v36
  %v101 = vunpack.c.l.bf16 %v37
  %v102 = vunpack.c.l.bf16 %v38
  %v103 = vunpack.c.l.bf16 %v39
  %v104 = vunpack.c.l.bf16 %v40
  %v105 = vunpack.c.l.bf16 %v41
  %v106 = vunpack.c.l.bf16 %v42
  %v107 = vunpack.c.l.bf16 %v43
  %v108 = vunpack.c.l.bf16 %v44
  %v109 = vunpack.c.l.bf16 %v45
  %v110 = vunpack.c.l.bf16 %v46
  %v111 = vunpack.c.l.bf16 %v47
  %v112 = vunpack.c.l.bf16 %v48
  %v113 = vunpack.c.l.bf16 %v49
  %v114 = vunpack.c.l.bf16 %v50
  %v115 = vunpack.c.l.bf16 %v51
  %v116 = vunpack.c.l.bf16 %v52
  %v117 = vunpack.c.l.bf16 %v53
  %v118 = vunpack.c.l.bf16 %v54
  %v119 = vunpack.c.l.bf16 %v55
  %v120 = vunpack.c.l.bf16 %v56
  %v121 = vunpack.c.l.bf16 %v57
  %v122 = vunpack.c.l.bf16 %v58
  %v123 = vunpack.c.l.bf16 %v59
  %v124 = vunpack.c.l.bf16 %v60
  %v125 = vunpack.c.l.bf16 %v61
  %v126 = vunpack.c.l.bf16 %v62
  %v127 = vunpack.c.l.bf16 %v63
  %v128 = vunpack.c.l.bf16 %v64
  %v129 = vunpack.c.l.bf16 %v65
  %v130 = vunpack.c.l.bf16 %v66
  %v131 = vunpack.c.l.bf16 %v67
  %v132 = vunpack.c.l.bf16 %v68
  %v133 = vunpack.c.l.bf16 %v69
  %v134 = vunpack.c.l.bf16 %v70
  %v135 = vunpack.c.l.bf16 %v71
  %v136 = vunpack.c.l.bf16 %v72
  %v137 = vunpack.c.l.bf16 %v73
  %v138 = vunpack.c.l.bf16 %v74
  %v139 = vunpack.c.l.bf16 %v75
  %v140 = vunpack.c.l.bf16 %v76
  %v141 = vunpack.c.l.bf16 %v77
  %v142 = vld [vmem:[%s1] sm:$0x1]
  %v144 = vperm.slane %v142, 0
  %v146 = vmul.f32 %v78, %v144
  %v147 = vmul.f32 %v79, %v144
  %v148 = vmul.f32 %v80, %v144
  %v149 = vmul.f32 %v81, %v144
  %v150 = vmul.f32 %v82, %v144
  %v151 = vmul.f32 %v83, %v144
  %v152 = vmul.f32 %v84, %v144
  %v153 = vmul.f32 %v85, %v144
  %v154 = vmul.f32 %v86, %v144
  %v155 = vmul.f32 %v87, %v144
  %v156 = vmul.f32 %v88, %v144
  %v157 = vmul.f32 %v89, %v144
  %v158 = vmul.f32 %v90, %v144
  %v159 = vmul.f32 %v91, %v144
  %v160 = vmul.f32 %v92, %v144
  %v161 = vmul.f32 %v93, %v144
  %v162 = vmul.f32 %v94, %v144
  %v163 = vmul.f32 %v95, %v144
  %v164 = vmul.f32 %v96, %v144
  %v165 = vmul.f32 %v97, %v144
  %v166 = vmul.f32 %v98, %v144
  %v167 = vmul.f32 %v99, %v144
  %v168 = vmul.f32 %v100, %v144
  %v169 = vmul.f32 %v101, %v144
  %v170 = vmul.f32 %v102, %v144
  %v171 = vmul.f32 %v103, %v144
  %v172 = vmul.f32 %v104, %v144
  %v173 = vmul.f32 %v105, %v144
  %v174 = vmul.f32 %v106, %v144
  %v175 = vmul.f32 %v107, %v144
  %v176 = vmul.f32 %v108, %v144
  %v177 = vmul.f32 %v109, %v144
  %v178 = vmul.f32 %v110, %v144
  %v179 = vmul.f32 %v111, %v144
  %v180 = vmul.f32 %v112, %v144
  %v181 = vmul.f32 %v113, %v144
  %v182 = vmul.f32 %v114, %v144
  %v183 = vmul.f32 %v115, %v144
  %v184 = vmul.f32 %v116, %v144
  %v185 = vmul.f32 %v117, %v144
  %v186 = vmul.f32 %v118, %v144
  %v187 = vmul.f32 %v119, %v144
  %v188 = vmul.f32 %v120, %v144
  %v189 = vmul.f32 %v121, %v144
  %v190 = vmul.f32 %v122, %v144
  %v191 = vmul.f32 %v123, %v144
  %v192 = vmul.f32 %v124, %v144
  %v193 = vmul.f32 %v125, %v144
  %v194 = vmul.f32 %v126, %v144
  %v195 = vmul.f32 %v127, %v144
  %v196 = vmul.f32 %v128, %v144
  %v197 = vmul.f32 %v129, %v144
  %v198 = vmul.f32 %v130, %v144
  %v199 = vmul.f32 %v131, %v144
  %v200 = vmul.f32 %v132, %v144
  %v201 = vmul.f32 %v133, %v144
  %v202 = vmul.f32 %v134, %v144
  %v203 = vmul.f32 %v135, %v144
  %v204 = vmul.f32 %v136, %v144
  %v205 = vmul.f32 %v137, %v144
  %v206 = vmul.f32 %v138, %v144
  %v207 = vmul.f32 %v139, %v144
  %v208 = vmul.f32 %v140, %v144
  %v209 = vmul.f32 %v141, %v144
  %v210 = vld [vmem:[%s2] sm:$0x1]
  %v212 = vperm.slane %v210, 0
  %v214 = vadd.f32 %v146, %v212
  %v215 = vadd.f32 %v147, %v212
  %v216 = vadd.f32 %v148, %v212
  %v217 = vadd.f32 %v149, %v212
  %v218 = vadd.f32 %v150, %v212
  %v219 = vadd.f32 %v151, %v212
  %v220 = vadd.f32 %v152, %v212
  %v221 = vadd.f32 %v153, %v212
  %v222 = vadd.f32 %v154, %v212
  %v223 = vadd.f32 %v155, %v212
  %v224 = vadd.f32 %v156, %v212
  %v225 = vadd.f32 %v157, %v212
  %v226 = vadd.f32 %v158, %v212
  %v227 = vadd.f32 %v159, %v212
  %v228 = vadd.f32 %v160, %v212
  %v229 = vadd.f32 %v161, %v212
  %v230 = vadd.f32 %v162, %v212
  %v231 = vadd.f32 %v163, %v212
  %v232 = vadd.f32 %v164, %v212
  %v233 = vadd.f32 %v165, %v212
  %v234 = vadd.f32 %v166, %v212
  %v235 = vadd.f32 %v167, %v212
  %v236 = vadd.f32 %v168, %v212
  %v237 = vadd.f32 %v169, %v212
  %v238 = vadd.f32 %v170, %v212
  %v239 = vadd.f32 %v171, %v212
  %v240 = vadd.f32 %v172, %v212
  %v241 = vadd.f32 %v173, %v212
  %v242 = vadd.f32 %v174, %v212
  %v243 = vadd.f32 %v175, %v212
  %v244 = vadd.f32 %v176, %v212
  %v245 = vadd.f32 %v177, %v212
  %v246 = vadd.f32 %v178, %v212
  %v247 = vadd.f32 %v179, %v212
  %v248 = vadd.f32 %v180, %v212
  %v249 = vadd.f32 %v181, %v212
  %v250 = vadd.f32 %v182, %v212
  %v251 = vadd.f32 %v183, %v212
  %v252 = vadd.f32 %v184, %v212
  %v253 = vadd.f32 %v185, %v212
  %v254 = vadd.f32 %v186, %v212
  %v255 = vadd.f32 %v187, %v212
  %v256 = vadd.f32 %v188, %v212
  %v257 = vadd.f32 %v189, %v212
  %v258 = vadd.f32 %v190, %v212
  %v259 = vadd.f32 %v191, %v212
  %v260 = vadd.f32 %v192, %v212
  %v261 = vadd.f32 %v193, %v212
  %v262 = vadd.f32 %v194, %v212
  %v263 = vadd.f32 %v195, %v212
  %v264 = vadd.f32 %v196, %v212
  %v265 = vadd.f32 %v197, %v212
  %v266 = vadd.f32 %v198, %v212
  %v267 = vadd.f32 %v199, %v212
  %v268 = vadd.f32 %v200, %v212
  %v269 = vadd.f32 %v201, %v212
  %v270 = vadd.f32 %v202, %v212
  %v271 = vadd.f32 %v203, %v212
  %v272 = vadd.f32 %v204, %v212
  %v273 = vadd.f32 %v205, %v212
  %v274 = vadd.f32 %v206, %v212
  %v275 = vadd.f32 %v207, %v212
  %v276 = vadd.f32 %v208, %v212
  %v277 = vadd.f32 %v209, %v212
  %v278 = vmax.f32 %v214, 0.0
  %v279 = vmax.f32 %v215, 0.0
  %v280 = vmax.f32 %v216, 0.0
  %v281 = vmax.f32 %v217, 0.0
  %v282 = vmax.f32 %v218, 0.0
  %v283 = vmax.f32 %v219, 0.0
  %v284 = vmax.f32 %v220, 0.0
  %v285 = vmax.f32 %v221, 0.0
  %v286 = vmax.f32 %v222, 0.0
  %v287 = vmax.f32 %v223, 0.0
  %v288 = vmax.f32 %v224, 0.0
  %v289 = vmax.f32 %v225, 0.0
  %v290 = vmax.f32 %v226, 0.0
  %v291 = vmax.f32 %v227, 0.0
  %v292 = vmax.f32 %v228, 0.0
  %v293 = vmax.f32 %v229, 0.0
  %v294 = vmax.f32 %v230, 0.0
  %v295 = vmax.f32 %v231, 0.0
  %v296 = vmax.f32 %v232, 0.0
  %v297 = vmax.f32 %v233, 0.0
  %v298 = vmax.f32 %v234, 0.0
  %v299 = vmax.f32 %v235, 0.0
  %v300 = vmax.f32 %v236, 0.0
  %v301 = vmax.f32 %v237, 0.0
  %v302 = vmax.f32 %v238, 0.0
  %v303 = vmax.f32 %v239, 0.0
  %v304 = vmax.f32 %v240, 0.0
  %v305 = vmax.f32 %v241, 0.0
  %v306 = vmax.f32 %v242, 0.0
  %v307 = vmax.f32 %v243, 0.0
  %v308 = vmax.f32 %v244, 0.0
  %v309 = vmax.f32 %v245, 0.0
  %v310 = vmax.f32 %v246, 0.0
  %v311 = vmax.f32 %v247, 0.0
  %v312 = vmax.f32 %v248, 0.0
  %v313 = vmax.f32 %v249, 0.0
  %v314 = vmax.f32 %v250, 0.0
  %v315 = vmax.f32 %v251, 0.0
  %v316 = vmax.f32 %v252, 0.0
  %v317 = vmax.f32 %v253, 0.0
  %v318 = vmax.f32 %v254, 0.0
  %v319 = vmax.f32 %v255, 0.0
  %v320 = vmax.f32 %v256, 0.0
  %v321 = vmax.f32 %v257, 0.0
  %v322 = vmax.f32 %v258, 0.0
  %v323 = vmax.f32 %v259, 0.0
  %v324 = vmax.f32 %v260, 0.0
  %v325 = vmax.f32 %v261, 0.0
  %v326 = vmax.f32 %v262, 0.0
  %v327 = vmax.f32 %v263, 0.0
  %v328 = vmax.f32 %v264, 0.0
  %v329 = vmax.f32 %v265, 0.0
  %v330 = vmax.f32 %v266, 0.0
  %v331 = vmax.f32 %v267, 0.0
  %v332 = vmax.f32 %v268, 0.0
  %v333 = vmax.f32 %v269, 0.0
  %v334 = vmax.f32 %v270, 0.0
  %v335 = vmax.f32 %v271, 0.0
  %v336 = vmax.f32 %v272, 0.0
  %v337 = vmax.f32 %v273, 0.0
  %v338 = vmax.f32 %v274, 0.0
  %v339 = vmax.f32 %v275, 0.0
  %v340 = vmax.f32 %v276, 0.0
  %v341 = vmax.f32 %v277, 0.0
  %v342 = vpack.c.bf16 %v278, %v278
  %v343 = vpack.c.bf16 %v279, %v279
  %v344 = vpack.c.bf16 %v280, %v280
  %v345 = vpack.c.bf16 %v281, %v281
  %v346 = vpack.c.bf16 %v282, %v282
  %v347 = vpack.c.bf16 %v283, %v283
  %v348 = vpack.c.bf16 %v284, %v284
  %v349 = vpack.c.bf16 %v285, %v285
  %v350 = vpack.c.bf16 %v286, %v286
  %v351 = vpack.c.bf16 %v287, %v287
  %v352 = vpack.c.bf16 %v288, %v288
  %v353 = vpack.c.bf16 %v289, %v289
  %v354 = vpack.c.bf16 %v290, %v290
  %v355 = vpack.c.bf16 %v291, %v291
  %v356 = vpack.c.bf16 %v292, %v292
  %v357 = vpack.c.bf16 %v293, %v293
  %v358 = vpack.c.bf16 %v294, %v294
  %v359 = vpack.c.bf16 %v295, %v295
  %v360 = vpack.c.bf16 %v296, %v296
  %v361 = vpack.c.bf16 %v297, %v297
  %v362 = vpack.c.bf16 %v298, %v298
  %v363 = vpack.c.bf16 %v299, %v299
  %v364 = vpack.c.bf16 %v300, %v300
  %v365 = vpack.c.bf16 %v301, %v301
  %v366 = vpack.c.bf16 %v302, %v302
  %v367 = vpack.c.bf16 %v303, %v303
  %v368 = vpack.c.bf16 %v304, %v304
  %v369 = vpack.c.bf16 %v305, %v305
  %v370 = vpack.c.bf16 %v306, %v306
  %v371 = vpack.c.bf16 %v307, %v307
  %v372 = vpack.c.bf16 %v308, %v308
  %v373 = vpack.c.bf16 %v309, %v309
  %v374 = vpack.c.bf16 %v310, %v310
  %v375 = vpack.c.bf16 %v311, %v311
  %v376 = vpack.c.bf16 %v312, %v312
  %v377 = vpack.c.bf16 %v313, %v313
  %v378 = vpack.c.bf16 %v314, %v314
  %v379 = vpack.c.bf16 %v315, %v315
  %v380 = vpack.c.bf16 %v316, %v316
  %v381 = vpack.c.bf16 %v317, %v317
  %v382 = vpack.c.bf16 %v318, %v318
  %v383 = vpack.c.bf16 %v319, %v319
  %v384 = vpack.c.bf16 %v320, %v320
  %v385 = vpack.c.bf16 %v321, %v321
  %v386 = vpack.c.bf16 %v322, %v322
  %v387 = vpack.c.bf16 %v323, %v323
  %v388 = vpack.c.bf16 %v324, %v324
  %v389 = vpack.c.bf16 %v325, %v325
  %v390 = vpack.c.bf16 %v326, %v326
  %v391 = vpack.c.bf16 %v327, %v327
  %v392 = vpack.c.bf16 %v328, %v328
  %v393 = vpack.c.bf16 %v329, %v329
  %v394 = vpack.c.bf16 %v330, %v330
  %v395 = vpack.c.bf16 %v331, %v331
  %v396 = vpack.c.bf16 %v332, %v332
  %v397 = vpack.c.bf16 %v333, %v333
  %v398 = vpack.c.bf16 %v334, %v334
  %v399 = vpack.c.bf16 %v335, %v335
  %v400 = vpack.c.bf16 %v336, %v336
  %v401 = vpack.c.bf16 %v337, %v337
  %v402 = vpack.c.bf16 %v338, %v338
  %v403 = vpack.c.bf16 %v339, %v339
  %v404 = vpack.c.bf16 %v340, %v340
  %v405 = vpack.c.bf16 %v341, %v341
  %vm406 = vcmask 257024
  %407 = vst.msk [vmem:[%s3] sm:$0xf] %vm406, %v342
  %408 = vst.msk [vmem:[%s3 + $0x4] sm:$0xf] %vm406, %v343
  %409 = vst.msk [vmem:[%s3 + $0x8] sm:$0xf] %vm406, %v344
  %410 = vst.msk [vmem:[%s3 + $0xc] sm:$0xf] %vm406, %v345
  %411 = vst.msk [vmem:[%s3 + $0x10] sm:$0xf] %vm406, %v346
  %412 = vst.msk [vmem:[%s3 + $0x14] sm:$0xf] %vm406, %v347
  %413 = vst.msk [vmem:[%s3 + $0x18] sm:$0xf] %vm406, %v348
  %414 = vst.msk [vmem:[%s3 + $0x1c] sm:$0xf] %vm406, %v349
  %415 = vst.msk [vmem:[%s3 + $0x20] sm:$0xf] %vm406, %v350
  %416 = vst.msk [vmem:[%s3 + $0x24] sm:$0xf] %vm406, %v351
  %417 = vst.msk [vmem:[%s3 + $0x28] sm:$0xf] %vm406, %v352
  %418 = vst.msk [vmem:[%s3 + $0x2c] sm:$0xf] %vm406, %v353
  %419 = vst.msk [vmem:[%s3 + $0x30] sm:$0xf] %vm406, %v354
  %420 = vst.msk [vmem:[%s3 + $0x34] sm:$0xf] %vm406, %v355
  %421 = vst.msk [vmem:[%s3 + $0x38] sm:$0xf] %vm406, %v356
  %422 = vst.msk [vmem:[%s3 + $0x3c] sm:$0xf] %vm406, %v357
  %423 = vst.msk [vmem:[%s3 + $0x40] sm:$0xf] %vm406, %v358
  %424 = vst.msk [vmem:[%s3 + $0x44] sm:$0xf] %vm406, %v359
  %425 = vst.msk [vmem:[%s3 + $0x48] sm:$0xf] %vm406, %v360
  %426 = vst.msk [vmem:[%s3 + $0x4c] sm:$0xf] %vm406, %v361
  %427 = vst.msk [vmem:[%s3 + $0x50] sm:$0xf] %vm406, %v362
  %428 = vst.msk [vmem:[%s3 + $0x54] sm:$0xf] %vm406, %v363
  %429 = vst.msk [vmem:[%s3 + $0x58] sm:$0xf] %vm406, %v364
  %430 = vst.msk [vmem:[%s3 + $0x5c] sm:$0xf] %vm406, %v365
  %431 = vst.msk [vmem:[%s3 + $0x60] sm:$0xf] %vm406, %v366
  %432 = vst.msk [vmem:[%s3 + $0x64] sm:$0xf] %vm406, %v367
  %433 = vst.msk [vmem:[%s3 + $0x68] sm:$0xf] %vm406, %v368
  %434 = vst.msk [vmem:[%s3 + $0x6c] sm:$0xf] %vm406, %v369
  %435 = vst.msk [vmem:[%s3 + $0x70] sm:$0xf] %vm406, %v370
  %436 = vst.msk [vmem:[%s3 + $0x74] sm:$0xf] %vm406, %v371
  %437 = vst.msk [vmem:[%s3 + $0x78] sm:$0xf] %vm406, %v372
  %438 = vst.msk [vmem:[%s3 + $0x7c] sm:$0xf] %vm406, %v373
  %439 = vst.msk [vmem:[%s3 + $0x80] sm:$0xf] %vm406, %v374
  %440 = vst.msk [vmem:[%s3 + $0x84] sm:$0xf] %vm406, %v375
  %441 = vst.msk [vmem:[%s3 + $0x88] sm:$0xf] %vm406, %v376
  %442 = vst.msk [vmem:[%s3 + $0x8c] sm:$0xf] %vm406, %v377
  %443 = vst.msk [vmem:[%s3 + $0x90] sm:$0xf] %vm406, %v378
  %444 = vst.msk [vmem:[%s3 + $0x94] sm:$0xf] %vm406, %v379
  %445 = vst.msk [vmem:[%s3 + $0x98] sm:$0xf] %vm406, %v380
  %446 = vst.msk [vmem:[%s3 + $0x9c] sm:$0xf] %vm406, %v381
  %447 = vst.msk [vmem:[%s3 + $0xa0] sm:$0xf] %vm406, %v382
  %448 = vst.msk [vmem:[%s3 + $0xa4] sm:$0xf] %vm406, %v383
  %449 = vst.msk [vmem:[%s3 + $0xa8] sm:$0xf] %vm406, %v384
  %450 = vst.msk [vmem:[%s3 + $0xac] sm:$0xf] %vm406, %v385
  %451 = vst.msk [vmem:[%s3 + $0xb0] sm:$0xf] %vm406, %v386
  %452 = vst.msk [vmem:[%s3 + $0xb4] sm:$0xf] %vm406, %v387
  %453 = vst.msk [vmem:[%s3 + $0xb8] sm:$0xf] %vm406, %v388
  %454 = vst.msk [vmem:[%s3 + $0xbc] sm:$0xf] %vm406, %v389
  %455 = vst.msk [vmem:[%s3 + $0xc0] sm:$0xf] %vm406, %v390
  %456 = vst.msk [vmem:[%s3 + $0xc4] sm:$0xf] %vm406, %v391
  %457 = vst.msk [vmem:[%s3 + $0xc8] sm:$0xf] %vm406, %v392
  %458 = vst.msk [vmem:[%s3 + $0xcc] sm:$0xf] %vm406, %v393
  %459 = vst.msk [vmem:[%s3 + $0xd0] sm:$0xf] %vm406, %v394
  %460 = vst.msk [vmem:[%s3 + $0xd4] sm:$0xf] %vm406, %v395
  %461 = vst.msk [vmem:[%s3 + $0xd8] sm:$0xf] %vm406, %v396
  %462 = vst.msk [vmem:[%s3 + $0xdc] sm:$0xf] %vm406, %v397
  %463 = vst.msk [vmem:[%s3 + $0xe0] sm:$0xf] %vm406, %v398
  %464 = vst.msk [vmem:[%s3 + $0xe4] sm:$0xf] %vm406, %v399
  %465 = vst.msk [vmem:[%s3 + $0xe8] sm:$0xf] %vm406, %v400
  %466 = vst.msk [vmem:[%s3 + $0xec] sm:$0xf] %vm406, %v401
  %467 = vst.msk [vmem:[%s3 + $0xf0] sm:$0xf] %vm406, %v402
  %468 = vst.msk [vmem:[%s3 + $0xf4] sm:$0xf] %vm406, %v403
  %469 = vst.msk [vmem:[%s3 + $0xf8] sm:$0xf] %vm406, %v404
  %470 = vst.msk [vmem:[%s3 + $0xfc] sm:$0xf] %vm406, %v405
  // Predicated region
  $region14: #{generator_forward.16} parent=0 // pred_check
    _
  $region15: #{generator_forward.16} parent=0 // pred_check_branch
    %472 = sbr.rel (0) target = $region17
  $region16: #{generator_forward.16} parent=0 // pred_region
    _
  $region17: #{generator_forward.16} parent=0 // pred_fallthru
    _
  // Predicated region
  $region18: #{generator_forward.16} parent=0 // pred_check
    _
  $region19: #{generator_forward.16} parent=0 // pred_check_branch
    %474 = sbr.rel (0) target = $region21
  $region20: #{generator_forward.16} parent=0 // pred_region
    _
  $region21: #{generator_forward.16} parent=0 // pred_fallthru
    _

// kernel: generator_forward.15
$region0: #{generator_forward.15}
  #allocation0 [shape = 'u32[]', space=smem, size = 0x4, offset = 0x4, fixed_abs, tag = 'smem constant byte address 0x4 - core index']
  #allocation1 [shape = 'u32[72,128]{1,0:T(1,128)}', space=vmem, size = 0x9000, scoped, tag = 'internal scratch']
  #allocation2 [shape = 'f32[512,32]{1,0:T(8,128)}', space=vmem, size = 0x40000, scoped, tag = 'scratch operand']
  %s0 = inlined_call_operand.vmem [shape: bf16[512,144], index: 0, kind: input, shape index: {}]
  %s1 = inlined_call_operand.vmem [shape: bf16[144,32], index: 1, kind: input, shape index: {}]
  %s2 = inlined_call_operand.vmem [shape: bf16[512,32], index: 2, kind: output, shape index: {0}]
  %s3 = inlined_call_operand.vmem [shape: f32[1,1,32], index: 3, kind: output, shape index: {1}]
  %s4 = inlined_call_operand.vmem [shape: f32[1,1,32], index: 4, kind: output, shape index: {2}]
  %5 = xla_tuple %s2, %s3, %s4
  %s6 = sld [smem:[#allocation0]]
  $region42: #{generator_forward.15} parent=0
    _
  %s8 = ssub.s32 1, %s6
  %s9 = scalar_select 0, %s8, %s6
  // Predicated region
  $region2: #{generator_forward.15} parent=0 // pred_check
    _
  $region3: #{generator_forward.15} parent=0 // pred_check_branch
    %11 = sbr.rel (0) target = $region5
  $region4: #{generator_forward.15} parent=0 // pred_region
    _
  $region5: #{generator_forward.15} parent=0 // pred_fallthru
    _
  // Predicated region
  $region6: #{generator_forward.15} parent=0 // pred_check
    _
  $region7: #{generator_forward.15} parent=0 // pred_check_branch
    %13 = sbr.rel (0) target = $region9
  $region8: #{generator_forward.15} parent=0 // pred_region
    _
  $region9: #{generator_forward.15} parent=0 // pred_fallthru
    _
  %p15 = scmp.eq.s32.totalorder 0, 0
  // Predicated region
  $region10: #{generator_forward.15} parent=0 // pred_check
    %p16 = pneg %p15
  $region11: #{generator_forward.15} parent=0 // pred_check_branch
    %18 = sbr.rel (%p16) target = $region13
  $region12: #{generator_forward.15} parent=0 // pred_region
    %vm19 = vcmask 261120
    %20 = vst.msk [vmem:[#allocation2] sm:$0xff] %vm19, 0.0
    %21 = vst.msk [vmem:[#allocation2 + $0x8] sm:$0xff] %vm19, 0.0
    %22 = vst.msk [vmem:[#allocation2 + $0x10] sm:$0xff] %vm19, 0.0
    %23 = vst.msk [vmem:[#allocation2 + $0x18] sm:$0xff] %vm19, 0.0
    %24 = vst.msk [vmem:[#allocation2 + $0x20] sm:$0xff] %vm19, 0.0
    %25 = vst.msk [vmem:[#allocation2 + $0x28] sm:$0xff] %vm19, 0.0
    %26 = vst.msk [vmem:[#allocation2 + $0x30] sm:$0xff] %vm19, 0.0
    %27 = vst.msk [vmem:[#allocation2 + $0x38] sm:$0xff] %vm19, 0.0
    %28 = vst.msk [vmem:[#allocation2 + $0x40] sm:$0xff] %vm19, 0.0
    %29 = vst.msk [vmem:[#allocation2 + $0x48] sm:$0xff] %vm19, 0.0
    %30 = vst.msk [vmem:[#allocation2 + $0x50] sm:$0xff] %vm19, 0.0
    %31 = vst.msk [vmem:[#allocation2 + $0x58] sm:$0xff] %vm19, 0.0
    %32 = vst.msk [vmem:[#allocation2 + $0x60] sm:$0xff] %vm19, 0.0
    %33 = vst.msk [vmem:[#allocation2 + $0x68] sm:$0xff] %vm19, 0.0
    %34 = vst.msk [vmem:[#allocation2 + $0x70] sm:$0xff] %vm19, 0.0
    %35 = vst.msk [vmem:[#allocation2 + $0x78] sm:$0xff] %vm19, 0.0
    %36 = vst.msk [vmem:[#allocation2 + $0x80] sm:$0xff] %vm19, 0.0
    %37 = vst.msk [vmem:[#allocation2 + $0x88] sm:$0xff] %vm19, 0.0
    %38 = vst.msk [vmem:[#allocation2 + $0x90] sm:$0xff] %vm19, 0.0
    %39 = vst.msk [vmem:[#allocation2 + $0x98] sm:$0xff] %vm19, 0.0
    %40 = vst.msk [vmem:[#allocation2 + $0xa0] sm:$0xff] %vm19, 0.0
    %41 = vst.msk [vmem:[#allocation2 + $0xa8] sm:$0xff] %vm19, 0.0
    %42 = vst.msk [vmem:[#allocation2 + $0xb0] sm:$0xff] %vm19, 0.0
    %43 = vst.msk [vmem:[#allocation2 + $0xb8] sm:$0xff] %vm19, 0.0
    %44 = vst.msk [vmem:[#allocation2 + $0xc0] sm:$0xff] %vm19, 0.0
    %45 = vst.msk [vmem:[#allocation2 + $0xc8] sm:$0xff] %vm19, 0.0
    %46 = vst.msk [vmem:[#allocation2 + $0xd0] sm:$0xff] %vm19, 0.0
    %47 = vst.msk [vmem:[#allocation2 + $0xd8] sm:$0xff] %vm19, 0.0
    %48 = vst.msk [vmem:[#allocation2 + $0xe0] sm:$0xff] %vm19, 0.0
    %49 = vst.msk [vmem:[#allocation2 + $0xe8] sm:$0xff] %vm19, 0.0
    %50 = vst.msk [vmem:[#allocation2 + $0xf0] sm:$0xff] %vm19, 0.0
    %51 = vst.msk [vmem:[#allocation2 + $0xf8] sm:$0xff] %vm19, 0.0
    %52 = vst.msk [vmem:[#allocation2 + $0x100] sm:$0xff] %vm19, 0.0
    %53 = vst.msk [vmem:[#allocation2 + $0x108] sm:$0xff] %vm19, 0.0
    %54 = vst.msk [vmem:[#allocation2 + $0x110] sm:$0xff] %vm19, 0.0
    %55 = vst.msk [vmem:[#allocation2 + $0x118] sm:$0xff] %vm19, 0.0
    %56 = vst.msk [vmem:[#allocation2 + $0x120] sm:$0xff] %vm19, 0.0
    %57 = vst.msk [vmem:[#allocation2 + $0x128] sm:$0xff] %vm19, 0.0
    %58 = vst.msk [vmem:[#allocation2 + $0x130] sm:$0xff] %vm19, 0.0
    %59 = vst.msk [vmem:[#allocation2 + $0x138] sm:$0xff] %vm19, 0.0
    %60 = vst.msk [vmem:[#allocation2 + $0x140] sm:$0xff] %vm19, 0.0
    %61 = vst.msk [vmem:[#allocation2 + $0x148] sm:$0xff] %vm19, 0.0
    %62 = vst.msk [vmem:[#allocation2 + $0x150] sm:$0xff] %vm19, 0.0
    %63 = vst.msk [vmem:[#allocation2 + $0x158] sm:$0xff] %vm19, 0.0
    %64 = vst.msk [vmem:[#allocation2 + $0x160] sm:$0xff] %vm19, 0.0
    %65 = vst.msk [vmem:[#allocation2 + $0x168] sm:$0xff] %vm19, 0.0
    %66 = vst.msk [vmem:[#allocation2 + $0x170] sm:$0xff] %vm19, 0.0
    %67 = vst.msk [vmem:[#allocation2 + $0x178] sm:$0xff] %vm19, 0.0
    %68 = vst.msk [vmem:[#allocation2 + $0x180] sm:$0xff] %vm19, 0.0
    %69 = vst.msk [vmem:[#allocation2 + $0x188] sm:$0xff] %vm19, 0.0
    %70 = vst.msk [vmem:[#allocation2 + $0x190] sm:$0xff] %vm19, 0.0
    %71 = vst.msk [vmem:[#allocation2 + $0x198] sm:$0xff] %vm19, 0.0
    %72 = vst.msk [vmem:[#allocation2 + $0x1a0] sm:$0xff] %vm19, 0.0
    %73 = vst.msk [vmem:[#allocation2 + $0x1a8] sm:$0xff] %vm19, 0.0
    %74 = vst.msk [vmem:[#allocation2 + $0x1b0] sm:$0xff] %vm19, 0.0
    %75 = vst.msk [vmem:[#allocation2 + $0x1b8] sm:$0xff] %vm19, 0.0
    %76 = vst.msk [vmem:[#allocation2 + $0x1c0] sm:$0xff] %vm19, 0.0
    %77 = vst.msk [vmem:[#allocation2 + $0x1c8] sm:$0xff] %vm19, 0.0
    %78 = vst.msk [vmem:[#allocation2 + $0x1d0] sm:$0xff] %vm19, 0.0
    %79 = vst.msk [vmem:[#allocation2 + $0x1d8] sm:$0xff] %vm19, 0.0
    %80 = vst.msk [vmem:[#allocation2 + $0x1e0] sm:$0xff] %vm19, 0.0
    %81 = vst.msk [vmem:[#allocation2 + $0x1e8] sm:$0xff] %vm19, 0.0
    %82 = vst.msk [vmem:[#allocation2 + $0x1f0] sm:$0xff] %vm19, 0.0
    %83 = vst.msk [vmem:[#allocation2 + $0x1f8] sm:$0xff] %vm19, 0.0
  $region13: #{generator_forward.15} parent=0 // pred_fallthru
    _
  %v84 = vld [vmem:[#allocation2] sm:$0xff]
  %v85 = vld [vmem:[#allocation2 + $0x8] sm:$0xff]
  %v86 = vld [vmem:[#allocation2 + $0x10] sm:$0xff]
  %v87 = vld [vmem:[#allocation2 + $0x18] sm:$0xff]
  %v88 = vld [vmem:[#allocation2 + $0x20] sm:$0xff]
  %v89 = vld [vmem:[#allocation2 + $0x28] sm:$0xff]
  %v90 = vld [vmem:[#allocation2 + $0x30] sm:$0xff]
  %v91 = vld [vmem:[#allocation2 + $0x38] sm:$0xff]
  %v92 = vld [vmem:[#allocation2 + $0x40] sm:$0xff]
  %v93 = vld [vmem:[#allocation2 + $0x48] sm:$0xff]
  %v94 = vld [vmem:[#allocation2 + $0x50] sm:$0xff]
  %v95 = vld [vmem:[#allocation2 + $0x58] sm:$0xff]
  %v96 = vld [vmem:[#allocation2 + $0x60] sm:$0xff]
  %v97 = vld [vmem:[#allocation2 + $0x68] sm:$0xff]
  %v98 = vld [vmem:[#allocation2 + $0x70] sm:$0xff]
  %v99 = vld [vmem:[#allocation2 + $0x78] sm:$0xff]
  %v100 = vld [vmem:[#allocation2 + $0x80] sm:$0xff]
  %v101 = vld [vmem:[#allocation2 + $0x88] sm:$0xff]
  %v102 = vld [vmem:[#allocation2 + $0x90] sm:$0xff]
  %v103 = vld [vmem:[#allocation2 + $0x98] sm:$0xff]
  %v104 = vld [vmem:[#allocation2 + $0xa0] sm:$0xff]
  %v105 = vld [vmem:[#allocation2 + $0xa8] sm:$0xff]
  %v106 = vld [vmem:[#allocation2 + $0xb0] sm:$0xff]
  %v107 = vld [vmem:[#allocation2 + $0xb8] sm:$0xff]
  %v108 = vld [vmem:[#allocation2 + $0xc0] sm:$0xff]
  %v109 = vld [vmem:[#allocation2 + $0xc8] sm:$0xff]
  %v110 = vld [vmem:[#allocation2 + $0xd0] sm:$0xff]
  %v111 = vld [vmem:[#allocation2 + $0xd8] sm:$0xff]
  %v112 = vld [vmem:[#allocation2 + $0xe0] sm:$0xff]
  %v113 = vld [vmem:[#allocation2 + $0xe8] sm:$0xff]
  %v114 = vld [vmem:[#allocation2 + $0xf0] sm:$0xff]
  %v115 = vld [vmem:[#allocation2 + $0xf8] sm:$0xff]
  %v116 = vld [vmem:[#allocation2 + $0x100] sm:$0xff]
  %v117 = vld [vmem:[#allocation2 + $0x108] sm:$0xff]
  %v118 = vld [vmem:[#allocation2 + $0x110] sm:$0xff]
  %v119 = vld [vmem:[#allocation2 + $0x118] sm:$0xff]
  %v120 = vld [vmem:[#allocation2 + $0x120] sm:$0xff]
  %v121 = vld [vmem:[#allocation2 + $0x128] sm:$0xff]
  %v122 = vld [vmem:[#allocation2 + $0x130] sm:$0xff]
  %v123 = vld [vmem:[#allocation2 + $0x138] sm:$0xff]
  %v124 = vld [vmem:[#allocation2 + $0x140] sm:$0xff]
  %v125 = vld [vmem:[#allocation2 + $0x148] sm:$0xff]
  %v126 = vld [vmem:[#allocation2 + $0x150] sm:$0xff]
  %v127 = vld [vmem:[#allocation2 + $0x158] sm:$0xff]
  %v128 = vld [vmem:[#allocation2 + $0x160] sm:$0xff]
  %v129 = vld [vmem:[#allocation2 + $0x168] sm:$0xff]
  %v130 = vld [vmem:[#allocation2 + $0x170] sm:$0xff]
  %v131 = vld [vmem:[#allocation2 + $0x178] sm:$0xff]
  %v132 = vld [vmem:[#allocation2 + $0x180] sm:$0xff]
  %v133 = vld [vmem:[#allocation2 + $0x188] sm:$0xff]
  %v134 = vld [vmem:[#allocation2 + $0x190] sm:$0xff]
  %v135 = vld [vmem:[#allocation2 + $0x198] sm:$0xff]
  %v136 = vld [vmem:[#allocation2 + $0x1a0] sm:$0xff]
  %v137 = vld [vmem:[#allocation2 + $0x1a8] sm:$0xff]
  %v138 = vld [vmem:[#allocation2 + $0x1b0] sm:$0xff]
  %v139 = vld [vmem:[#allocation2 + $0x1b8] sm:$0xff]
  %v140 = vld [vmem:[#allocation2 + $0x1c0] sm:$0xff]
  %v141 = vld [vmem:[#allocation2 + $0x1c8] sm:$0xff]
  %v142 = vld [vmem:[#allocation2 + $0x1d0] sm:$0xff]
  %v143 = vld [vmem:[#allocation2 + $0x1d8] sm:$0xff]
  %v144 = vld [vmem:[#allocation2 + $0x1e0] sm:$0xff]
  %v145 = vld [vmem:[#allocation2 + $0x1e8] sm:$0xff]
  %v146 = vld [vmem:[#allocation2 + $0x1f0] sm:$0xff]
  %v147 = vld [vmem:[#allocation2 + $0x1f8] sm:$0xff]
  %v148 = vld [vmem:[%s0] sm:$0xff]
  %v149 = vld [vmem:[%s0 + $0x8] sm:$0xff]
  %v150 = vld [vmem:[%s0 + $0x10] sm:$0xff]
  %v151 = vld [vmem:[%s0 + $0x18] sm:$0xff]
  %v152 = vld [vmem:[%s0 + $0x20] sm:$0xff]
  %v153 = vld [vmem:[%s0 + $0x28] sm:$0xff]
  %v154 = vld [vmem:[%s0 + $0x30] sm:$0xff]
  %v155 = vld [vmem:[%s0 + $0x38] sm:$0xff]
  %v156 = vld [vmem:[%s0 + $0x40] sm:$0xff]
  %v157 = vld [vmem:[%s0 + $0x48] sm:$0xff]
  %v158 = vld [vmem:[%s0 + $0x50] sm:$0xff]
  %v159 = vld [vmem:[%s0 + $0x58] sm:$0xff]
  %v160 = vld [vmem:[%s0 + $0x60] sm:$0xff]
  %v161 = vld [vmem:[%s0 + $0x68] sm:$0xff]
  %v162 = vld [vmem:[%s0 + $0x70] sm:$0xff]
  %v163 = vld [vmem:[%s0 + $0x78] sm:$0xff]
  %v164 = vld [vmem:[%s0 + $0x80] sm:$0xff]
  %v165 = vld [vmem:[%s0 + $0x88] sm:$0xff]
  %v166 = vld [vmem:[%s0 + $0x90] sm:$0xff]
  %v167 = vld [vmem:[%s0 + $0x98] sm:$0xff]
  %v168 = vld [vmem:[%s0 + $0xa0] sm:$0xff]
  %v169 = vld [vmem:[%s0 + $0xa8] sm:$0xff]
  %v170 = vld [vmem:[%s0 + $0xb0] sm:$0xff]
  %v171 = vld [vmem:[%s0 + $0xb8] sm:$0xff]
  %v172 = vld [vmem:[%s0 + $0xc0] sm:$0xff]
  %v173 = vld [vmem:[%s0 + $0xc8] sm:$0xff]
  %v174 = vld [vmem:[%s0 + $0xd0] sm:$0xff]
  %v175 = vld [vmem:[%s0 + $0xd8] sm:$0xff]
  %v176 = vld [vmem:[%s0 + $0xe0] sm:$0xff]
  %v177 = vld [vmem:[%s0 + $0xe8] sm:$0xff]
  %v178 = vld [vmem:[%s0 + $0xf0] sm:$0xff]
  %v179 = vld [vmem:[%s0 + $0xf8] sm:$0xff]
  %v180 = vld [vmem:[%s0 + $0x100] sm:$0xff]
  %v181 = vld [vmem:[%s0 + $0x108] sm:$0xff]
  %v182 = vld [vmem:[%s0 + $0x110] sm:$0xff]
  %v183 = vld [vmem:[%s0 + $0x118] sm:$0xff]
  %v184 = vld [vmem:[%s0 + $0x120] sm:$0xff]
  %v185 = vld [vmem:[%s0 + $0x128] sm:$0xff]
  %v186 = vld [vmem:[%s0 + $0x130] sm:$0xff]
  %v187 = vld [vmem:[%s0 + $0x138] sm:$0xff]
  %v188 = vld [vmem:[%s0 + $0x140] sm:$0xff]
  %v189 = vld [vmem:[%s0 + $0x148] sm:$0xff]
  %v190 = vld [vmem:[%s0 + $0x150] sm:$0xff]
  %v191 = vld [vmem:[%s0 + $0x158] sm:$0xff]
  %v192 = vld [vmem:[%s0 + $0x160] sm:$0xff]
  %v193 = vld [vmem:[%s0 + $0x168] sm:$0xff]
  %v194 = vld [vmem:[%s0 + $0x170] sm:$0xff]
  %v195 = vld [vmem:[%s0 + $0x178] sm:$0xff]
  %v196 = vld [vmem:[%s0 + $0x180] sm:$0xff]
  %v197 = vld [vmem:[%s0 + $0x188] sm:$0xff]
  %v198 = vld [vmem:[%s0 + $0x190] sm:$0xff]
  %v199 = vld [vmem:[%s0 + $0x198] sm:$0xff]
  %v200 = vld [vmem:[%s0 + $0x1a0] sm:$0xff]
  %v201 = vld [vmem:[%s0 + $0x1a8] sm:$0xff]
  %v202 = vld [vmem:[%s0 + $0x1b0] sm:$0xff]
  %v203 = vld [vmem:[%s0 + $0x1b8] sm:$0xff]
  %v204 = vld [vmem:[%s0 + $0x1c0] sm:$0xff]
  %v205 = vld [vmem:[%s0 + $0x1c8] sm:$0xff]
  %v206 = vld [vmem:[%s0 + $0x1d0] sm:$0xff]
  %v207 = vld [vmem:[%s0 + $0x1d8] sm:$0xff]
  %v208 = vld [vmem:[%s0 + $0x1e0] sm:$0xff]
  %v209 = vld [vmem:[%s0 + $0x1e8] sm:$0xff]
  %v210 = vld [vmem:[%s0 + $0x1f0] sm:$0xff]
  %v211 = vld [vmem:[%s0 + $0x1f8] sm:$0xff]
  %v212 = vld [vmem:[%s1] sm:$0xf]
  %v213 = vld [vmem:[%s1 + $0x4] sm:$0xf]
  %v214 = vld [vmem:[%s1 + $0x8] sm:$0xf]
  %v215 = vld [vmem:[%s1 + $0xc] sm:$0xf]
  %v216 = vld [vmem:[%s1 + $0x10] sm:$0xf]
  %v217 = vld [vmem:[%s1 + $0x14] sm:$0xf]
  %v218 = vld [vmem:[%s1 + $0x18] sm:$0xf]
  %v219 = vld [vmem:[%s1 + $0x1c] sm:$0xf]
  %v220 = vld [vmem:[%s1 + $0x20] sm:$0xf]
  %v221 = vld [vmem:[%s1 + $0x24] sm:$0xf]
  %v222 = vld [vmem:[%s1 + $0x28] sm:$0xf]
  %v223 = vld [vmem:[%s1 + $0x2c] sm:$0xf]
  %v224 = vld [vmem:[%s1 + $0x30] sm:$0xf]
  %v225 = vld [vmem:[%s1 + $0x34] sm:$0xf]
  %v226 = vld [vmem:[%s1 + $0x38] sm:$0xf]
  %v227 = vld [vmem:[%s1 + $0x3c] sm:$0xf]
  %v228 = vld [vmem:[%s1 + $0x40] sm:$0xf]
  %v229 = vld [vmem:[%s1 + $0x44] sm:$0xf]
  %v294 = vunpack.c.l.b16 %v148
  %v295 = vunpack.c.h.b16 %v148
  %v296 = vunpack.c.l.b16 %v149
  %v297 = vunpack.c.h.b16 %v149
  %v298 = vunpack.c.l.b16 %v150
  %v299 = vunpack.c.h.b16 %v150
  %v300 = vunpack.c.l.b16 %v151
  %v301 = vunpack.c.h.b16 %v151
  %v302 = vunpack.c.l.b16 %v152
  %v303 = vunpack.c.h.b16 %v152
  %v304 = vunpack.c.l.b16 %v153
  %v305 = vunpack.c.h.b16 %v153
  %v306 = vunpack.c.l.b16 %v154
  %v307 = vunpack.c.h.b16 %v154
  %v308 = vunpack.c.l.b16 %v155
  %v309 = vunpack.c.h.b16 %v155
  %v310 = vunpack.c.l.b16 %v156
  %v311 = vunpack.c.h.b16 %v156
  %v312 = vunpack.c.l.b16 %v157
  %v313 = vunpack.c.h.b16 %v157
  %v314 = vunpack.c.l.b16 %v158
  %v315 = vunpack.c.h.b16 %v158
  %v316 = vunpack.c.l.b16 %v159
  %v317 = vunpack.c.h.b16 %v159
  %v318 = vunpack.c.l.b16 %v160
  %v319 = vunpack.c.h.b16 %v160
  %v320 = vunpack.c.l.b16 %v161
  %v321 = vunpack.c.h.b16 %v161
  %v322 = vunpack.c.l.b16 %v162
  %v323 = vunpack.c.h.b16 %v162
  %v324 = vunpack.c.l.b16 %v163
  %v325 = vunpack.c.h.b16 %v163
  %v326 = vunpack.c.l.b16 %v164
  %v327 = vunpack.c.h.b16 %v164
  %v328 = vunpack.c.l.b16 %v165
  %v329 = vunpack.c.h.b16 %v165
  %v330 = vunpack.c.l.b16 %v166
  %v331 = vunpack.c.h.b16 %v166
  %v332 = vunpack.c.l.b16 %v167
  %v333 = vunpack.c.h.b16 %v167
  %v334 = vunpack.c.l.b16 %v168
  %v335 = vunpack.c.h.b16 %v168
  %v336 = vunpack.c.l.b16 %v169
  %v337 = vunpack.c.h.b16 %v169
  %v338 = vunpack.c.l.b16 %v170
  %v339 = vunpack.c.h.b16 %v170
  %v340 = vunpack.c.l.b16 %v171
  %v341 = vunpack.c.h.b16 %v171
  %v342 = vunpack.c.l.b16 %v172
  %v343 = vunpack.c.h.b16 %v172
  %v344 = vunpack.c.l.b16 %v173
  %v345 = vunpack.c.h.b16 %v173
  %v346 = vunpack.c.l.b16 %v174
  %v347 = vunpack.c.h.b16 %v174
  %v348 = vunpack.c.l.b16 %v175
  %v349 = vunpack.c.h.b16 %v175
  %v350 = vunpack.c.l.b16 %v176
  %v351 = vunpack.c.h.b16 %v176
  %v352 = vunpack.c.l.b16 %v177
  %v353 = vunpack.c.h.b16 %v177
  %v354 = vunpack.c.l.b16 %v178
  %v355 = vunpack.c.h.b16 %v178
  %v356 = vunpack.c.l.b16 %v179
  %v357 = vunpack.c.h.b16 %v179
  %v358 = vunpack.c.l.b16 %v180
  %v359 = vunpack.c.h.b16 %v180
  %v360 = vunpack.c.l.b16 %v181
  %v361 = vunpack.c.h.b16 %v181
  %v362 = vunpack.c.l.b16 %v182
  %v363 = vunpack.c.h.b16 %v182
  %v364 = vunpack.c.l.b16 %v183
  %v365 = vunpack.c.h.b16 %v183
  %v366 = vunpack.c.l.b16 %v184
  %v367 = vunpack.c.h.b16 %v184
  %v368 = vunpack.c.l.b16 %v185
  %v369 = vunpack.c.h.b16 %v185
  %v370 = vunpack.c.l.b16 %v186
  %v371 = vunpack.c.h.b16 %v186
  %v372 = vunpack.c.l.b16 %v187
  %v373 = vunpack.c.h.b16 %v187
  %v374 = vunpack.c.l.b16 %v188
  %v375 = vunpack.c.h.b16 %v188
  %v376 = vunpack.c.l.b16 %v189
  %v377 = vunpack.c.h.b16 %v189
  %v378 = vunpack.c.l.b16 %v190
  %v379 = vunpack.c.h.b16 %v190
  %v380 = vunpack.c.l.b16 %v191
  %v381 = vunpack.c.h.b16 %v191
  %v382 = vunpack.c.l.b16 %v192
  %v383 = vunpack.c.h.b16 %v192
  %v384 = vunpack.c.l.b16 %v193
  %v385 = vunpack.c.h.b16 %v193
  %v386 = vunpack.c.l.b16 %v194
  %v387 = vunpack.c.h.b16 %v194
  %v388 = vunpack.c.l.b16 %v195
  %v389 = vunpack.c.h.b16 %v195
  %v390 = vunpack.c.l.b16 %v196
  %v391 = vunpack.c.h.b16 %v196
  %v392 = vunpack.c.l.b16 %v197
  %v393 = vunpack.c.h.b16 %v197
  %v394 = vunpack.c.l.b16 %v198
  %v395 = vunpack.c.h.b16 %v198
  %v396 = vunpack.c.l.b16 %v199
  %v397 = vunpack.c.h.b16 %v199
  %v398 = vunpack.c.l.b16 %v200
  %v399 = vunpack.c.h.b16 %v200
  %v400 = vunpack.c.l.b16 %v201
  %v401 = vunpack.c.h.b16 %v201
  %v402 = vunpack.c.l.b16 %v202
  %v403 = vunpack.c.h.b16 %v202
  %v404 = vunpack.c.l.b16 %v203
  %v405 = vunpack.c.h.b16 %v203
  %v406 = vunpack.c.l.b16 %v204
  %v407 = vunpack.c.h.b16 %v204
  %v408 = vunpack.c.l.b16 %v205
  %v409 = vunpack.c.h.b16 %v205
  %v410 = vunpack.c.l.b16 %v206
  %v411 = vunpack.c.h.b16 %v206
  %v412 = vunpack.c.l.b16 %v207
  %v413 = vunpack.c.h.b16 %v207
  %v414 = vunpack.c.l.b16 %v208
  %v415 = vunpack.c.h.b16 %v208
  %v416 = vunpack.c.l.b16 %v209
  %v417 = vunpack.c.h.b16 %v209
  %v418 = vunpack.c.l.b16 %v210
  %v419 = vunpack.c.h.b16 %v210
  %v420 = vunpack.c.l.b16 %v211
  %v421 = vunpack.c.h.b16 %v211
  %v422 = vpack.c.b16 %v296, %v294
  %v423 = vpack.c.b16 %v297, %v295
  %v424 = vpack.c.b16 %v300, %v298
  %v425 = vpack.c.b16 %v301, %v299
  %v426 = vpack.c.b16 %v304, %v302
  %v427 = vpack.c.b16 %v305, %v303
  %v428 = vpack.c.b16 %v308, %v306
  %v429 = vpack.c.b16 %v309, %v307
  %v430 = vpack.c.b16 %v312, %v310
  %v431 = vpack.c.b16 %v313, %v311
  %v432 = vpack.c.b16 %v316, %v314
  %v433 = vpack.c.b16 %v317, %v315
  %v434 = vpack.c.b16 %v320, %v318
  %v435 = vpack.c.b16 %v321, %v319
  %v436 = vpack.c.b16 %v324, %v322
  %v437 = vpack.c.b16 %v325, %v323
  %v438 = vpack.c.b16 %v328, %v326
  %v439 = vpack.c.b16 %v329, %v327
  %v440 = vpack.c.b16 %v332, %v330
  %v441 = vpack.c.b16 %v333, %v331
  %v442 = vpack.c.b16 %v336, %v334
  %v443 = vpack.c.b16 %v337, %v335
  %v444 = vpack.c.b16 %v340, %v338
  %v445 = vpack.c.b16 %v341, %v339
  %v446 = vpack.c.b16 %v344, %v342
  %v447 = vpack.c.b16 %v345, %v343
  %v448 = vpack.c.b16 %v348, %v346
  %v449 = vpack.c.b16 %v349, %v347
  %v450 = vpack.c.b16 %v352, %v350
  %v451 = vpack.c.b16 %v353, %v351
  %v452 = vpack.c.b16 %v356, %v354
  %v453 = vpack.c.b16 %v357, %v355
  %v454 = vpack.c.b16 %v360, %v358
  %v455 = vpack.c.b16 %v361, %v359
  %v456 = vpack.c.b16 %v364, %v362
  %v457 = vpack.c.b16 %v365, %v363
  %v458 = vpack.c.b16 %v368, %v366
  %v459 = vpack.c.b16 %v369, %v367
  %v460 = vpack.c.b16 %v372, %v370
  %v461 = vpack.c.b16 %v373, %v371
  %v462 = vpack.c.b16 %v376, %v374
  %v463 = vpack.c.b16 %v377, %v375
  %v464 = vpack.c.b16 %v380, %v378
  %v465 = vpack.c.b16 %v381, %v379
  %v466 = vpack.c.b16 %v384, %v382
  %v467 = vpack.c.b16 %v385, %v383
  %v468 = vpack.c.b16 %v388, %v386
  %v469 = vpack.c.b16 %v389, %v387
  %v470 = vpack.c.b16 %v392, %v390
  %v471 = vpack.c.b16 %v393, %v391
  %v472 = vpack.c.b16 %v396, %v394
  %v473 = vpack.c.b16 %v397, %v395
  %v474 = vpack.c.b16 %v400, %v398
  %v475 = vpack.c.b16 %v401, %v399
  %v476 = vpack.c.b16 %v404, %v402
  %v477 = vpack.c.b16 %v405, %v403
  %v478 = vpack.c.b16 %v408, %v406
  %v479 = vpack.c.b16 %v409, %v407
  %v480 = vpack.c.b16 %v412, %v410
  %v481 = vpack.c.b16 %v413, %v411
  %v482 = vpack.c.b16 %v416, %v414
  %v483 = vpack.c.b16 %v417, %v415
  %v484 = vpack.c.b16 %v420, %v418
  %v485 = vpack.c.b16 %v421, %v419
  %v536 = vunpack.c.l.b16 %v212
  %v537 = vunpack.c.l.b16 %v213
  %v538 = vunpack.c.l.b16 %v214
  %v539 = vunpack.c.l.b16 %v215
  %v540 = vunpack.c.l.b16 %v216
  %v541 = vunpack.c.l.b16 %v217
  %v542 = vunpack.c.l.b16 %v218
  %v543 = vunpack.c.l.b16 %v219
  %v544 = vunpack.c.l.b16 %v220
  %v545 = vunpack.c.l.b16 %v221
  %v546 = vunpack.c.l.b16 %v222
  %v547 = vunpack.c.l.b16 %v223
  %v548 = vunpack.c.l.b16 %v224
  %v549 = vunpack.c.l.b16 %v225
  %v550 = vunpack.c.l.b16 %v226
  %v551 = vunpack.c.l.b16 %v227
  %v552 = vunpack.c.l.b16 %v228
  %v553 = vunpack.c.l.b16 %v229
  %v554 = vpack.c.b16 %v537, %v536
  %v555 = vpack.c.b16 %v539, %v538
  %v556 = vpack.c.b16 %v541, %v540
  %v557 = vpack.c.b16 %v543, %v542
  %v558 = vpack.c.b16 %v545, %v544
  %v559 = vpack.c.b16 %v547, %v546
  %v560 = vpack.c.b16 %v549, %v548
  %v561 = vpack.c.b16 %v551, %v550
  %v562 = vpack.c.b16 %v553, %v552
  %vm572 = vcmask 130048
  %v574 = vsel %vm572, %v423, 0
  %v577 = vsel %vm572, %v425, 0
  %v580 = vsel %vm572, %v427, 0
  %v583 = vsel %vm572, %v429, 0
  %v586 = vsel %vm572, %v431, 0
  %v589 = vsel %vm572, %v433, 0
  %v592 = vsel %vm572, %v435, 0
  %v595 = vsel %vm572, %v437, 0
  %v598 = vsel %vm572, %v439, 0
  %v601 = vsel %vm572, %v441, 0
  %v604 = vsel %vm572, %v443, 0
  %v607 = vsel %vm572, %v445, 0
  %v610 = vsel %vm572, %v447, 0
  %v613 = vsel %vm572, %v449, 0
  %v616 = vsel %vm572, %v451, 0
  %v619 = vsel %vm572, %v453, 0
  %v622 = vsel %vm572, %v455, 0
  %v625 = vsel %vm572, %v457, 0
  %v628 = vsel %vm572, %v459, 0
  %v631 = vsel %vm572, %v461, 0
  %v634 = vsel %vm572, %v463, 0
  %v637 = vsel %vm572, %v465, 0
  %v640 = vsel %vm572, %v467, 0
  %v643 = vsel %vm572, %v469, 0
  %v646 = vsel %vm572, %v471, 0
  %v649 = vsel %vm572, %v473, 0
  %v652 = vsel %vm572, %v475, 0
  %v655 = vsel %vm572, %v477, 0
  %v658 = vsel %vm572, %v479, 0
  %v661 = vsel %vm572, %v481, 0
  %v664 = vsel %vm572, %v483, 0
  %v667 = vsel %vm572, %v485, 0
  %669 = vmatpush.bf16.msra.mxu0 %v561
  %670 = vmatpush.bf16.msra.mxu0 %v560
  %671 = vmatpush.bf16.msra.mxu0 %v559
  %672 = vmatpush.bf16.msra.mxu0 %v558
  %673 = vmatpush.bf16.msra.mxu0 %v557
  %674 = vmatpush.bf16.msra.mxu0 %v556
  %675 = vmatpush.bf16.msra.mxu0 %v555
  %676 = vmatpush.bf16.msra.mxu0 %v554
  %677 = vmatmul.bf16.gmra.mxu0 %v422
  %v678 = vpop.f32.mrf.mxu0
  %v679 = vadd.f32 0.0, %v678
  %v680 = vpop.f32.mrf.mxu0
  %v681 = vadd.f32 0.0, %v680
  %682 = vmatmul.bf16.gmra.mxu0 %v424
  %v683 = vpop.f32.mrf.mxu0
  %v684 = vadd.f32 0.0, %v683
  %v685 = vpop.f32.mrf.mxu0
  %v686 = vadd.f32 0.0, %v685
  %687 = vmatmul.bf16.gmra.mxu0 %v426
  %v688 = vpop.f32.mrf.mxu0
  %v689 = vadd.f32 0.0, %v688
  %v690 = vpop.f32.mrf.mxu0
  %v691 = vadd.f32 0.0, %v690
  %692 = vmatmul.bf16.gmra.mxu0 %v428
  %v693 = vpop.f32.mrf.mxu0
  %v694 = vadd.f32 0.0, %v693
  %v695 = vpop.f32.mrf.mxu0
  %v696 = vadd.f32 0.0, %v695
  %697 = vmatmul.bf16.gmra.mxu0 %v430
  %v698 = vpop.f32.mrf.mxu0
  %v699 = vadd.f32 0.0, %v698
  %v700 = vpop.f32.mrf.mxu0
  %v701 = vadd.f32 0.0, %v700
  %702 = vmatmul.bf16.gmra.mxu0 %v432
  %v703 = vpop.f32.mrf.mxu0
  %v704 = vadd.f32 0.0, %v703
  %v705 = vpop.f32.mrf.mxu0
  %v706 = vadd.f32 0.0, %v705
  %707 = vmatmul.bf16.gmra.mxu0 %v434
  %v708 = vpop.f32.mrf.mxu0
  %v709 = vadd.f32 0.0, %v708
  %v710 = vpop.f32.mrf.mxu0
  %v711 = vadd.f32 0.0, %v710
  %712 = vmatmul.bf16.gmra.mxu0 %v436
  %v713 = vpop.f32.mrf.mxu0
  %v714 = vadd.f32 0.0, %v713
  %v715 = vpop.f32.mrf.mxu0
  %v716 = vadd.f32 0.0, %v715
  %717 = vmatmul.bf16.gmra.mxu0 %v438
  %v718 = vpop.f32.mrf.mxu0
  %v719 = vadd.f32 0.0, %v718
  %v720 = vpop.f32.mrf.mxu0
  %v721 = vadd.f32 0.0, %v720
  %722 = vmatmul.bf16.gmra.mxu0 %v440
  %v723 = vpop.f32.mrf.mxu0
  %v724 = vadd.f32 0.0, %v723
  %v725 = vpop.f32.mrf.mxu0
  %v726 = vadd.f32 0.0, %v725
  %727 = vmatmul.bf16.gmra.mxu0 %v442
  %v728 = vpop.f32.mrf.mxu0
  %v729 = vadd.f32 0.0, %v728
  %v730 = vpop.f32.mrf.mxu0
  %v731 = vadd.f32 0.0, %v730
  %732 = vmatmul.bf16.gmra.mxu0 %v444
  %v733 = vpop.f32.mrf.mxu0
  %v734 = vadd.f32 0.0, %v733
  %v735 = vpop.f32.mrf.mxu0
  %v736 = vadd.f32 0.0, %v735
  %737 = vmatmul.bf16.gmra.mxu0 %v446
  %v738 = vpop.f32.mrf.mxu0
  %v739 = vadd.f32 0.0, %v738
  %v740 = vpop.f32.mrf.mxu0
  %v741 = vadd.f32 0.0, %v740
  %742 = vmatmul.bf16.gmra.mxu0 %v448
  %v743 = vpop.f32.mrf.mxu0
  %v744 = vadd.f32 0.0, %v743
  %v745 = vpop.f32.mrf.mxu0
  %v746 = vadd.f32 0.0, %v745
  %747 = vmatmul.bf16.gmra.mxu0 %v450
  %v748 = vpop.f32.mrf.mxu0
  %v749 = vadd.f32 0.0, %v748
  %v750 = vpop.f32.mrf.mxu0
  %v751 = vadd.f32 0.0, %v750
  %752 = vmatmul.bf16.gmra.mxu0 %v452
  %v753 = vpop.f32.mrf.mxu0
  %v754 = vadd.f32 0.0, %v753
  %v755 = vpop.f32.mrf.mxu0
  %v756 = vadd.f32 0.0, %v755
  %757 = vmatmul.bf16.gmra.mxu0 %v454
  %v758 = vpop.f32.mrf.mxu0
  %v759 = vadd.f32 0.0, %v758
  %v760 = vpop.f32.mrf.mxu0
  %v761 = vadd.f32 0.0, %v760
  %762 = vmatmul.bf16.gmra.mxu0 %v456
  %v763 = vpop.f32.mrf.mxu0
  %v764 = vadd.f32 0.0, %v763
  %v765 = vpop.f32.mrf.mxu0
  %v766 = vadd.f32 0.0, %v765
  %767 = vmatmul.bf16.gmra.mxu0 %v458
  %v768 = vpop.f32.mrf.mxu0
  %v769 = vadd.f32 0.0, %v768
  %v770 = vpop.f32.mrf.mxu0
  %v771 = vadd.f32 0.0, %v770
  %772 = vmatmul.bf16.gmra.mxu0 %v460
  %v773 = vpop.f32.mrf.mxu0
  %v774 = vadd.f32 0.0, %v773
  %v775 = vpop.f32.mrf.mxu0
  %v776 = vadd.f32 0.0, %v775
  %777 = vmatmul.bf16.gmra.mxu0 %v462
  %v778 = vpop.f32.mrf.mxu0
  %v779 = vadd.f32 0.0, %v778
  %v780 = vpop.f32.mrf.mxu0
  %v781 = vadd.f32 0.0, %v780
  %782 = vmatmul.bf16.gmra.mxu0 %v464
  %v783 = vpop.f32.mrf.mxu0
  %v784 = vadd.f32 0.0, %v783
  %v785 = vpop.f32.mrf.mxu0
  %v786 = vadd.f32 0.0, %v785
  %787 = vmatmul.bf16.gmra.mxu0 %v466
  %v788 = vpop.f32.mrf.mxu0
  %v789 = vadd.f32 0.0, %v788
  %v790 = vpop.f32.mrf.mxu0
  %v791 = vadd.f32 0.0, %v790
  %792 = vmatmul.bf16.gmra.mxu0 %v468
  %v793 = vpop.f32.mrf.mxu0
  %v794 = vadd.f32 0.0, %v793
  %v795 = vpop.f32.mrf.mxu0
  %v796 = vadd.f32 0.0, %v795
  %797 = vmatmul.bf16.gmra.mxu0 %v470
  %v798 = vpop.f32.mrf.mxu0
  %v799 = vadd.f32 0.0, %v798
  %v800 = vpop.f32.mrf.mxu0
  %v801 = vadd.f32 0.0, %v800
  %802 = vmatmul.bf16.gmra.mxu0 %v472
  %v803 = vpop.f32.mrf.mxu0
  %v804 = vadd.f32 0.0, %v803
  %v805 = vpop.f32.mrf.mxu0
  %v806 = vadd.f32 0.0, %v805
  %807 = vmatmul.bf16.gmra.mxu0 %v474
  %v808 = vpop.f32.mrf.mxu0
  %v809 = vadd.f32 0.0, %v808
  %v810 = vpop.f32.mrf.mxu0
  %v811 = vadd.f32 0.0, %v810
  %812 = vmatmul.bf16.gmra.mxu0 %v476
  %v813 = vpop.f32.mrf.mxu0
  %v814 = vadd.f32 0.0, %v813
  %v815 = vpop.f32.mrf.mxu0
  %v816 = vadd.f32 0.0, %v815
  %817 = vmatmul.bf16.gmra.mxu0 %v478
  %v818 = vpop.f32.mrf.mxu0
  %v819 = vadd.f32 0.0, %v818
  %v820 = vpop.f32.mrf.mxu0
  %v821 = vadd.f32 0.0, %v820
  %822 = vmatmul.bf16.gmra.mxu0 %v480
  %v823 = vpop.f32.mrf.mxu0
  %v824 = vadd.f32 0.0, %v823
  %v825 = vpop.f32.mrf.mxu0
  %v826 = vadd.f32 0.0, %v825
  %827 = vmatmul.bf16.gmra.mxu0 %v482
  %v828 = vpop.f32.mrf.mxu0
  %v829 = vadd.f32 0.0, %v828
  %v830 = vpop.f32.mrf.mxu0
  %v831 = vadd.f32 0.0, %v830
  %832 = vmatmul.bf16.gmra.mxu0 %v484
  %v833 = vpop.f32.mrf.mxu0
  %v834 = vadd.f32 0.0, %v833
  %v835 = vpop.f32.mrf.mxu0
  %v836 = vadd.f32 0.0, %v835
  %837 = vdwg.mxu0
  %838 = vmatpush.bf16.msra.mxu0 0
  %839 = vmatpush.bf16.msra.mxu0 0
  %840 = vmatpush.bf16.msra.mxu0 0
  %841 = vmatpush.bf16.msra.mxu0 0
  %842 = vmatpush.bf16.msra.mxu0 0
  %843 = vmatpush.bf16.msra.mxu0 0
  %844 = vmatpush.bf16.msra.mxu0 0
  %845 = vmatpush.bf16.msra.mxu0 %v562
  %846 = vmatmul.bf16.gmra.mxu0 %v574
  %v847 = vpop.f32.mrf.mxu0
  %v848 = vadd.f32 %v679, %v847
  %v849 = vpop.f32.mrf.mxu0
  %v850 = vadd.f32 %v681, %v849
  %851 = vmatmul.bf16.gmra.mxu0 %v577
  %v852 = vpop.f32.mrf.mxu0
  %v853 = vadd.f32 %v684, %v852
  %v854 = vpop.f32.mrf.mxu0
  %v855 = vadd.f32 %v686, %v854
  %856 = vmatmul.bf16.gmra.mxu0 %v580
  %v857 = vpop.f32.mrf.mxu0
  %v858 = vadd.f32 %v689, %v857
  %v859 = vpop.f32.mrf.mxu0
  %v860 = vadd.f32 %v691, %v859
  %861 = vmatmul.bf16.gmra.mxu0 %v583
  %v862 = vpop.f32.mrf.mxu0
  %v863 = vadd.f32 %v694, %v862
  %v864 = vpop.f32.mrf.mxu0
  %v865 = vadd.f32 %v696, %v864
  %866 = vmatmul.bf16.gmra.mxu0 %v586
  %v867 = vpop.f32.mrf.mxu0
  %v868 = vadd.f32 %v699, %v867
  %v869 = vpop.f32.mrf.mxu0
  %v870 = vadd.f32 %v701, %v869
  %871 = vmatmul.bf16.gmra.mxu0 %v589
  %v872 = vpop.f32.mrf.mxu0
  %v873 = vadd.f32 %v704, %v872
  %v874 = vpop.f32.mrf.mxu0
  %v875 = vadd.f32 %v706, %v874
  %876 = vmatmul.bf16.gmra.mxu0 %v592
  %v877 = vpop.f32.mrf.mxu0
  %v878 = vadd.f32 %v709, %v877
  %v879 = vpop.f32.mrf.mxu0
  %v880 = vadd.f32 %v711, %v879
  %881 = vmatmul.bf16.gmra.mxu0 %v595
  %v882 = vpop.f32.mrf.mxu0
  %v883 = vadd.f32 %v714, %v882
  %v884 = vpop.f32.mrf.mxu0
  %v885 = vadd.f32 %v716, %v884
  %886 = vmatmul.bf16.gmra.mxu0 %v598
  %v887 = vpop.f32.mrf.mxu0
  %v888 = vadd.f32 %v719, %v887
  %v889 = vpop.f32.mrf.mxu0
  %v890 = vadd.f32 %v721, %v889
  %891 = vmatmul.bf16.gmra.mxu0 %v601
  %v892 = vpop.f32.mrf.mxu0
  %v893 = vadd.f32 %v724, %v892
  %v894 = vpop.f32.mrf.mxu0
  %v895 = vadd.f32 %v726, %v894
  %896 = vmatmul.bf16.gmra.mxu0 %v604
  %v897 = vpop.f32.mrf.mxu0
  %v898 = vadd.f32 %v729, %v897
  %v899 = vpop.f32.mrf.mxu0
  %v900 = vadd.f32 %v731, %v899
  %901 = vmatmul.bf16.gmra.mxu0 %v607
  %v902 = vpop.f32.mrf.mxu0
  %v903 = vadd.f32 %v734, %v902
  %v904 = vpop.f32.mrf.mxu0
  %v905 = vadd.f32 %v736, %v904
  %906 = vmatmul.bf16.gmra.mxu0 %v610
  %v907 = vpop.f32.mrf.mxu0
  %v908 = vadd.f32 %v739, %v907
  %v909 = vpop.f32.mrf.mxu0
  %v910 = vadd.f32 %v741, %v909
  %911 = vmatmul.bf16.gmra.mxu0 %v613
  %v912 = vpop.f32.mrf.mxu0
  %v913 = vadd.f32 %v744, %v912
  %v914 = vpop.f32.mrf.mxu0
  %v915 = vadd.f32 %v746, %v914
  %916 = vmatmul.bf16.gmra.mxu0 %v616
  %v917 = vpop.f32.mrf.mxu0
  %v918 = vadd.f32 %v749, %v917
  %v919 = vpop.f32.mrf.mxu0
  %v920 = vadd.f32 %v751, %v919
  %921 = vmatmul.bf16.gmra.mxu0 %v619
  %v922 = vpop.f32.mrf.mxu0
  %v923 = vadd.f32 %v754, %v922
  %v924 = vpop.f32.mrf.mxu0
  %v925 = vadd.f32 %v756, %v924
  %926 = vmatmul.bf16.gmra.mxu0 %v622
  %v927 = vpop.f32.mrf.mxu0
  %v928 = vadd.f32 %v759, %v927
  %v929 = vpop.f32.mrf.mxu0
  %v930 = vadd.f32 %v761, %v929
  %931 = vmatmul.bf16.gmra.mxu0 %v625
  %v932 = vpop.f32.mrf.mxu0
  %v933 = vadd.f32 %v764, %v932
  %v934 = vpop.f32.mrf.mxu0
  %v935 = vadd.f32 %v766, %v934
  %936 = vmatmul.bf16.gmra.mxu0 %v628
  %v937 = vpop.f32.mrf.mxu0
  %v938 = vadd.f32 %v769, %v937
  %v939 = vpop.f32.mrf.mxu0
  %v940 = vadd.f32 %v771, %v939
  %941 = vmatmul.bf16.gmra.mxu0 %v631
  %v942 = vpop.f32.mrf.mxu0
  %v943 = vadd.f32 %v774, %v942
  %v944 = vpop.f32.mrf.mxu0
  %v945 = vadd.f32 %v776, %v944
  %946 = vmatmul.bf16.gmra.mxu0 %v634
  %v947 = vpop.f32.mrf.mxu0
  %v948 = vadd.f32 %v779, %v947
  %v949 = vpop.f32.mrf.mxu0
  %v950 = vadd.f32 %v781, %v949
  %951 = vmatmul.bf16.gmra.mxu0 %v637
  %v952 = vpop.f32.mrf.mxu0
  %v953 = vadd.f32 %v784, %v952
  %v954 = vpop.f32.mrf.mxu0
  %v955 = vadd.f32 %v786, %v954
  %956 = vmatmul.bf16.gmra.mxu0 %v640
  %v957 = vpop.f32.mrf.mxu0
  %v958 = vadd.f32 %v789, %v957
  %v959 = vpop.f32.mrf.mxu0
  %v960 = vadd.f32 %v791, %v959
  %961 = vmatmul.bf16.gmra.mxu0 %v643
  %v962 = vpop.f32.mrf.mxu0
  %v963 = vadd.f32 %v794, %v962
  %v964 = vpop.f32.mrf.mxu0
  %v965 = vadd.f32 %v796, %v964
  %966 = vmatmul.bf16.gmra.mxu0 %v646
  %v967 = vpop.f32.mrf.mxu0
  %v968 = vadd.f32 %v799, %v967
  %v969 = vpop.f32.mrf.mxu0
  %v970 = vadd.f32 %v801, %v969
  %971 = vmatmul.bf16.gmra.mxu0 %v649
  %v972 = vpop.f32.mrf.mxu0
  %v973 = vadd.f32 %v804, %v972
  %v974 = vpop.f32.mrf.mxu0
  %v975 = vadd.f32 %v806, %v974
  %976 = vmatmul.bf16.gmra.mxu0 %v652
  %v977 = vpop.f32.mrf.mxu0
  %v978 = vadd.f32 %v809, %v977
  %v979 = vpop.f32.mrf.mxu0
  %v980 = vadd.f32 %v811, %v979
  %981 = vmatmul.bf16.gmra.mxu0 %v655
  %v982 = vpop.f32.mrf.mxu0
  %v983 = vadd.f32 %v814, %v982
  %v984 = vpop.f32.mrf.mxu0
  %v985 = vadd.f32 %v816, %v984
  %986 = vmatmul.bf16.gmra.mxu0 %v658
  %v987 = vpop.f32.mrf.mxu0
  %v988 = vadd.f32 %v819, %v987
  %v989 = vpop.f32.mrf.mxu0
  %v990 = vadd.f32 %v821, %v989
  %991 = vmatmul.bf16.gmra.mxu0 %v661
  %v992 = vpop.f32.mrf.mxu0
  %v993 = vadd.f32 %v824, %v992
  %v994 = vpop.f32.mrf.mxu0
  %v995 = vadd.f32 %v826, %v994
  %996 = vmatmul.bf16.gmra.mxu0 %v664
  %v997 = vpop.f32.mrf.mxu0
  %v998 = vadd.f32 %v829, %v997
  %v999 = vpop.f32.mrf.mxu0
  %v1000 = vadd.f32 %v831, %v999
  %1001 = vmatmul.bf16.gmra.mxu0 %v667
  %v1002 = vpop.f32.mrf.mxu0
  %v1003 = vadd.f32 %v834, %v1002
  %v1004 = vpop.f32.mrf.mxu0
  %v1005 = vadd.f32 %v836, %v1004
  %1006 = vdwg.mxu0
  %v1007 = vadd.f32 %v84, %v848
  %v1008 = vadd.f32 %v85, %v850
  %v1009 = vadd.f32 %v86, %v853
  %v1010 = vadd.f32 %v87, %v855
  %v1011 = vadd.f32 %v88, %v858
  %v1012 = vadd.f32 %v89, %v860
  %v1013 = vadd.f32 %v90, %v863
  %v1014 = vadd.f32 %v91, %v865
  %v1015 = vadd.f32 %v92, %v868
  %v1016 = vadd.f32 %v93, %v870
  %v1017 = vadd.f32 %v94, %v873
  %v1018 = vadd.f32 %v95, %v875
  %v1019 = vadd.f32 %v96, %v878
  %v1020 = vadd.f32 %v97, %v880
  %v1021 = vadd.f32 %v98, %v883
  %v1022 = vadd.f32 %v99, %v885
  %v1023 = vadd.f32 %v100, %v888
  %v1024 = vadd.f32 %v101, %v890
  %v1025 = vadd.f32 %v102, %v893
  %v1026 = vadd.f32 %v103, %v895
  %v1027 = vadd.f32 %v104, %v898
  %v1028 = vadd.f32 %v105, %v900
  %v1029 = vadd.f32 %v106, %v903
  %v1030 = vadd.f32 %v107, %v905
  %v1031 = vadd.f32 %v108, %v908
  %v1032 = vadd.f32 %v109, %v910
  %v1033 = vadd.f32 %v110, %v913
  %v1034 = vadd.f32 %v111, %v915
  %v1035 = vadd.f32 %v112, %v918
  %v1036 = vadd.f32 %v113, %v920
  %v1037 = vadd.f32 %v114, %v923
  %v1038 = vadd.f32 %v115, %v925
  %v1039 = vadd.f32 %v116, %v928
  %v1040 = vadd.f32 %v117, %v930
  %v1041 = vadd.f32 %v118, %v933
  %v1042 = vadd.f32 %v119, %v935
  %v1043 = vadd.f32 %v120, %v938
  %v1044 = vadd.f32 %v121, %v940
  %v1045 = vadd.f32 %v122, %v943
  %v1046 = vadd.f32 %v123, %v945
  %v1047 = vadd.f32 %v124, %v948
  %v1048 = vadd.f32 %v125, %v950
  %v1049 = vadd.f32 %v126, %v953
  %v1050 = vadd.f32 %v127, %v955
  %v1051 = vadd.f32 %v128, %v958
  %v1052 = vadd.f32 %v129, %v960
  %v1053 = vadd.f32 %v130, %v963
  %v1054 = vadd.f32 %v131, %v965
  %v1055 = vadd.f32 %v132, %v968
  %v1056 = vadd.f32 %v133, %v970
  %v1057 = vadd.f32 %v134, %v973
  %v1058 = vadd.f32 %v135, %v975
  %v1059 = vadd.f32 %v136, %v978
  %v1060 = vadd.f32 %v137, %v980
  %v1061 = vadd.f32 %v138, %v983
  %v1062 = vadd.f32 %v139, %v985
  %v1063 = vadd.f32 %v140, %v988
  %v1064 = vadd.f32 %v141, %v990
  %v1065 = vadd.f32 %v142, %v993
  %v1066 = vadd.f32 %v143, %v995
  %v1067 = vadd.f32 %v144, %v998
  %v1068 = vadd.f32 %v145, %v1000
  %v1069 = vadd.f32 %v146, %v1003
  %v1070 = vadd.f32 %v147, %v1005
  %vm1071 = vcmask 261120
  %1072 = vst.msk [vmem:[#allocation2] sm:$0xff] %vm1071, %v1007
  %1073 = vst.msk [vmem:[#allocation2 + $0x8] sm:$0xff] %vm1071, %v1008
  %1074 = vst.msk [vmem:[#allocation2 + $0x10] sm:$0xff] %vm1071, %v1009
  %1075 = vst.msk [vmem:[#allocation2 + $0x18] sm:$0xff] %vm1071, %v1010
  %1076 = vst.msk [vmem:[#allocation2 + $0x20] sm:$0xff] %vm1071, %v1011
  %1077 = vst.msk [vmem:[#allocation2 + $0x28] sm:$0xff] %vm1071, %v1012
  %1078 = vst.msk [vmem:[#allocation2 + $0x30] sm:$0xff] %vm1071, %v1013
  %1079 = vst.msk [vmem:[#allocation2 + $0x38] sm:$0xff] %vm1071, %v1014
  %1080 = vst.msk [vmem:[#allocation2 + $0x40] sm:$0xff] %vm1071, %v1015
  %1081 = vst.msk [vmem:[#allocation2 + $0x48] sm:$0xff] %vm1071, %v1016
  %1082 = vst.msk [vmem:[#allocation2 + $0x50] sm:$0xff] %vm1071, %v1017
  %1083 = vst.msk [vmem:[#allocation2 + $0x58] sm:$0xff] %vm1071, %v1018
  %1084 = vst.msk [vmem:[#allocation2 + $0x60] sm:$0xff] %vm1071, %v1019
  %1085 = vst.msk [vmem:[#allocation2 + $0x68] sm:$0xff] %vm1071, %v1020
  %1086 = vst.msk [vmem:[#allocation2 + $0x70] sm:$0xff] %vm1071, %v1021
  %1087 = vst.msk [vmem:[#allocation2 + $0x78] sm:$0xff] %vm1071, %v1022
  %1088 = vst.msk [vmem:[#allocation2 + $0x80] sm:$0xff] %vm1071, %v1023
  %1089 = vst.msk [vmem:[#allocation2 + $0x88] sm:$0xff] %vm1071, %v1024
  %1090 = vst.msk [vmem:[#allocation2 + $0x90] sm:$0xff] %vm1071, %v1025
  %1091 = vst.msk [vmem:[#allocation2 + $0x98] sm:$0xff] %vm1071, %v1026
  %1092 = vst.msk [vmem:[#allocation2 + $0xa0] sm:$0xff] %vm1071, %v1027
  %1093 = vst.msk [vmem:[#allocation2 + $0xa8] sm:$0xff] %vm1071, %v1028
  %1094 = vst.msk [vmem:[#allocation2 + $0xb0] sm:$0xff] %vm1071, %v1029
  %1095 = vst.msk [vmem:[#allocation2 + $0xb8] sm:$0xff] %vm1071, %v1030
  %1096 = vst.msk [vmem:[#allocation2 + $0xc0] sm:$0xff] %vm1071, %v1031
  %1097 = vst.msk [vmem:[#allocation2 + $0xc8] sm:$0xff] %vm1071, %v1032
  %1098 = vst.msk [vmem:[#allocation2 + $0xd0] sm:$0xff] %vm1071, %v1033
  %1099 = vst.msk [vmem:[#allocation2 + $0xd8] sm:$0xff] %vm1071, %v1034
  %1100 = vst.msk [vmem:[#allocation2 + $0xe0] sm:$0xff] %vm1071, %v1035
  %1101 = vst.msk [vmem:[#allocation2 + $0xe8] sm:$0xff] %vm1071, %v1036
  %1102 = vst.msk [vmem:[#allocation2 + $0xf0] sm:$0xff] %vm1071, %v1037
  %1103 = vst.msk [vmem:[#allocation2 + $0xf8] sm:$0xff] %vm1071, %v1038
  %1104 = vst.msk [vmem:[#allocation2 + $0x100] sm:$0xff] %vm1071, %v1039
  %1105 = vst.msk [vmem:[#allocation2 + $0x108] sm:$0xff] %vm1071, %v1040
  %1106 = vst.msk [vmem:[#allocation2 + $0x110] sm:$0xff] %vm1071, %v1041
  %1107 = vst.msk [vmem:[#allocation2 + $0x118] sm:$0xff] %vm1071, %v1042
  %1108 = vst.msk [vmem:[#allocation2 + $0x120] sm:$0xff] %vm1071, %v1043
  %1109 = vst.msk [vmem:[#allocation2 + $0x128] sm:$0xff] %vm1071, %v1044
  %1110 = vst.msk [vmem:[#allocation2 + $0x130] sm:$0xff] %vm1071, %v1045
  %1111 = vst.msk [vmem:[#allocation2 + $0x138] sm:$0xff] %vm1071, %v1046
  %1112 = vst.msk [vmem:[#allocation2 + $0x140] sm:$0xff] %vm1071, %v1047
  %1113 = vst.msk [vmem:[#allocation2 + $0x148] sm:$0xff] %vm1071, %v1048
  %1114 = vst.msk [vmem:[#allocation2 + $0x150] sm:$0xff] %vm1071, %v1049
  %1115 = vst.msk [vmem:[#allocation2 + $0x158] sm:$0xff] %vm1071, %v1050
  %1116 = vst.msk [vmem:[#allocation2 + $0x160] sm:$0xff] %vm1071, %v1051
  %1117 = vst.msk [vmem:[#allocation2 + $0x168] sm:$0xff] %vm1071, %v1052
  %1118 = vst.msk [vmem:[#allocation2 + $0x170] sm:$0xff] %vm1071, %v1053
  %1119 = vst.msk [vmem:[#allocation2 + $0x178] sm:$0xff] %vm1071, %v1054
  %1120 = vst.msk [vmem:[#allocation2 + $0x180] sm:$0xff] %vm1071, %v1055
  %1121 = vst.msk [vmem:[#allocation2 + $0x188] sm:$0xff] %vm1071, %v1056
  %1122 = vst.msk [vmem:[#allocation2 + $0x190] sm:$0xff] %vm1071, %v1057
  %1123 = vst.msk [vmem:[#allocation2 + $0x198] sm:$0xff] %vm1071, %v1058
  %1124 = vst.msk [vmem:[#allocation2 + $0x1a0] sm:$0xff] %vm1071, %v1059
  %1125 = vst.msk [vmem:[#allocation2 + $0x1a8] sm:$0xff] %vm1071, %v1060
  %1126 = vst.msk [vmem:[#allocation2 + $0x1b0] sm:$0xff] %vm1071, %v1061
  %1127 = vst.msk [vmem:[#allocation2 + $0x1b8] sm:$0xff] %vm1071, %v1062
  %1128 = vst.msk [vmem:[#allocation2 + $0x1c0] sm:$0xff] %vm1071, %v1063
  %1129 = vst.msk [vmem:[#allocation2 + $0x1c8] sm:$0xff] %vm1071, %v1064
  %1130 = vst.msk [vmem:[#allocation2 + $0x1d0] sm:$0xff] %vm1071, %v1065
  %1131 = vst.msk [vmem:[#allocation2 + $0x1d8] sm:$0xff] %vm1071, %v1066
  %1132 = vst.msk [vmem:[#allocation2 + $0x1e0] sm:$0xff] %vm1071, %v1067
  %1133 = vst.msk [vmem:[#allocation2 + $0x1e8] sm:$0xff] %vm1071, %v1068
  %1134 = vst.msk [vmem:[#allocation2 + $0x1f0] sm:$0xff] %vm1071, %v1069
  %1135 = vst.msk [vmem:[#allocation2 + $0x1f8] sm:$0xff] %vm1071, %v1070
  // Predicated region
  $region14: #{generator_forward.15} parent=0 // pred_check
    %p1136 = pneg %p15
  $region15: #{generator_forward.15} parent=0 // pred_check_branch
    %1138 = sbr.rel (%p1136) target = $region17
  $region16: #{generator_forward.15} parent=0 // pred_region
    %v1139 = vld [vmem:[#allocation2] sm:$0xff]
    %v1140 = vld [vmem:[#allocation2 + $0x8] sm:$0xff]
    %v1141 = vld [vmem:[#allocation2 + $0x10] sm:$0xff]
    %v1142 = vld [vmem:[#allocation2 + $0x18] sm:$0xff]
    %v1143 = vld [vmem:[#allocation2 + $0x20] sm:$0xff]
    %v1144 = vld [vmem:[#allocation2 + $0x28] sm:$0xff]
    %v1145 = vld [vmem:[#allocation2 + $0x30] sm:$0xff]
    %v1146 = vld [vmem:[#allocation2 + $0x38] sm:$0xff]
    %v1147 = vld [vmem:[#allocation2 + $0x40] sm:$0xff]
    %v1148 = vld [vmem:[#allocation2 + $0x48] sm:$0xff]
    %v1149 = vld [vmem:[#allocation2 + $0x50] sm:$0xff]
    %v1150 = vld [vmem:[#allocation2 + $0x58] sm:$0xff]
    %v1151 = vld [vmem:[#allocation2 + $0x60] sm:$0xff]
    %v1152 = vld [vmem:[#allocation2 + $0x68] sm:$0xff]
    %v1153 = vld [vmem:[#allocation2 + $0x70] sm:$0xff]
    %v1154 = vld [vmem:[#allocation2 + $0x78] sm:$0xff]
    %v1155 = vld [vmem:[#allocation2 + $0x80] sm:$0xff]
    %v1156 = vld [vmem:[#allocation2 + $0x88] sm:$0xff]
    %v1157 = vld [vmem:[#allocation2 + $0x90] sm:$0xff]
    %v1158 = vld [vmem:[#allocation2 + $0x98] sm:$0xff]
    %v1159 = vld [vmem:[#allocation2 + $0xa0] sm:$0xff]
    %v1160 = vld [vmem:[#allocation2 + $0xa8] sm:$0xff]
    %v1161 = vld [vmem:[#allocation2 + $0xb0] sm:$0xff]
    %v1162 = vld [vmem:[#allocation2 + $0xb8] sm:$0xff]
    %v1163 = vld [vmem:[#allocation2 + $0xc0] sm:$0xff]
    %v1164 = vld [vmem:[#allocation2 + $0xc8] sm:$0xff]
    %v1165 = vld [vmem:[#allocation2 + $0xd0] sm:$0xff]
    %v1166 = vld [vmem:[#allocation2 + $0xd8] sm:$0xff]
    %v1167 = vld [vmem:[#allocation2 + $0xe0] sm:$0xff]
    %v1168 = vld [vmem:[#allocation2 + $0xe8] sm:$0xff]
    %v1169 = vld [vmem:[#allocation2 + $0xf0] sm:$0xff]
    %v1170 = vld [vmem:[#allocation2 + $0xf8] sm:$0xff]
    %v1171 = vld [vmem:[#allocation2 + $0x100] sm:$0xff]
    %v1172 = vld [vmem:[#allocation2 + $0x108] sm:$0xff]
    %v1173 = vld [vmem:[#allocation2 + $0x110] sm:$0xff]
    %v1174 = vld [vmem:[#allocation2 + $0x118] sm:$0xff]
    %v1175 = vld [vmem:[#allocation2 + $0x120] sm:$0xff]
    %v1176 = vld [vmem:[#allocation2 + $0x128] sm:$0xff]
    %v1177 = vld [vmem:[#allocation2 + $0x130] sm:$0xff]
    %v1178 = vld [vmem:[#allocation2 + $0x138] sm:$0xff]
    %v1179 = vld [vmem:[#allocation2 + $0x140] sm:$0xff]
    %v1180 = vld [vmem:[#allocation2 + $0x148] sm:$0xff]
    %v1181 = vld [vmem:[#allocation2 + $0x150] sm:$0xff]
    %v1182 = vld [vmem:[#allocation2 + $0x158] sm:$0xff]
    %v1183 = vld [vmem:[#allocation2 + $0x160] sm:$0xff]
    %v1184 = vld [vmem:[#allocation2 + $0x168] sm:$0xff]
    %v1185 = vld [vmem:[#allocation2 + $0x170] sm:$0xff]
    %v1186 = vld [vmem:[#allocation2 + $0x178] sm:$0xff]
    %v1187 = vld [vmem:[#allocation2 + $0x180] sm:$0xff]
    %v1188 = vld [vmem:[#allocation2 + $0x188] sm:$0xff]
    %v1189 = vld [vmem:[#allocation2 + $0x190] sm:$0xff]
    %v1190 = vld [vmem:[#allocation2 + $0x198] sm:$0xff]
    %v1191 = vld [vmem:[#allocation2 + $0x1a0] sm:$0xff]
    %v1192 = vld [vmem:[#allocation2 + $0x1a8] sm:$0xff]
    %v1193 = vld [vmem:[#allocation2 + $0x1b0] sm:$0xff]
    %v1194 = vld [vmem:[#allocation2 + $0x1b8] sm:$0xff]
    %v1195 = vld [vmem:[#allocation2 + $0x1c0] sm:$0xff]
    %v1196 = vld [vmem:[#allocation2 + $0x1c8] sm:$0xff]
    %v1197 = vld [vmem:[#allocation2 + $0x1d0] sm:$0xff]
    %v1198 = vld [vmem:[#allocation2 + $0x1d8] sm:$0xff]
    %v1199 = vld [vmem:[#allocation2 + $0x1e0] sm:$0xff]
    %v1200 = vld [vmem:[#allocation2 + $0x1e8] sm:$0xff]
    %v1201 = vld [vmem:[#allocation2 + $0x1f0] sm:$0xff]
    %v1202 = vld [vmem:[#allocation2 + $0x1f8] sm:$0xff]
    %v1203 = vpack.c.bf16 %v1139, %v1139
    %v1204 = vpack.c.bf16 %v1140, %v1140
    %v1205 = vpack.c.bf16 %v1141, %v1141
    %v1206 = vpack.c.bf16 %v1142, %v1142
    %v1207 = vpack.c.bf16 %v1143, %v1143
    %v1208 = vpack.c.bf16 %v1144, %v1144
    %v1209 = vpack.c.bf16 %v1145, %v1145
    %v1210 = vpack.c.bf16 %v1146, %v1146
    %v1211 = vpack.c.bf16 %v1147, %v1147
    %v1212 = vpack.c.bf16 %v1148, %v1148
    %v1213 = vpack.c.bf16 %v1149, %v1149
    %v1214 = vpack.c.bf16 %v1150, %v1150
    %v1215 = vpack.c.bf16 %v1151, %v1151
    %v1216 = vpack.c.bf16 %v1152, %v1152
    %v1217 = vpack.c.bf16 %v1153, %v1153
    %v1218 = vpack.c.bf16 %v1154, %v1154
    %v1219 = vpack.c.bf16 %v1155, %v1155
    %v1220 = vpack.c.bf16 %v1156, %v1156
    %v1221 = vpack.c.bf16 %v1157, %v1157
    %v1222 = vpack.c.bf16 %v1158, %v1158
    %v1223 = vpack.c.bf16 %v1159, %v1159
    %v1224 = vpack.c.bf16 %v1160, %v1160
    %v1225 = vpack.c.bf16 %v1161, %v1161
    %v1226 = vpack.c.bf16 %v1162, %v1162
    %v1227 = vpack.c.bf16 %v1163, %v1163
    %v1228 = vpack.c.bf16 %v1164, %v1164
    %v1229 = vpack.c.bf16 %v1165, %v1165
    %v1230 = vpack.c.bf16 %v1166, %v1166
    %v1231 = vpack.c.bf16 %v1167, %v1167
    %v1232 = vpack.c.bf16 %v1168, %v1168
    %v1233 = vpack.c.bf16 %v1169, %v1169
    %v1234 = vpack.c.bf16 %v1170, %v1170
    %v1235 = vpack.c.bf16 %v1171, %v1171
    %v1236 = vpack.c.bf16 %v1172, %v1172
    %v1237 = vpack.c.bf16 %v1173, %v1173
    %v1238 = vpack.c.bf16 %v1174, %v1174
    %v1239 = vpack.c.bf16 %v1175, %v1175
    %v1240 = vpack.c.bf16 %v1176, %v1176
    %v1241 = vpack.c.bf16 %v1177, %v1177
    %v1242 = vpack.c.bf16 %v1178, %v1178
    %v1243 = vpack.c.bf16 %v1179, %v1179
    %v1244 = vpack.c.bf16 %v1180, %v1180
    %v1245 = vpack.c.bf16 %v1181, %v1181
    %v1246 = vpack.c.bf16 %v1182, %v1182
    %v1247 = vpack.c.bf16 %v1183, %v1183
    %v1248 = vpack.c.bf16 %v1184, %v1184
    %v1249 = vpack.c.bf16 %v1185, %v1185
    %v1250 = vpack.c.bf16 %v1186, %v1186
    %v1251 = vpack.c.bf16 %v1187, %v1187
    %v1252 = vpack.c.bf16 %v1188, %v1188
    %v1253 = vpack.c.bf16 %v1189, %v1189
    %v1254 = vpack.c.bf16 %v1190, %v1190
    %v1255 = vpack.c.bf16 %v1191, %v1191
    %v1256 = vpack.c.bf16 %v1192, %v1192
    %v1257 = vpack.c.bf16 %v1193, %v1193
    %v1258 = vpack.c.bf16 %v1194, %v1194
    %v1259 = vpack.c.bf16 %v1195, %v1195
    %v1260 = vpack.c.bf16 %v1196, %v1196
    %v1261 = vpack.c.bf16 %v1197, %v1197
    %v1262 = vpack.c.bf16 %v1198, %v1198
    %v1263 = vpack.c.bf16 %v1199, %v1199
    %v1264 = vpack.c.bf16 %v1200, %v1200
    %v1265 = vpack.c.bf16 %v1201, %v1201
    %v1266 = vpack.c.bf16 %v1202, %v1202
    %vm1267 = vcmask 257024
    %1268 = vst.msk [vmem:[%s2] sm:$0xf] %vm1267, %v1203
    %1269 = vst.msk [vmem:[%s2 + $0x4] sm:$0xf] %vm1267, %v1204
    %1270 = vst.msk [vmem:[%s2 + $0x8] sm:$0xf] %vm1267, %v1205
    %1271 = vst.msk [vmem:[%s2 + $0xc] sm:$0xf] %vm1267, %v1206
    %1272 = vst.msk [vmem:[%s2 + $0x10] sm:$0xf] %vm1267, %v1207
    %1273 = vst.msk [vmem:[%s2 + $0x14] sm:$0xf] %vm1267, %v1208
    %1274 = vst.msk [vmem:[%s2 + $0x18] sm:$0xf] %vm1267, %v1209
    %1275 = vst.msk [vmem:[%s2 + $0x1c] sm:$0xf] %vm1267, %v1210
    %1276 = vst.msk [vmem:[%s2 + $0x20] sm:$0xf] %vm1267, %v1211
    %1277 = vst.msk [vmem:[%s2 + $0x24] sm:$0xf] %vm1267, %v1212
    %1278 = vst.msk [vmem:[%s2 + $0x28] sm:$0xf] %vm1267, %v1213
    %1279 = vst.msk [vmem:[%s2 + $0x2c] sm:$0xf] %vm1267, %v1214
    %1280 = vst.msk [vmem:[%s2 + $0x30] sm:$0xf] %vm1267, %v1215
    %1281 = vst.msk [vmem:[%s2 + $0x34] sm:$0xf] %vm1267, %v1216
    %1282 = vst.msk [vmem:[%s2 + $0x38] sm:$0xf] %vm1267, %v1217
    %1283 = vst.msk [vmem:[%s2 + $0x3c] sm:$0xf] %vm1267, %v1218
    %1284 = vst.msk [vmem:[%s2 + $0x40] sm:$0xf] %vm1267, %v1219
    %1285 = vst.msk [vmem:[%s2 + $0x44] sm:$0xf] %vm1267, %v1220
    %1286 = vst.msk [vmem:[%s2 + $0x48] sm:$0xf] %vm1267, %v1221
    %1287 = vst.msk [vmem:[%s2 + $0x4c] sm:$0xf] %vm1267, %v1222
    %1288 = vst.msk [vmem:[%s2 + $0x50] sm:$0xf] %vm1267, %v1223
    %1289 = vst.msk [vmem:[%s2 + $0x54] sm:$0xf] %vm1267, %v1224
    %1290 = vst.msk [vmem:[%s2 + $0x58] sm:$0xf] %vm1267, %v1225
    %1291 = vst.msk [vmem:[%s2 + $0x5c] sm:$0xf] %vm1267, %v1226
    %1292 = vst.msk [vmem:[%s2 + $0x60] sm:$0xf] %vm1267, %v1227
    %1293 = vst.msk [vmem:[%s2 + $0x64] sm:$0xf] %vm1267, %v1228
    %1294 = vst.msk [vmem:[%s2 + $0x68] sm:$0xf] %vm1267, %v1229
    %1295 = vst.msk [vmem:[%s2 + $0x6c] sm:$0xf] %vm1267, %v1230
    %1296 = vst.msk [vmem:[%s2 + $0x70] sm:$0xf] %vm1267, %v1231
    %1297 = vst.msk [vmem:[%s2 + $0x74] sm:$0xf] %vm1267, %v1232
    %1298 = vst.msk [vmem:[%s2 + $0x78] sm:$0xf] %vm1267, %v1233
    %1299 = vst.msk [vmem:[%s2 + $0x7c] sm:$0xf] %vm1267, %v1234
    %1300 = vst.msk [vmem:[%s2 + $0x80] sm:$0xf] %vm1267, %v1235
    %1301 = vst.msk [vmem:[%s2 + $0x84] sm:$0xf] %vm1267, %v1236
    %1302 = vst.msk [vmem:[%s2 + $0x88] sm:$0xf] %vm1267, %v1237
    %1303 = vst.msk [vmem:[%s2 + $0x8c] sm:$0xf] %vm1267, %v1238
    %1304 = vst.msk [vmem:[%s2 + $0x90] sm:$0xf] %vm1267, %v1239
    %1305 = vst.msk [vmem:[%s2 + $0x94] sm:$0xf] %vm1267, %v1240
    %1306 = vst.msk [vmem:[%s2 + $0x98] sm:$0xf] %vm1267, %v1241
    %1307 = vst.msk [vmem:[%s2 + $0x9c] sm:$0xf] %vm1267, %v1242
    %1308 = vst.msk [vmem:[%s2 + $0xa0] sm:$0xf] %vm1267, %v1243
    %1309 = vst.msk [vmem:[%s2 + $0xa4] sm:$0xf] %vm1267, %v1244
    %1310 = vst.msk [vmem:[%s2 + $0xa8] sm:$0xf] %vm1267, %v1245
    %1311 = vst.msk [vmem:[%s2 + $0xac] sm:$0xf] %vm1267, %v1246
    %1312 = vst.msk [vmem:[%s2 + $0xb0] sm:$0xf] %vm1267, %v1247
    %1313 = vst.msk [vmem:[%s2 + $0xb4] sm:$0xf] %vm1267, %v1248
    %1314 = vst.msk [vmem:[%s2 + $0xb8] sm:$0xf] %vm1267, %v1249
    %1315 = vst.msk [vmem:[%s2 + $0xbc] sm:$0xf] %vm1267, %v1250
    %1316 = vst.msk [vmem:[%s2 + $0xc0] sm:$0xf] %vm1267, %v1251
    %1317 = vst.msk [vmem:[%s2 + $0xc4] sm:$0xf] %vm1267, %v1252
    %1318 = vst.msk [vmem:[%s2 + $0xc8] sm:$0xf] %vm1267, %v1253
    %1319 = vst.msk [vmem:[%s2 + $0xcc] sm:$0xf] %vm1267, %v1254
    %1320 = vst.msk [vmem:[%s2 + $0xd0] sm:$0xf] %vm1267, %v1255
    %1321 = vst.msk [vmem:[%s2 + $0xd4] sm:$0xf] %vm1267, %v1256
    %1322 = vst.msk [vmem:[%s2 + $0xd8] sm:$0xf] %vm1267, %v1257
    %1323 = vst.msk [vmem:[%s2 + $0xdc] sm:$0xf] %vm1267, %v1258
    %1324 = vst.msk [vmem:[%s2 + $0xe0] sm:$0xf] %vm1267, %v1259
    %1325 = vst.msk [vmem:[%s2 + $0xe4] sm:$0xf] %vm1267, %v1260
    %1326 = vst.msk [vmem:[%s2 + $0xe8] sm:$0xf] %vm1267, %v1261
    %1327 = vst.msk [vmem:[%s2 + $0xec] sm:$0xf] %vm1267, %v1262
    %1328 = vst.msk [vmem:[%s2 + $0xf0] sm:$0xf] %vm1267, %v1263
    %1329 = vst.msk [vmem:[%s2 + $0xf4] sm:$0xf] %vm1267, %v1264
    %1330 = vst.msk [vmem:[%s2 + $0xf8] sm:$0xf] %vm1267, %v1265
    %1331 = vst.msk [vmem:[%s2 + $0xfc] sm:$0xf] %vm1267, %v1266
    %v1332 = vsel %vm1071, %v1139, 0.0
    %v1333 = vsel %vm1071, %v1140, 0.0
    %v1334 = vadd.f32 %v1332, %v1333
    %v1335 = vsel %vm1071, %v1141, 0.0
    %v1336 = vadd.f32 %v1334, %v1335
    %v1337 = vsel %vm1071, %v1142, 0.0
    %v1338 = vadd.f32 %v1336, %v1337
    %v1339 = vsel %vm1071, %v1143, 0.0
    %v1340 = vadd.f32 %v1338, %v1339
    %v1341 = vsel %vm1071, %v1144, 0.0
    %v1342 = vadd.f32 %v1340, %v1341
    %v1343 = vsel %vm1071, %v1145, 0.0
    %v1344 = vadd.f32 %v1342, %v1343
    %v1345 = vsel %vm1071, %v1146, 0.0
    %v1346 = vadd.f32 %v1344, %v1345
    %v1347 = vsel %vm1071, %v1147, 0.0
    %v1348 = vadd.f32 %v1346, %v1347
    %v1349 = vsel %vm1071, %v1148, 0.0
    %v1350 = vadd.f32 %v1348, %v1349
    %v1351 = vsel %vm1071, %v1149, 0.0
    %v1352 = vadd.f32 %v1350, %v1351
    %v1353 = vsel %vm1071, %v1150, 0.0
    %v1354 = vadd.f32 %v1352, %v1353
    %v1355 = vsel %vm1071, %v1151, 0.0
    %v1356 = vadd.f32 %v1354, %v1355
    %v1357 = vsel %vm1071, %v1152, 0.0
    %v1358 = vadd.f32 %v1356, %v1357
    %v1359 = vsel %vm1071, %v1153, 0.0
    %v1360 = vadd.f32 %v1358, %v1359
    %v1361 = vsel %vm1071, %v1154, 0.0
    %v1362 = vadd.f32 %v1360, %v1361
    %v1363 = vsel %vm1071, %v1155, 0.0
    %v1364 = vadd.f32 %v1362, %v1363
    %v1365 = vsel %vm1071, %v1156, 0.0
    %v1366 = vadd.f32 %v1364, %v1365
    %v1367 = vsel %vm1071, %v1157, 0.0
    %v1368 = vadd.f32 %v1366, %v1367
    %v1369 = vsel %vm1071, %v1158, 0.0
    %v1370 = vadd.f32 %v1368, %v1369
    %v1371 = vsel %vm1071, %v1159, 0.0
    %v1372 = vadd.f32 %v1370, %v1371
    %v1373 = vsel %vm1071, %v1160, 0.0
    %v1374 = vadd.f32 %v1372, %v1373
    %v1375 = vsel %vm1071, %v1161, 0.0
    %v1376 = vadd.f32 %v1374, %v1375
    %v1377 = vsel %vm1071, %v1162, 0.0
    %v1378 = vadd.f32 %v1376, %v1377
    %v1379 = vsel %vm1071, %v1163, 0.0
    %v1380 = vadd.f32 %v1378, %v1379
    %v1381 = vsel %vm1071, %v1164, 0.0
    %v1382 = vadd.f32 %v1380, %v1381
    %v1383 = vsel %vm1071, %v1165, 0.0
    %v1384 = vadd.f32 %v1382, %v1383
    %v1385 = vsel %vm1071, %v1166, 0.0
    %v1386 = vadd.f32 %v1384, %v1385
    %v1387 = vsel %vm1071, %v1167, 0.0
    %v1388 = vadd.f32 %v1386, %v1387
    %v1389 = vsel %vm1071, %v1168, 0.0
    %v1390 = vadd.f32 %v1388, %v1389
    %v1391 = vsel %vm1071, %v1169, 0.0
    %v1392 = vadd.f32 %v1390, %v1391
    %v1393 = vsel %vm1071, %v1170, 0.0
    %v1394 = vadd.f32 %v1392, %v1393
    %v1395 = vsel %vm1071, %v1171, 0.0
    %v1396 = vadd.f32 %v1394, %v1395
    %v1397 = vsel %vm1071, %v1172, 0.0
    %v1398 = vadd.f32 %v1396, %v1397
    %v1399 = vsel %vm1071, %v1173, 0.0
    %v1400 = vadd.f32 %v1398, %v1399
    %v1401 = vsel %vm1071, %v1174, 0.0
    %v1402 = vadd.f32 %v1400, %v1401
    %v1403 = vsel %vm1071, %v1175, 0.0
    %v1404 = vadd.f32 %v1402, %v1403
    %v1405 = vsel %vm1071, %v1176, 0.0
    %v1406 = vadd.f32 %v1404, %v1405
    %v1407 = vsel %vm1071, %v1177, 0.0
    %v1408 = vadd.f32 %v1406, %v1407
    %v1409 = vsel %vm1071, %v1178, 0.0
    %v1410 = vadd.f32 %v1408, %v1409
    %v1411 = vsel %vm1071, %v1179, 0.0
    %v1412 = vadd.f32 %v1410, %v1411
    %v1413 = vsel %vm1071, %v1180, 0.0
    %v1414 = vadd.f32 %v1412, %v1413
    %v1415 = vsel %vm1071, %v1181, 0.0
    %v1416 = vadd.f32 %v1414, %v1415
    %v1417 = vsel %vm1071, %v1182, 0.0
    %v1418 = vadd.f32 %v1416, %v1417
    %v1419 = vsel %vm1071, %v1183, 0.0
    %v1420 = vadd.f32 %v1418, %v1419
    %v1421 = vsel %vm1071, %v1184, 0.0
    %v1422 = vadd.f32 %v1420, %v1421
    %v1423 = vsel %vm1071, %v1185, 0.0
    %v1424 = vadd.f32 %v1422, %v1423
    %v1425 = vsel %vm1071, %v1186, 0.0
    %v1426 = vadd.f32 %v1424, %v1425
    %v1427 = vsel %vm1071, %v1187, 0.0
    %v1428 = vadd.f32 %v1426, %v1427
    %v1429 = vsel %vm1071, %v1188, 0.0
    %v1430 = vadd.f32 %v1428, %v1429
    %v1431 = vsel %vm1071, %v1189, 0.0
    %v1432 = vadd.f32 %v1430, %v1431
    %v1433 = vsel %vm1071, %v1190, 0.0
    %v1434 = vadd.f32 %v1432, %v1433
    %v1435 = vsel %vm1071, %v1191, 0.0
    %v1436 = vadd.f32 %v1434, %v1435
    %v1437 = vsel %vm1071, %v1192, 0.0
    %v1438 = vadd.f32 %v1436, %v1437
    %v1439 = vsel %vm1071, %v1193, 0.0
    %v1440 = vadd.f32 %v1438, %v1439
    %v1441 = vsel %vm1071, %v1194, 0.0
    %v1442 = vadd.f32 %v1440, %v1441
    %v1443 = vsel %vm1071, %v1195, 0.0
    %v1444 = vadd.f32 %v1442, %v1443
    %v1445 = vsel %vm1071, %v1196, 0.0
    %v1446 = vadd.f32 %v1444, %v1445
    %v1447 = vsel %vm1071, %v1197, 0.0
    %v1448 = vadd.f32 %v1446, %v1447
    %v1449 = vsel %vm1071, %v1198, 0.0
    %v1450 = vadd.f32 %v1448, %v1449
    %v1451 = vsel %vm1071, %v1199, 0.0
    %v1452 = vadd.f32 %v1450, %v1451
    %v1453 = vsel %vm1071, %v1200, 0.0
    %v1454 = vadd.f32 %v1452, %v1453
    %v1455 = vsel %vm1071, %v1201, 0.0
    %v1456 = vadd.f32 %v1454, %v1455
    %v1457 = vsel %vm1071, %v1202, 0.0
    %v1458 = vadd.f32 %v1456, %v1457
    %v1459 = vrot.slane %v1458, 4
    %v1460 = vadd.f32 %v1458, %v1459
    %v1461 = vrot.slane %v1460, 2
    %v1462 = vadd.f32 %v1460, %v1461
    %v1463 = vrot.slane %v1462, 1
    %v1464 = vadd.f32 %v1462, %v1463
    %vm1465 = vcmask 253952
    %1466 = vst.msk [vmem:[%s3] sm:$0x1] %vm1465, %v1464
    %v1467 = vmul.f32 %v1139, %v1139
    %v1468 = vmul.f32 %v1140, %v1140
    %v1469 = vmul.f32 %v1141, %v1141
    %v1470 = vmul.f32 %v1142, %v1142
    %v1471 = vmul.f32 %v1143, %v1143
    %v1472 = vmul.f32 %v1144, %v1144
    %v1473 = vmul.f32 %v1145, %v1145
    %v1474 = vmul.f32 %v1146, %v1146
    %v1475 = vmul.f32 %v1147, %v1147
    %v1476 = vmul.f32 %v1148, %v1148
    %v1477 = vmul.f32 %v1149, %v1149
    %v1478 = vmul.f32 %v1150, %v1150
    %v1479 = vmul.f32 %v1151, %v1151
    %v1480 = vmul.f32 %v1152, %v1152
    %v1481 = vmul.f32 %v1153, %v1153
    %v1482 = vmul.f32 %v1154, %v1154
    %v1483 = vmul.f32 %v1155, %v1155
    %v1484 = vmul.f32 %v1156, %v1156
    %v1485 = vmul.f32 %v1157, %v1157
    %v1486 = vmul.f32 %v1158, %v1158
    %v1487 = vmul.f32 %v1159, %v1159
    %v1488 = vmul.f32 %v1160, %v1160
    %v1489 = vmul.f32 %v1161, %v1161
    %v1490 = vmul.f32 %v1162, %v1162
    %v1491 = vmul.f32 %v1163, %v1163
    %v1492 = vmul.f32 %v1164, %v1164
    %v1493 = vmul.f32 %v1165, %v1165
    %v1494 = vmul.f32 %v1166, %v1166
    %v1495 = vmul.f32 %v1167, %v1167
    %v1496 = vmul.f32 %v1168, %v1168
    %v1497 = vmul.f32 %v1169, %v1169
    %v1498 = vmul.f32 %v1170, %v1170
    %v1499 = vmul.f32 %v1171, %v1171
    %v1500 = vmul.f32 %v1172, %v1172
    %v1501 = vmul.f32 %v1173, %v1173
    %v1502 = vmul.f32 %v1174, %v1174
    %v1503 = vmul.f32 %v1175, %v1175
    %v1504 = vmul.f32 %v1176, %v1176
    %v1505 = vmul.f32 %v1177, %v1177
    %v1506 = vmul.f32 %v1178, %v1178
    %v1507 = vmul.f32 %v1179, %v1179
    %v1508 = vmul.f32 %v1180, %v1180
    %v1509 = vmul.f32 %v1181, %v1181
    %v1510 = vmul.f32 %v1182, %v1182
    %v1511 = vmul.f32 %v1183, %v1183
    %v1512 = vmul.f32 %v1184, %v1184
    %v1513 = vmul.f32 %v1185, %v1185
    %v1514 = vmul.f32 %v1186, %v1186
    %v1515 = vmul.f32 %v1187, %v1187
    %v1516 = vmul.f32 %v1188, %v1188
    %v1517 = vmul.f32 %v1189, %v1189
    %v1518 = vmul.f32 %v1190, %v1190
    %v1519 = vmul.f32 %v1191, %v1191
    %v1520 = vmul.f32 %v1192, %v1192
    %v1521 = vmul.f32 %v1193, %v1193
    %v1522 = vmul.f32 %v1194, %v1194
    %v1523 = vmul.f32 %v1195, %v1195
    %v1524 = vmul.f32 %v1196, %v1196
    %v1525 = vmul.f32 %v1197, %v1197
    %v1526 = vmul.f32 %v1198, %v1198
    %v1527 = vmul.f32 %v1199, %v1199
    %v1528 = vmul.f32 %v1200, %v1200
    %v1529 = vmul.f32 %v1201, %v1201
    %v1530 = vmul.f32 %v1202, %v1202
    %v1531 = vsel %vm1071, %v1467, 0.0
    %v1532 = vsel %vm1071, %v1468, 0.0
    %v1533 = vadd.f32 %v1531, %v1532
    %v1534 = vsel %vm1071, %v1469, 0.0
    %v1535 = vadd.f32 %v1533, %v1534
    %v1536 = vsel %vm1071, %v1470, 0.0
    %v1537 = vadd.f32 %v1535, %v1536
    %v1538 = vsel %vm1071, %v1471, 0.0
    %v1539 = vadd.f32 %v1537, %v1538
    %v1540 = vsel %vm1071, %v1472, 0.0
    %v1541 = vadd.f32 %v1539, %v1540
    %v1542 = vsel %vm1071, %v1473, 0.0
    %v1543 = vadd.f32 %v1541, %v1542
    %v1544 = vsel %vm1071, %v1474, 0.0
    %v1545 = vadd.f32 %v1543, %v1544
    %v1546 = vsel %vm1071, %v1475, 0.0
    %v1547 = vadd.f32 %v1545, %v1546
    %v1548 = vsel %vm1071, %v1476, 0.0
    %v1549 = vadd.f32 %v1547, %v1548
    %v1550 = vsel %vm1071, %v1477, 0.0
    %v1551 = vadd.f32 %v1549, %v1550
    %v1552 = vsel %vm1071, %v1478, 0.0
    %v1553 = vadd.f32 %v1551, %v1552
    %v1554 = vsel %vm1071, %v1479, 0.0
    %v1555 = vadd.f32 %v1553, %v1554
    %v1556 = vsel %vm1071, %v1480, 0.0
    %v1557 = vadd.f32 %v1555, %v1556
    %v1558 = vsel %vm1071, %v1481, 0.0
    %v1559 = vadd.f32 %v1557, %v1558
    %v1560 = vsel %vm1071, %v1482, 0.0
    %v1561 = vadd.f32 %v1559, %v1560
    %v1562 = vsel %vm1071, %v1483, 0.0
    %v1563 = vadd.f32 %v1561, %v1562
    %v1564 = vsel %vm1071, %v1484, 0.0
    %v1565 = vadd.f32 %v1563, %v1564
    %v1566 = vsel %vm1071, %v1485, 0.0
    %v1567 = vadd.f32 %v1565, %v1566
    %v1568 = vsel %vm1071, %v1486, 0.0
    %v1569 = vadd.f32 %v1567, %v1568
    %v1570 = vsel %vm1071, %v1487, 0.0
    %v1571 = vadd.f32 %v1569, %v1570
    %v1572 = vsel %vm1071, %v1488, 0.0
    %v1573 = vadd.f32 %v1571, %v1572
    %v1574 = vsel %vm1071, %v1489, 0.0
    %v1575 = vadd.f32 %v1573, %v1574
    %v1576 = vsel %vm1071, %v1490, 0.0
    %v1577 = vadd.f32 %v1575, %v1576
    %v1578 = vsel %vm1071, %v1491, 0.0
    %v1579 = vadd.f32 %v1577, %v1578
    %v1580 = vsel %vm1071, %v1492, 0.0
    %v1581 = vadd.f32 %v1579, %v1580
    %v1582 = vsel %vm1071, %v1493, 0.0
    %v1583 = vadd.f32 %v1581, %v1582
    %v1584 = vsel %vm1071, %v1494, 0.0
    %v1585 = vadd.f32 %v1583, %v1584
    %v1586 = vsel %vm1071, %v1495, 0.0
    %v1587 = vadd.f32 %v1585, %v1586
    %v1588 = vsel %vm1071, %v1496, 0.0
    %v1589 = vadd.f32 %v1587, %v1588
    %v1590 = vsel %vm1071, %v1497, 0.0
    %v1591 = vadd.f32 %v1589, %v1590
    %v1592 = vsel %vm1071, %v1498, 0.0
    %v1593 = vadd.f32 %v1591, %v1592
    %v1594 = vsel %vm1071, %v1499, 0.0
    %v1595 = vadd.f32 %v1593, %v1594
    %v1596 = vsel %vm1071, %v1500, 0.0
    %v1597 = vadd.f32 %v1595, %v1596
    %v1598 = vsel %vm1071, %v1501, 0.0
    %v1599 = vadd.f32 %v1597, %v1598
    %v1600 = vsel %vm1071, %v1502, 0.0
    %v1601 = vadd.f32 %v1599, %v1600
    %v1602 = vsel %vm1071, %v1503, 0.0
    %v1603 = vadd.f32 %v1601, %v1602
    %v1604 = vsel %vm1071, %v1504, 0.0
    %v1605 = vadd.f32 %v1603, %v1604
    %v1606 = vsel %vm1071, %v1505, 0.0
    %v1607 = vadd.f32 %v1605, %v1606
    %v1608 = vsel %vm1071, %v1506, 0.0
    %v1609 = vadd.f32 %v1607, %v1608
    %v1610 = vsel %vm1071, %v1507, 0.0
    %v1611 = vadd.f32 %v1609, %v1610
    %v1612 = vsel %vm1071, %v1508, 0.0
    %v1613 = vadd.f32 %v1611, %v1612
    %v1614 = vsel %vm1071, %v1509, 0.0
    %v1615 = vadd.f32 %v1613, %v1614
    %v1616 = vsel %vm1071, %v1510, 0.0
    %v1617 = vadd.f32 %v1615, %v1616
    %v1618 = vsel %vm1071, %v1511, 0.0
    %v1619 = vadd.f32 %v1617, %v1618
    %v1620 = vsel %vm1071, %v1512, 0.0
    %v1621 = vadd.f32 %v1619, %v1620
    %v1622 = vsel %vm1071, %v1513, 0.0
    %v1623 = vadd.f32 %v1621, %v1622
    %v1624 = vsel %vm1071, %v1514, 0.0
    %v1625 = vadd.f32 %v1623, %v1624
    %v1626 = vsel %vm1071, %v1515, 0.0
    %v1627 = vadd.f32 %v1625, %v1626
    %v1628 = vsel %vm1071, %v1516, 0.0
    %v1629 = vadd.f32 %v1627, %v1628
    %v1630 = vsel %vm1071, %v1517, 0.0
    %v1631 = vadd.f32 %v1629, %v1630
    %v1632 = vsel %vm1071, %v1518, 0.0
    %v1633 = vadd.f32 %v1631, %v1632
    %v1634 = vsel %vm1071, %v1519, 0.0
    %v1635 = vadd.f32 %v1633, %v1634
    %v1636 = vsel %vm1071, %v1520, 0.0
    %v1637 = vadd.f32 %v1635, %v1636
    %v1638 = vsel %vm1071, %v1521, 0.0
    %v1639 = vadd.f32 %v1637, %v1638
    %v1640 = vsel %vm1071, %v1522, 0.0
    %v1641 = vadd.f32 %v1639, %v1640
    %v1642 = vsel %vm1071, %v1523, 0.0
    %v1643 = vadd.f32 %v1641, %v1642
    %v1644 = vsel %vm1071, %v1524, 0.0
    %v1645 = vadd.f32 %v1643, %v1644
    %v1646 = vsel %vm1071, %v1525, 0.0
    %v1647 = vadd.f32 %v1645, %v1646
    %v1648 = vsel %vm1071, %v1526, 0.0
    %v1649 = vadd.f32 %v1647, %v1648
    %v1650 = vsel %vm1071, %v1527, 0.0
    %v1651 = vadd.f32 %v1649, %v1650
    %v1652 = vsel %vm1071, %v1528, 0.0
    %v1653 = vadd.f32 %v1651, %v1652
    %v1654 = vsel %vm1071, %v1529, 0.0
    %v1655 = vadd.f32 %v1653, %v1654
    %v1656 = vsel %vm1071, %v1530, 0.0
    %v1657 = vadd.f32 %v1655, %v1656
    %v1658 = vrot.slane %v1657, 4
    %v1659 = vadd.f32 %v1657, %v1658
    %v1660 = vrot.slane %v1659, 2
    %v1661 = vadd.f32 %v1659, %v1660
    %v1662 = vrot.slane %v1661, 1
    %v1663 = vadd.f32 %v1661, %v1662
    %1664 = vst.msk [vmem:[%s4] sm:$0x1] %vm1465, %v1663
  $region17: #{generator_forward.15} parent=0 // pred_fallthru
    _
  // Predicated region
  $region18: #{generator_forward.15} parent=0 // pred_check
    _
  $region19: #{generator_forward.15} parent=0 // pred_check_branch
    %1666 = sbr.rel (0) target = $region21
  $region20: #{generator_forward.15} parent=0 // pred_region
    _
  $region21: #{generator_forward.15} parent=0 // pred_fallthru
    _
  // Predicated region
  $region22: #{generator_forward.15} parent=0 // pred_check
    _
  $region23: #{generator_forward.15} parent=0 // pred_check_branch
    %1668 = sbr.rel (0) target = $region25
  $region24: #{generator_forward.15} parent=0 // pred_region
    _
  $region25: #{generator_forward.15} parent=0 // pred_fallthru
    _
  // Predicated region
  $region26: #{generator_forward.15} parent=0 // pred_check
    _
  $region27: #{generator_forward.15} parent=0 // pred_check_branch
    %1670 = sbr.rel (0) target = $region29
  $region28: #{generator_forward.15} parent=0 // pred_region
    _
  $region29: #{generator_forward.15} parent=0 // pred_fallthru
    _
  // Predicated region
  $region30: #{generator_forward.15} parent=0 // pred_check
    _
  $region31: #{generator_forward.15} parent=0 // pred_check_branch
    %1672 = sbr.rel (0) target = $region33
  $region32: #{generator_forward.15} parent=0 // pred_region
    _
  $region33: #{generator_forward.15} parent=0 // pred_fallthru
    _
  // Predicated region
  $region34: #{generator_forward.15} parent=0 // pred_check
    _
  $region35: #{generator_forward.15} parent=0 // pred_check_branch
    %1674 = sbr.rel (0) target = $region37
  $region36: #{generator_forward.15} parent=0 // pred_region
    _
  $region37: #{generator_forward.15} parent=0 // pred_fallthru
    _
  // Predicated region
  $region38: #{generator_forward.15} parent=0 // pred_check
    _
  $region39: #{generator_forward.15} parent=0 // pred_check_branch
    %1676 = sbr.rel (0) target = $region41
  $region40: #{generator_forward.15} parent=0 // pred_region
    _
  $region41: #{generator_forward.15} parent=0 // pred_fallthru
    _

// kernel: tile.88
$region0: #{tile.88}
  #allocation0 [shape = 's32[1]{0}', space=sflag, size = 0x4, scoped, tag = 'scoped memory for tile.88']
  %s0 = inlined_call_operand.vmem [shape: f32[3], index: 0, kind: input, shape index: {}]
  %s1 = inlined_call_operand.vmem [shape: f32[4,3], index: 1, kind: output, shape index: {}]
  // Predicated region
  $region2: #{tile.88} parent=0 // pred_check
    _
  $region3: #{tile.88} parent=0 // pred_check_branch
    %3 = sbr.rel (0) target = $region5
  $region4: #{tile.88} parent=0 // pred_region
    _
  $region5: #{tile.88} parent=0 // pred_fallthru
    _
  %v4 = vld [vmem:[%s0] ss:$0 sm:$0xff]
  %5 = vst [vmem:[%s1] sm:$0xf] %v4

// kernel: tile.89
$region0: #{tile.89}
  %s0 = inlined_call_operand.vmem [shape: f32[4,3], index: 0, kind: input, shape index: {}]
  %s1 = inlined_call_operand.vmem [shape: f32[1,12], index: 1, kind: output, shape index: {}]
  $region1: #{tile.89} parent=0
    #allocation0 [shape = 'u8[4096]{0}', space=vmem, size = 0x1000, scoped, tag = 'scoped mem for output reshape']
    #allocation1 [shape = 'u8[4096]{0}', space=vmem, size = 0x1000, scoped, tag = 'scoped mem for input reshape']
    %s3 = ssub.s32 16, 1
    %v4 = vld [vmem:[%s0] sm:%s3]
    %5 = vst [vmem:[#allocation1] sm:%s3] %v4
    %v6 = vld [vmem:[#allocation1] sm:$0x1]
    %vm7 = vcmask 23552
    %8 = vst.msk [vmem:[#allocation0] sm:$0x1] %vm7, %v6
    %s9 = scalar_lea.vmem [#allocation1], 3
    %v10 = vld [vmem:[%s9] sm:$0x1]
    %11 = vrot.lane.b32.xlu0 %v10, 9
    %v12 = vpop.permute.xlu0 %11
    %vm13 = vcmask 97352
    %14 = vst.msk [vmem:[#allocation0] sm:$0x1] %vm13, %v12
    %s15 = scalar_lea.vmem [#allocation1], 2
    %v16 = vld [vmem:[%s15] sm:$0x1]
    %17 = vrot.lane.b32.xlu0 %v16, 6
    %v18 = vpop.permute.xlu0 %17
    %vm19 = vcmask 72752
    %20 = vst.msk [vmem:[#allocation0] sm:$0x1] %vm19, %v18
    %s21 = scalar_lea.vmem [#allocation1], 1
    %v22 = vld [vmem:[%s21] sm:$0x1]
    %23 = vrot.lane.b32.xlu0 %v22, 3
    %v24 = vpop.permute.xlu0 %23
    %vm25 = vcmask 48152
    %26 = vst.msk [vmem:[#allocation0] sm:$0x1] %vm25, %v24
    %s28 = ssub.s32 2, 1
    %v29 = vld [vmem:[#allocation0] sm:%s28]
    %s31 = ssub.s32 2, 1
    %32 = vst [vmem:[%s1] sm:%s31] %v29

// kernel: generator_forward.17
$region0: #{generator_forward.17}
  #allocation0 [shape = 'u32[]', space=smem, size = 0x4, offset = 0x4, fixed_abs, tag = 'smem constant byte address 0x4 - core index']
  #allocation1 [shape = 'u32[72,128]{1,0:T(1,128)}', space=vmem, size = 0x9000, scoped, tag = 'internal scratch']
  #allocation2 [shape = 'f32[512,12]{1,0:T(8,128)}', space=vmem, size = 0x40000, scoped, tag = 'scratch operand']
  %s0 = inlined_call_operand.vmem [shape: bf16[2048,72], index: 0, kind: input, shape index: {}]
  %s1 = inlined_call_operand.vmem [shape: bf16[72,12], index: 1, kind: input, shape index: {}]
  %s2 = inlined_call_operand.vmem [shape: f32[1,12], index: 2, kind: input, shape index: {}]
  %s3 = inlined_call_operand.vmem [shape: f32[2048,12], index: 3, kind: output, shape index: {}]
  %s4 = sld [smem:[#allocation0]]
  $region53: #{generator_forward.17} parent=0
    _
  %s6 = ssub.s32 1, %s4
  %s7 = scalar_select 0, %s6, %s4
  loop: start=0, step=1, limit=6
  $region2: #{generator_forward.17} parent=0 // loop_pre_header
    _
  $region3: #{generator_forward.17} parent=0 // loop_header
    %s9 = sphi 0, %s13
    %p10 = scmp.ge.s32.totalorder %s9, 6
    %s16 = sphi 0, %s28
    %s17 = sphi 0, %s24
    %s18 = sphi 0, %s16
    %s19 = sphi 0, %s17
    %s20 = sphi 0, %s18
    %s21 = sphi 0, %s19
    %s33 = sphi 0, %s35
    %s36 = sphi 0, %s33
    %s37 = sphi 0, %s36
    %s53 = sphi 0, %s37
    %s59 = sphi 0, %s61
    %s62 = sphi 0, %s59
    %s63 = sphi 0, %s62
    %s79 = sphi 0, %s63
    %s83 = sphi 0, %s83
    %s85 = sphi 0, %s83
    %s86 = sphi 0, %s85
    %s100 = sphi 0, %s86
    %s106 = sphi 0, %s108
    %s109 = sphi 0, %s106
    %s110 = sphi 0, %s109
    %s126 = sphi 0, %s110
  $region4: #{generator_forward.17} parent=0 // loop_header_branch
    %12 = sbr.rel (%p10) target = $region8
  $region5: #{generator_forward.17} parent=0 // loop_body
    %s14 = ssub.s32 %s9, 1
    %s15 = ssub.s32 %s9, 2
    %s22 = sadd.s32 1, %s17
    %p23 = scmp.ge.s32.totalorder %s22, 1
    %s24 = scalar_select %p23, 0, %s22
    %s25 = sadd.s32 1, %s16
    %s26 = scalar_select %p23, %s25, %s16
    %p27 = scmp.ge.s32.totalorder %s26, 4
    %s28 = scalar_select %p27, 0, %s26
    %s29 = ssub.s32 %s16, %s28
    %s30 = ssub.s32 %s17, %s24
    %s31 = sor.u32 %s29, %s30
    %p32 = scmp.eq.s32.totalorder %s31, 0
    %s34 = sadd.s32 %s33, 1
    %s35 = scalar_select %p32, %s33, %s34
    %p38 = pneg %p32
    %p39 = scmp.eq.s32.totalorder %s9, 3
    %p40 = por %p38, %p39
    %p41 = scmp.ne.s32.totalorder %s33, %s36
    %p42 = scmp.eq.s32.totalorder %s9, 0
    %p43 = por %p41, %p42
    %p44 = scmp.ne.s32.totalorder %s33, %s36
    %p45 = scmp.eq.s32.totalorder %s14, 3
    %p46 = por %p44, %p45
    %p47 = scmp.ne.s32.totalorder %s36, %s37
    %p48 = scmp.eq.s32.totalorder %s14, 0
    %p49 = por %p47, %p48
    %p50 = scmp.ne.s32.totalorder %s36, %s37
    %p51 = scmp.eq.s32.totalorder %s15, 3
    %p52 = por %p50, %p51
    %p54 = scmp.ne.s32.totalorder %s37, %s53
    %p55 = scmp.eq.s32.totalorder %s15, 0
    %p56 = por %p54, %p55
    %s57 = ssub.s32 %s17, %s24
    %p58 = scmp.eq.s32.totalorder %s57, 0
    %s60 = sadd.s32 %s59, 1
    %s61 = scalar_select %p58, %s59, %s60
    %p64 = pneg %p58
    %p65 = scmp.eq.s32.totalorder %s9, 3
    %p66 = por %p64, %p65
    %p67 = scmp.ne.s32.totalorder %s59, %s62
    %p68 = scmp.eq.s32.totalorder %s9, 0
    %p69 = por %p67, %p68
    %p70 = scmp.ne.s32.totalorder %s59, %s62
    %p71 = scmp.eq.s32.totalorder %s14, 3
    %p72 = por %p70, %p71
    %p73 = scmp.ne.s32.totalorder %s62, %s63
    %p74 = scmp.eq.s32.totalorder %s14, 0
    %p75 = por %p73, %p74
    %p76 = scmp.ne.s32.totalorder %s62, %s63
    %p77 = scmp.eq.s32.totalorder %s15, 3
    %p78 = por %p76, %p77
    %p80 = scmp.ne.s32.totalorder %s63, %s79
    %p81 = scmp.eq.s32.totalorder %s15, 0
    %p82 = por %p80, %p81
    %s84 = sadd.s32 %s83, 1
    %p87 = scmp.eq.s32.totalorder %s9, 3
    %p88 = scmp.ne.s32.totalorder %s83, %s85
    %p89 = scmp.eq.s32.totalorder %s9, 0
    %p90 = por %p88, %p89
    %p91 = scmp.ne.s32.totalorder %s83, %s85
    %p92 = scmp.eq.s32.totalorder %s14, 3
    %p93 = por %p91, %p92
    %p94 = scmp.ne.s32.totalorder %s85, %s86
    %p95 = scmp.eq.s32.totalorder %s14, 0
    %p96 = por %p94, %p95
    %p97 = scmp.ne.s32.totalorder %s85, %s86
    %p98 = scmp.eq.s32.totalorder %s15, 3
    %p99 = por %p97, %p98
    %p101 = scmp.ne.s32.totalorder %s86, %s100
    %p102 = scmp.eq.s32.totalorder %s15, 0
    %p103 = por %p101, %p102
    %s104 = ssub.s32 %s16, %s28
    %p105 = scmp.eq.s32.totalorder %s104, 0
    %s107 = sadd.s32 %s106, 1
    %s108 = scalar_select %p105, %s106, %s107
    %p111 = pneg %p105
    %p112 = scmp.eq.s32.totalorder %s9, 3
    %p113 = por %p111, %p112
    %p114 = scmp.ne.s32.totalorder %s106, %s109
    %p115 = scmp.eq.s32.totalorder %s9, 0
    %p116 = por %p114, %p115
    %p117 = scmp.ne.s32.totalorder %s106, %s109
    %p118 = scmp.eq.s32.totalorder %s14, 3
    %p119 = por %p117, %p118
    %p120 = scmp.ne.s32.totalorder %s109, %s110
    %p121 = scmp.eq.s32.totalorder %s14, 0
    %p122 = por %p120, %p121
    %p123 = scmp.ne.s32.totalorder %s109, %s110
    %p124 = scmp.eq.s32.totalorder %s15, 3
    %p125 = por %p123, %p124
    %p127 = scmp.ne.s32.totalorder %s110, %s126
    %p128 = scmp.eq.s32.totalorder %s15, 0
    %p129 = por %p127, %p128
    %p130 = scmp.le.s32.totalorder 1, %s9
    %p131 = scmp.lt.s32.totalorder %s9, 5
    %p132 = pnand %p130, %p131
    %p133 = pneg %p132
    // Predicated region
    $region9: #{generator_forward.17} parent=5 // pred_check
      _
    $region10: #{generator_forward.17} parent=5 // pred_check_branch
      %135 = sbr.rel (%p132) target = $region12
    $region11: #{generator_forward.17} parent=5 // pred_region
      %s136 = ssub.s32 %s9, 1
      // Predicated region
      $region13: #{generator_forward.17} parent=11 // pred_check
        %p137 = pneg %p75
      $region14: #{generator_forward.17} parent=11 // pred_check_branch
        %139 = sbr.rel (%p137) target = $region16
      $region15: #{generator_forward.17} parent=11 // pred_region
        %s140 = smul.u32 9, %s19
        %p141 = scmp.lt.s32.totalorder %s140, 8
        %s142 = scalar_select %p141, %s140, 8
        %s143 = smul.addr %s142, 4
        %s144 = scalar_lea.vmem %s1, %s143
        %s145 = smul.u32 9, %s19
      $region16: #{generator_forward.17} parent=11 // pred_fallthru
        _
      // Predicated region
      $region17: #{generator_forward.17} parent=11 // pred_check
        %p146 = pneg %p96
      $region18: #{generator_forward.17} parent=11 // pred_check_branch
        %148 = sbr.rel (%p146) target = $region20
      $region19: #{generator_forward.17} parent=11 // pred_region
        _
      $region20: #{generator_forward.17} parent=11 // pred_fallthru
        _
    $region12: #{generator_forward.17} parent=5 // pred_fallthru
      _
    %p149 = scmp.lt.s32.totalorder %s9, 4
    // Predicated region
    $region21: #{generator_forward.17} parent=5 // pred_check
      %p150 = pneg %p149
    $region22: #{generator_forward.17} parent=5 // pred_check_branch
      %152 = sbr.rel (%p150) target = $region24
    $region23: #{generator_forward.17} parent=5 // pred_region
      // Predicated region
      $region25: #{generator_forward.17} parent=23 // pred_check
        %p153 = pneg %p43
      $region26: #{generator_forward.17} parent=23 // pred_check_branch
        %155 = sbr.rel (%p153) target = $region28
      $region27: #{generator_forward.17} parent=23 // pred_region
        %s156 = smul.u32 64, %s16
        %p157 = scmp.lt.s32.totalorder %s156, 255
        %s158 = scalar_select %p157, %s156, 255
        %p159 = scmp.lt.s32.totalorder %s17, 0
        %s160 = scalar_select %p159, %s17, 0
        %s161 = sadd.s32 %s160, %s158
        %s162 = smul.addr %s161, 4
        %s163 = scalar_lea.vmem %s0, %s162
        %s164 = smul.u32 64, %s16
      $region28: #{generator_forward.17} parent=23 // pred_fallthru
        _
    $region24: #{generator_forward.17} parent=5 // pred_fallthru
      _
    %p165 = scmp.le.s32.totalorder 1, %s9
    %p166 = scmp.lt.s32.totalorder %s9, 5
    %p167 = pnand %p165, %p166
    %p168 = pneg %p167
    // Predicated region
    $region29: #{generator_forward.17} parent=5 // pred_check
      _
    $region30: #{generator_forward.17} parent=5 // pred_check_branch
      %170 = sbr.rel (%p167) target = $region32
    $region31: #{generator_forward.17} parent=5 // pred_region
      %s171 = ssub.s32 %s9, 1
      %s172 = smul.u32 64, %s18
      %p173 = scmp.lt.s32.totalorder %s172, 255
      %s174 = scalar_select %p173, %s172, 255
      %p175 = scmp.lt.s32.totalorder %s19, 0
      %s176 = scalar_select %p175, %s19, 0
      %s177 = sadd.s32 %s176, %s174
      %s178 = smul.addr %s177, 4
      %s179 = scalar_lea.vmem %s0, %s178
      %p180 = pneg %p49
      %p181 = pneg %p46
      %s182 = smul.u32 9, %s19
      %p183 = scmp.lt.s32.totalorder %s182, 8
      %s184 = scalar_select %p183, %s182, 8
      %s185 = smul.addr %s184, 4
      %s186 = scalar_lea.vmem %s1, %s185
      %p187 = pneg %p75
      %p188 = pneg %p72
      %p189 = pneg %p96
      %p190 = pneg %p93
      %p191 = pneg %p122
      %p192 = pneg %p119
      %s193 = smul.u32 64, %s18
      %p194 = scmp.lt.s32.totalorder %s193, 255
      %s195 = scalar_select %p194, %s193, 255
      %s196 = smul.addr %s195, 8
      %s197 = scalar_lea.vmem %s3, %s196
      %s198 = smul.u32 64, %s18
      %p199 = scmp.lt.s32.totalorder %s198, 255
      %s200 = scalar_select %p199, %s198, 255
      %p201 = scmp.lt.s32.totalorder %s19, 0
      %s202 = scalar_select %p201, %s19, 0
      %s203 = sadd.s32 %s202, %s200
      %s204 = smul.addr %s203, 4
      %s205 = scalar_lea.vmem %s0, %s204
      %s206 = smul.u32 64, %s18
      %s207 = smul.u32 9, %s19
      %p208 = scmp.lt.s32.totalorder %s207, 8
      %s209 = scalar_select %p208, %s207, 8
      %s210 = smul.addr %s209, 4
      %s211 = scalar_lea.vmem %s1, %s210
      %s212 = smul.u32 9, %s19
      %s213 = smul.u32 64, %s18
      %p214 = scmp.lt.s32.totalorder %s213, 255
      %s215 = scalar_select %p214, %s213, 255
      %s216 = smul.addr %s215, 8
      %s217 = scalar_lea.vmem %s3, %s216
      %s218 = smul.u32 64, %s18
      %p220 = scmp.eq.s32.totalorder %s19, 0
      // Predicated region
      $region33: #{generator_forward.17} parent=31 // pred_check
        %p221 = pneg %p220
      $region34: #{generator_forward.17} parent=31 // pred_check_branch
        %223 = sbr.rel (%p221) target = $region36
      $region35: #{generator_forward.17} parent=31 // pred_region
        %vm224 = vcmask 97280
        %225 = vst.msk [vmem:[#allocation2] sm:$0xff] %vm224, 0.0
        %226 = vst.msk [vmem:[#allocation2 + $0x8] sm:$0xff] %vm224, 0.0
        %227 = vst.msk [vmem:[#allocation2 + $0x10] sm:$0xff] %vm224, 0.0
        %228 = vst.msk [vmem:[#allocation2 + $0x18] sm:$0xff] %vm224, 0.0
        %229 = vst.msk [vmem:[#allocation2 + $0x20] sm:$0xff] %vm224, 0.0
        %230 = vst.msk [vmem:[#allocation2 + $0x28] sm:$0xff] %vm224, 0.0
        %231 = vst.msk [vmem:[#allocation2 + $0x30] sm:$0xff] %vm224, 0.0
        %232 = vst.msk [vmem:[#allocation2 + $0x38] sm:$0xff] %vm224, 0.0
        %233 = vst.msk [vmem:[#allocation2 + $0x40] sm:$0xff] %vm224, 0.0
        %234 = vst.msk [vmem:[#allocation2 + $0x48] sm:$0xff] %vm224, 0.0
        %235 = vst.msk [vmem:[#allocation2 + $0x50] sm:$0xff] %vm224, 0.0
        %236 = vst.msk [vmem:[#allocation2 + $0x58] sm:$0xff] %vm224, 0.0
        %237 = vst.msk [vmem:[#allocation2 + $0x60] sm:$0xff] %vm224, 0.0
        %238 = vst.msk [vmem:[#allocation2 + $0x68] sm:$0xff] %vm224, 0.0
        %239 = vst.msk [vmem:[#allocation2 + $0x70] sm:$0xff] %vm224, 0.0
        %240 = vst.msk [vmem:[#allocation2 + $0x78] sm:$0xff] %vm224, 0.0
        %241 = vst.msk [vmem:[#allocation2 + $0x80] sm:$0xff] %vm224, 0.0
        %242 = vst.msk [vmem:[#allocation2 + $0x88] sm:$0xff] %vm224, 0.0
        %243 = vst.msk [vmem:[#allocation2 + $0x90] sm:$0xff] %vm224, 0.0
        %244 = vst.msk [vmem:[#allocation2 + $0x98] sm:$0xff] %vm224, 0.0
        %245 = vst.msk [vmem:[#allocation2 + $0xa0] sm:$0xff] %vm224, 0.0
        %246 = vst.msk [vmem:[#allocation2 + $0xa8] sm:$0xff] %vm224, 0.0
        %247 = vst.msk [vmem:[#allocation2 + $0xb0] sm:$0xff] %vm224, 0.0
        %248 = vst.msk [vmem:[#allocation2 + $0xb8] sm:$0xff] %vm224, 0.0
        %249 = vst.msk [vmem:[#allocation2 + $0xc0] sm:$0xff] %vm224, 0.0
        %250 = vst.msk [vmem:[#allocation2 + $0xc8] sm:$0xff] %vm224, 0.0
        %251 = vst.msk [vmem:[#allocation2 + $0xd0] sm:$0xff] %vm224, 0.0
        %252 = vst.msk [vmem:[#allocation2 + $0xd8] sm:$0xff] %vm224, 0.0
        %253 = vst.msk [vmem:[#allocation2 + $0xe0] sm:$0xff] %vm224, 0.0
        %254 = vst.msk [vmem:[#allocation2 + $0xe8] sm:$0xff] %vm224, 0.0
        %255 = vst.msk [vmem:[#allocation2 + $0xf0] sm:$0xff] %vm224, 0.0
        %256 = vst.msk [vmem:[#allocation2 + $0xf8] sm:$0xff] %vm224, 0.0
        %257 = vst.msk [vmem:[#allocation2 + $0x100] sm:$0xff] %vm224, 0.0
        %258 = vst.msk [vmem:[#allocation2 + $0x108] sm:$0xff] %vm224, 0.0
        %259 = vst.msk [vmem:[#allocation2 + $0x110] sm:$0xff] %vm224, 0.0
        %260 = vst.msk [vmem:[#allocation2 + $0x118] sm:$0xff] %vm224, 0.0
        %261 = vst.msk [vmem:[#allocation2 + $0x120] sm:$0xff] %vm224, 0.0
        %262 = vst.msk [vmem:[#allocation2 + $0x128] sm:$0xff] %vm224, 0.0
        %263 = vst.msk [vmem:[#allocation2 + $0x130] sm:$0xff] %vm224, 0.0
        %264 = vst.msk [vmem:[#allocation2 + $0x138] sm:$0xff] %vm224, 0.0
        %265 = vst.msk [vmem:[#allocation2 + $0x140] sm:$0xff] %vm224, 0.0
        %266 = vst.msk [vmem:[#allocation2 + $0x148] sm:$0xff] %vm224, 0.0
        %267 = vst.msk [vmem:[#allocation2 + $0x150] sm:$0xff] %vm224, 0.0
        %268 = vst.msk [vmem:[#allocation2 + $0x158] sm:$0xff] %vm224, 0.0
        %269 = vst.msk [vmem:[#allocation2 + $0x160] sm:$0xff] %vm224, 0.0
        %270 = vst.msk [vmem:[#allocation2 + $0x168] sm:$0xff] %vm224, 0.0
        %271 = vst.msk [vmem:[#allocation2 + $0x170] sm:$0xff] %vm224, 0.0
        %272 = vst.msk [vmem:[#allocation2 + $0x178] sm:$0xff] %vm224, 0.0
        %273 = vst.msk [vmem:[#allocation2 + $0x180] sm:$0xff] %vm224, 0.0
        %274 = vst.msk [vmem:[#allocation2 + $0x188] sm:$0xff] %vm224, 0.0
        %275 = vst.msk [vmem:[#allocation2 + $0x190] sm:$0xff] %vm224, 0.0
        %276 = vst.msk [vmem:[#allocation2 + $0x198] sm:$0xff] %vm224, 0.0
        %277 = vst.msk [vmem:[#allocation2 + $0x1a0] sm:$0xff] %vm224, 0.0
        %278 = vst.msk [vmem:[#allocation2 + $0x1a8] sm:$0xff] %vm224, 0.0
        %279 = vst.msk [vmem:[#allocation2 + $0x1b0] sm:$0xff] %vm224, 0.0
        %280 = vst.msk [vmem:[#allocation2 + $0x1b8] sm:$0xff] %vm224, 0.0
        %281 = vst.msk [vmem:[#allocation2 + $0x1c0] sm:$0xff] %vm224, 0.0
        %282 = vst.msk [vmem:[#allocation2 + $0x1c8] sm:$0xff] %vm224, 0.0
        %283 = vst.msk [vmem:[#allocation2 + $0x1d0] sm:$0xff] %vm224, 0.0
        %284 = vst.msk [vmem:[#allocation2 + $0x1d8] sm:$0xff] %vm224, 0.0
        %285 = vst.msk [vmem:[#allocation2 + $0x1e0] sm:$0xff] %vm224, 0.0
        %286 = vst.msk [vmem:[#allocation2 + $0x1e8] sm:$0xff] %vm224, 0.0
        %287 = vst.msk [vmem:[#allocation2 + $0x1f0] sm:$0xff] %vm224, 0.0
        %288 = vst.msk [vmem:[#allocation2 + $0x1f8] sm:$0xff] %vm224, 0.0
      $region36: #{generator_forward.17} parent=31 // pred_fallthru
        _
      %v289 = vld [vmem:[#allocation2] sm:$0xff]
      %v290 = vld [vmem:[#allocation2 + $0x8] sm:$0xff]
      %v291 = vld [vmem:[#allocation2 + $0x10] sm:$0xff]
      %v292 = vld [vmem:[#allocation2 + $0x18] sm:$0xff]
      %v293 = vld [vmem:[#allocation2 + $0x20] sm:$0xff]
      %v294 = vld [vmem:[#allocation2 + $0x28] sm:$0xff]
      %v295 = vld [vmem:[#allocation2 + $0x30] sm:$0xff]
      %v296 = vld [vmem:[#allocation2 + $0x38] sm:$0xff]
      %v297 = vld [vmem:[#allocation2 + $0x40] sm:$0xff]
      %v298 = vld [vmem:[#allocation2 + $0x48] sm:$0xff]
      %v299 = vld [vmem:[#allocation2 + $0x50] sm:$0xff]
      %v300 = vld [vmem:[#allocation2 + $0x58] sm:$0xff]
      %v301 = vld [vmem:[#allocation2 + $0x60] sm:$0xff]
      %v302 = vld [vmem:[#allocation2 + $0x68] sm:$0xff]
      %v303 = vld [vmem:[#allocation2 + $0x70] sm:$0xff]
      %v304 = vld [vmem:[#allocation2 + $0x78] sm:$0xff]
      %v305 = vld [vmem:[#allocation2 + $0x80] sm:$0xff]
      %v306 = vld [vmem:[#allocation2 + $0x88] sm:$0xff]
      %v307 = vld [vmem:[#allocation2 + $0x90] sm:$0xff]
      %v308 = vld [vmem:[#allocation2 + $0x98] sm:$0xff]
      %v309 = vld [vmem:[#allocation2 + $0xa0] sm:$0xff]
      %v310 = vld [vmem:[#allocation2 + $0xa8] sm:$0xff]
      %v311 = vld [vmem:[#allocation2 + $0xb0] sm:$0xff]
      %v312 = vld [vmem:[#allocation2 + $0xb8] sm:$0xff]
      %v313 = vld [vmem:[#allocation2 + $0xc0] sm:$0xff]
      %v314 = vld [vmem:[#allocation2 + $0xc8] sm:$0xff]
      %v315 = vld [vmem:[#allocation2 + $0xd0] sm:$0xff]
      %v316 = vld [vmem:[#allocation2 + $0xd8] sm:$0xff]
      %v317 = vld [vmem:[#allocation2 + $0xe0] sm:$0xff]
      %v318 = vld [vmem:[#allocation2 + $0xe8] sm:$0xff]
      %v319 = vld [vmem:[#allocation2 + $0xf0] sm:$0xff]
      %v320 = vld [vmem:[#allocation2 + $0xf8] sm:$0xff]
      %v321 = vld [vmem:[#allocation2 + $0x100] sm:$0xff]
      %v322 = vld [vmem:[#allocation2 + $0x108] sm:$0xff]
      %v323 = vld [vmem:[#allocation2 + $0x110] sm:$0xff]
      %v324 = vld [vmem:[#allocation2 + $0x118] sm:$0xff]
      %v325 = vld [vmem:[#allocation2 + $0x120] sm:$0xff]
      %v326 = vld [vmem:[#allocation2 + $0x128] sm:$0xff]
      %v327 = vld [vmem:[#allocation2 + $0x130] sm:$0xff]
      %v328 = vld [vmem:[#allocation2 + $0x138] sm:$0xff]
      %v329 = vld [vmem:[#allocation2 + $0x140] sm:$0xff]
      %v330 = vld [vmem:[#allocation2 + $0x148] sm:$0xff]
      %v331 = vld [vmem:[#allocation2 + $0x150] sm:$0xff]
      %v332 = vld [vmem:[#allocation2 + $0x158] sm:$0xff]
      %v333 = vld [vmem:[#allocation2 + $0x160] sm:$0xff]
      %v334 = vld [vmem:[#allocation2 + $0x168] sm:$0xff]
      %v335 = vld [vmem:[#allocation2 + $0x170] sm:$0xff]
      %v336 = vld [vmem:[#allocation2 + $0x178] sm:$0xff]
      %v337 = vld [vmem:[#allocation2 + $0x180] sm:$0xff]
      %v338 = vld [vmem:[#allocation2 + $0x188] sm:$0xff]
      %v339 = vld [vmem:[#allocation2 + $0x190] sm:$0xff]
      %v340 = vld [vmem:[#allocation2 + $0x198] sm:$0xff]
      %v341 = vld [vmem:[#allocation2 + $0x1a0] sm:$0xff]
      %v342 = vld [vmem:[#allocation2 + $0x1a8] sm:$0xff]
      %v343 = vld [vmem:[#allocation2 + $0x1b0] sm:$0xff]
      %v344 = vld [vmem:[#allocation2 + $0x1b8] sm:$0xff]
      %v345 = vld [vmem:[#allocation2 + $0x1c0] sm:$0xff]
      %v346 = vld [vmem:[#allocation2 + $0x1c8] sm:$0xff]
      %v347 = vld [vmem:[#allocation2 + $0x1d0] sm:$0xff]
      %v348 = vld [vmem:[#allocation2 + $0x1d8] sm:$0xff]
      %v349 = vld [vmem:[#allocation2 + $0x1e0] sm:$0xff]
      %v350 = vld [vmem:[#allocation2 + $0x1e8] sm:$0xff]
      %v351 = vld [vmem:[#allocation2 + $0x1f0] sm:$0xff]
      %v352 = vld [vmem:[#allocation2 + $0x1f8] sm:$0xff]
      %v353 = vld [vmem:[%s205] sm:$0xf]
      %v354 = vld [vmem:[%s205 + $0x4] sm:$0xf]
      %v355 = vld [vmem:[%s205 + $0x8] sm:$0xf]
      %v356 = vld [vmem:[%s205 + $0xc] sm:$0xf]
      %v357 = vld [vmem:[%s205 + $0x10] sm:$0xf]
      %v358 = vld [vmem:[%s205 + $0x14] sm:$0xf]
      %v359 = vld [vmem:[%s205 + $0x18] sm:$0xf]
      %v360 = vld [vmem:[%s205 + $0x1c] sm:$0xf]
      %v361 = vld [vmem:[%s205 + $0x20] sm:$0xf]
      %v362 = vld [vmem:[%s205 + $0x24] sm:$0xf]
      %v363 = vld [vmem:[%s205 + $0x28] sm:$0xf]
      %v364 = vld [vmem:[%s205 + $0x2c] sm:$0xf]
      %v365 = vld [vmem:[%s205 + $0x30] sm:$0xf]
      %v366 = vld [vmem:[%s205 + $0x34] sm:$0xf]
      %v367 = vld [vmem:[%s205 + $0x38] sm:$0xf]
      %v368 = vld [vmem:[%s205 + $0x3c] sm:$0xf]
      %v369 = vld [vmem:[%s205 + $0x40] sm:$0xf]
      %v370 = vld [vmem:[%s205 + $0x44] sm:$0xf]
      %v371 = vld [vmem:[%s205 + $0x48] sm:$0xf]
      %v372 = vld [vmem:[%s205 + $0x4c] sm:$0xf]
      %v373 = vld [vmem:[%s205 + $0x50] sm:$0xf]
      %v374 = vld [vmem:[%s205 + $0x54] sm:$0xf]
      %v375 = vld [vmem:[%s205 + $0x58] sm:$0xf]
      %v376 = vld [vmem:[%s205 + $0x5c] sm:$0xf]
      %v377 = vld [vmem:[%s205 + $0x60] sm:$0xf]
      %v378 = vld [vmem:[%s205 + $0x64] sm:$0xf]
      %v379 = vld [vmem:[%s205 + $0x68] sm:$0xf]
      %v380 = vld [vmem:[%s205 + $0x6c] sm:$0xf]
      %v381 = vld [vmem:[%s205 + $0x70] sm:$0xf]
      %v382 = vld [vmem:[%s205 + $0x74] sm:$0xf]
      %v383 = vld [vmem:[%s205 + $0x78] sm:$0xf]
      %v384 = vld [vmem:[%s205 + $0x7c] sm:$0xf]
      %v385 = vld [vmem:[%s205 + $0x80] sm:$0xf]
      %v386 = vld [vmem:[%s205 + $0x84] sm:$0xf]
      %v387 = vld [vmem:[%s205 + $0x88] sm:$0xf]
      %v388 = vld [vmem:[%s205 + $0x8c] sm:$0xf]
      %v389 = vld [vmem:[%s205 + $0x90] sm:$0xf]
      %v390 = vld [vmem:[%s205 + $0x94] sm:$0xf]
      %v391 = vld [vmem:[%s205 + $0x98] sm:$0xf]
      %v392 = vld [vmem:[%s205 + $0x9c] sm:$0xf]
      %v393 = vld [vmem:[%s205 + $0xa0] sm:$0xf]
      %v394 = vld [vmem:[%s205 + $0xa4] sm:$0xf]
      %v395 = vld [vmem:[%s205 + $0xa8] sm:$0xf]
      %v396 = vld [vmem:[%s205 + $0xac] sm:$0xf]
      %v397 = vld [vmem:[%s205 + $0xb0] sm:$0xf]
      %v398 = vld [vmem:[%s205 + $0xb4] sm:$0xf]
      %v399 = vld [vmem:[%s205 + $0xb8] sm:$0xf]
      %v400 = vld [vmem:[%s205 + $0xbc] sm:$0xf]
      %v401 = vld [vmem:[%s205 + $0xc0] sm:$0xf]
      %v402 = vld [vmem:[%s205 + $0xc4] sm:$0xf]
      %v403 = vld [vmem:[%s205 + $0xc8] sm:$0xf]
      %v404 = vld [vmem:[%s205 + $0xcc] sm:$0xf]
      %v405 = vld [vmem:[%s205 + $0xd0] sm:$0xf]
      %v406 = vld [vmem:[%s205 + $0xd4] sm:$0xf]
      %v407 = vld [vmem:[%s205 + $0xd8] sm:$0xf]
      %v408 = vld [vmem:[%s205 + $0xdc] sm:$0xf]
      %v409 = vld [vmem:[%s205 + $0xe0] sm:$0xf]
      %v410 = vld [vmem:[%s205 + $0xe4] sm:$0xf]
      %v411 = vld [vmem:[%s205 + $0xe8] sm:$0xf]
      %v412 = vld [vmem:[%s205 + $0xec] sm:$0xf]
      %v413 = vld [vmem:[%s205 + $0xf0] sm:$0xf]
      %v414 = vld [vmem:[%s205 + $0xf4] sm:$0xf]
      %v415 = vld [vmem:[%s205 + $0xf8] sm:$0xf]
      %v416 = vld [vmem:[%s205 + $0xfc] sm:$0xf]
      %v417 = vld [vmem:[%s211] sm:$0xf]
      %v418 = vld [vmem:[%s211 + $0x4] sm:$0xf]
      %v419 = vld [vmem:[%s211 + $0x8] sm:$0xf]
      %v420 = vld [vmem:[%s211 + $0xc] sm:$0xf]
      %v421 = vld [vmem:[%s211 + $0x10] sm:$0xf]
      %v422 = vld [vmem:[%s211 + $0x14] sm:$0xf]
      %v423 = vld [vmem:[%s211 + $0x18] sm:$0xf]
      %v424 = vld [vmem:[%s211 + $0x1c] sm:$0xf]
      %v425 = vld [vmem:[%s211 + $0x20] sm:$0xf]
      %v490 = vunpack.c.l.b16 %v353
      %v491 = vunpack.c.l.b16 %v354
      %v492 = vunpack.c.l.b16 %v355
      %v493 = vunpack.c.l.b16 %v356
      %v494 = vunpack.c.l.b16 %v357
      %v495 = vunpack.c.l.b16 %v358
      %v496 = vunpack.c.l.b16 %v359
      %v497 = vunpack.c.l.b16 %v360
      %v498 = vunpack.c.l.b16 %v361
      %v499 = vunpack.c.l.b16 %v362
      %v500 = vunpack.c.l.b16 %v363
      %v501 = vunpack.c.l.b16 %v364
      %v502 = vunpack.c.l.b16 %v365
      %v503 = vunpack.c.l.b16 %v366
      %v504 = vunpack.c.l.b16 %v367
      %v505 = vunpack.c.l.b16 %v368
      %v506 = vunpack.c.l.b16 %v369
      %v507 = vunpack.c.l.b16 %v370
      %v508 = vunpack.c.l.b16 %v371
      %v509 = vunpack.c.l.b16 %v372
      %v510 = vunpack.c.l.b16 %v373
      %v511 = vunpack.c.l.b16 %v374
      %v512 = vunpack.c.l.b16 %v375
      %v513 = vunpack.c.l.b16 %v376
      %v514 = vunpack.c.l.b16 %v377
      %v515 = vunpack.c.l.b16 %v378
      %v516 = vunpack.c.l.b16 %v379
      %v517 = vunpack.c.l.b16 %v380
      %v518 = vunpack.c.l.b16 %v381
      %v519 = vunpack.c.l.b16 %v382
      %v520 = vunpack.c.l.b16 %v383
      %v521 = vunpack.c.l.b16 %v384
      %v522 = vunpack.c.l.b16 %v385
      %v523 = vunpack.c.l.b16 %v386
      %v524 = vunpack.c.l.b16 %v387
      %v525 = vunpack.c.l.b16 %v388
      %v526 = vunpack.c.l.b16 %v389
      %v527 = vunpack.c.l.b16 %v390
      %v528 = vunpack.c.l.b16 %v391
      %v529 = vunpack.c.l.b16 %v392
      %v530 = vunpack.c.l.b16 %v393
      %v531 = vunpack.c.l.b16 %v394
      %v532 = vunpack.c.l.b16 %v395
      %v533 = vunpack.c.l.b16 %v396
      %v534 = vunpack.c.l.b16 %v397
      %v535 = vunpack.c.l.b16 %v398
      %v536 = vunpack.c.l.b16 %v399
      %v537 = vunpack.c.l.b16 %v400
      %v538 = vunpack.c.l.b16 %v401
      %v539 = vunpack.c.l.b16 %v402
      %v540 = vunpack.c.l.b16 %v403
      %v541 = vunpack.c.l.b16 %v404
      %v542 = vunpack.c.l.b16 %v405
      %v543 = vunpack.c.l.b16 %v406
      %v544 = vunpack.c.l.b16 %v407
      %v545 = vunpack.c.l.b16 %v408
      %v546 = vunpack.c.l.b16 %v409
      %v547 = vunpack.c.l.b16 %v410
      %v548 = vunpack.c.l.b16 %v411
      %v549 = vunpack.c.l.b16 %v412
      %v550 = vunpack.c.l.b16 %v413
      %v551 = vunpack.c.l.b16 %v414
      %v552 = vunpack.c.l.b16 %v415
      %v553 = vunpack.c.l.b16 %v416
      %v554 = vpack.c.b16 %v491, %v490
      %v555 = vpack.c.b16 %v493, %v492
      %v556 = vpack.c.b16 %v495, %v494
      %v557 = vpack.c.b16 %v497, %v496
      %v558 = vpack.c.b16 %v499, %v498
      %v559 = vpack.c.b16 %v501, %v500
      %v560 = vpack.c.b16 %v503, %v502
      %v561 = vpack.c.b16 %v505, %v504
      %v562 = vpack.c.b16 %v507, %v506
      %v563 = vpack.c.b16 %v509, %v508
      %v564 = vpack.c.b16 %v511, %v510
      %v565 = vpack.c.b16 %v513, %v512
      %v566 = vpack.c.b16 %v515, %v514
      %v567 = vpack.c.b16 %v517, %v516
      %v568 = vpack.c.b16 %v519, %v518
      %v569 = vpack.c.b16 %v521, %v520
      %v570 = vpack.c.b16 %v523, %v522
      %v571 = vpack.c.b16 %v525, %v524
      %v572 = vpack.c.b16 %v527, %v526
      %v573 = vpack.c.b16 %v529, %v528
      %v574 = vpack.c.b16 %v531, %v530
      %v575 = vpack.c.b16 %v533, %v532
      %v576 = vpack.c.b16 %v535, %v534
      %v577 = vpack.c.b16 %v537, %v536
      %v578 = vpack.c.b16 %v539, %v538
      %v579 = vpack.c.b16 %v541, %v540
      %v580 = vpack.c.b16 %v543, %v542
      %v581 = vpack.c.b16 %v545, %v544
      %v582 = vpack.c.b16 %v547, %v546
      %v583 = vpack.c.b16 %v549, %v548
      %v584 = vpack.c.b16 %v551, %v550
      %v585 = vpack.c.b16 %v553, %v552
      %v595 = vunpack.c.l.b16 %v417
      %v596 = vunpack.c.l.b16 %v418
      %v597 = vunpack.c.l.b16 %v419
      %v598 = vunpack.c.l.b16 %v420
      %v599 = vunpack.c.l.b16 %v421
      %v600 = vunpack.c.l.b16 %v422
      %v601 = vunpack.c.l.b16 %v423
      %v602 = vunpack.c.l.b16 %v424
      %v603 = vunpack.c.l.b16 %v425
      %v604 = vpack.c.b16 %v596, %v595
      %v605 = vpack.c.b16 %v598, %v597
      %v606 = vpack.c.b16 %v600, %v599
      %v607 = vpack.c.b16 %v602, %v601
      %v608 = vpack.c.b16 %v603, %v603
      %vm613 = vcmask 588800
      %v615 = vsel %vm613, %v554, 0
      %v618 = vsel %vm613, %v555, 0
      %v621 = vsel %vm613, %v556, 0
      %v624 = vsel %vm613, %v557, 0
      %v627 = vsel %vm613, %v558, 0
      %v630 = vsel %vm613, %v559, 0
      %v633 = vsel %vm613, %v560, 0
      %v636 = vsel %vm613, %v561, 0
      %v639 = vsel %vm613, %v562, 0
      %v642 = vsel %vm613, %v563, 0
      %v645 = vsel %vm613, %v564, 0
      %v648 = vsel %vm613, %v565, 0
      %v651 = vsel %vm613, %v566, 0
      %v654 = vsel %vm613, %v567, 0
      %v657 = vsel %vm613, %v568, 0
      %v660 = vsel %vm613, %v569, 0
      %v663 = vsel %vm613, %v570, 0
      %v666 = vsel %vm613, %v571, 0
      %v669 = vsel %vm613, %v572, 0
      %v672 = vsel %vm613, %v573, 0
      %v675 = vsel %vm613, %v574, 0
      %v678 = vsel %vm613, %v575, 0
      %v681 = vsel %vm613, %v576, 0
      %v684 = vsel %vm613, %v577, 0
      %v687 = vsel %vm613, %v578, 0
      %v690 = vsel %vm613, %v579, 0
      %v693 = vsel %vm613, %v580, 0
      %v696 = vsel %vm613, %v581, 0
      %v699 = vsel %vm613, %v582, 0
      %v702 = vsel %vm613, %v583, 0
      %v705 = vsel %vm613, %v584, 0
      %v708 = vsel %vm613, %v585, 0
      %vm710 = vcmask 1043456
      %v712 = vsel %vm710, %v608, 0
      %714 = vmatpush.bf16.msra.mxu0 0
      %715 = vmatpush.bf16.msra.mxu0 0
      %716 = vmatpush.bf16.msra.mxu0 0
      %717 = vmatpush.bf16.msra.mxu0 %v712
      %718 = vmatpush.bf16.msra.mxu0 %v607
      %719 = vmatpush.bf16.msra.mxu0 %v606
      %720 = vmatpush.bf16.msra.mxu0 %v605
      %721 = vmatpush.bf16.msra.mxu0 %v604
      %722 = vmatmul.bf16.gmra.mxu0 %v615
      %v723 = vpop.f32.mrf.mxu0
      %v724 = vadd.f32 0.0, %v723
      %v725 = vpop.f32.mrf.mxu0
      %v726 = vadd.f32 0.0, %v725
      %727 = vmatmul.bf16.gmra.mxu0 %v618
      %v728 = vpop.f32.mrf.mxu0
      %v729 = vadd.f32 0.0, %v728
      %v730 = vpop.f32.mrf.mxu0
      %v731 = vadd.f32 0.0, %v730
      %732 = vmatmul.bf16.gmra.mxu0 %v621
      %v733 = vpop.f32.mrf.mxu0
      %v734 = vadd.f32 0.0, %v733
      %v735 = vpop.f32.mrf.mxu0
      %v736 = vadd.f32 0.0, %v735
      %737 = vmatmul.bf16.gmra.mxu0 %v624
      %v738 = vpop.f32.mrf.mxu0
      %v739 = vadd.f32 0.0, %v738
      %v740 = vpop.f32.mrf.mxu0
      %v741 = vadd.f32 0.0, %v740
      %742 = vmatmul.bf16.gmra.mxu0 %v627
      %v743 = vpop.f32.mrf.mxu0
      %v744 = vadd.f32 0.0, %v743
      %v745 = vpop.f32.mrf.mxu0
      %v746 = vadd.f32 0.0, %v745
      %747 = vmatmul.bf16.gmra.mxu0 %v630
      %v748 = vpop.f32.mrf.mxu0
      %v749 = vadd.f32 0.0, %v748
      %v750 = vpop.f32.mrf.mxu0
      %v751 = vadd.f32 0.0, %v750
      %752 = vmatmul.bf16.gmra.mxu0 %v633
      %v753 = vpop.f32.mrf.mxu0
      %v754 = vadd.f32 0.0, %v753
      %v755 = vpop.f32.mrf.mxu0
      %v756 = vadd.f32 0.0, %v755
      %757 = vmatmul.bf16.gmra.mxu0 %v636
      %v758 = vpop.f32.mrf.mxu0
      %v759 = vadd.f32 0.0, %v758
      %v760 = vpop.f32.mrf.mxu0
      %v761 = vadd.f32 0.0, %v760
      %762 = vmatmul.bf16.gmra.mxu0 %v639
      %v763 = vpop.f32.mrf.mxu0
      %v764 = vadd.f32 0.0, %v763
      %v765 = vpop.f32.mrf.mxu0
      %v766 = vadd.f32 0.0, %v765
      %767 = vmatmul.bf16.gmra.mxu0 %v642
      %v768 = vpop.f32.mrf.mxu0
      %v769 = vadd.f32 0.0, %v768
      %v770 = vpop.f32.mrf.mxu0
      %v771 = vadd.f32 0.0, %v770
      %772 = vmatmul.bf16.gmra.mxu0 %v645
      %v773 = vpop.f32.mrf.mxu0
      %v774 = vadd.f32 0.0, %v773
      %v775 = vpop.f32.mrf.mxu0
      %v776 = vadd.f32 0.0, %v775
      %777 = vmatmul.bf16.gmra.mxu0 %v648
      %v778 = vpop.f32.mrf.mxu0
      %v779 = vadd.f32 0.0, %v778
      %v780 = vpop.f32.mrf.mxu0
      %v781 = vadd.f32 0.0, %v780
      %782 = vmatmul.bf16.gmra.mxu0 %v651
      %v783 = vpop.f32.mrf.mxu0
      %v784 = vadd.f32 0.0, %v783
      %v785 = vpop.f32.mrf.mxu0
      %v786 = vadd.f32 0.0, %v785
      %787 = vmatmul.bf16.gmra.mxu0 %v654
      %v788 = vpop.f32.mrf.mxu0
      %v789 = vadd.f32 0.0, %v788
      %v790 = vpop.f32.mrf.mxu0
      %v791 = vadd.f32 0.0, %v790
      %792 = vmatmul.bf16.gmra.mxu0 %v657
      %v793 = vpop.f32.mrf.mxu0
      %v794 = vadd.f32 0.0, %v793
      %v795 = vpop.f32.mrf.mxu0
      %v796 = vadd.f32 0.0, %v795
      %797 = vmatmul.bf16.gmra.mxu0 %v660
      %v798 = vpop.f32.mrf.mxu0
      %v799 = vadd.f32 0.0, %v798
      %v800 = vpop.f32.mrf.mxu0
      %v801 = vadd.f32 0.0, %v800
      %802 = vmatmul.bf16.gmra.mxu0 %v663
      %v803 = vpop.f32.mrf.mxu0
      %v804 = vadd.f32 0.0, %v803
      %v805 = vpop.f32.mrf.mxu0
      %v806 = vadd.f32 0.0, %v805
      %807 = vmatmul.bf16.gmra.mxu0 %v666
      %v808 = vpop.f32.mrf.mxu0
      %v809 = vadd.f32 0.0, %v808
      %v810 = vpop.f32.mrf.mxu0
      %v811 = vadd.f32 0.0, %v810
      %812 = vmatmul.bf16.gmra.mxu0 %v669
      %v813 = vpop.f32.mrf.mxu0
      %v814 = vadd.f32 0.0, %v813
      %v815 = vpop.f32.mrf.mxu0
      %v816 = vadd.f32 0.0, %v815
      %817 = vmatmul.bf16.gmra.mxu0 %v672
      %v818 = vpop.f32.mrf.mxu0
      %v819 = vadd.f32 0.0, %v818
      %v820 = vpop.f32.mrf.mxu0
      %v821 = vadd.f32 0.0, %v820
      %822 = vmatmul.bf16.gmra.mxu0 %v675
      %v823 = vpop.f32.mrf.mxu0
      %v824 = vadd.f32 0.0, %v823
      %v825 = vpop.f32.mrf.mxu0
      %v826 = vadd.f32 0.0, %v825
      %827 = vmatmul.bf16.gmra.mxu0 %v678
      %v828 = vpop.f32.mrf.mxu0
      %v829 = vadd.f32 0.0, %v828
      %v830 = vpop.f32.mrf.mxu0
      %v831 = vadd.f32 0.0, %v830
      %832 = vmatmul.bf16.gmra.mxu0 %v681
      %v833 = vpop.f32.mrf.mxu0
      %v834 = vadd.f32 0.0, %v833
      %v835 = vpop.f32.mrf.mxu0
      %v836 = vadd.f32 0.0, %v835
      %837 = vmatmul.bf16.gmra.mxu0 %v684
      %v838 = vpop.f32.mrf.mxu0
      %v839 = vadd.f32 0.0, %v838
      %v840 = vpop.f32.mrf.mxu0
      %v841 = vadd.f32 0.0, %v840
      %842 = vmatmul.bf16.gmra.mxu0 %v687
      %v843 = vpop.f32.mrf.mxu0
      %v844 = vadd.f32 0.0, %v843
      %v845 = vpop.f32.mrf.mxu0
      %v846 = vadd.f32 0.0, %v845
      %847 = vmatmul.bf16.gmra.mxu0 %v690
      %v848 = vpop.f32.mrf.mxu0
      %v849 = vadd.f32 0.0, %v848
      %v850 = vpop.f32.mrf.mxu0
      %v851 = vadd.f32 0.0, %v850
      %852 = vmatmul.bf16.gmra.mxu0 %v693
      %v853 = vpop.f32.mrf.mxu0
      %v854 = vadd.f32 0.0, %v853
      %v855 = vpop.f32.mrf.mxu0
      %v856 = vadd.f32 0.0, %v855
      %857 = vmatmul.bf16.gmra.mxu0 %v696
      %v858 = vpop.f32.mrf.mxu0
      %v859 = vadd.f32 0.0, %v858
      %v860 = vpop.f32.mrf.mxu0
      %v861 = vadd.f32 0.0, %v860
      %862 = vmatmul.bf16.gmra.mxu0 %v699
      %v863 = vpop.f32.mrf.mxu0
      %v864 = vadd.f32 0.0, %v863
      %v865 = vpop.f32.mrf.mxu0
      %v866 = vadd.f32 0.0, %v865
      %867 = vmatmul.bf16.gmra.mxu0 %v702
      %v868 = vpop.f32.mrf.mxu0
      %v869 = vadd.f32 0.0, %v868
      %v870 = vpop.f32.mrf.mxu0
      %v871 = vadd.f32 0.0, %v870
      %872 = vmatmul.bf16.gmra.mxu0 %v705
      %v873 = vpop.f32.mrf.mxu0
      %v874 = vadd.f32 0.0, %v873
      %v875 = vpop.f32.mrf.mxu0
      %v876 = vadd.f32 0.0, %v875
      %877 = vmatmul.bf16.gmra.mxu0 %v708
      %v878 = vpop.f32.mrf.mxu0
      %v879 = vadd.f32 0.0, %v878
      %v880 = vpop.f32.mrf.mxu0
      %v881 = vadd.f32 0.0, %v880
      %882 = vdwg.mxu0
      %v883 = vadd.f32 %v289, %v724
      %v884 = vadd.f32 %v290, %v726
      %v885 = vadd.f32 %v291, %v729
      %v886 = vadd.f32 %v292, %v731
      %v887 = vadd.f32 %v293, %v734
      %v888 = vadd.f32 %v294, %v736
      %v889 = vadd.f32 %v295, %v739
      %v890 = vadd.f32 %v296, %v741
      %v891 = vadd.f32 %v297, %v744
      %v892 = vadd.f32 %v298, %v746
      %v893 = vadd.f32 %v299, %v749
      %v894 = vadd.f32 %v300, %v751
      %v895 = vadd.f32 %v301, %v754
      %v896 = vadd.f32 %v302, %v756
      %v897 = vadd.f32 %v303, %v759
      %v898 = vadd.f32 %v304, %v761
      %v899 = vadd.f32 %v305, %v764
      %v900 = vadd.f32 %v306, %v766
      %v901 = vadd.f32 %v307, %v769
      %v902 = vadd.f32 %v308, %v771
      %v903 = vadd.f32 %v309, %v774
      %v904 = vadd.f32 %v310, %v776
      %v905 = vadd.f32 %v311, %v779
      %v906 = vadd.f32 %v312, %v781
      %v907 = vadd.f32 %v313, %v784
      %v908 = vadd.f32 %v314, %v786
      %v909 = vadd.f32 %v315, %v789
      %v910 = vadd.f32 %v316, %v791
      %v911 = vadd.f32 %v317, %v794
      %v912 = vadd.f32 %v318, %v796
      %v913 = vadd.f32 %v319, %v799
      %v914 = vadd.f32 %v320, %v801
      %v915 = vadd.f32 %v321, %v804
      %v916 = vadd.f32 %v322, %v806
      %v917 = vadd.f32 %v323, %v809
      %v918 = vadd.f32 %v324, %v811
      %v919 = vadd.f32 %v325, %v814
      %v920 = vadd.f32 %v326, %v816
      %v921 = vadd.f32 %v327, %v819
      %v922 = vadd.f32 %v328, %v821
      %v923 = vadd.f32 %v329, %v824
      %v924 = vadd.f32 %v330, %v826
      %v925 = vadd.f32 %v331, %v829
      %v926 = vadd.f32 %v332, %v831
      %v927 = vadd.f32 %v333, %v834
      %v928 = vadd.f32 %v334, %v836
      %v929 = vadd.f32 %v335, %v839
      %v930 = vadd.f32 %v336, %v841
      %v931 = vadd.f32 %v337, %v844
      %v932 = vadd.f32 %v338, %v846
      %v933 = vadd.f32 %v339, %v849
      %v934 = vadd.f32 %v340, %v851
      %v935 = vadd.f32 %v341, %v854
      %v936 = vadd.f32 %v342, %v856
      %v937 = vadd.f32 %v343, %v859
      %v938 = vadd.f32 %v344, %v861
      %v939 = vadd.f32 %v345, %v864
      %v940 = vadd.f32 %v346, %v866
      %v941 = vadd.f32 %v347, %v869
      %v942 = vadd.f32 %v348, %v871
      %v943 = vadd.f32 %v349, %v874
      %v944 = vadd.f32 %v350, %v876
      %v945 = vadd.f32 %v351, %v879
      %v946 = vadd.f32 %v352, %v881
      %vm947 = vcmask 97280
      %948 = vst.msk [vmem:[#allocation2] sm:$0xff] %vm947, %v883
      %949 = vst.msk [vmem:[#allocation2 + $0x8] sm:$0xff] %vm947, %v884
      %950 = vst.msk [vmem:[#allocation2 + $0x10] sm:$0xff] %vm947, %v885
      %951 = vst.msk [vmem:[#allocation2 + $0x18] sm:$0xff] %vm947, %v886
      %952 = vst.msk [vmem:[#allocation2 + $0x20] sm:$0xff] %vm947, %v887
      %953 = vst.msk [vmem:[#allocation2 + $0x28] sm:$0xff] %vm947, %v888
      %954 = vst.msk [vmem:[#allocation2 + $0x30] sm:$0xff] %vm947, %v889
      %955 = vst.msk [vmem:[#allocation2 + $0x38] sm:$0xff] %vm947, %v890
      %956 = vst.msk [vmem:[#allocation2 + $0x40] sm:$0xff] %vm947, %v891
      %957 = vst.msk [vmem:[#allocation2 + $0x48] sm:$0xff] %vm947, %v892
      %958 = vst.msk [vmem:[#allocation2 + $0x50] sm:$0xff] %vm947, %v893
      %959 = vst.msk [vmem:[#allocation2 + $0x58] sm:$0xff] %vm947, %v894
      %960 = vst.msk [vmem:[#allocation2 + $0x60] sm:$0xff] %vm947, %v895
      %961 = vst.msk [vmem:[#allocation2 + $0x68] sm:$0xff] %vm947, %v896
      %962 = vst.msk [vmem:[#allocation2 + $0x70] sm:$0xff] %vm947, %v897
      %963 = vst.msk [vmem:[#allocation2 + $0x78] sm:$0xff] %vm947, %v898
      %964 = vst.msk [vmem:[#allocation2 + $0x80] sm:$0xff] %vm947, %v899
      %965 = vst.msk [vmem:[#allocation2 + $0x88] sm:$0xff] %vm947, %v900
      %966 = vst.msk [vmem:[#allocation2 + $0x90] sm:$0xff] %vm947, %v901
      %967 = vst.msk [vmem:[#allocation2 + $0x98] sm:$0xff] %vm947, %v902
      %968 = vst.msk [vmem:[#allocation2 + $0xa0] sm:$0xff] %vm947, %v903
      %969 = vst.msk [vmem:[#allocation2 + $0xa8] sm:$0xff] %vm947, %v904
      %970 = vst.msk [vmem:[#allocation2 + $0xb0] sm:$0xff] %vm947, %v905
      %971 = vst.msk [vmem:[#allocation2 + $0xb8] sm:$0xff] %vm947, %v906
      %972 = vst.msk [vmem:[#allocation2 + $0xc0] sm:$0xff] %vm947, %v907
      %973 = vst.msk [vmem:[#allocation2 + $0xc8] sm:$0xff] %vm947, %v908
      %974 = vst.msk [vmem:[#allocation2 + $0xd0] sm:$0xff] %vm947, %v909
      %975 = vst.msk [vmem:[#allocation2 + $0xd8] sm:$0xff] %vm947, %v910
      %976 = vst.msk [vmem:[#allocation2 + $0xe0] sm:$0xff] %vm947, %v911
      %977 = vst.msk [vmem:[#allocation2 + $0xe8] sm:$0xff] %vm947, %v912
      %978 = vst.msk [vmem:[#allocation2 + $0xf0] sm:$0xff] %vm947, %v913
      %979 = vst.msk [vmem:[#allocation2 + $0xf8] sm:$0xff] %vm947, %v914
      %980 = vst.msk [vmem:[#allocation2 + $0x100] sm:$0xff] %vm947, %v915
      %981 = vst.msk [vmem:[#allocation2 + $0x108] sm:$0xff] %vm947, %v916
      %982 = vst.msk [vmem:[#allocation2 + $0x110] sm:$0xff] %vm947, %v917
      %983 = vst.msk [vmem:[#allocation2 + $0x118] sm:$0xff] %vm947, %v918
      %984 = vst.msk [vmem:[#allocation2 + $0x120] sm:$0xff] %vm947, %v919
      %985 = vst.msk [vmem:[#allocation2 + $0x128] sm:$0xff] %vm947, %v920
      %986 = vst.msk [vmem:[#allocation2 + $0x130] sm:$0xff] %vm947, %v921
      %987 = vst.msk [vmem:[#allocation2 + $0x138] sm:$0xff] %vm947, %v922
      %988 = vst.msk [vmem:[#allocation2 + $0x140] sm:$0xff] %vm947, %v923
      %989 = vst.msk [vmem:[#allocation2 + $0x148] sm:$0xff] %vm947, %v924
      %990 = vst.msk [vmem:[#allocation2 + $0x150] sm:$0xff] %vm947, %v925
      %991 = vst.msk [vmem:[#allocation2 + $0x158] sm:$0xff] %vm947, %v926
      %992 = vst.msk [vmem:[#allocation2 + $0x160] sm:$0xff] %vm947, %v927
      %993 = vst.msk [vmem:[#allocation2 + $0x168] sm:$0xff] %vm947, %v928
      %994 = vst.msk [vmem:[#allocation2 + $0x170] sm:$0xff] %vm947, %v929
      %995 = vst.msk [vmem:[#allocation2 + $0x178] sm:$0xff] %vm947, %v930
      %996 = vst.msk [vmem:[#allocation2 + $0x180] sm:$0xff] %vm947, %v931
      %997 = vst.msk [vmem:[#allocation2 + $0x188] sm:$0xff] %vm947, %v932
      %998 = vst.msk [vmem:[#allocation2 + $0x190] sm:$0xff] %vm947, %v933
      %999 = vst.msk [vmem:[#allocation2 + $0x198] sm:$0xff] %vm947, %v934
      %1000 = vst.msk [vmem:[#allocation2 + $0x1a0] sm:$0xff] %vm947, %v935
      %1001 = vst.msk [vmem:[#allocation2 + $0x1a8] sm:$0xff] %vm947, %v936
      %1002 = vst.msk [vmem:[#allocation2 + $0x1b0] sm:$0xff] %vm947, %v937
      %1003 = vst.msk [vmem:[#allocation2 + $0x1b8] sm:$0xff] %vm947, %v938
      %1004 = vst.msk [vmem:[#allocation2 + $0x1c0] sm:$0xff] %vm947, %v939
      %1005 = vst.msk [vmem:[#allocation2 + $0x1c8] sm:$0xff] %vm947, %v940
      %1006 = vst.msk [vmem:[#allocation2 + $0x1d0] sm:$0xff] %vm947, %v941
      %1007 = vst.msk [vmem:[#allocation2 + $0x1d8] sm:$0xff] %vm947, %v942
      %1008 = vst.msk [vmem:[#allocation2 + $0x1e0] sm:$0xff] %vm947, %v943
      %1009 = vst.msk [vmem:[#allocation2 + $0x1e8] sm:$0xff] %vm947, %v944
      %1010 = vst.msk [vmem:[#allocation2 + $0x1f0] sm:$0xff] %vm947, %v945
      %1011 = vst.msk [vmem:[#allocation2 + $0x1f8] sm:$0xff] %vm947, %v946
      // Predicated region
      $region37: #{generator_forward.17} parent=31 // pred_check
        %p1012 = pneg %p220
      $region38: #{generator_forward.17} parent=31 // pred_check_branch
        %1014 = sbr.rel (%p1012) target = $region40
      $region39: #{generator_forward.17} parent=31 // pred_region
        %v1015 = vld [vmem:[#allocation2] sm:$0xff]
        %v1016 = vld [vmem:[#allocation2 + $0x8] sm:$0xff]
        %v1017 = vld [vmem:[#allocation2 + $0x10] sm:$0xff]
        %v1018 = vld [vmem:[#allocation2 + $0x18] sm:$0xff]
        %v1019 = vld [vmem:[#allocation2 + $0x20] sm:$0xff]
        %v1020 = vld [vmem:[#allocation2 + $0x28] sm:$0xff]
        %v1021 = vld [vmem:[#allocation2 + $0x30] sm:$0xff]
        %v1022 = vld [vmem:[#allocation2 + $0x38] sm:$0xff]
        %v1023 = vld [vmem:[#allocation2 + $0x40] sm:$0xff]
        %v1024 = vld [vmem:[#allocation2 + $0x48] sm:$0xff]
        %v1025 = vld [vmem:[#allocation2 + $0x50] sm:$0xff]
        %v1026 = vld [vmem:[#allocation2 + $0x58] sm:$0xff]
        %v1027 = vld [vmem:[#allocation2 + $0x60] sm:$0xff]
        %v1028 = vld [vmem:[#allocation2 + $0x68] sm:$0xff]
        %v1029 = vld [vmem:[#allocation2 + $0x70] sm:$0xff]
        %v1030 = vld [vmem:[#allocation2 + $0x78] sm:$0xff]
        %v1031 = vld [vmem:[#allocation2 + $0x80] sm:$0xff]
        %v1032 = vld [vmem:[#allocation2 + $0x88] sm:$0xff]
        %v1033 = vld [vmem:[#allocation2 + $0x90] sm:$0xff]
        %v1034 = vld [vmem:[#allocation2 + $0x98] sm:$0xff]
        %v1035 = vld [vmem:[#allocation2 + $0xa0] sm:$0xff]
        %v1036 = vld [vmem:[#allocation2 + $0xa8] sm:$0xff]
        %v1037 = vld [vmem:[#allocation2 + $0xb0] sm:$0xff]
        %v1038 = vld [vmem:[#allocation2 + $0xb8] sm:$0xff]
        %v1039 = vld [vmem:[#allocation2 + $0xc0] sm:$0xff]
        %v1040 = vld [vmem:[#allocation2 + $0xc8] sm:$0xff]
        %v1041 = vld [vmem:[#allocation2 + $0xd0] sm:$0xff]
        %v1042 = vld [vmem:[#allocation2 + $0xd8] sm:$0xff]
        %v1043 = vld [vmem:[#allocation2 + $0xe0] sm:$0xff]
        %v1044 = vld [vmem:[#allocation2 + $0xe8] sm:$0xff]
        %v1045 = vld [vmem:[#allocation2 + $0xf0] sm:$0xff]
        %v1046 = vld [vmem:[#allocation2 + $0xf8] sm:$0xff]
        %v1047 = vld [vmem:[#allocation2 + $0x100] sm:$0xff]
        %v1048 = vld [vmem:[#allocation2 + $0x108] sm:$0xff]
        %v1049 = vld [vmem:[#allocation2 + $0x110] sm:$0xff]
        %v1050 = vld [vmem:[#allocation2 + $0x118] sm:$0xff]
        %v1051 = vld [vmem:[#allocation2 + $0x120] sm:$0xff]
        %v1052 = vld [vmem:[#allocation2 + $0x128] sm:$0xff]
        %v1053 = vld [vmem:[#allocation2 + $0x130] sm:$0xff]
        %v1054 = vld [vmem:[#allocation2 + $0x138] sm:$0xff]
        %v1055 = vld [vmem:[#allocation2 + $0x140] sm:$0xff]
        %v1056 = vld [vmem:[#allocation2 + $0x148] sm:$0xff]
        %v1057 = vld [vmem:[#allocation2 + $0x150] sm:$0xff]
        %v1058 = vld [vmem:[#allocation2 + $0x158] sm:$0xff]
        %v1059 = vld [vmem:[#allocation2 + $0x160] sm:$0xff]
        %v1060 = vld [vmem:[#allocation2 + $0x168] sm:$0xff]
        %v1061 = vld [vmem:[#allocation2 + $0x170] sm:$0xff]
        %v1062 = vld [vmem:[#allocation2 + $0x178] sm:$0xff]
        %v1063 = vld [vmem:[#allocation2 + $0x180] sm:$0xff]
        %v1064 = vld [vmem:[#allocation2 + $0x188] sm:$0xff]
        %v1065 = vld [vmem:[#allocation2 + $0x190] sm:$0xff]
        %v1066 = vld [vmem:[#allocation2 + $0x198] sm:$0xff]
        %v1067 = vld [vmem:[#allocation2 + $0x1a0] sm:$0xff]
        %v1068 = vld [vmem:[#allocation2 + $0x1a8] sm:$0xff]
        %v1069 = vld [vmem:[#allocation2 + $0x1b0] sm:$0xff]
        %v1070 = vld [vmem:[#allocation2 + $0x1b8] sm:$0xff]
        %v1071 = vld [vmem:[#allocation2 + $0x1c0] sm:$0xff]
        %v1072 = vld [vmem:[#allocation2 + $0x1c8] sm:$0xff]
        %v1073 = vld [vmem:[#allocation2 + $0x1d0] sm:$0xff]
        %v1074 = vld [vmem:[#allocation2 + $0x1d8] sm:$0xff]
        %v1075 = vld [vmem:[#allocation2 + $0x1e0] sm:$0xff]
        %v1076 = vld [vmem:[#allocation2 + $0x1e8] sm:$0xff]
        %v1077 = vld [vmem:[#allocation2 + $0x1f0] sm:$0xff]
        %v1078 = vld [vmem:[#allocation2 + $0x1f8] sm:$0xff]
        %v1079 = vld [vmem:[%s2] sm:$0x1]
        %v1081 = vperm.slane %v1079, 0
        %v1083 = vadd.f32 %v1015, %v1081
        %v1084 = vadd.f32 %v1016, %v1081
        %v1085 = vadd.f32 %v1017, %v1081
        %v1086 = vadd.f32 %v1018, %v1081
        %v1087 = vadd.f32 %v1019, %v1081
        %v1088 = vadd.f32 %v1020, %v1081
        %v1089 = vadd.f32 %v1021, %v1081
        %v1090 = vadd.f32 %v1022, %v1081
        %v1091 = vadd.f32 %v1023, %v1081
        %v1092 = vadd.f32 %v1024, %v1081
        %v1093 = vadd.f32 %v1025, %v1081
        %v1094 = vadd.f32 %v1026, %v1081
        %v1095 = vadd.f32 %v1027, %v1081
        %v1096 = vadd.f32 %v1028, %v1081
        %v1097 = vadd.f32 %v1029, %v1081
        %v1098 = vadd.f32 %v1030, %v1081
        %v1099 = vadd.f32 %v1031, %v1081
        %v1100 = vadd.f32 %v1032, %v1081
        %v1101 = vadd.f32 %v1033, %v1081
        %v1102 = vadd.f32 %v1034, %v1081
        %v1103 = vadd.f32 %v1035, %v1081
        %v1104 = vadd.f32 %v1036, %v1081
        %v1105 = vadd.f32 %v1037, %v1081
        %v1106 = vadd.f32 %v1038, %v1081
        %v1107 = vadd.f32 %v1039, %v1081
        %v1108 = vadd.f32 %v1040, %v1081
        %v1109 = vadd.f32 %v1041, %v1081
        %v1110 = vadd.f32 %v1042, %v1081
        %v1111 = vadd.f32 %v1043, %v1081
        %v1112 = vadd.f32 %v1044, %v1081
        %v1113 = vadd.f32 %v1045, %v1081
        %v1114 = vadd.f32 %v1046, %v1081
        %v1115 = vadd.f32 %v1047, %v1081
        %v1116 = vadd.f32 %v1048, %v1081
        %v1117 = vadd.f32 %v1049, %v1081
        %v1118 = vadd.f32 %v1050, %v1081
        %v1119 = vadd.f32 %v1051, %v1081
        %v1120 = vadd.f32 %v1052, %v1081
        %v1121 = vadd.f32 %v1053, %v1081
        %v1122 = vadd.f32 %v1054, %v1081
        %v1123 = vadd.f32 %v1055, %v1081
        %v1124 = vadd.f32 %v1056, %v1081
        %v1125 = vadd.f32 %v1057, %v1081
        %v1126 = vadd.f32 %v1058, %v1081
        %v1127 = vadd.f32 %v1059, %v1081
        %v1128 = vadd.f32 %v1060, %v1081
        %v1129 = vadd.f32 %v1061, %v1081
        %v1130 = vadd.f32 %v1062, %v1081
        %v1131 = vadd.f32 %v1063, %v1081
        %v1132 = vadd.f32 %v1064, %v1081
        %v1133 = vadd.f32 %v1065, %v1081
        %v1134 = vadd.f32 %v1066, %v1081
        %v1135 = vadd.f32 %v1067, %v1081
        %v1136 = vadd.f32 %v1068, %v1081
        %v1137 = vadd.f32 %v1069, %v1081
        %v1138 = vadd.f32 %v1070, %v1081
        %v1139 = vadd.f32 %v1071, %v1081
        %v1140 = vadd.f32 %v1072, %v1081
        %v1141 = vadd.f32 %v1073, %v1081
        %v1142 = vadd.f32 %v1074, %v1081
        %v1143 = vadd.f32 %v1075, %v1081
        %v1144 = vadd.f32 %v1076, %v1081
        %v1145 = vadd.f32 %v1077, %v1081
        %v1146 = vadd.f32 %v1078, %v1081
        %v1147 = vtanh.pop %v1083
        %v1148 = vtanh.pop %v1084
        %v1149 = vtanh.pop %v1085
        %v1150 = vtanh.pop %v1086
        %v1151 = vtanh.pop %v1087
        %v1152 = vtanh.pop %v1088
        %v1153 = vtanh.pop %v1089
        %v1154 = vtanh.pop %v1090
        %v1155 = vtanh.pop %v1091
        %v1156 = vtanh.pop %v1092
        %v1157 = vtanh.pop %v1093
        %v1158 = vtanh.pop %v1094
        %v1159 = vtanh.pop %v1095
        %v1160 = vtanh.pop %v1096
        %v1161 = vtanh.pop %v1097
        %v1162 = vtanh.pop %v1098
        %v1163 = vtanh.pop %v1099
        %v1164 = vtanh.pop %v1100
        %v1165 = vtanh.pop %v1101
        %v1166 = vtanh.pop %v1102
        %v1167 = vtanh.pop %v1103
        %v1168 = vtanh.pop %v1104
        %v1169 = vtanh.pop %v1105
        %v1170 = vtanh.pop %v1106
        %v1171 = vtanh.pop %v1107
        %v1172 = vtanh.pop %v1108
        %v1173 = vtanh.pop %v1109
        %v1174 = vtanh.pop %v1110
        %v1175 = vtanh.pop %v1111
        %v1176 = vtanh.pop %v1112
        %v1177 = vtanh.pop %v1113
        %v1178 = vtanh.pop %v1114
        %v1179 = vtanh.pop %v1115
        %v1180 = vtanh.pop %v1116
        %v1181 = vtanh.pop %v1117
        %v1182 = vtanh.pop %v1118
        %v1183 = vtanh.pop %v1119
        %v1184 = vtanh.pop %v1120
        %v1185 = vtanh.pop %v1121
        %v1186 = vtanh.pop %v1122
        %v1187 = vtanh.pop %v1123
        %v1188 = vtanh.pop %v1124
        %v1189 = vtanh.pop %v1125
        %v1190 = vtanh.pop %v1126
        %v1191 = vtanh.pop %v1127
        %v1192 = vtanh.pop %v1128
        %v1193 = vtanh.pop %v1129
        %v1194 = vtanh.pop %v1130
        %v1195 = vtanh.pop %v1131
        %v1196 = vtanh.pop %v1132
        %v1197 = vtanh.pop %v1133
        %v1198 = vtanh.pop %v1134
        %v1199 = vtanh.pop %v1135
        %v1200 = vtanh.pop %v1136
        %v1201 = vtanh.pop %v1137
        %v1202 = vtanh.pop %v1138
        %v1203 = vtanh.pop %v1139
        %v1204 = vtanh.pop %v1140
        %v1205 = vtanh.pop %v1141
        %v1206 = vtanh.pop %v1142
        %v1207 = vtanh.pop %v1143
        %v1208 = vtanh.pop %v1144
        %v1209 = vtanh.pop %v1145
        %v1210 = vtanh.pop %v1146
        %1211 = vst.msk [vmem:[%s217] sm:$0xff] %vm947, %v1147
        %1212 = vst.msk [vmem:[%s217 + $0x8] sm:$0xff] %vm947, %v1148
        %1213 = vst.msk [vmem:[%s217 + $0x10] sm:$0xff] %vm947, %v1149
        %1214 = vst.msk [vmem:[%s217 + $0x18] sm:$0xff] %vm947, %v1150
        %1215 = vst.msk [vmem:[%s217 + $0x20] sm:$0xff] %vm947, %v1151
        %1216 = vst.msk [vmem:[%s217 + $0x28] sm:$0xff] %vm947, %v1152
        %1217 = vst.msk [vmem:[%s217 + $0x30] sm:$0xff] %vm947, %v1153
        %1218 = vst.msk [vmem:[%s217 + $0x38] sm:$0xff] %vm947, %v1154
        %1219 = vst.msk [vmem:[%s217 + $0x40] sm:$0xff] %vm947, %v1155
        %1220 = vst.msk [vmem:[%s217 + $0x48] sm:$0xff] %vm947, %v1156
        %1221 = vst.msk [vmem:[%s217 + $0x50] sm:$0xff] %vm947, %v1157
        %1222 = vst.msk [vmem:[%s217 + $0x58] sm:$0xff] %vm947, %v1158
        %1223 = vst.msk [vmem:[%s217 + $0x60] sm:$0xff] %vm947, %v1159
        %1224 = vst.msk [vmem:[%s217 + $0x68] sm:$0xff] %vm947, %v1160
        %1225 = vst.msk [vmem:[%s217 + $0x70] sm:$0xff] %vm947, %v1161
        %1226 = vst.msk [vmem:[%s217 + $0x78] sm:$0xff] %vm947, %v1162
        %1227 = vst.msk [vmem:[%s217 + $0x80] sm:$0xff] %vm947, %v1163
        %1228 = vst.msk [vmem:[%s217 + $0x88] sm:$0xff] %vm947, %v1164
        %1229 = vst.msk [vmem:[%s217 + $0x90] sm:$0xff] %vm947, %v1165
        %1230 = vst.msk [vmem:[%s217 + $0x98] sm:$0xff] %vm947, %v1166
        %1231 = vst.msk [vmem:[%s217 + $0xa0] sm:$0xff] %vm947, %v1167
        %1232 = vst.msk [vmem:[%s217 + $0xa8] sm:$0xff] %vm947, %v1168
        %1233 = vst.msk [vmem:[%s217 + $0xb0] sm:$0xff] %vm947, %v1169
        %1234 = vst.msk [vmem:[%s217 + $0xb8] sm:$0xff] %vm947, %v1170
        %1235 = vst.msk [vmem:[%s217 + $0xc0] sm:$0xff] %vm947, %v1171
        %1236 = vst.msk [vmem:[%s217 + $0xc8] sm:$0xff] %vm947, %v1172
        %1237 = vst.msk [vmem:[%s217 + $0xd0] sm:$0xff] %vm947, %v1173
        %1238 = vst.msk [vmem:[%s217 + $0xd8] sm:$0xff] %vm947, %v1174
        %1239 = vst.msk [vmem:[%s217 + $0xe0] sm:$0xff] %vm947, %v1175
        %1240 = vst.msk [vmem:[%s217 + $0xe8] sm:$0xff] %vm947, %v1176
        %1241 = vst.msk [vmem:[%s217 + $0xf0] sm:$0xff] %vm947, %v1177
        %1242 = vst.msk [vmem:[%s217 + $0xf8] sm:$0xff] %vm947, %v1178
        %1243 = vst.msk [vmem:[%s217 + $0x100] sm:$0xff] %vm947, %v1179
        %1244 = vst.msk [vmem:[%s217 + $0x108] sm:$0xff] %vm947, %v1180
        %1245 = vst.msk [vmem:[%s217 + $0x110] sm:$0xff] %vm947, %v1181
        %1246 = vst.msk [vmem:[%s217 + $0x118] sm:$0xff] %vm947, %v1182
        %1247 = vst.msk [vmem:[%s217 + $0x120] sm:$0xff] %vm947, %v1183
        %1248 = vst.msk [vmem:[%s217 + $0x128] sm:$0xff] %vm947, %v1184
        %1249 = vst.msk [vmem:[%s217 + $0x130] sm:$0xff] %vm947, %v1185
        %1250 = vst.msk [vmem:[%s217 + $0x138] sm:$0xff] %vm947, %v1186
        %1251 = vst.msk [vmem:[%s217 + $0x140] sm:$0xff] %vm947, %v1187
        %1252 = vst.msk [vmem:[%s217 + $0x148] sm:$0xff] %vm947, %v1188
        %1253 = vst.msk [vmem:[%s217 + $0x150] sm:$0xff] %vm947, %v1189
        %1254 = vst.msk [vmem:[%s217 + $0x158] sm:$0xff] %vm947, %v1190
        %1255 = vst.msk [vmem:[%s217 + $0x160] sm:$0xff] %vm947, %v1191
        %1256 = vst.msk [vmem:[%s217 + $0x168] sm:$0xff] %vm947, %v1192
        %1257 = vst.msk [vmem:[%s217 + $0x170] sm:$0xff] %vm947, %v1193
        %1258 = vst.msk [vmem:[%s217 + $0x178] sm:$0xff] %vm947, %v1194
        %1259 = vst.msk [vmem:[%s217 + $0x180] sm:$0xff] %vm947, %v1195
        %1260 = vst.msk [vmem:[%s217 + $0x188] sm:$0xff] %vm947, %v1196
        %1261 = vst.msk [vmem:[%s217 + $0x190] sm:$0xff] %vm947, %v1197
        %1262 = vst.msk [vmem:[%s217 + $0x198] sm:$0xff] %vm947, %v1198
        %1263 = vst.msk [vmem:[%s217 + $0x1a0] sm:$0xff] %vm947, %v1199
        %1264 = vst.msk [vmem:[%s217 + $0x1a8] sm:$0xff] %vm947, %v1200
        %1265 = vst.msk [vmem:[%s217 + $0x1b0] sm:$0xff] %vm947, %v1201
        %1266 = vst.msk [vmem:[%s217 + $0x1b8] sm:$0xff] %vm947, %v1202
        %1267 = vst.msk [vmem:[%s217 + $0x1c0] sm:$0xff] %vm947, %v1203
        %1268 = vst.msk [vmem:[%s217 + $0x1c8] sm:$0xff] %vm947, %v1204
        %1269 = vst.msk [vmem:[%s217 + $0x1d0] sm:$0xff] %vm947, %v1205
        %1270 = vst.msk [vmem:[%s217 + $0x1d8] sm:$0xff] %vm947, %v1206
        %1271 = vst.msk [vmem:[%s217 + $0x1e0] sm:$0xff] %vm947, %v1207
        %1272 = vst.msk [vmem:[%s217 + $0x1e8] sm:$0xff] %vm947, %v1208
        %1273 = vst.msk [vmem:[%s217 + $0x1f0] sm:$0xff] %vm947, %v1209
        %1274 = vst.msk [vmem:[%s217 + $0x1f8] sm:$0xff] %vm947, %v1210
      $region40: #{generator_forward.17} parent=31 // pred_fallthru
        _
      %s1275 = smul.u32 64, %s18
      %p1276 = scmp.lt.s32.totalorder %s1275, 255
      %s1277 = scalar_select %p1276, %s1275, 255
      %s1278 = smul.addr %s1277, 8
      %s1279 = scalar_lea.vmem %s3, %s1278
      // Predicated region
      $region41: #{generator_forward.17} parent=31 // pred_check
        %p1280 = pneg %p119
      $region42: #{generator_forward.17} parent=31 // pred_check_branch
        %1282 = sbr.rel (%p1280) target = $region44
      $region43: #{generator_forward.17} parent=31 // pred_region
        %s1283 = smul.u32 64, %s18
      $region44: #{generator_forward.17} parent=31 // pred_fallthru
        _
    $region32: #{generator_forward.17} parent=5 // pred_fallthru
      _
    %p1284 = scmp.le.s32.totalorder 2, %s9
    // Predicated region
    $region45: #{generator_forward.17} parent=5 // pred_check
      %p1285 = pneg %p1284
    $region46: #{generator_forward.17} parent=5 // pred_check_branch
      %1287 = sbr.rel (%p1285) target = $region48
    $region47: #{generator_forward.17} parent=5 // pred_region
      %s1288 = ssub.s32 %s9, 2
      // Predicated region
      $region49: #{generator_forward.17} parent=47 // pred_check
        %p1289 = pneg %p125
      $region50: #{generator_forward.17} parent=47 // pred_check_branch
        %1291 = sbr.rel (%p1289) target = $region52
      $region51: #{generator_forward.17} parent=47 // pred_region
        %s1292 = smul.u32 64, %s20
        %p1293 = scmp.lt.s32.totalorder %s1292, 255
        %s1294 = scalar_select %p1293, %s1292, 255
        %s1295 = smul.addr %s1294, 8
        %s1296 = scalar_lea.vmem %s3, %s1295
      $region52: #{generator_forward.17} parent=47 // pred_fallthru
        _
    $region48: #{generator_forward.17} parent=5 // pred_fallthru
      _
  $region6: #{generator_forward.17} parent=0 // loop_footer
    %s13 = sadd.s32 1, %s9
  $region7: #{generator_forward.17} parent=0 // loop_footer_branch
    %8 = sbr.rel target = $region3
  $region8: #{generator_forward.17} parent=0 // loop_exit
    _

</llo_original>
